<compile_context>
chip_gen: v7x
topology: tpu7x:2x2x1
jax: 0.10.0
libtpu: 0.0.40
codegen_flags: <defaults>
</compile_context>

<pallas_src>
import functools
import math

import jax
import jax.numpy as jnp
from jax.experimental import pallas as pl
from jax.experimental.pallas import tpu as pltpu

_LANES = 128      # channel dims are zero-padded to this (lane-dense layout)
_HALO_BLK = 8     # sublane-aligned row-halo block fetched from the neighbours
_NEG = -1.0e30    # "-inf" for max-pool padding (SiLU outputs are > -0.279)


# ---------------------------------------------------------------------------
# Small host-side helpers
# ---------------------------------------------------------------------------

def _round_up(x, m):
    return (x + m - 1) // m * m


def _device_kind():
    try:
        return jax.devices()[0].device_kind.lower()
    except Exception:
        return ""


def _default_pool_dtype():
    # v5e and older have no bf16 VALU: pooling in bf16 there would be emulated
    # through pack/unpack, so keep the pool chain in f32 on v5-.
    kind = _device_kind()
    if any(v in kind for v in ("v2", "v3", "v4", "v5")):
        return jnp.float32
    return jnp.bfloat16


def _working_set_bytes(tile_h, W, cin_p, cout_p, pool_dtype, compute_dtype, pw):
    """Rough per-grid-step VMEM footprint of the kernel (bytes)."""
    bc = jnp.dtype(compute_dtype).itemsize
    bp = jnp.dtype(pool_dtype).itemsize
    rows = tile_h + 2 * _HALO_BLK
    x_blk = rows * W * cin_p * bc * 2                  # x tile + halos, 2 bufs
    y_f32 = rows * W * cout_p * 4                      # conv1 output (f32)
    pools = 2 * rows * (W + 2 * pw) * cout_p * bp      # padded buffer + temp
    acc = tile_h * W * cout_p * 4                      # conv2 accumulator
    o_blk = tile_h * W * cout_p * bc * 2               # output tile, 2 bufs
    return x_blk + y_f32 + pools + acc + o_blk


def _choose_tile_h(H, W, cin_p, cout_p, pool_dtype, compute_dtype, pw,
                   budget=24 * 1024 * 1024):
    """Largest multiple-of-8 divisor of H whose working set fits `budget`."""
    if H % 8 != 0:
        return H   # TODO(synk): ragged row tiles for H not a multiple of 8.
    cands = [d for d in range(8, H + 1, 8) if H % d == 0]
    for th in sorted(cands, reverse=True):
        if _working_set_bytes(th, W, cin_p, cout_p, pool_dtype, compute_dtype,
                              pw) <= budget:
            return th
    return cands[0]


def _vmem_limit_bytes(tile_h, W, cin_p, cout_p, p1, pool_dtype, compute_dtype,
                      pw):
    bc = jnp.dtype(compute_dtype).itemsize
    weights = (cin_p * cout_p + p1 * cout_p * cout_p + 2 * cout_p) * bc * 2
    est = _working_set_bytes(tile_h, W, cin_p, cout_p, pool_dtype,
                             compute_dtype, pw) + weights
    cap = (56 if "v7" in _device_kind() else 100) * 1024 * 1024
    return int(min(cap, max(32 * 1024 * 1024, 2 * est)))


# ---------------------------------------------------------------------------
# In-kernel helpers
# ---------------------------------------------------------------------------

def _silu(v):
    # exp and the approximate reciprocal both issue on the EUP slot, leaving
    # the VALU free for the pooling / accumulate work.
    return v * pl.reciprocal(1.0 + jnp.exp(-v), approx=True)


def _maxpool2d_valid(p, k):
    """k x k VALID max-pool (stride 1) of a (R, S, C) tile, C on lanes.

    Separable: W pass first (sublane-offset slices -> XLU relayouts, inherent
    to stride-1 windows), then H pass (leading-dim slices -> free)."""
    R, S, _ = p.shape
    so = S - k + 1
    r = p[:, 0:so, :]
    for d in range(1, k):
        r = jnp.maximum(r, p[:, d:d + so, :])
    ro = R - k + 1
    out = r[0:ro]
    for d in range(1, k):
        out = jnp.maximum(out, r[d:d + ro])
    return out


def _sppf_kernel(x_cur_ref, x_up_ref, x_dn_ref, w1_ref, b1_ref, w2_ref, b2_ref,
                 o_ref, *, pool_sizes, pool_dtype):
    # x_cur_ref: (1, TH, W, Cin_p)   current row tile (bf16)
    # x_up_ref : (1, 8,  W, Cin_p)   8-row halo above (clamped at top edge)
    # x_dn_ref : (1, 8,  W, Cin_p)   8-row halo below (clamped at bottom edge)
    # w1_ref   : (Cin_p, Cout_p)     conv1 weight with BN scale folded in
    # b1_ref   : (1, Cout_p)         conv1 folded BN bias (f32)
    # w2_ref   : (P+1, Cout_p, Cout_p) conv2 weight split per concat branch
    # b2_ref   : (1, Cout_p)         conv2 folded BN bias (f32)
    # o_ref    : (1, TH, W, Cout_p)  bf16 output tile
    t = pl.program_id(1)
    nt = pl.num_programs(1)
    _, th, W, cin_p = x_cur_ref.shape
    hb = x_up_ref.shape[1]
    cout_p = o_ref.shape[3]
    cdt = w2_ref.dtype
    pw = sum(k // 2 for k in pool_sizes)     # total receptive half-width (6)

    # --- conv1 (1x1) + folded BN + SiLU on the tile and both row halos ------
    x_all = jnp.concatenate([x_up_ref[0], x_cur_ref[0], x_dn_ref[0]], axis=0)
    rows = th + 2 * hb
    y = jnp.dot(x_all.reshape(rows * W, cin_p), w1_ref[...],
                preferred_element_type=jnp.float32)
    y = _silu(y + b1_ref[...]).reshape(rows, W, cout_p)          # f32

    # Pool in pool_dtype (bf16 on v6e/v7x; f32 on v5e).  Max is monotone, so
    # pooling the rounded values equals rounding the pooled values.
    yp = y.astype(pool_dtype)

    # --- build the -inf-padded buffer ONCE -----------------------------------
    # Halo rows that fall outside the image (only at the first / last row
    # tile) are pushed to ~-1e30 with a scalar bias add (scalar select ->
    # splat -> add); plus a pw-wide -1e30 column border.  Chained "same"
    # max-pools == chained VALID pools on this single pre-padded buffer.
    top_bias = jnp.where(t == 0, _NEG, 0.0).astype(pool_dtype)
    bot_bias = jnp.where(t == nt - 1, _NEG, 0.0).astype(pool_dtype)
    core = jnp.concatenate(
        [yp[:hb] + top_bias, yp[hb:hb + th], yp[hb + th:] + bot_bias], axis=0)
    padw = jnp.full((rows, pw, cout_p), _NEG, pool_dtype)
    buf = jnp.concatenate([padw, core, padw], axis=1)     # (rows, W+2*pw, C)

    # --- conv2 as a running sum of per-branch partial matmuls ---------------
    # The (.., 4*Cout) concat is never materialized.  Each `acc + dot` pair is
    # adjacent so v7x can fuse the add into the MRB accumulator.
    # TODO(synk): on v6e/v7x (256-deep MXU) branch pairs could be fused into
    # K=2*cout_p dots via a lane-axis concat once cout_p == 128.
    y0 = yp[hb:hb + th].reshape(th * W, cout_p)
    acc = jnp.dot(y0.astype(cdt), w2_ref[0],
                  preferred_element_type=jnp.float32)

    r_off, c_off = hb, pw
    for i, k in enumerate(pool_sizes):
        buf = _maxpool2d_valid(buf, k)
        r_off -= k // 2
        c_off -= k // 2
        br = buf[r_off:r_off + th, c_off:c_off + W, :].reshape(th * W, cout_p)
        acc = acc + jnp.dot(br.astype(cdt), w2_ref[i + 1],
                            preferred_element_type=jnp.float32)

    out = _silu(acc + b2_ref[...])
    o_ref[0] = out.reshape(th, W, cout_p).astype(o_ref.dtype)


# ---------------------------------------------------------------------------
# Wrapper
# ---------------------------------------------------------------------------

def sppf_forward(x_nchw, params, pool_sizes=(5, 5, 5), *,
                 compute_dtype=jnp.bfloat16, pool_dtype=None, tile_h=None,
                 out_dtype=jnp.float32):
    """Fused SPPF forward: (N, Cin, H, W) -> (N, Cout, H, W)."""
    N, cin, H, W = x_nchw.shape
    cout = params["w1"].shape[1]
    p1 = len(pool_sizes) + 1
    pw = sum(k // 2 for k in pool_sizes)
    assert all(k % 2 == 1 for k in pool_sizes), "even pool sizes unsupported"
    assert pw <= _HALO_BLK, "TODO(synk): widen row halo for larger pool stacks"
    assert H >= _HALO_BLK, "TODO(synk): feature maps shorter than 8 rows"

    if pool_dtype is None:
        pool_dtype = _default_pool_dtype()

    # Channel padding to full 128-lane vregs -> dense (unmasked) stores/DMAs.
    # Padded channels stay exactly zero through conv1/SiLU/pool/conv2 and are
    # sliced off below.  A no-op at production channel counts (>=128).
    cin_p = _round_up(cin, _LANES)
    cout_p = _round_up(cout, _LANES)

    # Cast to bf16 BEFORE the layout transpose (halves its HBM traffic).
    x = x_nchw.astype(compute_dtype)
    x = jnp.transpose(x, (0, 2, 3, 1))                          # NCHW -> NHWC
    x = jnp.pad(x, ((0, 0), (0, 0), (0, 0), (0, cin_p - cin)))

    w1 = jnp.pad(params["w1"],
                 ((0, cin_p - cin), (0, cout_p - cout))).astype(compute_dtype)
    w2 = jnp.pad(params["w2"],
                 ((0, 0), (0, cout_p - cout),
                  (0, cout_p - cout))).astype(compute_dtype)
    b1 = jnp.pad(params["b1"], (0, cout_p - cout)).reshape(1, cout_p)
    b1 = b1.astype(jnp.float32)
    b2 = jnp.pad(params["b2"], (0, cout_p - cout)).reshape(1, cout_p)
    b2 = b2.astype(jnp.float32)

    if tile_h is None:
        tile_h = _choose_tile_h(H, W, cin_p, cout_p, pool_dtype, compute_dtype,
                                pw)
    assert H % tile_h == 0 and (tile_h % 8 == 0 or tile_h == H), \
        f"tile_h={tile_h} must divide H={H} and be a multiple of 8"
    nt = H // tile_h
    th8 = max(tile_h // _HALO_BLK, 1)       # tile height in 8-row halo blocks
    h8_last = H // _HALO_BLK - 1            # last fully in-bounds halo block

    kernel = functools.partial(_sppf_kernel, pool_sizes=tuple(pool_sizes),
                               pool_dtype=pool_dtype)
    vmem_limit = _vmem_limit_bytes(tile_h, W, cin_p, cout_p, p1, pool_dtype,
                                   compute_dtype, pw)

    def _run(single_buffer_weights):
        def wspec(shape):
            rank = len(shape)
            kw = ({"pipeline_mode": pl.Buffered(1)}
                  if single_buffer_weights else {})
            return pl.BlockSpec(shape, lambda n, t: (0,) * rank, **kw)

        in_specs = [
            # current row tile of x
            pl.BlockSpec((1, tile_h, W, cin_p), lambda n, t: (n, t, 0, 0)),
            # 8-row halo above (clamped at the top edge; masked in-kernel)
            pl.BlockSpec((1, _HALO_BLK, W, cin_p),
                         lambda n, t: (n, jnp.maximum(t * th8 - 1, 0), 0, 0)),
            # 8-row halo below (clamped at the bottom edge; masked in-kernel)
            pl.BlockSpec((1, _HALO_BLK, W, cin_p),
                         lambda n, t: (n, jnp.minimum((t + 1) * th8, h8_last),
                                       0, 0)),
            wspec((cin_p, cout_p)),       # conv1 weight (BN-folded)
            wspec((1, cout_p)),           # conv1 bias
            wspec((p1, cout_p, cout_p)),  # conv2 weight, split per branch
            wspec((1, cout_p)),           # conv2 bias
        ]
        return pl.pallas_call(
            kernel,
            out_shape=jax.ShapeDtypeStruct((N, H, W, cout_p), compute_dtype),
            grid=(N, nt),
            in_specs=in_specs,
            out_specs=pl.BlockSpec((1, tile_h, W, cout_p),
                                   lambda n, t: (n, t, 0, 0)),
            compiler_params=pltpu.CompilerParams(
                dimension_semantics=("parallel", "parallel"),
                vmem_limit_bytes=vmem_limit,
            ),
        )(x, x, x, w1, b1, w2, b2)

    try:
        # Grid-constant weight blocks only need a single VMEM buffer.
        out = _run(True)
    except Exception:
        # pl.Buffered(1) not supported on this JAX version -> default buffers.
        out = _run(False)

    out = out[..., :cout]                                # drop channel padding
    out = jnp.transpose(out, (0, 3, 1, 2))               # NHWC -> NCHW (bf16)
    return out.astype(out_dtype)


# ---------------------------------------------------------------------------
# Parameter construction (deterministic, synthetic; BN folded offline)
# ---------------------------------------------------------------------------

def _conv1x1_bn_folded(kw_key, kbn_key, cin, cout):
    std = 1.0 / math.sqrt(cin)
    w = std * jax.random.normal(kw_key, (cin, cout), jnp.float32)
    kg, kb = jax.random.split(kbn_key)
    gamma = 1.0 + 0.1 * jax.random.normal(kg, (cout,), jnp.float32)
    beta = 0.1 * jax.random.normal(kb, (cout,), jnp.float32)
    eps = 1e-5
    scale = gamma / jnp.sqrt(1.0 + eps)      # running_var = 1, running_mean = 0
    return w * scale[None, :], beta          # folded weight, bias


def init_sppf_params(key, in_channels, out_channels, pool_sizes=(5, 5, 5)):
    p1 = len(pool_sizes) + 1
    k1, k2, kb1, kb2 = jax.random.split(key, 4)
    w1, b1 = _conv1x1_bn_folded(k1, kb1, in_channels, out_channels)
    w2_full, b2 = _conv1x1_bn_folded(k2, kb2, p1 * out_channels, out_channels)
    # Split conv2's input-channel axis by concat branch: (P1*Cout, Cout) ->
    # (P1, Cout, Cout); branch order matches torch.cat([y0, y1, y2, y3], dim=1).
    w2 = w2_full.reshape(p1, out_channels, out_channels)
    return {"w1": w1, "b1": b1, "w2": w2, "b2": b2}


# ---------------------------------------------------------------------------
# Pure-JAX reference (bf16-rounded matmul inputs, f32 math, exact sigmoid)
# ---------------------------------------------------------------------------

def sppf_reference(x_nchw, params, pool_sizes=(5, 5, 5),
                   compute_dtype=jnp.bfloat16):
    q = lambda a: a.astype(compute_dtype).astype(jnp.float32)
    x = q(jnp.transpose(x_nchw, (0, 2, 3, 1)))                 # NHWC
    w1, w2 = q(params["w1"]), q(params["w2"])
    y = jnp.einsum("nhwc,cd->nhwd", x, w1) + params["b1"]
    y = y * jax.nn.sigmoid(y)
    branches = [y]
    cur = y
    for k in pool_sizes:
        p = k // 2
        cur = jax.lax.reduce_window(
            cur, -jnp.inf, jax.lax.max,
            window_dimensions=(1, k, k, 1), window_strides=(1, 1, 1, 1),
            padding=((0, 0), (p, p), (p, p), (0, 0)))
        branches.append(cur)
    acc = sum(jnp.einsum("nhwc,cd->nhwd", q(b), w2[i])
              for i, b in enumerate(branches))
    out = acc + params["b2"]
    out = out * jax.nn.sigmoid(out)
    return jnp.transpose(out, (0, 3, 1, 2))


# ---------------------------------------------------------------------------

if __name__ == "__main__":
    in_channels, out_channels = 4, 16
    N, H, W = 2, 16, 16
    pool_sizes = (5, 5, 5)

    key = jax.random.PRNGKey(0)
    kx, kp = jax.random.split(key)
    x = jax.random.normal(kx, (N, in_channels, H, W), jnp.float32)
    params = init_sppf_params(kp, in_channels, out_channels, pool_sizes)

    ref = sppf_reference(x, params, pool_sizes)

    # Exercise both the row-tiled path (2 tiles of 8 rows + 8-row halos) and
    # the auto-chosen single-tile path; both must match the reference.
    for th in (8, None):
        out = jax.block_until_ready(
            sppf_forward(x, params, pool_sizes, tile_h=th))
        assert out.shape == (N, out_channels, H, W), out.shape
        assert bool(jnp.all(jnp.isfinite(out)))
        max_err = float(jnp.max(jnp.abs(out - ref)))
        assert max_err < 1e-1, f"tile_h={th}: max abs error {max_err}"

    print("KERNEL_OK")
</pallas_src>

<mosaic_0001>
module attributes {stable_mosaic.version = 11 : i64} {
  func.func @_sppf_kernel(%arg0: i32, %arg1: i32, %arg2: memref<1x8x16x128xbf16, #tpu.memory_space<vmem>>, %arg3: memref<1x8x16x128xbf16, #tpu.memory_space<vmem>>, %arg4: memref<1x8x16x128xbf16, #tpu.memory_space<vmem>>, %arg5: memref<128x128xbf16, #tpu.memory_space<vmem>>, %arg6: memref<1x128xf32, #tpu.memory_space<vmem>>, %arg7: memref<4x128x128xbf16, #tpu.memory_space<vmem>>, %arg8: memref<1x128xf32, #tpu.memory_space<vmem>>, %arg9: memref<1x8x16x128xbf16, #tpu.memory_space<vmem>>) attributes {dimension_semantics = [#tpu.dimension_semantics<parallel>, #tpu.dimension_semantics<parallel>], iteration_bounds = array<i64: 2, 2>, scalar_prefetch = 0 : i64, scratch_operands = 0 : i64, tpu.core_type = #tpu.core_type<tc>, window_params = [{transform_indices = @transform_0, window_bounds = array<i64: 1, 8, 16, 128>}, {transform_indices = @transform_1, window_bounds = array<i64: 1, 8, 16, 128>}, {transform_indices = @transform_2, window_bounds = array<i64: 1, 8, 16, 128>}, {pipeline_mode = #tpu.pipeline_mode<synchronous>, transform_indices = @transform_3, window_bounds = array<i64: 128, 128>}, {pipeline_mode = #tpu.pipeline_mode<synchronous>, transform_indices = @transform_4, window_bounds = array<i64: 1, 128>}, {pipeline_mode = #tpu.pipeline_mode<synchronous>, transform_indices = @transform_5, window_bounds = array<i64: 4, 128, 128>}, {pipeline_mode = #tpu.pipeline_mode<synchronous>, transform_indices = @transform_6, window_bounds = array<i64: 1, 128>}, {transform_indices = @transform_7, window_bounds = array<i64: 1, 8, 16, 128>}]} {
    %c0 = arith.constant 0 : index
    %c0_0 = arith.constant 0 : index
    %c0_1 = arith.constant 0 : index
    %c0_2 = arith.constant 0 : index
    %0 = vector.load %arg3[%c0, %c0_0, %c0_1, %c0_2] : memref<1x8x16x128xbf16, #tpu.memory_space<vmem>>, vector<1x8x16x128xbf16>
    %1 = vector.shape_cast %0 : vector<1x8x16x128xbf16> to vector<8x16x128xbf16>
    %c0_3 = arith.constant 0 : index
    %c0_4 = arith.constant 0 : index
    %c0_5 = arith.constant 0 : index
    %c0_6 = arith.constant 0 : index
    %2 = vector.load %arg2[%c0_3, %c0_4, %c0_5, %c0_6] : memref<1x8x16x128xbf16, #tpu.memory_space<vmem>>, vector<1x8x16x128xbf16>
    %3 = vector.shape_cast %2 : vector<1x8x16x128xbf16> to vector<8x16x128xbf16>
    %c0_7 = arith.constant 0 : index
    %c0_8 = arith.constant 0 : index
    %c0_9 = arith.constant 0 : index
    %c0_10 = arith.constant 0 : index
    %4 = vector.load %arg4[%c0_7, %c0_8, %c0_9, %c0_10] : memref<1x8x16x128xbf16, #tpu.memory_space<vmem>>, vector<1x8x16x128xbf16>
    %5 = vector.shape_cast %4 : vector<1x8x16x128xbf16> to vector<8x16x128xbf16>
    %6 = tpu.concatenate %1, %3, %5 in 0 : vector<8x16x128xbf16>, vector<8x16x128xbf16>, vector<8x16x128xbf16> -> vector<24x16x128xbf16>
    %7 = vector.shape_cast %6 : vector<24x16x128xbf16> to vector<384x128xbf16>
    %c0_11 = arith.constant 0 : index
    %c0_12 = arith.constant 0 : index
    %8 = vector.load %arg5[%c0_11, %c0_12] : memref<128x128xbf16, #tpu.memory_space<vmem>>, vector<128x128xbf16>
    %cst = arith.constant dense<0.000000e+00> : vector<384x128xf32>
    %9 = tpu.matmul %7, %8, %cst {dimension_numbers = #tpu.dot_dimension_numbers<[1], [0], [0], [1], [0, 0, 1, 1], [], []>} : vector<384x128xbf16>, vector<128x128xbf16>, vector<384x128xf32> -> vector<384x128xf32>
    %c0_13 = arith.constant 0 : index
    %c0_14 = arith.constant 0 : index
    %10 = vector.load %arg6[%c0_13, %c0_14] : memref<1x128xf32, #tpu.memory_space<vmem>>, vector<1x128xf32>
    %11 = vector.broadcast %10 : vector<1x128xf32> to vector<384x128xf32>
    %12 = arith.addf %9, %11 : vector<384x128xf32>
    %cst_15 = arith.constant 0.000000e+00 : f32
    %13 = vector.broadcast %cst_15 : f32 to vector<384x128xf32>
    %14 = arith.subf %13, %12 : vector<384x128xf32>
    %15 = math.exp %14 : vector<384x128xf32>
    %cst_16 = arith.constant 1.000000e+00 : f32
    %16 = vector.broadcast %cst_16 : f32 to vector<384x128xf32>
    %17 = arith.addf %16, %15 : vector<384x128xf32>
    %18 = tpu.reciprocal %17 {approx = true} : vector<384x128xf32> -> vector<384x128xf32>
    %19 = arith.mulf %12, %18 : vector<384x128xf32>
    %20 = vector.shape_cast %19 : vector<384x128xf32> to vector<24x16x128xf32>
    %21 = arith.truncf %20 : vector<24x16x128xf32> to vector<24x16x128xbf16>
    %c0_i32 = arith.constant 0 : i32
    %22 = arith.cmpi eq, %arg1, %c0_i32 : i32
    %cst_17 = arith.constant -1.000000e+30 : f32
    %cst_18 = arith.constant 0.000000e+00 : f32
    %23 = arith.select %22, %cst_17, %cst_18 : f32
    %24 = arith.truncf %23 : f32 to bf16
    %c1_i32 = arith.constant 1 : i32
    %25 = arith.cmpi eq, %arg1, %c1_i32 : i32
    %cst_19 = arith.constant -1.000000e+30 : f32
    %cst_20 = arith.constant 0.000000e+00 : f32
    %26 = arith.select %25, %cst_19, %cst_20 : f32
    %27 = arith.truncf %26 : f32 to bf16
    %28 = vector.extract_strided_slice %21 {offsets = [0, 0, 0], sizes = [8, 16, 128], strides = [1, 1, 1]} : vector<24x16x128xbf16> to vector<8x16x128xbf16>
    %29 = vector.broadcast %24 : bf16 to vector<8x16x128xbf16>
    %30 = arith.addf %28, %29 : vector<8x16x128xbf16>
    %31 = vector.extract_strided_slice %21 {offsets = [8, 0, 0], sizes = [8, 16, 128], strides = [1, 1, 1]} : vector<24x16x128xbf16> to vector<8x16x128xbf16>
    %32 = vector.extract_strided_slice %21 {offsets = [16, 0, 0], sizes = [8, 16, 128], strides = [1, 1, 1]} : vector<24x16x128xbf16> to vector<8x16x128xbf16>
    %33 = vector.broadcast %27 : bf16 to vector<8x16x128xbf16>
    %34 = arith.addf %32, %33 : vector<8x16x128xbf16>
    %35 = tpu.concatenate %30, %31, %34 in 0 : vector<8x16x128xbf16>, vector<8x16x128xbf16>, vector<8x16x128xbf16> -> vector<24x16x128xbf16>
    %cst_21 = arith.constant -1.000260e+30 : bf16
    %36 = vector.broadcast %cst_21 : bf16 to vector<24x6x128xbf16>
    %37 = tpu.concatenate %36, %35, %36 in 1 : vector<24x6x128xbf16>, vector<24x16x128xbf16>, vector<24x6x128xbf16> -> vector<24x28x128xbf16>
    %38 = vector.extract_strided_slice %21 {offsets = [8, 0, 0], sizes = [8, 16, 128], strides = [1, 1, 1]} : vector<24x16x128xbf16> to vector<8x16x128xbf16>
    %39 = vector.shape_cast %38 : vector<8x16x128xbf16> to vector<128x128xbf16>
    %c0_22 = arith.constant 0 : index
    %c0_23 = arith.constant 0 : index
    %c0_24 = arith.constant 0 : index
    %40 = vector.load %arg7[%c0_22, %c0_23, %c0_24] : memref<4x128x128xbf16, #tpu.memory_space<vmem>>, vector<1x128x128xbf16>
    %41 = vector.shape_cast %40 : vector<1x128x128xbf16> to vector<128x128xbf16>
    %cst_25 = arith.constant dense<0.000000e+00> : vector<128x128xf32>
    %42 = tpu.matmul %39, %41, %cst_25 {dimension_numbers = #tpu.dot_dimension_numbers<[1], [0], [0], [1], [0, 0, 1, 1], [], []>} : vector<128x128xbf16>, vector<128x128xbf16>, vector<128x128xf32> -> vector<128x128xf32>
    %43 = vector.extract_strided_slice %37 {offsets = [0, 0, 0], sizes = [24, 24, 128], strides = [1, 1, 1]} : vector<24x28x128xbf16> to vector<24x24x128xbf16>
    %44 = vector.extract_strided_slice %37 {offsets = [0, 1, 0], sizes = [24, 24, 128], strides = [1, 1, 1]} : vector<24x28x128xbf16> to vector<24x24x128xbf16>
    %45 = arith.maximumf %43, %44 : vector<24x24x128xbf16>
    %46 = vector.extract_strided_slice %37 {offsets = [0, 2, 0], sizes = [24, 24, 128], strides = [1, 1, 1]} : vector<24x28x128xbf16> to vector<24x24x128xbf16>
    %47 = arith.maximumf %45, %46 : vector<24x24x128xbf16>
    %48 = vector.extract_strided_slice %37 {offsets = [0, 3, 0], sizes = [24, 24, 128], strides = [1, 1, 1]} : vector<24x28x128xbf16> to vector<24x24x128xbf16>
    %49 = arith.maximumf %47, %48 : vector<24x24x128xbf16>
    %50 = vector.extract_strided_slice %37 {offsets = [0, 4, 0], sizes = [24, 24, 128], strides = [1, 1, 1]} : vector<24x28x128xbf16> to vector<24x24x128xbf16>
    %51 = arith.maximumf %49, %50 : vector<24x24x128xbf16>
    %52 = vector.extract_strided_slice %51 {offsets = [0, 0, 0], sizes = [20, 24, 128], strides = [1, 1, 1]} : vector<24x24x128xbf16> to vector<20x24x128xbf16>
    %53 = vector.extract_strided_slice %51 {offsets = [1, 0, 0], sizes = [20, 24, 128], strides = [1, 1, 1]} : vector<24x24x128xbf16> to vector<20x24x128xbf16>
    %54 = arith.maximumf %52, %53 : vector<20x24x128xbf16>
    %55 = vector.extract_strided_slice %51 {offsets = [2, 0, 0], sizes = [20, 24, 128], strides = [1, 1, 1]} : vector<24x24x128xbf16> to vector<20x24x128xbf16>
    %56 = arith.maximumf %54, %55 : vector<20x24x128xbf16>
    %57 = vector.extract_strided_slice %51 {offsets = [3, 0, 0], sizes = [20, 24, 128], strides = [1, 1, 1]} : vector<24x24x128xbf16> to vector<20x24x128xbf16>
    %58 = arith.maximumf %56, %57 : vector<20x24x128xbf16>
    %59 = vector.extract_strided_slice %51 {offsets = [4, 0, 0], sizes = [20, 24, 128], strides = [1, 1, 1]} : vector<24x24x128xbf16> to vector<20x24x128xbf16>
    %60 = arith.maximumf %58, %59 : vector<20x24x128xbf16>
    %61 = vector.extract_strided_slice %60 {offsets = [6, 4, 0], sizes = [8, 16, 128], strides = [1, 1, 1]} : vector<20x24x128xbf16> to vector<8x16x128xbf16>
    %62 = vector.shape_cast %61 : vector<8x16x128xbf16> to vector<128x128xbf16>
    %c1 = arith.constant 1 : index
    %c0_26 = arith.constant 0 : index
    %c0_27 = arith.constant 0 : index
    %63 = vector.load %arg7[%c1, %c0_26, %c0_27] : memref<4x128x128xbf16, #tpu.memory_space<vmem>>, vector<1x128x128xbf16>
    %64 = vector.shape_cast %63 : vector<1x128x128xbf16> to vector<128x128xbf16>
    %cst_28 = arith.constant dense<0.000000e+00> : vector<128x128xf32>
    %65 = tpu.matmul %62, %64, %cst_28 {dimension_numbers = #tpu.dot_dimension_numbers<[1], [0], [0], [1], [0, 0, 1, 1], [], []>} : vector<128x128xbf16>, vector<128x128xbf16>, vector<128x128xf32> -> vector<128x128xf32>
    %66 = arith.addf %42, %65 : vector<128x128xf32>
    %67 = vector.extract_strided_slice %60 {offsets = [0, 0, 0], sizes = [20, 20, 128], strides = [1, 1, 1]} : vector<20x24x128xbf16> to vector<20x20x128xbf16>
    %68 = vector.extract_strided_slice %60 {offsets = [0, 1, 0], sizes = [20, 20, 128], strides = [1, 1, 1]} : vector<20x24x128xbf16> to vector<20x20x128xbf16>
    %69 = arith.maximumf %67, %68 : vector<20x20x128xbf16>
    %70 = vector.extract_strided_slice %60 {offsets = [0, 2, 0], sizes = [20, 20, 128], strides = [1, 1, 1]} : vector<20x24x128xbf16> to vector<20x20x128xbf16>
    %71 = arith.maximumf %69, %70 : vector<20x20x128xbf16>
    %72 = vector.extract_strided_slice %60 {offsets = [0, 3, 0], sizes = [20, 20, 128], strides = [1, 1, 1]} : vector<20x24x128xbf16> to vector<20x20x128xbf16>
    %73 = arith.maximumf %71, %72 : vector<20x20x128xbf16>
    %74 = vector.extract_strided_slice %60 {offsets = [0, 4, 0], sizes = [20, 20, 128], strides = [1, 1, 1]} : vector<20x24x128xbf16> to vector<20x20x128xbf16>
    %75 = arith.maximumf %73, %74 : vector<20x20x128xbf16>
    %76 = vector.extract_strided_slice %75 {offsets = [0, 0, 0], sizes = [16, 20, 128], strides = [1, 1, 1]} : vector<20x20x128xbf16> to vector<16x20x128xbf16>
    %77 = vector.extract_strided_slice %75 {offsets = [1, 0, 0], sizes = [16, 20, 128], strides = [1, 1, 1]} : vector<20x20x128xbf16> to vector<16x20x128xbf16>
    %78 = arith.maximumf %76, %77 : vector<16x20x128xbf16>
    %79 = vector.extract_strided_slice %75 {offsets = [2, 0, 0], sizes = [16, 20, 128], strides = [1, 1, 1]} : vector<20x20x128xbf16> to vector<16x20x128xbf16>
    %80 = arith.maximumf %78, %79 : vector<16x20x128xbf16>
    %81 = vector.extract_strided_slice %75 {offsets = [3, 0, 0], sizes = [16, 20, 128], strides = [1, 1, 1]} : vector<20x20x128xbf16> to vector<16x20x128xbf16>
    %82 = arith.maximumf %80, %81 : vector<16x20x128xbf16>
    %83 = vector.extract_strided_slice %75 {offsets = [4, 0, 0], sizes = [16, 20, 128], strides = [1, 1, 1]} : vector<20x20x128xbf16> to vector<16x20x128xbf16>
    %84 = arith.maximumf %82, %83 : vector<16x20x128xbf16>
    %85 = vector.extract_strided_slice %84 {offsets = [4, 2, 0], sizes = [8, 16, 128], strides = [1, 1, 1]} : vector<16x20x128xbf16> to vector<8x16x128xbf16>
    %86 = vector.shape_cast %85 : vector<8x16x128xbf16> to vector<128x128xbf16>
    %c2 = arith.constant 2 : index
    %c0_29 = arith.constant 0 : index
    %c0_30 = arith.constant 0 : index
    %87 = vector.load %arg7[%c2, %c0_29, %c0_30] : memref<4x128x128xbf16, #tpu.memory_space<vmem>>, vector<1x128x128xbf16>
    %88 = vector.shape_cast %87 : vector<1x128x128xbf16> to vector<128x128xbf16>
    %cst_31 = arith.constant dense<0.000000e+00> : vector<128x128xf32>
    %89 = tpu.matmul %86, %88, %cst_31 {dimension_numbers = #tpu.dot_dimension_numbers<[1], [0], [0], [1], [0, 0, 1, 1], [], []>} : vector<128x128xbf16>, vector<128x128xbf16>, vector<128x128xf32> -> vector<128x128xf32>
    %90 = arith.addf %66, %89 : vector<128x128xf32>
    %91 = vector.extract_strided_slice %84 {offsets = [0, 0, 0], sizes = [16, 16, 128], strides = [1, 1, 1]} : vector<16x20x128xbf16> to vector<16x16x128xbf16>
    %92 = vector.extract_strided_slice %84 {offsets = [0, 1, 0], sizes = [16, 16, 128], strides = [1, 1, 1]} : vector<16x20x128xbf16> to vector<16x16x128xbf16>
    %93 = arith.maximumf %91, %92 : vector<16x16x128xbf16>
    %94 = vector.extract_strided_slice %84 {offsets = [0, 2, 0], sizes = [16, 16, 128], strides = [1, 1, 1]} : vector<16x20x128xbf16> to vector<16x16x128xbf16>
    %95 = arith.maximumf %93, %94 : vector<16x16x128xbf16>
    %96 = vector.extract_strided_slice %84 {offsets = [0, 3, 0], sizes = [16, 16, 128], strides = [1, 1, 1]} : vector<16x20x128xbf16> to vector<16x16x128xbf16>
    %97 = arith.maximumf %95, %96 : vector<16x16x128xbf16>
    %98 = vector.extract_strided_slice %84 {offsets = [0, 4, 0], sizes = [16, 16, 128], strides = [1, 1, 1]} : vector<16x20x128xbf16> to vector<16x16x128xbf16>
    %99 = arith.maximumf %97, %98 : vector<16x16x128xbf16>
    %100 = vector.extract_strided_slice %99 {offsets = [0, 0, 0], sizes = [12, 16, 128], strides = [1, 1, 1]} : vector<16x16x128xbf16> to vector<12x16x128xbf16>
    %101 = vector.extract_strided_slice %99 {offsets = [1, 0, 0], sizes = [12, 16, 128], strides = [1, 1, 1]} : vector<16x16x128xbf16> to vector<12x16x128xbf16>
    %102 = arith.maximumf %100, %101 : vector<12x16x128xbf16>
    %103 = vector.extract_strided_slice %99 {offsets = [2, 0, 0], sizes = [12, 16, 128], strides = [1, 1, 1]} : vector<16x16x128xbf16> to vector<12x16x128xbf16>
    %104 = arith.maximumf %102, %103 : vector<12x16x128xbf16>
    %105 = vector.extract_strided_slice %99 {offsets = [3, 0, 0], sizes = [12, 16, 128], strides = [1, 1, 1]} : vector<16x16x128xbf16> to vector<12x16x128xbf16>
    %106 = arith.maximumf %104, %105 : vector<12x16x128xbf16>
    %107 = vector.extract_strided_slice %99 {offsets = [4, 0, 0], sizes = [12, 16, 128], strides = [1, 1, 1]} : vector<16x16x128xbf16> to vector<12x16x128xbf16>
    %108 = arith.maximumf %106, %107 : vector<12x16x128xbf16>
    %109 = vector.extract_strided_slice %108 {offsets = [2, 0, 0], sizes = [8, 16, 128], strides = [1, 1, 1]} : vector<12x16x128xbf16> to vector<8x16x128xbf16>
    %110 = vector.shape_cast %109 : vector<8x16x128xbf16> to vector<128x128xbf16>
    %c3 = arith.constant 3 : index
    %c0_32 = arith.constant 0 : index
    %c0_33 = arith.constant 0 : index
    %111 = vector.load %arg7[%c3, %c0_32, %c0_33] : memref<4x128x128xbf16, #tpu.memory_space<vmem>>, vector<1x128x128xbf16>
    %112 = vector.shape_cast %111 : vector<1x128x128xbf16> to vector<128x128xbf16>
    %cst_34 = arith.constant dense<0.000000e+00> : vector<128x128xf32>
    %113 = tpu.matmul %110, %112, %cst_34 {dimension_numbers = #tpu.dot_dimension_numbers<[1], [0], [0], [1], [0, 0, 1, 1], [], []>} : vector<128x128xbf16>, vector<128x128xbf16>, vector<128x128xf32> -> vector<128x128xf32>
    %114 = arith.addf %90, %113 : vector<128x128xf32>
    %c0_35 = arith.constant 0 : index
    %c0_36 = arith.constant 0 : index
    %115 = vector.load %arg8[%c0_35, %c0_36] : memref<1x128xf32, #tpu.memory_space<vmem>>, vector<1x128xf32>
    %116 = vector.broadcast %115 : vector<1x128xf32> to vector<128x128xf32>
    %117 = arith.addf %114, %116 : vector<128x128xf32>
    %cst_37 = arith.constant 0.000000e+00 : f32
    %118 = vector.broadcast %cst_37 : f32 to vector<128x128xf32>
    %119 = arith.subf %118, %117 : vector<128x128xf32>
    %120 = math.exp %119 : vector<128x128xf32>
    %cst_38 = arith.constant 1.000000e+00 : f32
    %121 = vector.broadcast %cst_38 : f32 to vector<128x128xf32>
    %122 = arith.addf %121, %120 : vector<128x128xf32>
    %123 = tpu.reciprocal %122 {approx = true} : vector<128x128xf32> -> vector<128x128xf32>
    %124 = arith.mulf %117, %123 : vector<128x128xf32>
    %125 = vector.shape_cast %124 : vector<128x128xf32> to vector<8x16x128xf32>
    %126 = arith.truncf %125 : vector<8x16x128xf32> to vector<8x16x128xbf16>
    %c0_39 = arith.constant 0 : index
    %c0_40 = arith.constant 0 : index
    %c0_41 = arith.constant 0 : index
    %c0_42 = arith.constant 0 : index
    %127 = vector.load %arg9[%c0_39, %c0_40, %c0_41, %c0_42] : memref<1x8x16x128xbf16, #tpu.memory_space<vmem>>, vector<1x8x16x128xbf16>
    %128 = vector.shape_cast %127 : vector<1x8x16x128xbf16> to vector<8x16x128xbf16>
    %129 = vector.shape_cast %126 : vector<8x16x128xbf16> to vector<1x8x16x128xbf16>
    tpu.vector_store %arg9[%c0_39, %c0_40, %c0_41, %c0_42], %129 {strides = array<i32>} : memref<1x8x16x128xbf16, #tpu.memory_space<vmem>>, vector<1x8x16x128xbf16>,
    return
  }
  func.func @transform_0(%arg0: i32, %arg1: i32) -> (i32, i32, i32, i32) {
    %c0_i32 = arith.constant 0 : i32
    %c0_i32_0 = arith.constant 0 : i32
    %c0_i32_1 = arith.constant 0 : i32
    return %arg0, %arg1, %c0_i32, %c0_i32_0 : i32, i32, i32, i32
  }
  func.func @transform_1(%arg0: i32, %arg1: i32) -> (i32, i32, i32, i32) {
    %c1_i32 = arith.constant 1 : i32
    %0 = arith.muli %arg1, %c1_i32 : i32
    %c1_i32_0 = arith.constant 1 : i32
    %1 = arith.subi %0, %c1_i32_0 : i32
    %c0_i32 = arith.constant 0 : i32
    %2 = arith.maxsi %1, %c0_i32 : i32
    %c0_i32_1 = arith.constant 0 : i32
    %c0_i32_2 = arith.constant 0 : i32
    %c0_i32_3 = arith.constant 0 : i32
    return %arg0, %2, %c0_i32_1, %c0_i32_2 : i32, i32, i32, i32
  }
  func.func @transform_2(%arg0: i32, %arg1: i32) -> (i32, i32, i32, i32) {
    %c1_i32 = arith.constant 1 : i32
    %0 = arith.addi %arg1, %c1_i32 : i32
    %c1_i32_0 = arith.constant 1 : i32
    %1 = arith.muli %0, %c1_i32_0 : i32
    %c1_i32_1 = arith.constant 1 : i32
    %2 = arith.minsi %1, %c1_i32_1 : i32
    %c0_i32 = arith.constant 0 : i32
    %c0_i32_2 = arith.constant 0 : i32
    %c0_i32_3 = arith.constant 0 : i32
    return %arg0, %2, %c0_i32, %c0_i32_2 : i32, i32, i32, i32
  }
  func.func @transform_3(%arg0: i32, %arg1: i32) -> (i32, i32) {
    %c0_i32 = arith.constant 0 : i32
    %c0_i32_0 = arith.constant 0 : i32
    %c0_i32_1 = arith.constant 0 : i32
    return %c0_i32, %c0_i32_0 : i32, i32
  }
  func.func @transform_4(%arg0: i32, %arg1: i32) -> (i32, i32) {
    %c0_i32 = arith.constant 0 : i32
    %c0_i32_0 = arith.constant 0 : i32
    %c0_i32_1 = arith.constant 0 : i32
    return %c0_i32, %c0_i32_0 : i32, i32
  }
  func.func @transform_5(%arg0: i32, %arg1: i32) -> (i32, i32, i32) {
    %c0_i32 = arith.constant 0 : i32
    %c0_i32_0 = arith.constant 0 : i32
    %c0_i32_1 = arith.constant 0 : i32
    %c0_i32_2 = arith.constant 0 : i32
    return %c0_i32, %c0_i32_0, %c0_i32_1 : i32, i32, i32
  }
  func.func @transform_6(%arg0: i32, %arg1: i32) -> (i32, i32) {
    %c0_i32 = arith.constant 0 : i32
    %c0_i32_0 = arith.constant 0 : i32
    %c0_i32_1 = arith.constant 0 : i32
    return %c0_i32, %c0_i32_0 : i32, i32
  }
  func.func @transform_7(%arg0: i32, %arg1: i32) -> (i32, i32, i32, i32) {
    %c0_i32 = arith.constant 0 : i32
    %c0_i32_0 = arith.constant 0 : i32
    %c0_i32_1 = arith.constant 0 : i32
    return %arg0, %arg1, %c0_i32, %c0_i32_0 : i32, i32, i32, i32
  }
}

module attributes {stable_mosaic.version = 11 : i64} {
  func.func @_sppf_kernel(%arg0: i32, %arg1: i32, %arg2: memref<1x8x16x128xbf16, #tpu.memory_space<vmem>>, %arg3: memref<1x8x16x128xbf16, #tpu.memory_space<vmem>>, %arg4: memref<1x8x16x128xbf16, #tpu.memory_space<vmem>>, %arg5: memref<128x128xbf16, #tpu.memory_space<vmem>>, %arg6: memref<1x128xf32, #tpu.memory_space<vmem>>, %arg7: memref<4x128x128xbf16, #tpu.memory_space<vmem>>, %arg8: memref<1x128xf32, #tpu.memory_space<vmem>>, %arg9: memref<1x8x16x128xbf16, #tpu.memory_space<vmem>>) attributes {dimension_semantics = [#tpu.dimension_semantics<parallel>, #tpu.dimension_semantics<parallel>], iteration_bounds = array<i64: 2, 2>, scalar_prefetch = 0 : i64, scratch_operands = 0 : i64, tpu.core_type = #tpu.core_type<tc>, window_params = [{transform_indices = @transform_0, window_bounds = array<i64: 1, 8, 16, 128>}, {transform_indices = @transform_1, window_bounds = array<i64: 1, 8, 16, 128>}, {transform_indices = @transform_2, window_bounds = array<i64: 1, 8, 16, 128>}, {pipeline_mode = #tpu.pipeline_mode<synchronous>, transform_indices = @transform_3, window_bounds = array<i64: 128, 128>}, {pipeline_mode = #tpu.pipeline_mode<synchronous>, transform_indices = @transform_4, window_bounds = array<i64: 1, 128>}, {pipeline_mode = #tpu.pipeline_mode<synchronous>, transform_indices = @transform_5, window_bounds = array<i64: 4, 128, 128>}, {pipeline_mode = #tpu.pipeline_mode<synchronous>, transform_indices = @transform_6, window_bounds = array<i64: 1, 128>}, {transform_indices = @transform_7, window_bounds = array<i64: 1, 8, 16, 128>}]} {
    %c0 = arith.constant 0 : index
    %c0_0 = arith.constant 0 : index
    %c0_1 = arith.constant 0 : index
    %c0_2 = arith.constant 0 : index
    %0 = vector.load %arg3[%c0, %c0_0, %c0_1, %c0_2] : memref<1x8x16x128xbf16, #tpu.memory_space<vmem>>, vector<1x8x16x128xbf16>
    %1 = vector.shape_cast %0 : vector<1x8x16x128xbf16> to vector<8x16x128xbf16>
    %c0_3 = arith.constant 0 : index
    %c0_4 = arith.constant 0 : index
    %c0_5 = arith.constant 0 : index
    %c0_6 = arith.constant 0 : index
    %2 = vector.load %arg2[%c0_3, %c0_4, %c0_5, %c0_6] : memref<1x8x16x128xbf16, #tpu.memory_space<vmem>>, vector<1x8x16x128xbf16>
    %3 = vector.shape_cast %2 : vector<1x8x16x128xbf16> to vector<8x16x128xbf16>
    %c0_7 = arith.constant 0 : index
    %c0_8 = arith.constant 0 : index
    %c0_9 = arith.constant 0 : index
    %c0_10 = arith.constant 0 : index
    %4 = vector.load %arg4[%c0_7, %c0_8, %c0_9, %c0_10] : memref<1x8x16x128xbf16, #tpu.memory_space<vmem>>, vector<1x8x16x128xbf16>
    %5 = vector.shape_cast %4 : vector<1x8x16x128xbf16> to vector<8x16x128xbf16>
    %6 = tpu.concatenate %1, %3, %5 in 0 : vector<8x16x128xbf16>, vector<8x16x128xbf16>, vector<8x16x128xbf16> -> vector<24x16x128xbf16>
    %7 = vector.shape_cast %6 : vector<24x16x128xbf16> to vector<384x128xbf16>
    %c0_11 = arith.constant 0 : index
    %c0_12 = arith.constant 0 : index
    %8 = vector.load %arg5[%c0_11, %c0_12] : memref<128x128xbf16, #tpu.memory_space<vmem>>, vector<128x128xbf16>
    %cst = arith.constant dense<0.000000e+00> : vector<384x128xf32>
    %9 = tpu.matmul %7, %8, %cst {dimension_numbers = #tpu.dot_dimension_numbers<[1], [0], [0], [1], [0, 0, 1, 1], [], []>} : vector<384x128xbf16>, vector<128x128xbf16>, vector<384x128xf32> -> vector<384x128xf32>
    %c0_13 = arith.constant 0 : index
    %c0_14 = arith.constant 0 : index
    %10 = vector.load %arg6[%c0_13, %c0_14] : memref<1x128xf32, #tpu.memory_space<vmem>>, vector<1x128xf32>
    %11 = vector.broadcast %10 : vector<1x128xf32> to vector<384x128xf32>
    %12 = arith.addf %9, %11 : vector<384x128xf32>
    %cst_15 = arith.constant 0.000000e+00 : f32
    %13 = vector.broadcast %cst_15 : f32 to vector<384x128xf32>
    %14 = arith.subf %13, %12 : vector<384x128xf32>
    %15 = math.exp %14 : vector<384x128xf32>
    %cst_16 = arith.constant 1.000000e+00 : f32
    %16 = vector.broadcast %cst_16 : f32 to vector<384x128xf32>
    %17 = arith.addf %16, %15 : vector<384x128xf32>
    %18 = tpu.reciprocal %17 {approx = true} : vector<384x128xf32> -> vector<384x128xf32>
    %19 = arith.mulf %12, %18 : vector<384x128xf32>
    %20 = vector.shape_cast %19 : vector<384x128xf32> to vector<24x16x128xf32>
    %21 = arith.truncf %20 : vector<24x16x128xf32> to vector<24x16x128xbf16>
    %c0_i32 = arith.constant 0 : i32
    %22 = arith.cmpi eq, %arg1, %c0_i32 : i32
    %cst_17 = arith.constant -1.000000e+30 : f32
    %cst_18 = arith.constant 0.000000e+00 : f32
    %23 = arith.select %22, %cst_17, %cst_18 : f32
    %24 = arith.truncf %23 : f32 to bf16
    %c1_i32 = arith.constant 1 : i32
    %25 = arith.cmpi eq, %arg1, %c1_i32 : i32
    %cst_19 = arith.constant -1.000000e+30 : f32
    %cst_20 = arith.constant 0.000000e+00 : f32
    %26 = arith.select %25, %cst_19, %cst_20 : f32
    %27 = arith.truncf %26 : f32 to bf16
    %28 = vector.extract_strided_slice %21 {offsets = [0, 0, 0], sizes = [8, 16, 128], strides = [1, 1, 1]} : vector<24x16x128xbf16> to vector<8x16x128xbf16>
    %29 = vector.broadcast %24 : bf16 to vector<8x16x128xbf16>
    %30 = arith.addf %28, %29 : vector<8x16x128xbf16>
    %31 = vector.extract_strided_slice %21 {offsets = [8, 0, 0], sizes = [8, 16, 128], strides = [1, 1, 1]} : vector<24x16x128xbf16> to vector<8x16x128xbf16>
    %32 = vector.extract_strided_slice %21 {offsets = [16, 0, 0], sizes = [8, 16, 128], strides = [1, 1, 1]} : vector<24x16x128xbf16> to vector<8x16x128xbf16>
    %33 = vector.broadcast %27 : bf16 to vector<8x16x128xbf16>
    %34 = arith.addf %32, %33 : vector<8x16x128xbf16>
    %35 = tpu.concatenate %30, %31, %34 in 0 : vector<8x16x128xbf16>, vector<8x16x128xbf16>, vector<8x16x128xbf16> -> vector<24x16x128xbf16>
    %cst_21 = arith.constant -1.000260e+30 : bf16
    %36 = vector.broadcast %cst_21 : bf16 to vector<24x6x128xbf16>
    %37 = tpu.concatenate %36, %35, %36 in 1 : vector<24x6x128xbf16>, vector<24x16x128xbf16>, vector<24x6x128xbf16> -> vector<24x28x128xbf16>
    %38 = vector.extract_strided_slice %21 {offsets = [8, 0, 0], sizes = [8, 16, 128], strides = [1, 1, 1]} : vector<24x16x128xbf16> to vector<8x16x128xbf16>
    %39 = vector.shape_cast %38 : vector<8x16x128xbf16> to vector<128x128xbf16>
    %c0_22 = arith.constant 0 : index
    %c0_23 = arith.constant 0 : index
    %c0_24 = arith.constant 0 : index
    %40 = vector.load %arg7[%c0_22, %c0_23, %c0_24] : memref<4x128x128xbf16, #tpu.memory_space<vmem>>, vector<1x128x128xbf16>
    %41 = vector.shape_cast %40 : vector<1x128x128xbf16> to vector<128x128xbf16>
    %cst_25 = arith.constant dense<0.000000e+00> : vector<128x128xf32>
    %42 = tpu.matmul %39, %41, %cst_25 {dimension_numbers = #tpu.dot_dimension_numbers<[1], [0], [0], [1], [0, 0, 1, 1], [], []>} : vector<128x128xbf16>, vector<128x128xbf16>, vector<128x128xf32> -> vector<128x128xf32>
    %43 = vector.extract_strided_slice %37 {offsets = [0, 0, 0], sizes = [24, 24, 128], strides = [1, 1, 1]} : vector<24x28x128xbf16> to vector<24x24x128xbf16>
    %44 = vector.extract_strided_slice %37 {offsets = [0, 1, 0], sizes = [24, 24, 128], strides = [1, 1, 1]} : vector<24x28x128xbf16> to vector<24x24x128xbf16>
    %45 = arith.maximumf %43, %44 : vector<24x24x128xbf16>
    %46 = vector.extract_strided_slice %37 {offsets = [0, 2, 0], sizes = [24, 24, 128], strides = [1, 1, 1]} : vector<24x28x128xbf16> to vector<24x24x128xbf16>
    %47 = arith.maximumf %45, %46 : vector<24x24x128xbf16>
    %48 = vector.extract_strided_slice %37 {offsets = [0, 3, 0], sizes = [24, 24, 128], strides = [1, 1, 1]} : vector<24x28x128xbf16> to vector<24x24x128xbf16>
    %49 = arith.maximumf %47, %48 : vector<24x24x128xbf16>
    %50 = vector.extract_strided_slice %37 {offsets = [0, 4, 0], sizes = [24, 24, 128], strides = [1, 1, 1]} : vector<24x28x128xbf16> to vector<24x24x128xbf16>
    %51 = arith.maximumf %49, %50 : vector<24x24x128xbf16>
    %52 = vector.extract_strided_slice %51 {offsets = [0, 0, 0], sizes = [20, 24, 128], strides = [1, 1, 1]} : vector<24x24x128xbf16> to vector<20x24x128xbf16>
    %53 = vector.extract_strided_slice %51 {offsets = [1, 0, 0], sizes = [20, 24, 128], strides = [1, 1, 1]} : vector<24x24x128xbf16> to vector<20x24x128xbf16>
    %54 = arith.maximumf %52, %53 : vector<20x24x128xbf16>
    %55 = vector.extract_strided_slice %51 {offsets = [2, 0, 0], sizes = [20, 24, 128], strides = [1, 1, 1]} : vector<24x24x128xbf16> to vector<20x24x128xbf16>
    %56 = arith.maximumf %54, %55 : vector<20x24x128xbf16>
    %57 = vector.extract_strided_slice %51 {offsets = [3, 0, 0], sizes = [20, 24, 128], strides = [1, 1, 1]} : vector<24x24x128xbf16> to vector<20x24x128xbf16>
    %58 = arith.maximumf %56, %57 : vector<20x24x128xbf16>
    %59 = vector.extract_strided_slice %51 {offsets = [4, 0, 0], sizes = [20, 24, 128], strides = [1, 1, 1]} : vector<24x24x128xbf16> to vector<20x24x128xbf16>
    %60 = arith.maximumf %58, %59 : vector<20x24x128xbf16>
    %61 = vector.extract_strided_slice %60 {offsets = [6, 4, 0], sizes = [8, 16, 128], strides = [1, 1, 1]} : vector<20x24x128xbf16> to vector<8x16x128xbf16>
    %62 = vector.shape_cast %61 : vector<8x16x128xbf16> to vector<128x128xbf16>
    %c1 = arith.constant 1 : index
    %c0_26 = arith.constant 0 : index
    %c0_27 = arith.constant 0 : index
    %63 = vector.load %arg7[%c1, %c0_26, %c0_27] : memref<4x128x128xbf16, #tpu.memory_space<vmem>>, vector<1x128x128xbf16>
    %64 = vector.shape_cast %63 : vector<1x128x128xbf16> to vector<128x128xbf16>
    %cst_28 = arith.constant dense<0.000000e+00> : vector<128x128xf32>
    %65 = tpu.matmul %62, %64, %cst_28 {dimension_numbers = #tpu.dot_dimension_numbers<[1], [0], [0], [1], [0, 0, 1, 1], [], []>} : vector<128x128xbf16>, vector<128x128xbf16>, vector<128x128xf32> -> vector<128x128xf32>
    %66 = arith.addf %42, %65 : vector<128x128xf32>
    %67 = vector.extract_strided_slice %60 {offsets = [0, 0, 0], sizes = [20, 20, 128], strides = [1, 1, 1]} : vector<20x24x128xbf16> to vector<20x20x128xbf16>
    %68 = vector.extract_strided_slice %60 {offsets = [0, 1, 0], sizes = [20, 20, 128], strides = [1, 1, 1]} : vector<20x24x128xbf16> to vector<20x20x128xbf16>
    %69 = arith.maximumf %67, %68 : vector<20x20x128xbf16>
    %70 = vector.extract_strided_slice %60 {offsets = [0, 2, 0], sizes = [20, 20, 128], strides = [1, 1, 1]} : vector<20x24x128xbf16> to vector<20x20x128xbf16>
    %71 = arith.maximumf %69, %70 : vector<20x20x128xbf16>
    %72 = vector.extract_strided_slice %60 {offsets = [0, 3, 0], sizes = [20, 20, 128], strides = [1, 1, 1]} : vector<20x24x128xbf16> to vector<20x20x128xbf16>
    %73 = arith.maximumf %71, %72 : vector<20x20x128xbf16>
    %74 = vector.extract_strided_slice %60 {offsets = [0, 4, 0], sizes = [20, 20, 128], strides = [1, 1, 1]} : vector<20x24x128xbf16> to vector<20x20x128xbf16>
    %75 = arith.maximumf %73, %74 : vector<20x20x128xbf16>
    %76 = vector.extract_strided_slice %75 {offsets = [0, 0, 0], sizes = [16, 20, 128], strides = [1, 1, 1]} : vector<20x20x128xbf16> to vector<16x20x128xbf16>
    %77 = vector.extract_strided_slice %75 {offsets = [1, 0, 0], sizes = [16, 20, 128], strides = [1, 1, 1]} : vector<20x20x128xbf16> to vector<16x20x128xbf16>
    %78 = arith.maximumf %76, %77 : vector<16x20x128xbf16>
    %79 = vector.extract_strided_slice %75 {offsets = [2, 0, 0], sizes = [16, 20, 128], strides = [1, 1, 1]} : vector<20x20x128xbf16> to vector<16x20x128xbf16>
    %80 = arith.maximumf %78, %79 : vector<16x20x128xbf16>
    %81 = vector.extract_strided_slice %75 {offsets = [3, 0, 0], sizes = [16, 20, 128], strides = [1, 1, 1]} : vector<20x20x128xbf16> to vector<16x20x128xbf16>
    %82 = arith.maximumf %80, %81 : vector<16x20x128xbf16>
    %83 = vector.extract_strided_slice %75 {offsets = [4, 0, 0], sizes = [16, 20, 128], strides = [1, 1, 1]} : vector<20x20x128xbf16> to vector<16x20x128xbf16>
    %84 = arith.maximumf %82, %83 : vector<16x20x128xbf16>
    %85 = vector.extract_strided_slice %84 {offsets = [4, 2, 0], sizes = [8, 16, 128], strides = [1, 1, 1]} : vector<16x20x128xbf16> to vector<8x16x128xbf16>
    %86 = vector.shape_cast %85 : vector<8x16x128xbf16> to vector<128x128xbf16>
    %c2 = arith.constant 2 : index
    %c0_29 = arith.constant 0 : index
    %c0_30 = arith.constant 0 : index
    %87 = vector.load %arg7[%c2, %c0_29, %c0_30] : memref<4x128x128xbf16, #tpu.memory_space<vmem>>, vector<1x128x128xbf16>
    %88 = vector.shape_cast %87 : vector<1x128x128xbf16> to vector<128x128xbf16>
    %cst_31 = arith.constant dense<0.000000e+00> : vector<128x128xf32>
    %89 = tpu.matmul %86, %88, %cst_31 {dimension_numbers = #tpu.dot_dimension_numbers<[1], [0], [0], [1], [0, 0, 1, 1], [], []>} : vector<128x128xbf16>, vector<128x128xbf16>, vector<128x128xf32> -> vector<128x128xf32>
    %90 = arith.addf %66, %89 : vector<128x128xf32>
    %91 = vector.extract_strided_slice %84 {offsets = [0, 0, 0], sizes = [16, 16, 128], strides = [1, 1, 1]} : vector<16x20x128xbf16> to vector<16x16x128xbf16>
    %92 = vector.extract_strided_slice %84 {offsets = [0, 1, 0], sizes = [16, 16, 128], strides = [1, 1, 1]} : vector<16x20x128xbf16> to vector<16x16x128xbf16>
    %93 = arith.maximumf %91, %92 : vector<16x16x128xbf16>
    %94 = vector.extract_strided_slice %84 {offsets = [0, 2, 0], sizes = [16, 16, 128], strides = [1, 1, 1]} : vector<16x20x128xbf16> to vector<16x16x128xbf16>
    %95 = arith.maximumf %93, %94 : vector<16x16x128xbf16>
    %96 = vector.extract_strided_slice %84 {offsets = [0, 3, 0], sizes = [16, 16, 128], strides = [1, 1, 1]} : vector<16x20x128xbf16> to vector<16x16x128xbf16>
    %97 = arith.maximumf %95, %96 : vector<16x16x128xbf16>
    %98 = vector.extract_strided_slice %84 {offsets = [0, 4, 0], sizes = [16, 16, 128], strides = [1, 1, 1]} : vector<16x20x128xbf16> to vector<16x16x128xbf16>
    %99 = arith.maximumf %97, %98 : vector<16x16x128xbf16>
    %100 = vector.extract_strided_slice %99 {offsets = [0, 0, 0], sizes = [12, 16, 128], strides = [1, 1, 1]} : vector<16x16x128xbf16> to vector<12x16x128xbf16>
    %101 = vector.extract_strided_slice %99 {offsets = [1, 0, 0], sizes = [12, 16, 128], strides = [1, 1, 1]} : vector<16x16x128xbf16> to vector<12x16x128xbf16>
    %102 = arith.maximumf %100, %101 : vector<12x16x128xbf16>
    %103 = vector.extract_strided_slice %99 {offsets = [2, 0, 0], sizes = [12, 16, 128], strides = [1, 1, 1]} : vector<16x16x128xbf16> to vector<12x16x128xbf16>
    %104 = arith.maximumf %102, %103 : vector<12x16x128xbf16>
    %105 = vector.extract_strided_slice %99 {offsets = [3, 0, 0], sizes = [12, 16, 128], strides = [1, 1, 1]} : vector<16x16x128xbf16> to vector<12x16x128xbf16>
    %106 = arith.maximumf %104, %105 : vector<12x16x128xbf16>
    %107 = vector.extract_strided_slice %99 {offsets = [4, 0, 0], sizes = [12, 16, 128], strides = [1, 1, 1]} : vector<16x16x128xbf16> to vector<12x16x128xbf16>
    %108 = arith.maximumf %106, %107 : vector<12x16x128xbf16>
    %109 = vector.extract_strided_slice %108 {offsets = [2, 0, 0], sizes = [8, 16, 128], strides = [1, 1, 1]} : vector<12x16x128xbf16> to vector<8x16x128xbf16>
    %110 = vector.shape_cast %109 : vector<8x16x128xbf16> to vector<128x128xbf16>
    %c3 = arith.constant 3 : index
    %c0_32 = arith.constant 0 : index
    %c0_33 = arith.constant 0 : index
    %111 = vector.load %arg7[%c3, %c0_32, %c0_33] : memref<4x128x128xbf16, #tpu.memory_space<vmem>>, vector<1x128x128xbf16>
    %112 = vector.shape_cast %111 : vector<1x128x128xbf16> to vector<128x128xbf16>
    %cst_34 = arith.constant dense<0.000000e+00> : vector<128x128xf32>
    %113 = tpu.matmul %110, %112, %cst_34 {dimension_numbers = #tpu.dot_dimension_numbers<[1], [0], [0], [1], [0, 0, 1, 1], [], []>} : vector<128x128xbf16>, vector<128x128xbf16>, vector<128x128xf32> -> vector<128x128xf32>
    %114 = arith.addf %90, %113 : vector<128x128xf32>
    %c0_35 = arith.constant 0 : index
    %c0_36 = arith.constant 0 : index
    %115 = vector.load %arg8[%c0_35, %c0_36] : memref<1x128xf32, #tpu.memory_space<vmem>>, vector<1x128xf32>
    %116 = vector.broadcast %115 : vector<1x128xf32> to vector<128x128xf32>
    %117 = arith.addf %114, %116 : vector<128x128xf32>
    %cst_37 = arith.constant 0.000000e+00 : f32
    %118 = vector.broadcast %cst_37 : f32 to vector<128x128xf32>
    %119 = arith.subf %118, %117 : vector<128x128xf32>
    %120 = math.exp %119 : vector<128x128xf32>
    %cst_38 = arith.constant 1.000000e+00 : f32
    %121 = vector.broadcast %cst_38 : f32 to vector<128x128xf32>
    %122 = arith.addf %121, %120 : vector<128x128xf32>
    %123 = tpu.reciprocal %122 {approx = true} : vector<128x128xf32> -> vector<128x128xf32>
    %124 = arith.mulf %117, %123 : vector<128x128xf32>
    %125 = vector.shape_cast %124 : vector<128x128xf32> to vector<8x16x128xf32>
    %126 = arith.truncf %125 : vector<8x16x128xf32> to vector<8x16x128xbf16>
    %c0_39 = arith.constant 0 : index
    %c0_40 = arith.constant 0 : index
    %c0_41 = arith.constant 0 : index
    %c0_42 = arith.constant 0 : index
    %127 = vector.load %arg9[%c0_39, %c0_40, %c0_41, %c0_42] : memref<1x8x16x128xbf16, #tpu.memory_space<vmem>>, vector<1x8x16x128xbf16>
    %128 = vector.shape_cast %127 : vector<1x8x16x128xbf16> to vector<8x16x128xbf16>
    %129 = vector.shape_cast %126 : vector<8x16x128xbf16> to vector<1x8x16x128xbf16>
    tpu.vector_store %arg9[%c0_39, %c0_40, %c0_41, %c0_42], %129 {strides = array<i32>} : memref<1x8x16x128xbf16, #tpu.memory_space<vmem>>, vector<1x8x16x128xbf16>,
    return
  }
  func.func @transform_0(%arg0: i32, %arg1: i32) -> (i32, i32, i32, i32) {
    %c0_i32 = arith.constant 0 : i32
    %c0_i32_0 = arith.constant 0 : i32
    %c0_i32_1 = arith.constant 0 : i32
    return %arg0, %arg1, %c0_i32, %c0_i32_0 : i32, i32, i32, i32
  }
  func.func @transform_1(%arg0: i32, %arg1: i32) -> (i32, i32, i32, i32) {
    %c1_i32 = arith.constant 1 : i32
    %0 = arith.muli %arg1, %c1_i32 : i32
    %c1_i32_0 = arith.constant 1 : i32
    %1 = arith.subi %0, %c1_i32_0 : i32
    %c0_i32 = arith.constant 0 : i32
    %2 = arith.maxsi %1, %c0_i32 : i32
    %c0_i32_1 = arith.constant 0 : i32
    %c0_i32_2 = arith.constant 0 : i32
    %c0_i32_3 = arith.constant 0 : i32
    return %arg0, %2, %c0_i32_1, %c0_i32_2 : i32, i32, i32, i32
  }
  func.func @transform_2(%arg0: i32, %arg1: i32) -> (i32, i32, i32, i32) {
    %c1_i32 = arith.constant 1 : i32
    %0 = arith.addi %arg1, %c1_i32 : i32
    %c1_i32_0 = arith.constant 1 : i32
    %1 = arith.muli %0, %c1_i32_0 : i32
    %c1_i32_1 = arith.constant 1 : i32
    %2 = arith.minsi %1, %c1_i32_1 : i32
    %c0_i32 = arith.constant 0 : i32
    %c0_i32_2 = arith.constant 0 : i32
    %c0_i32_3 = arith.constant 0 : i32
    return %arg0, %2, %c0_i32, %c0_i32_2 : i32, i32, i32, i32
  }
  func.func @transform_3(%arg0: i32, %arg1: i32) -> (i32, i32) {
    %c0_i32 = arith.constant 0 : i32
    %c0_i32_0 = arith.constant 0 : i32
    %c0_i32_1 = arith.constant 0 : i32
    return %c0_i32, %c0_i32_0 : i32, i32
  }
  func.func @transform_4(%arg0: i32, %arg1: i32) -> (i32, i32) {
    %c0_i32 = arith.constant 0 : i32
    %c0_i32_0 = arith.constant 0 : i32
    %c0_i32_1 = arith.constant 0 : i32
    return %c0_i32, %c0_i32_0 : i32, i32
  }
  func.func @transform_5(%arg0: i32, %arg1: i32) -> (i32, i32, i32) {
    %c0_i32 = arith.constant 0 : i32
    %c0_i32_0 = arith.constant 0 : i32
    %c0_i32_1 = arith.constant 0 : i32
    %c0_i32_2 = arith.constant 0 : i32
    return %c0_i32, %c0_i32_0, %c0_i32_1 : i32, i32, i32
  }
  func.func @transform_6(%arg0: i32, %arg1: i32) -> (i32, i32) {
    %c0_i32 = arith.constant 0 : i32
    %c0_i32_0 = arith.constant 0 : i32
    %c0_i32_1 = arith.constant 0 : i32
    return %c0_i32, %c0_i32_0 : i32, i32
  }
  func.func @transform_7(%arg0: i32, %arg1: i32) -> (i32, i32, i32, i32) {
    %c0_i32 = arith.constant 0 : i32
    %c0_i32_0 = arith.constant 0 : i32
    %c0_i32_1 = arith.constant 0 : i32
    return %arg0, %arg1, %c0_i32, %c0_i32_0 : i32, i32, i32, i32
  }
}

</mosaic_0001>

<llo_original>
// kernel: tpu_custom_call.1
$region0: #{tpu_custom_call.1}
  #allocation0 [shape = 'u32[]', space=smem, size = 0x4, offset = 0x4, fixed_abs, tag = 'smem constant byte address 0x4 - core index']
  #allocation1 [shape = 'u32[144,128]{1,0:T(1,128)}', space=vmem, size = 0x12000, scoped, tag = 'internal scratch']
  %s0 = inlined_call_operand.hbm [shape: bf16[2,16,16,128], index: 0, kind: input, shape index: {}]
  %s1 = inlined_call_operand.hbm [shape: bf16[2,16,16,128], index: 1, kind: input, shape index: {}]
  %s2 = inlined_call_operand.hbm [shape: bf16[2,16,16,128], index: 2, kind: input, shape index: {}]
  %s3 = inlined_call_operand.hbm [shape: bf16[128,128], index: 3, kind: input, shape index: {}]
  %s4 = inlined_call_operand.vmem [shape: f32[1,128], index: 4, kind: input, shape index: {}]
  %s5 = inlined_call_operand.hbm [shape: bf16[4,128,128], index: 5, kind: input, shape index: {}]
  %s6 = inlined_call_operand.vmem [shape: f32[1,128], index: 6, kind: input, shape index: {}]
  %s7 = inlined_call_operand.hbm [shape: bf16[2,16,16,128], index: 7, kind: output, shape index: {}]
  %s8 = sld [smem:[#allocation0]]
  $region81: #{tpu_custom_call.1} parent=0
    _
  %s10 = ssub.s32 1, %s8
  %s11 = scalar_select 0, %s10, %s8
  $region1: #{tpu_custom_call.1} parent=0
    #allocation2 [shape = 'u8[65536]{0}', space=vmem, size = 0x10000, scoped, tag = 'input window, operand 0']
    #allocation3 [shape = 's32[2]{0}', space=sflag, size = 0x8, scoped, tag = 'scoped memory for tpu_custom_call.1']
    #allocation4 [shape = 's32[2]{0}', space=sflag, size = 0x8, scoped, tag = 'scoped memory for tpu_custom_call.1']
    #allocation5 [shape = 'u8[65536]{0}', space=vmem, size = 0x10000, scoped, tag = 'input window, operand 1']
    #allocation6 [shape = 's32[2]{0}', space=sflag, size = 0x8, scoped, tag = 'scoped memory for tpu_custom_call.1']
    #allocation7 [shape = 'u8[65536]{0}', space=vmem, size = 0x10000, scoped, tag = 'input window, operand 2']
    #allocation8 [shape = 'u8[32768]{0}', space=vmem, size = 0x8000, scoped, tag = 'input window, operand 3, single buffered']
    #allocation9 [shape = 's32[1]{0}', space=sflag, size = 0x4, scoped, tag = 'scoped memory for tpu_custom_call.1']
    #allocation10 [shape = 'u8[131072]{0}', space=vmem, size = 0x20000, scoped, tag = 'input window, operand 5, single buffered']
    #allocation11 [shape = 'u8[65536]{0}', space=vmem, size = 0x10000, scoped, tag = 'output window, operand 0']
    %12 = vsyncpa [#allocation3], 0
    %s13 = scalar_lea.sflag [#allocation3], 1
    %14 = vsyncpa %s13, 0
    %15 = vsyncpa [#allocation6], 0
    %s16 = scalar_lea.sflag [#allocation6], 1
    %17 = vsyncpa %s16, 0
    %18 = vsyncpa [#allocation9], 0
    %19 = vsyncpa [#allocation4], 0
    %s20 = scalar_lea.sflag [#allocation4], 1
    %21 = vsyncpa %s20, 0
    loop: start=0, step=1, limit=6
    $region2: #{tpu_custom_call.1} parent=1 // loop_pre_header
      _
    $region3: #{tpu_custom_call.1} parent=1 // loop_header
      %s23 = sphi 0, %s27
      %p24 = scmp.ge.s32.totalorder %s23, 6
      %s30 = sphi 0, %s42
      %s31 = sphi 0, %s38
      %s32 = sphi 0, %s30
      %s33 = sphi 0, %s31
      %s34 = sphi 0, %s32
      %s35 = sphi 0, %s33
      %s47 = sphi 0, %s49
      %s50 = sphi 0, %s47
      %s51 = sphi 0, %s50
      %s67 = sphi 0, %s51
      %s81 = sphi 0, %s83
      %s84 = sphi 0, %s81
      %s85 = sphi 0, %s84
      %s101 = sphi 0, %s85
      %s115 = sphi 0, %s117
      %s118 = sphi 0, %s115
      %s119 = sphi 0, %s118
      %s135 = sphi 0, %s119
      %s139 = sphi 0, %s139
      %s141 = sphi 0, %s139
      %s142 = sphi 0, %s141
      %s156 = sphi 0, %s142
      %s160 = sphi 0, %s160
      %s162 = sphi 0, %s160
      %s163 = sphi 0, %s162
      %s177 = sphi 0, %s163
      %s181 = sphi 0, %s181
      %s183 = sphi 0, %s181
      %s184 = sphi 0, %s183
      %s198 = sphi 0, %s184
      %s202 = sphi 0, %s202
      %s204 = sphi 0, %s202
      %s205 = sphi 0, %s204
      %s219 = sphi 0, %s205
      %s227 = sphi 0, %s229
      %s230 = sphi 0, %s227
      %s231 = sphi 0, %s230
      %s247 = sphi 0, %s231
    $region4: #{tpu_custom_call.1} parent=1 // loop_header_branch
      %26 = sbr.rel (%p24) target = $region8
    $region5: #{tpu_custom_call.1} parent=1 // loop_body
      %s28 = ssub.s32 %s23, 1
      %s29 = ssub.s32 %s23, 2
      %s36 = sadd.s32 1, %s31
      %p37 = scmp.ge.s32.totalorder %s36, 2
      %s38 = scalar_select %p37, 0, %s36
      %s39 = sadd.s32 1, %s30
      %s40 = scalar_select %p37, %s39, %s30
      %p41 = scmp.ge.s32.totalorder %s40, 2
      %s42 = scalar_select %p41, 0, %s40
      %s43 = ssub.s32 %s30, %s42
      %s44 = ssub.s32 %s31, %s38
      %s45 = sor.u32 %s43, %s44
      %p46 = scmp.eq.s32.totalorder %s45, 0
      %s48 = sadd.s32 %s47, 1
      %s49 = scalar_select %p46, %s47, %s48
      %p52 = pneg %p46
      %p53 = scmp.eq.s32.totalorder %s23, 3
      %p54 = por %p52, %p53
      %p55 = scmp.ne.s32.totalorder %s47, %s50
      %p56 = scmp.eq.s32.totalorder %s23, 0
      %p57 = por %p55, %p56
      %p58 = scmp.ne.s32.totalorder %s47, %s50
      %p59 = scmp.eq.s32.totalorder %s28, 3
      %p60 = por %p58, %p59
      %p61 = scmp.ne.s32.totalorder %s50, %s51
      %p62 = scmp.eq.s32.totalorder %s28, 0
      %p63 = por %p61, %p62
      %p64 = scmp.ne.s32.totalorder %s50, %s51
      %p65 = scmp.eq.s32.totalorder %s29, 3
      %p66 = por %p64, %p65
      %p68 = scmp.ne.s32.totalorder %s51, %s67
      %p69 = scmp.eq.s32.totalorder %s29, 0
      %p70 = por %p68, %p69
      %s71 = ssub.s32 %s31, 1
      %p72 = scmp.gt.s32.totalorder %s71, 0
      %s73 = scalar_select %p72, %s71, 0
      %s74 = ssub.s32 %s38, 1
      %p75 = scmp.gt.s32.totalorder %s74, 0
      %s76 = scalar_select %p75, %s74, 0
      %s77 = ssub.s32 %s30, %s42
      %s78 = ssub.s32 %s73, %s76
      %s79 = sor.u32 %s77, %s78
      %p80 = scmp.eq.s32.totalorder %s79, 0
      %s82 = sadd.s32 %s81, 1
      %s83 = scalar_select %p80, %s81, %s82
      %p86 = pneg %p80
      %p87 = scmp.eq.s32.totalorder %s23, 3
      %p88 = por %p86, %p87
      %p89 = scmp.ne.s32.totalorder %s81, %s84
      %p90 = scmp.eq.s32.totalorder %s23, 0
      %p91 = por %p89, %p90
      %p92 = scmp.ne.s32.totalorder %s81, %s84
      %p93 = scmp.eq.s32.totalorder %s28, 3
      %p94 = por %p92, %p93
      %p95 = scmp.ne.s32.totalorder %s84, %s85
      %p96 = scmp.eq.s32.totalorder %s28, 0
      %p97 = por %p95, %p96
      %p98 = scmp.ne.s32.totalorder %s84, %s85
      %p99 = scmp.eq.s32.totalorder %s29, 3
      %p100 = por %p98, %p99
      %p102 = scmp.ne.s32.totalorder %s85, %s101
      %p103 = scmp.eq.s32.totalorder %s29, 0
      %p104 = por %p102, %p103
      %s105 = sadd.s32 %s31, 1
      %p106 = scmp.lt.s32.totalorder %s105, 1
      %s107 = scalar_select %p106, %s105, 1
      %s108 = sadd.s32 %s38, 1
      %p109 = scmp.lt.s32.totalorder %s108, 1
      %s110 = scalar_select %p109, %s108, 1
      %s111 = ssub.s32 %s30, %s42
      %s112 = ssub.s32 %s107, %s110
      %s113 = sor.u32 %s111, %s112
      %p114 = scmp.eq.s32.totalorder %s113, 0
      %s116 = sadd.s32 %s115, 1
      %s117 = scalar_select %p114, %s115, %s116
      %p120 = pneg %p114
      %p121 = scmp.eq.s32.totalorder %s23, 3
      %p122 = por %p120, %p121
      %p123 = scmp.ne.s32.totalorder %s115, %s118
      %p124 = scmp.eq.s32.totalorder %s23, 0
      %p125 = por %p123, %p124
      %p126 = scmp.ne.s32.totalorder %s115, %s118
      %p127 = scmp.eq.s32.totalorder %s28, 3
      %p128 = por %p126, %p127
      %p129 = scmp.ne.s32.totalorder %s118, %s119
      %p130 = scmp.eq.s32.totalorder %s28, 0
      %p131 = por %p129, %p130
      %p132 = scmp.ne.s32.totalorder %s118, %s119
      %p133 = scmp.eq.s32.totalorder %s29, 3
      %p134 = por %p132, %p133
      %p136 = scmp.ne.s32.totalorder %s119, %s135
      %p137 = scmp.eq.s32.totalorder %s29, 0
      %p138 = por %p136, %p137
      %s140 = sadd.s32 %s139, 1
      %p143 = scmp.eq.s32.totalorder %s23, 3
      %p144 = scmp.ne.s32.totalorder %s139, %s141
      %p145 = scmp.eq.s32.totalorder %s23, 0
      %p146 = por %p144, %p145
      %p147 = scmp.ne.s32.totalorder %s139, %s141
      %p148 = scmp.eq.s32.totalorder %s28, 3
      %p149 = por %p147, %p148
      %p150 = scmp.ne.s32.totalorder %s141, %s142
      %p151 = scmp.eq.s32.totalorder %s28, 0
      %p152 = por %p150, %p151
      %p153 = scmp.ne.s32.totalorder %s141, %s142
      %p154 = scmp.eq.s32.totalorder %s29, 3
      %p155 = por %p153, %p154
      %p157 = scmp.ne.s32.totalorder %s142, %s156
      %p158 = scmp.eq.s32.totalorder %s29, 0
      %p159 = por %p157, %p158
      %s161 = sadd.s32 %s160, 1
      %p164 = scmp.eq.s32.totalorder %s23, 3
      %p165 = scmp.ne.s32.totalorder %s160, %s162
      %p166 = scmp.eq.s32.totalorder %s23, 0
      %p167 = por %p165, %p166
      %p168 = scmp.ne.s32.totalorder %s160, %s162
      %p169 = scmp.eq.s32.totalorder %s28, 3
      %p170 = por %p168, %p169
      %p171 = scmp.ne.s32.totalorder %s162, %s163
      %p172 = scmp.eq.s32.totalorder %s28, 0
      %p173 = por %p171, %p172
      %p174 = scmp.ne.s32.totalorder %s162, %s163
      %p175 = scmp.eq.s32.totalorder %s29, 3
      %p176 = por %p174, %p175
      %p178 = scmp.ne.s32.totalorder %s163, %s177
      %p179 = scmp.eq.s32.totalorder %s29, 0
      %p180 = por %p178, %p179
      %s182 = sadd.s32 %s181, 1
      %p185 = scmp.eq.s32.totalorder %s23, 3
      %p186 = scmp.ne.s32.totalorder %s181, %s183
      %p187 = scmp.eq.s32.totalorder %s23, 0
      %p188 = por %p186, %p187
      %p189 = scmp.ne.s32.totalorder %s181, %s183
      %p190 = scmp.eq.s32.totalorder %s28, 3
      %p191 = por %p189, %p190
      %p192 = scmp.ne.s32.totalorder %s183, %s184
      %p193 = scmp.eq.s32.totalorder %s28, 0
      %p194 = por %p192, %p193
      %p195 = scmp.ne.s32.totalorder %s183, %s184
      %p196 = scmp.eq.s32.totalorder %s29, 3
      %p197 = por %p195, %p196
      %p199 = scmp.ne.s32.totalorder %s184, %s198
      %p200 = scmp.eq.s32.totalorder %s29, 0
      %p201 = por %p199, %p200
      %s203 = sadd.s32 %s202, 1
      %p206 = scmp.eq.s32.totalorder %s23, 3
      %p207 = scmp.ne.s32.totalorder %s202, %s204
      %p208 = scmp.eq.s32.totalorder %s23, 0
      %p209 = por %p207, %p208
      %p210 = scmp.ne.s32.totalorder %s202, %s204
      %p211 = scmp.eq.s32.totalorder %s28, 3
      %p212 = por %p210, %p211
      %p213 = scmp.ne.s32.totalorder %s204, %s205
      %p214 = scmp.eq.s32.totalorder %s28, 0
      %p215 = por %p213, %p214
      %p216 = scmp.ne.s32.totalorder %s204, %s205
      %p217 = scmp.eq.s32.totalorder %s29, 3
      %p218 = por %p216, %p217
      %p220 = scmp.ne.s32.totalorder %s205, %s219
      %p221 = scmp.eq.s32.totalorder %s29, 0
      %p222 = por %p220, %p221
      %s223 = ssub.s32 %s30, %s42
      %s224 = ssub.s32 %s31, %s38
      %s225 = sor.u32 %s223, %s224
      %p226 = scmp.eq.s32.totalorder %s225, 0
      %s228 = sadd.s32 %s227, 1
      %s229 = scalar_select %p226, %s227, %s228
      %p232 = pneg %p226
      %p233 = scmp.eq.s32.totalorder %s23, 3
      %p234 = por %p232, %p233
      %p235 = scmp.ne.s32.totalorder %s227, %s230
      %p236 = scmp.eq.s32.totalorder %s23, 0
      %p237 = por %p235, %p236
      %p238 = scmp.ne.s32.totalorder %s227, %s230
      %p239 = scmp.eq.s32.totalorder %s28, 3
      %p240 = por %p238, %p239
      %p241 = scmp.ne.s32.totalorder %s230, %s231
      %p242 = scmp.eq.s32.totalorder %s28, 0
      %p243 = por %p241, %p242
      %p244 = scmp.ne.s32.totalorder %s230, %s231
      %p245 = scmp.eq.s32.totalorder %s29, 3
      %p246 = por %p244, %p245
      %p248 = scmp.ne.s32.totalorder %s231, %s247
      %p249 = scmp.eq.s32.totalorder %s29, 0
      %p250 = por %p248, %p249
      %p251 = scmp.le.s32.totalorder 1, %s23
      %p252 = scmp.lt.s32.totalorder %s23, 5
      %p253 = pnand %p251, %p252
      %p254 = pneg %p253
      // Predicated region
      $region9: #{tpu_custom_call.1} parent=5 // pred_check
        _
      $region10: #{tpu_custom_call.1} parent=5 // pred_check_branch
        %256 = sbr.rel (%p253) target = $region12
      $region11: #{tpu_custom_call.1} parent=5 // pred_region
        %s257 = ssub.s32 %s23, 1
        // Predicated region
        $region13: #{tpu_custom_call.1} parent=11 // pred_check
          %p258 = pneg %p152
        $region14: #{tpu_custom_call.1} parent=11 // pred_check_branch
          %260 = sbr.rel (%p258) target = $region16
        $region15: #{tpu_custom_call.1} parent=11 // pred_region
          %s262 = ssub.s32 1024, 1024
          %263 = vsyncadd [#allocation9], %s262
          %s264 = sshll.u32 [#allocation8], 4
          %s265 = int_to_ptr.vmem [resolvable:$true] %s264
          %270 = dma.hbm_to_vmem [thread:$0]  %s3, 1024, %s265, [#allocation9], 64, 64, 4
        $region16: #{tpu_custom_call.1} parent=11 // pred_fallthru
          _
        // Predicated region
        $region17: #{tpu_custom_call.1} parent=11 // pred_check
          %p271 = pneg %p173
        $region18: #{tpu_custom_call.1} parent=11 // pred_check_branch
          %273 = sbr.rel (%p271) target = $region20
        $region19: #{tpu_custom_call.1} parent=11 // pred_region
          _
        $region20: #{tpu_custom_call.1} parent=11 // pred_fallthru
          _
        // Predicated region
        $region21: #{tpu_custom_call.1} parent=11 // pred_check
          %p274 = pneg %p194
        $region22: #{tpu_custom_call.1} parent=11 // pred_check_branch
          %276 = sbr.rel (%p274) target = $region24
        $region23: #{tpu_custom_call.1} parent=11 // pred_region
          %s278 = ssub.s32 4096, 4096
          %279 = vsyncadd [#allocation9], %s278
          %s280 = sshll.u32 [#allocation10], 4
          %s281 = int_to_ptr.vmem [resolvable:$true] %s280
          %286 = dma.hbm_to_vmem [thread:$0]  %s5, 4096, %s281, [#allocation9], 64, 64, 4
        $region24: #{tpu_custom_call.1} parent=11 // pred_fallthru
          _
        // Predicated region
        $region25: #{tpu_custom_call.1} parent=11 // pred_check
          %p287 = pneg %p215
        $region26: #{tpu_custom_call.1} parent=11 // pred_check_branch
          %289 = sbr.rel (%p287) target = $region28
        $region27: #{tpu_custom_call.1} parent=11 // pred_region
          _
        $region28: #{tpu_custom_call.1} parent=11 // pred_fallthru
          _
      $region12: #{tpu_custom_call.1} parent=5 // pred_fallthru
        _
      %p290 = scmp.lt.s32.totalorder %s23, 4
      // Predicated region
      $region29: #{tpu_custom_call.1} parent=5 // pred_check
        %p291 = pneg %p290
      $region30: #{tpu_custom_call.1} parent=5 // pred_check_branch
        %293 = sbr.rel (%p291) target = $region32
      $region31: #{tpu_custom_call.1} parent=5 // pred_region
        // Predicated region
        $region33: #{tpu_custom_call.1} parent=31 // pred_check
          %p294 = pneg %p57
        $region34: #{tpu_custom_call.1} parent=31 // pred_check_branch
          %296 = sbr.rel (%p294) target = $region36
        $region35: #{tpu_custom_call.1} parent=31 // pred_region
          %s297 = sand.u32 %s47, 1
          %s298 = scalar_lea.sflag [#allocation3], %s297
          %s299 = sand.u32 %s47, 1
          %s300 = smul.addr %s299, 64
          %s301 = scalar_lea.vmem [#allocation2], %s300
          %s302 = smul.u32 8, %s31
          %s304 = ssub.s32 1024, 1024
          %305 = vsyncadd %s298, %s304
          %s306 = smul.addr %s302, 2
          %s307 = smul.addr %s30, 32
          %s308 = sadd.s32 %s306, %s307
          %s309 = smul.addr %s308, 64
          %s310 = scalar_lea.hbm %s0, %s309
          %s311 = sshll.u32 %s301, 4
          %s312 = int_to_ptr.vmem [resolvable:$true] %s311
          %317 = dma.hbm_to_vmem [thread:$0]  %s310, 1024, %s312, %s298, 64, 64, 4
        $region36: #{tpu_custom_call.1} parent=31 // pred_fallthru
          _
        // Predicated region
        $region37: #{tpu_custom_call.1} parent=31 // pred_check
          %p318 = pneg %p91
        $region38: #{tpu_custom_call.1} parent=31 // pred_check_branch
          %320 = sbr.rel (%p318) target = $region40
        $region39: #{tpu_custom_call.1} parent=31 // pred_region
          %s321 = sand.u32 %s23, 1
          %s322 = scalar_lea.sflag [#allocation6], %s321
          %s323 = sand.u32 %s81, 1
          %s324 = smul.addr %s323, 64
          %s325 = scalar_lea.vmem [#allocation5], %s324
          %s326 = ssub.s32 %s31, 1
          %p327 = scmp.gt.s32.totalorder %s326, 0
          %s328 = scalar_select %p327, %s326, 0
          %s329 = smul.u32 8, %s328
          %s331 = ssub.s32 1024, 1024
          %332 = vsyncadd %s322, %s331
          %s333 = smul.addr %s329, 2
          %s334 = smul.addr %s30, 32
          %s335 = sadd.s32 %s333, %s334
          %s336 = smul.addr %s335, 64
          %s337 = scalar_lea.hbm %s1, %s336
          %s338 = sshll.u32 %s325, 4
          %s339 = int_to_ptr.vmem [resolvable:$true] %s338
          %344 = dma.hbm_to_vmem [thread:$0]  %s337, 1024, %s339, %s322, 64, 64, 4
        $region40: #{tpu_custom_call.1} parent=31 // pred_fallthru
          _
        // Predicated region
        $region41: #{tpu_custom_call.1} parent=31 // pred_check
          %p345 = pneg %p125
        $region42: #{tpu_custom_call.1} parent=31 // pred_check_branch
          %347 = sbr.rel (%p345) target = $region44
        $region43: #{tpu_custom_call.1} parent=31 // pred_region
          %s348 = sand.u32 %s23, 1
          %s349 = scalar_lea.sflag [#allocation6], %s348
          %s350 = sand.u32 %s115, 1
          %s351 = smul.addr %s350, 64
          %s352 = scalar_lea.vmem [#allocation7], %s351
          %s353 = sadd.s32 %s31, 1
          %p354 = scmp.lt.s32.totalorder %s353, 1
          %s355 = scalar_select %p354, %s353, 1
          %s356 = smul.u32 8, %s355
          %s358 = ssub.s32 1024, 1024
          %359 = vsyncadd %s349, %s358
          %s360 = smul.addr %s356, 2
          %s361 = smul.addr %s30, 32
          %s362 = sadd.s32 %s360, %s361
          %s363 = smul.addr %s362, 64
          %s364 = scalar_lea.hbm %s2, %s363
          %s365 = sshll.u32 %s352, 4
          %s366 = int_to_ptr.vmem [resolvable:$true] %s365
          %371 = dma.hbm_to_vmem [thread:$0]  %s364, 1024, %s366, %s349, 64, 64, 4
        $region44: #{tpu_custom_call.1} parent=31 // pred_fallthru
          _
      $region32: #{tpu_custom_call.1} parent=5 // pred_fallthru
        _
      %p372 = scmp.le.s32.totalorder 1, %s23
      %p373 = scmp.lt.s32.totalorder %s23, 5
      %p374 = pnand %p372, %p373
      %p375 = pneg %p374
      // Predicated region
      $region45: #{tpu_custom_call.1} parent=5 // pred_check
        _
      $region46: #{tpu_custom_call.1} parent=5 // pred_check_branch
        %377 = sbr.rel (%p374) target = $region48
      $region47: #{tpu_custom_call.1} parent=5 // pred_region
        %s378 = ssub.s32 %s23, 1
        %s379 = sand.u32 %s50, 1
        %s380 = scalar_lea.sflag [#allocation3], %s379
        %s381 = sand.u32 %s50, 1
        %s382 = smul.addr %s381, 64
        %s383 = scalar_lea.vmem [#allocation2], %s382
        // Predicated region
        $region49: #{tpu_custom_call.1} parent=47 // pred_check
          %p384 = pneg %p63
        $region50: #{tpu_custom_call.1} parent=47 // pred_check_branch
          %386 = sbr.rel (%p384) target = $region52
        $region51: #{tpu_custom_call.1} parent=47 // pred_region
          %387 = dma.done %s380, 1024
        $region52: #{tpu_custom_call.1} parent=47 // pred_fallthru
          _
        %s388 = sand.u32 %s28, 1
        %s389 = scalar_lea.sflag [#allocation6], %s388
        %s390 = sand.u32 %s84, 1
        %s391 = smul.addr %s390, 64
        %s392 = scalar_lea.vmem [#allocation5], %s391
        // Predicated region
        $region53: #{tpu_custom_call.1} parent=47 // pred_check
          %p393 = pneg %p97
        $region54: #{tpu_custom_call.1} parent=47 // pred_check_branch
          %395 = sbr.rel (%p393) target = $region56
        $region55: #{tpu_custom_call.1} parent=47 // pred_region
          %396 = dma.done %s389, 1024
        $region56: #{tpu_custom_call.1} parent=47 // pred_fallthru
          _
        %s397 = sand.u32 %s28, 1
        %s398 = scalar_lea.sflag [#allocation6], %s397
        %s399 = sand.u32 %s118, 1
        %s400 = smul.addr %s399, 64
        %s401 = scalar_lea.vmem [#allocation7], %s400
        // Predicated region
        $region57: #{tpu_custom_call.1} parent=47 // pred_check
          %p402 = pneg %p131
        $region58: #{tpu_custom_call.1} parent=47 // pred_check_branch
          %404 = sbr.rel (%p402) target = $region60
        $region59: #{tpu_custom_call.1} parent=47 // pred_region
          %405 = dma.done %s398, 1024
        $region60: #{tpu_custom_call.1} parent=47 // pred_fallthru
          _
        // Predicated region
        $region61: #{tpu_custom_call.1} parent=47 // pred_check
          %p406 = pneg %p152
        $region62: #{tpu_custom_call.1} parent=47 // pred_check_branch
          %408 = sbr.rel (%p406) target = $region64
        $region63: #{tpu_custom_call.1} parent=47 // pred_region
          %409 = dma.done [#allocation9], 1024
        $region64: #{tpu_custom_call.1} parent=47 // pred_fallthru
          _
        // Predicated region
        $region65: #{tpu_custom_call.1} parent=47 // pred_check
          %p410 = pneg %p194
        $region66: #{tpu_custom_call.1} parent=47 // pred_check_branch
          %412 = sbr.rel (%p410) target = $region68
        $region67: #{tpu_custom_call.1} parent=47 // pred_region
          %413 = dma.done [#allocation9], 4096
        $region68: #{tpu_custom_call.1} parent=47 // pred_fallthru
          _
        %s414 = sand.u32 %s50, 1
        %s415 = scalar_lea.sflag [#allocation3], %s414
        %s416 = sand.u32 %s50, 1
        %s417 = smul.addr %s416, 64
        %s418 = scalar_lea.vmem [#allocation2], %s417
        %p419 = pneg %p63
        %p420 = pneg %p60
        %s421 = sand.u32 %s28, 1
        %s422 = scalar_lea.sflag [#allocation6], %s421
        %s423 = sand.u32 %s84, 1
        %s424 = smul.addr %s423, 64
        %s425 = scalar_lea.vmem [#allocation5], %s424
        %p426 = pneg %p97
        %p427 = pneg %p94
        %s428 = sand.u32 %s28, 1
        %s429 = scalar_lea.sflag [#allocation6], %s428
        %s430 = sand.u32 %s118, 1
        %s431 = smul.addr %s430, 64
        %s432 = scalar_lea.vmem [#allocation7], %s431
        %p433 = pneg %p131
        %p434 = pneg %p128
        %p435 = pneg %p152
        %p436 = pneg %p149
        %p437 = pneg %p173
        %p438 = pneg %p170
        %p439 = pneg %p194
        %p440 = pneg %p191
        %p441 = pneg %p215
        %p442 = pneg %p212
        %p443 = pneg %p243
        %p444 = pneg %p240
        %s445 = sand.u32 %s230, 1
        %s446 = scalar_lea.sflag [#allocation4], %s445
        %s447 = sand.u32 %s230, 1
        %s448 = smul.addr %s447, 64
        %s449 = scalar_lea.vmem [#allocation11], %s448
        %s450 = smul.u32 8, %s33
        %s451 = ssub.s32 %s33, 1
        %p452 = scmp.gt.s32.totalorder %s451, 0
        %s453 = scalar_select %p452, %s451, 0
        %s454 = smul.u32 8, %s453
        %s455 = sadd.s32 %s33, 1
        %p456 = scmp.lt.s32.totalorder %s455, 1
        %s457 = scalar_select %p456, %s455, 1
        %s458 = smul.u32 8, %s457
        %s459 = smul.u32 8, %s33
        %v462 = vld [vmem:[%s392] sm:$0xf]
        %v463 = vld [vmem:[%s392 + $0x4] sm:$0xf]
        %v464 = vld [vmem:[%s392 + $0x8] sm:$0xf]
        %v465 = vld [vmem:[%s392 + $0xc] sm:$0xf]
        %v466 = vld [vmem:[%s392 + $0x10] sm:$0xf]
        %v467 = vld [vmem:[%s392 + $0x14] sm:$0xf]
        %v468 = vld [vmem:[%s392 + $0x18] sm:$0xf]
        %v469 = vld [vmem:[%s392 + $0x1c] sm:$0xf]
        %v470 = vld [vmem:[%s392 + $0x20] sm:$0xf]
        %v471 = vld [vmem:[%s392 + $0x24] sm:$0xf]
        %v472 = vld [vmem:[%s392 + $0x28] sm:$0xf]
        %v473 = vld [vmem:[%s392 + $0x2c] sm:$0xf]
        %v474 = vld [vmem:[%s392 + $0x30] sm:$0xf]
        %v475 = vld [vmem:[%s392 + $0x34] sm:$0xf]
        %v476 = vld [vmem:[%s392 + $0x38] sm:$0xf]
        %v477 = vld [vmem:[%s392 + $0x3c] sm:$0xf]
        %v478 = vld [vmem:[%s383] sm:$0xf]
        %v479 = vld [vmem:[%s383 + $0x4] sm:$0xf]
        %v480 = vld [vmem:[%s383 + $0x8] sm:$0xf]
        %v481 = vld [vmem:[%s383 + $0xc] sm:$0xf]
        %v482 = vld [vmem:[%s383 + $0x10] sm:$0xf]
        %v483 = vld [vmem:[%s383 + $0x14] sm:$0xf]
        %v484 = vld [vmem:[%s383 + $0x18] sm:$0xf]
        %v485 = vld [vmem:[%s383 + $0x1c] sm:$0xf]
        %v486 = vld [vmem:[%s383 + $0x20] sm:$0xf]
        %v487 = vld [vmem:[%s383 + $0x24] sm:$0xf]
        %v488 = vld [vmem:[%s383 + $0x28] sm:$0xf]
        %v489 = vld [vmem:[%s383 + $0x2c] sm:$0xf]
        %v490 = vld [vmem:[%s383 + $0x30] sm:$0xf]
        %v491 = vld [vmem:[%s383 + $0x34] sm:$0xf]
        %v492 = vld [vmem:[%s383 + $0x38] sm:$0xf]
        %v493 = vld [vmem:[%s383 + $0x3c] sm:$0xf]
        %v494 = vld [vmem:[%s401] sm:$0xf]
        %v495 = vld [vmem:[%s401 + $0x4] sm:$0xf]
        %v496 = vld [vmem:[%s401 + $0x8] sm:$0xf]
        %v497 = vld [vmem:[%s401 + $0xc] sm:$0xf]
        %v498 = vld [vmem:[%s401 + $0x10] sm:$0xf]
        %v499 = vld [vmem:[%s401 + $0x14] sm:$0xf]
        %v500 = vld [vmem:[%s401 + $0x18] sm:$0xf]
        %v501 = vld [vmem:[%s401 + $0x1c] sm:$0xf]
        %v502 = vld [vmem:[%s401 + $0x20] sm:$0xf]
        %v503 = vld [vmem:[%s401 + $0x24] sm:$0xf]
        %v504 = vld [vmem:[%s401 + $0x28] sm:$0xf]
        %v505 = vld [vmem:[%s401 + $0x2c] sm:$0xf]
        %v506 = vld [vmem:[%s401 + $0x30] sm:$0xf]
        %v507 = vld [vmem:[%s401 + $0x34] sm:$0xf]
        %v508 = vld [vmem:[%s401 + $0x38] sm:$0xf]
        %v509 = vld [vmem:[%s401 + $0x3c] sm:$0xf]
        %v510 = vld [vmem:[#allocation8] sm:$0xf]
        %v511 = vld [vmem:[#allocation8 + $0x4] sm:$0xf]
        %v512 = vld [vmem:[#allocation8 + $0x8] sm:$0xf]
        %v513 = vld [vmem:[#allocation8 + $0xc] sm:$0xf]
        %v514 = vld [vmem:[#allocation8 + $0x10] sm:$0xf]
        %v515 = vld [vmem:[#allocation8 + $0x14] sm:$0xf]
        %v516 = vld [vmem:[#allocation8 + $0x18] sm:$0xf]
        %v517 = vld [vmem:[#allocation8 + $0x1c] sm:$0xf]
        %v518 = vld [vmem:[#allocation8 + $0x20] sm:$0xf]
        %v519 = vld [vmem:[#allocation8 + $0x24] sm:$0xf]
        %v520 = vld [vmem:[#allocation8 + $0x28] sm:$0xf]
        %v521 = vld [vmem:[#allocation8 + $0x2c] sm:$0xf]
        %v522 = vld [vmem:[#allocation8 + $0x30] sm:$0xf]
        %v523 = vld [vmem:[#allocation8 + $0x34] sm:$0xf]
        %v524 = vld [vmem:[#allocation8 + $0x38] sm:$0xf]
        %v525 = vld [vmem:[#allocation8 + $0x3c] sm:$0xf]
        %v526 = vld [vmem:[%s4] sm:$0x1]
        %v528 = vlaneseq
        %v529 = vshrl.u32 %v528, 7
        %v530 = vsub.s32 0, %v529
        %v531 = vrot.slane %v526, %v530
        %v581 = vunpack.c.l.b16 %v462
        %v582 = vunpack.c.l.b16 %v463
        %v583 = vunpack.c.l.b16 %v464
        %v584 = vunpack.c.l.b16 %v465
        %v585 = vunpack.c.l.b16 %v466
        %v586 = vunpack.c.l.b16 %v467
        %v587 = vunpack.c.l.b16 %v468
        %v588 = vunpack.c.l.b16 %v469
        %v589 = vunpack.c.l.b16 %v470
        %v590 = vunpack.c.l.b16 %v471
        %v591 = vunpack.c.l.b16 %v472
        %v592 = vunpack.c.l.b16 %v473
        %v593 = vunpack.c.l.b16 %v474
        %v594 = vunpack.c.l.b16 %v475
        %v595 = vunpack.c.l.b16 %v476
        %v596 = vunpack.c.l.b16 %v477
        %v597 = vunpack.c.l.b16 %v478
        %v598 = vunpack.c.l.b16 %v479
        %v599 = vunpack.c.l.b16 %v480
        %v600 = vunpack.c.l.b16 %v481
        %v601 = vunpack.c.l.b16 %v482
        %v602 = vunpack.c.l.b16 %v483
        %v603 = vunpack.c.l.b16 %v484
        %v604 = vunpack.c.l.b16 %v485
        %v605 = vunpack.c.l.b16 %v486
        %v606 = vunpack.c.l.b16 %v487
        %v607 = vunpack.c.l.b16 %v488
        %v608 = vunpack.c.l.b16 %v489
        %v609 = vunpack.c.l.b16 %v490
        %v610 = vunpack.c.l.b16 %v491
        %v611 = vunpack.c.l.b16 %v492
        %v612 = vunpack.c.l.b16 %v493
        %v613 = vunpack.c.l.b16 %v494
        %v614 = vunpack.c.l.b16 %v495
        %v615 = vunpack.c.l.b16 %v496
        %v616 = vunpack.c.l.b16 %v497
        %v617 = vunpack.c.l.b16 %v498
        %v618 = vunpack.c.l.b16 %v499
        %v619 = vunpack.c.l.b16 %v500
        %v620 = vunpack.c.l.b16 %v501
        %v621 = vunpack.c.l.b16 %v502
        %v622 = vunpack.c.l.b16 %v503
        %v623 = vunpack.c.l.b16 %v504
        %v624 = vunpack.c.l.b16 %v505
        %v625 = vunpack.c.l.b16 %v506
        %v626 = vunpack.c.l.b16 %v507
        %v627 = vunpack.c.l.b16 %v508
        %v628 = vunpack.c.l.b16 %v509
        %v629 = vpack.c.b16 %v582, %v581
        %v630 = vpack.c.b16 %v584, %v583
        %v631 = vpack.c.b16 %v586, %v585
        %v632 = vpack.c.b16 %v588, %v587
        %v633 = vpack.c.b16 %v590, %v589
        %v634 = vpack.c.b16 %v592, %v591
        %v635 = vpack.c.b16 %v594, %v593
        %v636 = vpack.c.b16 %v596, %v595
        %v637 = vpack.c.b16 %v598, %v597
        %v638 = vpack.c.b16 %v600, %v599
        %v639 = vpack.c.b16 %v602, %v601
        %v640 = vpack.c.b16 %v604, %v603
        %v641 = vpack.c.b16 %v606, %v605
        %v642 = vpack.c.b16 %v608, %v607
        %v643 = vpack.c.b16 %v610, %v609
        %v644 = vpack.c.b16 %v612, %v611
        %v645 = vpack.c.b16 %v614, %v613
        %v646 = vpack.c.b16 %v616, %v615
        %v647 = vpack.c.b16 %v618, %v617
        %v648 = vpack.c.b16 %v620, %v619
        %v649 = vpack.c.b16 %v622, %v621
        %v650 = vpack.c.b16 %v624, %v623
        %v651 = vpack.c.b16 %v626, %v625
        %v652 = vpack.c.b16 %v628, %v627
        %v693 = vunpack.c.l.b16 %v510
        %v694 = vunpack.c.l.b16 %v511
        %v695 = vunpack.c.l.b16 %v512
        %v696 = vunpack.c.l.b16 %v513
        %v697 = vunpack.c.l.b16 %v514
        %v698 = vunpack.c.l.b16 %v515
        %v699 = vunpack.c.l.b16 %v516
        %v700 = vunpack.c.l.b16 %v517
        %v701 = vunpack.c.l.b16 %v518
        %v702 = vunpack.c.l.b16 %v519
        %v703 = vunpack.c.l.b16 %v520
        %v704 = vunpack.c.l.b16 %v521
        %v705 = vunpack.c.l.b16 %v522
        %v706 = vunpack.c.l.b16 %v523
        %v707 = vunpack.c.l.b16 %v524
        %v708 = vunpack.c.l.b16 %v525
        %v709 = vpack.c.b16 %v694, %v693
        %v710 = vpack.c.b16 %v696, %v695
        %v711 = vpack.c.b16 %v698, %v697
        %v712 = vpack.c.b16 %v700, %v699
        %v713 = vpack.c.b16 %v702, %v701
        %v714 = vpack.c.b16 %v704, %v703
        %v715 = vpack.c.b16 %v706, %v705
        %v716 = vpack.c.b16 %v708, %v707
        %725 = vmatprep.subr.bf16.mxu0 0
        %726 = vmatpush1.bf16.msra.mxu0 %v709
        %727 = vmatprep.subr.bf16.mxu0 0
        %728 = vmatpush1.bf16.msra.mxu0 %v710
        %729 = vmatprep.subr.bf16.mxu0 0
        %730 = vmatpush1.bf16.msra.mxu0 %v711
        %731 = vmatprep.subr.bf16.mxu0 0
        %732 = vmatpush1.bf16.msra.mxu0 %v712
        %733 = vmatprep.subr.bf16.mxu0 0
        %734 = vmatpush1.bf16.msra.mxu0 %v713
        %735 = vmatprep.subr.bf16.mxu0 0
        %736 = vmatpush1.bf16.msra.mxu0 %v714
        %737 = vmatprep.subr.bf16.mxu0 0
        %738 = vmatpush1.bf16.msra.mxu0 %v715
        %739 = vmatprep.subr.bf16.mxu0 0
        %740 = vmatpush1.bf16.msra.mxu0 %v716
        %741 = vmatprep.subr.bf16.mxu0 0
        %742 = vmatpush1.bf16.msra.mxu0 0
        %743 = vmatprep.subr.bf16.mxu0 0
        %744 = vmatpush1.bf16.msra.mxu0 0
        %745 = vmatprep.subr.bf16.mxu0 0
        %746 = vmatpush1.bf16.msra.mxu0 0
        %747 = vmatprep.subr.bf16.mxu0 0
        %748 = vmatpush1.bf16.msra.mxu0 0
        %749 = vmatprep.subr.bf16.mxu0 0
        %750 = vmatpush1.bf16.msra.mxu0 0
        %751 = vmatprep.subr.bf16.mxu0 0
        %752 = vmatpush1.bf16.msra.mxu0 0
        %753 = vmatprep.subr.bf16.mxu0 0
        %754 = vmatpush1.bf16.msra.mxu0 0
        %755 = vmatprep.subr.bf16.mxu0 0
        %756 = vmatpush1.bf16.msra.mxu0 0
        %757 = vmatprep.mubr.bf16.mxu0 0
        %758 = vmatmul.mubr.bf16.gmra.mrb[0].mxu0 %v629
        %v759 = vpop.f32.mrb[0].mxu0
        %v760 = vpop.f32.mrb[0].mxu0
        %v761 = vpop.f32.mrb[0].mxu0
        %v762 = vpop.f32.mrb[0].mxu0
        %763 = vmatprep.mubr.bf16.mxu0 0
        %764 = vmatmul.mubr.bf16.gmra.mrb[0].mxu0 %v630
        %v765 = vpop.f32.mrb[0].mxu0
        %v766 = vpop.f32.mrb[0].mxu0
        %v767 = vpop.f32.mrb[0].mxu0
        %v768 = vpop.f32.mrb[0].mxu0
        %769 = vmatprep.mubr.bf16.mxu0 0
        %770 = vmatmul.mubr.bf16.gmra.mrb[0].mxu0 %v631
        %v771 = vpop.f32.mrb[0].mxu0
        %v772 = vadd.f32 %v531, %v771
        %v773 = vpop.f32.mrb[0].mxu0
        %v774 = vpop.f32.mrb[0].mxu0
        %v775 = vadd.f32 %v531, %v774
        %v776 = vpop.f32.mrb[0].mxu0
        %777 = vmatprep.mubr.bf16.mxu0 0
        %778 = vmatmul.mubr.bf16.gmra.mrb[0].mxu0 %v632
        %v779 = vpop.f32.mrb[0].mxu0
        %v780 = vadd.f32 %v531, %v779
        %v781 = vpop.f32.mrb[0].mxu0
        %v782 = vpop.f32.mrb[0].mxu0
        %v783 = vadd.f32 %v531, %v782
        %v784 = vpop.f32.mrb[0].mxu0
        %785 = vmatprep.mubr.bf16.mxu0 0
        %786 = vmatmul.mubr.bf16.gmra.mrb[0].mxu0 %v633
        %v787 = vpop.f32.mrb[0].mxu0
        %v788 = vadd.f32 %v531, %v787
        %v789 = vpop.f32.mrb[0].mxu0
        %v790 = vpop.f32.mrb[0].mxu0
        %v791 = vadd.f32 %v531, %v790
        %v792 = vpop.f32.mrb[0].mxu0
        %793 = vmatprep.mubr.bf16.mxu0 0
        %794 = vmatmul.mubr.bf16.gmra.mrb[0].mxu0 %v634
        %v795 = vpop.f32.mrb[0].mxu0
        %v796 = vadd.f32 %v531, %v795
        %v797 = vpop.f32.mrb[0].mxu0
        %v798 = vpop.f32.mrb[0].mxu0
        %v799 = vadd.f32 %v531, %v798
        %v800 = vpop.f32.mrb[0].mxu0
        %801 = vmatprep.mubr.bf16.mxu0 0
        %802 = vmatmul.mubr.bf16.gmra.mrb[0].mxu0 %v635
        %v803 = vpop.f32.mrb[0].mxu0
        %v804 = vadd.f32 %v531, %v803
        %v805 = vpop.f32.mrb[0].mxu0
        %v806 = vpop.f32.mrb[0].mxu0
        %v807 = vadd.f32 %v531, %v806
        %v808 = vpop.f32.mrb[0].mxu0
        %809 = vmatprep.mubr.bf16.mxu0 0
        %810 = vmatmul.mubr.bf16.gmra.mrb[0].mxu0 %v636
        %v811 = vpop.f32.mrb[0].mxu0
        %v812 = vadd.f32 %v531, %v811
        %v813 = vpop.f32.mrb[0].mxu0
        %v814 = vpop.f32.mrb[0].mxu0
        %v815 = vadd.f32 %v531, %v814
        %v816 = vpop.f32.mrb[0].mxu0
        %817 = vmatprep.mubr.bf16.mxu0 0
        %818 = vmatmul.mubr.bf16.gmra.mrb[0].mxu0 %v637
        %v819 = vpop.f32.mrb[0].mxu0
        %v820 = vadd.f32 %v531, %v819
        %v821 = vpop.f32.mrb[0].mxu0
        %v822 = vpop.f32.mrb[0].mxu0
        %v823 = vadd.f32 %v531, %v822
        %v824 = vpop.f32.mrb[0].mxu0
        %825 = vmatprep.mubr.bf16.mxu0 0
        %826 = vmatmul.mubr.bf16.gmra.mrb[0].mxu0 %v638
        %v827 = vpop.f32.mrb[0].mxu0
        %v828 = vadd.f32 %v531, %v827
        %v829 = vpop.f32.mrb[0].mxu0
        %v830 = vpop.f32.mrb[0].mxu0
        %v831 = vadd.f32 %v531, %v830
        %v832 = vpop.f32.mrb[0].mxu0
        %833 = vmatprep.mubr.bf16.mxu0 0
        %834 = vmatmul.mubr.bf16.gmra.mrb[0].mxu0 %v639
        %v835 = vpop.f32.mrb[0].mxu0
        %v836 = vadd.f32 %v531, %v835
        %v837 = vpop.f32.mrb[0].mxu0
        %v838 = vpop.f32.mrb[0].mxu0
        %v839 = vadd.f32 %v531, %v838
        %v840 = vpop.f32.mrb[0].mxu0
        %841 = vmatprep.mubr.bf16.mxu0 0
        %842 = vmatmul.mubr.bf16.gmra.mrb[0].mxu0 %v640
        %v843 = vpop.f32.mrb[0].mxu0
        %v844 = vadd.f32 %v531, %v843
        %v845 = vpop.f32.mrb[0].mxu0
        %v846 = vpop.f32.mrb[0].mxu0
        %v847 = vadd.f32 %v531, %v846
        %v848 = vpop.f32.mrb[0].mxu0
        %849 = vmatprep.mubr.bf16.mxu0 0
        %850 = vmatmul.mubr.bf16.gmra.mrb[0].mxu0 %v641
        %v851 = vpop.f32.mrb[0].mxu0
        %v852 = vadd.f32 %v531, %v851
        %v853 = vpop.f32.mrb[0].mxu0
        %v854 = vpop.f32.mrb[0].mxu0
        %v855 = vadd.f32 %v531, %v854
        %v856 = vpop.f32.mrb[0].mxu0
        %857 = vmatprep.mubr.bf16.mxu0 0
        %858 = vmatmul.mubr.bf16.gmra.mrb[0].mxu0 %v642
        %v859 = vpop.f32.mrb[0].mxu0
        %v860 = vadd.f32 %v531, %v859
        %v861 = vpop.f32.mrb[0].mxu0
        %v862 = vpop.f32.mrb[0].mxu0
        %v863 = vadd.f32 %v531, %v862
        %v864 = vpop.f32.mrb[0].mxu0
        %865 = vmatprep.mubr.bf16.mxu0 0
        %866 = vmatmul.mubr.bf16.gmra.mrb[0].mxu0 %v643
        %v867 = vpop.f32.mrb[0].mxu0
        %v868 = vadd.f32 %v531, %v867
        %v869 = vpop.f32.mrb[0].mxu0
        %v870 = vpop.f32.mrb[0].mxu0
        %v871 = vadd.f32 %v531, %v870
        %v872 = vpop.f32.mrb[0].mxu0
        %873 = vmatprep.mubr.bf16.mxu0 0
        %874 = vmatmul.mubr.bf16.gmra.mrb[0].mxu0 %v644
        %v875 = vpop.f32.mrb[0].mxu0
        %v876 = vadd.f32 %v531, %v875
        %v877 = vpop.f32.mrb[0].mxu0
        %v878 = vpop.f32.mrb[0].mxu0
        %v879 = vadd.f32 %v531, %v878
        %v880 = vpop.f32.mrb[0].mxu0
        %881 = vmatprep.mubr.bf16.mxu0 0
        %882 = vmatmul.mubr.bf16.gmra.mrb[0].mxu0 %v645
        %v883 = vpop.f32.mrb[0].mxu0
        %v884 = vadd.f32 %v531, %v883
        %v885 = vpop.f32.mrb[0].mxu0
        %v886 = vpop.f32.mrb[0].mxu0
        %v887 = vadd.f32 %v531, %v886
        %v888 = vpop.f32.mrb[0].mxu0
        %889 = vmatprep.mubr.bf16.mxu0 0
        %890 = vmatmul.mubr.bf16.gmra.mrb[0].mxu0 %v646
        %v891 = vpop.f32.mrb[0].mxu0
        %v892 = vadd.f32 %v531, %v891
        %v893 = vpop.f32.mrb[0].mxu0
        %v894 = vpop.f32.mrb[0].mxu0
        %v895 = vadd.f32 %v531, %v894
        %v896 = vpop.f32.mrb[0].mxu0
        %897 = vmatprep.mubr.bf16.mxu0 0
        %898 = vmatmul.mubr.bf16.gmra.mrb[0].mxu0 %v647
        %v899 = vpop.f32.mrb[0].mxu0
        %v900 = vadd.f32 %v531, %v899
        %v901 = vpop.f32.mrb[0].mxu0
        %v902 = vpop.f32.mrb[0].mxu0
        %v903 = vadd.f32 %v531, %v902
        %v904 = vpop.f32.mrb[0].mxu0
        %905 = vmatprep.mubr.bf16.mxu0 0
        %906 = vmatmul.mubr.bf16.gmra.mrb[0].mxu0 %v648
        %v907 = vpop.f32.mrb[0].mxu0
        %v908 = vadd.f32 %v531, %v907
        %v909 = vpop.f32.mrb[0].mxu0
        %v910 = vpop.f32.mrb[0].mxu0
        %v911 = vadd.f32 %v531, %v910
        %v912 = vpop.f32.mrb[0].mxu0
        %913 = vmatprep.mubr.bf16.mxu0 0
        %914 = vmatmul.mubr.bf16.gmra.mrb[0].mxu0 %v649
        %v915 = vpop.f32.mrb[0].mxu0
        %v916 = vadd.f32 %v531, %v915
        %v917 = vpop.f32.mrb[0].mxu0
        %v918 = vpop.f32.mrb[0].mxu0
        %v919 = vadd.f32 %v531, %v918
        %v920 = vpop.f32.mrb[0].mxu0
        %921 = vmatprep.mubr.bf16.mxu0 0
        %922 = vmatmul.mubr.bf16.gmra.mrb[0].mxu0 %v650
        %v923 = vpop.f32.mrb[0].mxu0
        %v924 = vadd.f32 %v531, %v923
        %v925 = vpop.f32.mrb[0].mxu0
        %v926 = vpop.f32.mrb[0].mxu0
        %v927 = vadd.f32 %v531, %v926
        %v928 = vpop.f32.mrb[0].mxu0
        %929 = vmatprep.mubr.bf16.mxu0 0
        %930 = vmatmul.mubr.bf16.gmra.mrb[0].mxu0 %v651
        %v931 = vpop.f32.mrb[0].mxu0
        %v932 = vpop.f32.mrb[0].mxu0
        %v933 = vpop.f32.mrb[0].mxu0
        %v934 = vpop.f32.mrb[0].mxu0
        %935 = vmatprep.mubr.bf16.mxu0 0
        %936 = vmatmul.mubr.bf16.gmra.mrb[0].mxu0 %v652
        %v937 = vpop.f32.mrb[0].mxu0
        %v938 = vpop.f32.mrb[0].mxu0
        %v939 = vpop.f32.mrb[0].mxu0
        %v940 = vpop.f32.mrb[0].mxu0
        %941 = vdwg.mxu0
        %v942 = vsub.f32 0.0, %v772
        %v943 = vsub.f32 0.0, %v775
        %v944 = vsub.f32 0.0, %v780
        %v945 = vsub.f32 0.0, %v783
        %v946 = vsub.f32 0.0, %v788
        %v947 = vsub.f32 0.0, %v791
        %v948 = vsub.f32 0.0, %v796
        %v949 = vsub.f32 0.0, %v799
        %v950 = vsub.f32 0.0, %v804
        %v951 = vsub.f32 0.0, %v807
        %v952 = vsub.f32 0.0, %v812
        %v953 = vsub.f32 0.0, %v815
        %v954 = vsub.f32 0.0, %v820
        %v955 = vsub.f32 0.0, %v823
        %v956 = vsub.f32 0.0, %v828
        %v957 = vsub.f32 0.0, %v831
        %v958 = vsub.f32 0.0, %v836
        %v959 = vsub.f32 0.0, %v839
        %v960 = vsub.f32 0.0, %v844
        %v961 = vsub.f32 0.0, %v847
        %v962 = vsub.f32 0.0, %v852
        %v963 = vsub.f32 0.0, %v855
        %v964 = vsub.f32 0.0, %v860
        %v965 = vsub.f32 0.0, %v863
        %v966 = vsub.f32 0.0, %v868
        %v967 = vsub.f32 0.0, %v871
        %v968 = vsub.f32 0.0, %v876
        %v969 = vsub.f32 0.0, %v879
        %v970 = vsub.f32 0.0, %v884
        %v971 = vsub.f32 0.0, %v887
        %v972 = vsub.f32 0.0, %v892
        %v973 = vsub.f32 0.0, %v895
        %v974 = vsub.f32 0.0, %v900
        %v975 = vsub.f32 0.0, %v903
        %v976 = vsub.f32 0.0, %v908
        %v977 = vsub.f32 0.0, %v911
        %v978 = vsub.f32 0.0, %v916
        %v979 = vsub.f32 0.0, %v919
        %v980 = vsub.f32 0.0, %v924
        %v981 = vsub.f32 0.0, %v927
        %v982 = vmul.f32 %v942, 1.442695
        %v983 = vpow.pop %v982
        %v984 = vmul.f32 %v943, 1.442695
        %v985 = vpow.pop %v984
        %v986 = vmul.f32 %v944, 1.442695
        %v987 = vpow.pop %v986
        %v988 = vmul.f32 %v945, 1.442695
        %v989 = vpow.pop %v988
        %v990 = vmul.f32 %v946, 1.442695
        %v991 = vpow.pop %v990
        %v992 = vmul.f32 %v947, 1.442695
        %v993 = vpow.pop %v992
        %v994 = vmul.f32 %v948, 1.442695
        %v995 = vpow.pop %v994
        %v996 = vmul.f32 %v949, 1.442695
        %v997 = vpow.pop %v996
        %v998 = vmul.f32 %v950, 1.442695
        %v999 = vpow.pop %v998
        %v1000 = vmul.f32 %v951, 1.442695
        %v1001 = vpow.pop %v1000
        %v1002 = vmul.f32 %v952, 1.442695
        %v1003 = vpow.pop %v1002
        %v1004 = vmul.f32 %v953, 1.442695
        %v1005 = vpow.pop %v1004
        %v1006 = vmul.f32 %v954, 1.442695
        %v1007 = vpow.pop %v1006
        %v1008 = vmul.f32 %v955, 1.442695
        %v1009 = vpow.pop %v1008
        %v1010 = vmul.f32 %v956, 1.442695
        %v1011 = vpow.pop %v1010
        %v1012 = vmul.f32 %v957, 1.442695
        %v1013 = vpow.pop %v1012
        %v1014 = vmul.f32 %v958, 1.442695
        %v1015 = vpow.pop %v1014
        %v1016 = vmul.f32 %v959, 1.442695
        %v1017 = vpow.pop %v1016
        %v1018 = vmul.f32 %v960, 1.442695
        %v1019 = vpow.pop %v1018
        %v1020 = vmul.f32 %v961, 1.442695
        %v1021 = vpow.pop %v1020
        %v1022 = vmul.f32 %v962, 1.442695
        %v1023 = vpow.pop %v1022
        %v1024 = vmul.f32 %v963, 1.442695
        %v1025 = vpow.pop %v1024
        %v1026 = vmul.f32 %v964, 1.442695
        %v1027 = vpow.pop %v1026
        %v1028 = vmul.f32 %v965, 1.442695
        %v1029 = vpow.pop %v1028
        %v1030 = vmul.f32 %v966, 1.442695
        %v1031 = vpow.pop %v1030
        %v1032 = vmul.f32 %v967, 1.442695
        %v1033 = vpow.pop %v1032
        %v1034 = vmul.f32 %v968, 1.442695
        %v1035 = vpow.pop %v1034
        %v1036 = vmul.f32 %v969, 1.442695
        %v1037 = vpow.pop %v1036
        %v1038 = vmul.f32 %v970, 1.442695
        %v1039 = vpow.pop %v1038
        %v1040 = vmul.f32 %v971, 1.442695
        %v1041 = vpow.pop %v1040
        %v1042 = vmul.f32 %v972, 1.442695
        %v1043 = vpow.pop %v1042
        %v1044 = vmul.f32 %v973, 1.442695
        %v1045 = vpow.pop %v1044
        %v1046 = vmul.f32 %v974, 1.442695
        %v1047 = vpow.pop %v1046
        %v1048 = vmul.f32 %v975, 1.442695
        %v1049 = vpow.pop %v1048
        %v1050 = vmul.f32 %v976, 1.442695
        %v1051 = vpow.pop %v1050
        %v1052 = vmul.f32 %v977, 1.442695
        %v1053 = vpow.pop %v1052
        %v1054 = vmul.f32 %v978, 1.442695
        %v1055 = vpow.pop %v1054
        %v1056 = vmul.f32 %v979, 1.442695
        %v1057 = vpow.pop %v1056
        %v1058 = vmul.f32 %v980, 1.442695
        %v1059 = vpow.pop %v1058
        %v1060 = vmul.f32 %v981, 1.442695
        %v1061 = vpow.pop %v1060
        %v1062 = vadd.f32 %v983, 1.0
        %v1063 = vadd.f32 %v985, 1.0
        %v1064 = vadd.f32 %v987, 1.0
        %v1065 = vadd.f32 %v989, 1.0
        %v1066 = vadd.f32 %v991, 1.0
        %v1067 = vadd.f32 %v993, 1.0
        %v1068 = vadd.f32 %v995, 1.0
        %v1069 = vadd.f32 %v997, 1.0
        %v1070 = vadd.f32 %v999, 1.0
        %v1071 = vadd.f32 %v1001, 1.0
        %v1072 = vadd.f32 %v1003, 1.0
        %v1073 = vadd.f32 %v1005, 1.0
        %v1074 = vadd.f32 %v1007, 1.0
        %v1075 = vadd.f32 %v1009, 1.0
        %v1076 = vadd.f32 %v1011, 1.0
        %v1077 = vadd.f32 %v1013, 1.0
        %v1078 = vadd.f32 %v1015, 1.0
        %v1079 = vadd.f32 %v1017, 1.0
        %v1080 = vadd.f32 %v1019, 1.0
        %v1081 = vadd.f32 %v1021, 1.0
        %v1082 = vadd.f32 %v1023, 1.0
        %v1083 = vadd.f32 %v1025, 1.0
        %v1084 = vadd.f32 %v1027, 1.0
        %v1085 = vadd.f32 %v1029, 1.0
        %v1086 = vadd.f32 %v1031, 1.0
        %v1087 = vadd.f32 %v1033, 1.0
        %v1088 = vadd.f32 %v1035, 1.0
        %v1089 = vadd.f32 %v1037, 1.0
        %v1090 = vadd.f32 %v1039, 1.0
        %v1091 = vadd.f32 %v1041, 1.0
        %v1092 = vadd.f32 %v1043, 1.0
        %v1093 = vadd.f32 %v1045, 1.0
        %v1094 = vadd.f32 %v1047, 1.0
        %v1095 = vadd.f32 %v1049, 1.0
        %v1096 = vadd.f32 %v1051, 1.0
        %v1097 = vadd.f32 %v1053, 1.0
        %v1098 = vadd.f32 %v1055, 1.0
        %v1099 = vadd.f32 %v1057, 1.0
        %v1100 = vadd.f32 %v1059, 1.0
        %v1101 = vadd.f32 %v1061, 1.0
        %v1102 = vrcp.pop %v1062
        %v1103 = vrcp.pop %v1063
        %v1104 = vrcp.pop %v1064
        %v1105 = vrcp.pop %v1065
        %v1106 = vrcp.pop %v1066
        %v1107 = vrcp.pop %v1067
        %v1108 = vrcp.pop %v1068
        %v1109 = vrcp.pop %v1069
        %v1110 = vrcp.pop %v1070
        %v1111 = vrcp.pop %v1071
        %v1112 = vrcp.pop %v1072
        %v1113 = vrcp.pop %v1073
        %v1114 = vrcp.pop %v1074
        %v1115 = vrcp.pop %v1075
        %v1116 = vrcp.pop %v1076
        %v1117 = vrcp.pop %v1077
        %v1118 = vrcp.pop %v1078
        %v1119 = vrcp.pop %v1079
        %v1120 = vrcp.pop %v1080
        %v1121 = vrcp.pop %v1081
        %v1122 = vrcp.pop %v1082
        %v1123 = vrcp.pop %v1083
        %v1124 = vrcp.pop %v1084
        %v1125 = vrcp.pop %v1085
        %v1126 = vrcp.pop %v1086
        %v1127 = vrcp.pop %v1087
        %v1128 = vrcp.pop %v1088
        %v1129 = vrcp.pop %v1089
        %v1130 = vrcp.pop %v1090
        %v1131 = vrcp.pop %v1091
        %v1132 = vrcp.pop %v1092
        %v1133 = vrcp.pop %v1093
        %v1134 = vrcp.pop %v1094
        %v1135 = vrcp.pop %v1095
        %v1136 = vrcp.pop %v1096
        %v1137 = vrcp.pop %v1097
        %v1138 = vrcp.pop %v1098
        %v1139 = vrcp.pop %v1099
        %v1140 = vrcp.pop %v1100
        %v1141 = vrcp.pop %v1101
        %v1142 = vmul.f32 %v772, %v1102
        %v1143 = vmul.f32 %v775, %v1103
        %v1144 = vmul.f32 %v780, %v1104
        %v1145 = vmul.f32 %v783, %v1105
        %v1146 = vmul.f32 %v788, %v1106
        %v1147 = vmul.f32 %v791, %v1107
        %v1148 = vmul.f32 %v796, %v1108
        %v1149 = vmul.f32 %v799, %v1109
        %v1150 = vmul.f32 %v804, %v1110
        %v1151 = vmul.f32 %v807, %v1111
        %v1152 = vmul.f32 %v812, %v1112
        %v1153 = vmul.f32 %v815, %v1113
        %v1154 = vmul.f32 %v820, %v1114
        %v1155 = vmul.f32 %v823, %v1115
        %v1156 = vmul.f32 %v828, %v1116
        %v1157 = vmul.f32 %v831, %v1117
        %v1158 = vmul.f32 %v836, %v1118
        %v1159 = vmul.f32 %v839, %v1119
        %v1160 = vmul.f32 %v844, %v1120
        %v1161 = vmul.f32 %v847, %v1121
        %v1162 = vmul.f32 %v852, %v1122
        %v1163 = vmul.f32 %v855, %v1123
        %v1164 = vmul.f32 %v860, %v1124
        %v1165 = vmul.f32 %v863, %v1125
        %v1166 = vmul.f32 %v868, %v1126
        %v1167 = vmul.f32 %v871, %v1127
        %v1168 = vmul.f32 %v876, %v1128
        %v1169 = vmul.f32 %v879, %v1129
        %v1170 = vmul.f32 %v884, %v1130
        %v1171 = vmul.f32 %v887, %v1131
        %v1172 = vmul.f32 %v892, %v1132
        %v1173 = vmul.f32 %v895, %v1133
        %v1174 = vmul.f32 %v900, %v1134
        %v1175 = vmul.f32 %v903, %v1135
        %v1176 = vmul.f32 %v908, %v1136
        %v1177 = vmul.f32 %v911, %v1137
        %v1178 = vmul.f32 %v916, %v1138
        %v1179 = vmul.f32 %v919, %v1139
        %v1180 = vmul.f32 %v924, %v1140
        %v1181 = vmul.f32 %v927, %v1141
        %v1182 = vpack.c.bf16 %v1143, %v1142
        %v1183 = vpack.c.bf16 %v1145, %v1144
        %v1184 = vpack.c.bf16 %v1147, %v1146
        %v1185 = vpack.c.bf16 %v1149, %v1148
        %v1186 = vpack.c.bf16 %v1151, %v1150
        %v1187 = vpack.c.bf16 %v1153, %v1152
        %v1188 = vpack.c.bf16 %v1155, %v1154
        %v1189 = vpack.c.bf16 %v1157, %v1156
        %v1190 = vpack.c.bf16 %v1159, %v1158
        %v1191 = vpack.c.bf16 %v1161, %v1160
        %v1192 = vpack.c.bf16 %v1163, %v1162
        %v1193 = vpack.c.bf16 %v1165, %v1164
        %v1194 = vpack.c.bf16 %v1167, %v1166
        %v1195 = vpack.c.bf16 %v1169, %v1168
        %v1196 = vpack.c.bf16 %v1171, %v1170
        %v1197 = vpack.c.bf16 %v1173, %v1172
        %v1198 = vpack.c.bf16 %v1175, %v1174
        %v1199 = vpack.c.bf16 %v1177, %v1176
        %v1200 = vpack.c.bf16 %v1179, %v1178
        %v1201 = vpack.c.bf16 %v1181, %v1180
        %p1202 = scmp.eq.s32.totalorder %s33, 0
        %s1203 = scalar_select %p1202, -1e+30, 0.0
        %p1205 = scmp.ne.f32.partialorder %s1203, %s1203
        %s1206 = sshrl.u32 %s1203, 16
        %s1207 = sand.u32 %s1206, 1
        %s1208 = sadd.s32 32767, %s1207
        %s1209 = sadd.s32 %s1203, %s1208
        %s1210 = sand.u32 %s1209, 4294901760
        %s1211 = scalar_select %p1205, 2143289344, %s1210
        %s1213 = sshrl.u32 %s1211, 16
        %p1214 = scmp.eq.s32.totalorder %s33, 1
        %s1215 = scalar_select %p1214, -1e+30, 0.0
        %p1217 = scmp.ne.f32.partialorder %s1215, %s1215
        %s1218 = sshrl.u32 %s1215, 16
        %s1219 = sand.u32 %s1218, 1
        %s1220 = sadd.s32 32767, %s1219
        %s1221 = sadd.s32 %s1215, %s1220
        %s1222 = sand.u32 %s1221, 4294901760
        %s1223 = scalar_select %p1217, 2143289344, %s1222
        %s1225 = sshrl.u32 %s1223, 16
        %s1226 = sshll.u32 %s1213, 16
        %s1227 = sor.u32 %s1213, %s1226
        %v1228 = vstv %s1227
        %v1230 = vadd.bf16 %v1182, %v1228
        %v1231 = vadd.bf16 %v1183, %v1228
        %v1232 = vadd.bf16 %v1184, %v1228
        %v1233 = vadd.bf16 %v1185, %v1228
        %v1234 = vadd.bf16 %v1186, %v1228
        %v1235 = vadd.bf16 %v1187, %v1228
        %s1236 = sshll.u32 %s1225, 16
        %s1237 = sor.u32 %s1225, %s1236
        %v1238 = vstv %s1237
        %v1240 = vadd.bf16 %v1196, %v1238
        %v1241 = vadd.bf16 %v1197, %v1238
        %v1242 = vadd.bf16 %v1198, %v1238
        %v1243 = vadd.bf16 %v1199, %v1238
        %v1244 = vadd.bf16 %v1200, %v1238
        %v1245 = vadd.bf16 %v1201, %v1238
        %v1266 = vrot.slane %v1230, 5
        %v1267 = vrot.slane %v1231, 5
        %v1268 = vrot.slane %v1232, 5
        %v1269 = vrot.slane %v1233, 5
        %v1270 = vrot.slane %v1234, 5
        %v1271 = vrot.slane %v1235, 5
        %v1272 = vrot.slane %v1188, 5
        %v1273 = vrot.slane %v1189, 5
        %v1274 = vrot.slane %v1190, 5
        %v1275 = vrot.slane %v1191, 5
        %v1276 = vrot.slane %v1192, 5
        %v1277 = vrot.slane %v1193, 5
        %v1278 = vrot.slane %v1194, 5
        %v1279 = vrot.slane %v1195, 5
        %v1280 = vrot.slane %v1240, 5
        %v1281 = vrot.slane %v1241, 5
        %v1282 = vrot.slane %v1242, 5
        %v1283 = vrot.slane %v1243, 5
        %v1284 = vrot.slane %v1244, 5
        %v1285 = vrot.slane %v1245, 5
        %vm1286 = vcmask 1042432
        %v1289 = vsel %vm1286, 4048220490, %v1266
        %v1292 = vsel %vm1286, 4048220490, %v1267
        %v1295 = vsel %vm1286, 4048220490, %v1268
        %v1298 = vsel %vm1286, 4048220490, %v1269
        %v1301 = vsel %vm1286, 4048220490, %v1270
        %v1304 = vsel %vm1286, 4048220490, %v1271
        %v1307 = vsel %vm1286, 4048220490, %v1272
        %v1310 = vsel %vm1286, 4048220490, %v1273
        %v1313 = vsel %vm1286, 4048220490, %v1274
        %v1316 = vsel %vm1286, 4048220490, %v1275
        %v1319 = vsel %vm1286, 4048220490, %v1276
        %v1322 = vsel %vm1286, 4048220490, %v1277
        %v1325 = vsel %vm1286, 4048220490, %v1278
        %v1328 = vsel %vm1286, 4048220490, %v1279
        %v1331 = vsel %vm1286, 4048220490, %v1280
        %v1334 = vsel %vm1286, 4048220490, %v1281
        %v1337 = vsel %vm1286, 4048220490, %v1282
        %v1340 = vsel %vm1286, 4048220490, %v1283
        %v1343 = vsel %vm1286, 4048220490, %v1284
        %v1346 = vsel %vm1286, 4048220490, %v1285
        %v1348 = vsel %vm1286, %v1266, 4048220490
        %v1350 = vsel %vm1286, %v1267, 4048220490
        %v1352 = vsel %vm1286, %v1268, 4048220490
        %v1354 = vsel %vm1286, %v1269, 4048220490
        %v1356 = vsel %vm1286, %v1270, 4048220490
        %v1358 = vsel %vm1286, %v1271, 4048220490
        %v1360 = vsel %vm1286, %v1272, 4048220490
        %v1362 = vsel %vm1286, %v1273, 4048220490
        %v1364 = vsel %vm1286, %v1274, 4048220490
        %v1366 = vsel %vm1286, %v1275, 4048220490
        %v1368 = vsel %vm1286, %v1276, 4048220490
        %v1370 = vsel %vm1286, %v1277, 4048220490
        %v1372 = vsel %vm1286, %v1278, 4048220490
        %v1374 = vsel %vm1286, %v1279, 4048220490
        %v1376 = vsel %vm1286, %v1280, 4048220490
        %v1378 = vsel %vm1286, %v1281, 4048220490
        %v1380 = vsel %vm1286, %v1282, 4048220490
        %v1382 = vsel %vm1286, %v1283, 4048220490
        %v1384 = vsel %vm1286, %v1284, 4048220490
        %v1386 = vsel %vm1286, %v1285, 4048220490
        %v1388 = vld [vmem:[#allocation10] sm:$0xf]
        %v1389 = vld [vmem:[#allocation10 + $0x4] sm:$0xf]
        %v1390 = vld [vmem:[#allocation10 + $0x8] sm:$0xf]
        %v1391 = vld [vmem:[#allocation10 + $0xc] sm:$0xf]
        %v1392 = vld [vmem:[#allocation10 + $0x10] sm:$0xf]
        %v1393 = vld [vmem:[#allocation10 + $0x14] sm:$0xf]
        %v1394 = vld [vmem:[#allocation10 + $0x18] sm:$0xf]
        %v1395 = vld [vmem:[#allocation10 + $0x1c] sm:$0xf]
        %v1396 = vld [vmem:[#allocation10 + $0x20] sm:$0xf]
        %v1397 = vld [vmem:[#allocation10 + $0x24] sm:$0xf]
        %v1398 = vld [vmem:[#allocation10 + $0x28] sm:$0xf]
        %v1399 = vld [vmem:[#allocation10 + $0x2c] sm:$0xf]
        %v1400 = vld [vmem:[#allocation10 + $0x30] sm:$0xf]
        %v1401 = vld [vmem:[#allocation10 + $0x34] sm:$0xf]
        %v1402 = vld [vmem:[#allocation10 + $0x38] sm:$0xf]
        %v1403 = vld [vmem:[#allocation10 + $0x3c] sm:$0xf]
        %vm1404 = vsmask.f32 7424
        %v1405 = vshrl.u32 %v1289, 16
        %v1407 = vshll.u32 %v1289, 16
        %v1409 = vrot.slane %v1407, 1
        %v1410 = vor.u32 %v1405, %v1409
        %v1411 = vshll.u32 %v1348, 16
        %v1413 = vrot.slane %v1411, 1
        %v1414 = vsel %vm1404, %v1410, %v1413
        %v1415 = vshrl.u32 %v1348, 16
        %v1417 = vor.u32 %v1415, %v1413
        %v1418 = vshrl.u32 %v1292, 16
        %v1420 = vshll.u32 %v1292, 16
        %v1422 = vrot.slane %v1420, 1
        %v1423 = vor.u32 %v1418, %v1422
        %v1424 = vshll.u32 %v1350, 16
        %v1426 = vrot.slane %v1424, 1
        %v1427 = vsel %vm1404, %v1423, %v1426
        %v1428 = vshrl.u32 %v1350, 16
        %v1430 = vor.u32 %v1428, %v1426
        %v1431 = vshrl.u32 %v1295, 16
        %v1433 = vshll.u32 %v1295, 16
        %v1435 = vrot.slane %v1433, 1
        %v1436 = vor.u32 %v1431, %v1435
        %v1437 = vshll.u32 %v1352, 16
        %v1439 = vrot.slane %v1437, 1
        %v1440 = vsel %vm1404, %v1436, %v1439
        %v1441 = vshrl.u32 %v1352, 16
        %v1443 = vor.u32 %v1441, %v1439
        %v1444 = vshrl.u32 %v1298, 16
        %v1446 = vshll.u32 %v1298, 16
        %v1448 = vrot.slane %v1446, 1
        %v1449 = vor.u32 %v1444, %v1448
        %v1450 = vshll.u32 %v1354, 16
        %v1452 = vrot.slane %v1450, 1
        %v1453 = vsel %vm1404, %v1449, %v1452
        %v1454 = vshrl.u32 %v1354, 16
        %v1456 = vor.u32 %v1454, %v1452
        %v1457 = vshrl.u32 %v1301, 16
        %v1459 = vshll.u32 %v1301, 16
        %v1461 = vrot.slane %v1459, 1
        %v1462 = vor.u32 %v1457, %v1461
        %v1463 = vshll.u32 %v1356, 16
        %v1465 = vrot.slane %v1463, 1
        %v1466 = vsel %vm1404, %v1462, %v1465
        %v1467 = vshrl.u32 %v1356, 16
        %v1469 = vor.u32 %v1467, %v1465
        %v1470 = vshrl.u32 %v1304, 16
        %v1472 = vshll.u32 %v1304, 16
        %v1474 = vrot.slane %v1472, 1
        %v1475 = vor.u32 %v1470, %v1474
        %v1476 = vshll.u32 %v1358, 16
        %v1478 = vrot.slane %v1476, 1
        %v1479 = vsel %vm1404, %v1475, %v1478
        %v1480 = vshrl.u32 %v1358, 16
        %v1482 = vor.u32 %v1480, %v1478
        %v1483 = vshrl.u32 %v1307, 16
        %v1485 = vshll.u32 %v1307, 16
        %v1487 = vrot.slane %v1485, 1
        %v1488 = vor.u32 %v1483, %v1487
        %v1489 = vshll.u32 %v1360, 16
        %v1491 = vrot.slane %v1489, 1
        %v1492 = vsel %vm1404, %v1488, %v1491
        %v1493 = vshrl.u32 %v1360, 16
        %v1495 = vor.u32 %v1493, %v1491
        %v1496 = vshrl.u32 %v1310, 16
        %v1498 = vshll.u32 %v1310, 16
        %v1500 = vrot.slane %v1498, 1
        %v1501 = vor.u32 %v1496, %v1500
        %v1502 = vshll.u32 %v1362, 16
        %v1504 = vrot.slane %v1502, 1
        %v1505 = vsel %vm1404, %v1501, %v1504
        %v1506 = vshrl.u32 %v1362, 16
        %v1508 = vor.u32 %v1506, %v1504
        %v1509 = vshrl.u32 %v1313, 16
        %v1511 = vshll.u32 %v1313, 16
        %v1513 = vrot.slane %v1511, 1
        %v1514 = vor.u32 %v1509, %v1513
        %v1515 = vshll.u32 %v1364, 16
        %v1517 = vrot.slane %v1515, 1
        %v1518 = vsel %vm1404, %v1514, %v1517
        %v1519 = vshrl.u32 %v1364, 16
        %v1521 = vor.u32 %v1519, %v1517
        %v1522 = vshrl.u32 %v1316, 16
        %v1524 = vshll.u32 %v1316, 16
        %v1526 = vrot.slane %v1524, 1
        %v1527 = vor.u32 %v1522, %v1526
        %v1528 = vshll.u32 %v1366, 16
        %v1530 = vrot.slane %v1528, 1
        %v1531 = vsel %vm1404, %v1527, %v1530
        %v1532 = vshrl.u32 %v1366, 16
        %v1534 = vor.u32 %v1532, %v1530
        %v1535 = vshrl.u32 %v1319, 16
        %v1537 = vshll.u32 %v1319, 16
        %v1539 = vrot.slane %v1537, 1
        %v1540 = vor.u32 %v1535, %v1539
        %v1541 = vshll.u32 %v1368, 16
        %v1543 = vrot.slane %v1541, 1
        %v1544 = vsel %vm1404, %v1540, %v1543
        %v1545 = vshrl.u32 %v1368, 16
        %v1547 = vor.u32 %v1545, %v1543
        %v1548 = vshrl.u32 %v1322, 16
        %v1550 = vshll.u32 %v1322, 16
        %v1552 = vrot.slane %v1550, 1
        %v1553 = vor.u32 %v1548, %v1552
        %v1554 = vshll.u32 %v1370, 16
        %v1556 = vrot.slane %v1554, 1
        %v1557 = vsel %vm1404, %v1553, %v1556
        %v1558 = vshrl.u32 %v1370, 16
        %v1560 = vor.u32 %v1558, %v1556
        %v1561 = vshrl.u32 %v1325, 16
        %v1563 = vshll.u32 %v1325, 16
        %v1565 = vrot.slane %v1563, 1
        %v1566 = vor.u32 %v1561, %v1565
        %v1567 = vshll.u32 %v1372, 16
        %v1569 = vrot.slane %v1567, 1
        %v1570 = vsel %vm1404, %v1566, %v1569
        %v1571 = vshrl.u32 %v1372, 16
        %v1573 = vor.u32 %v1571, %v1569
        %v1574 = vshrl.u32 %v1328, 16
        %v1576 = vshll.u32 %v1328, 16
        %v1578 = vrot.slane %v1576, 1
        %v1579 = vor.u32 %v1574, %v1578
        %v1580 = vshll.u32 %v1374, 16
        %v1582 = vrot.slane %v1580, 1
        %v1583 = vsel %vm1404, %v1579, %v1582
        %v1584 = vshrl.u32 %v1374, 16
        %v1586 = vor.u32 %v1584, %v1582
        %v1587 = vshrl.u32 %v1331, 16
        %v1589 = vshll.u32 %v1331, 16
        %v1591 = vrot.slane %v1589, 1
        %v1592 = vor.u32 %v1587, %v1591
        %v1593 = vshll.u32 %v1376, 16
        %v1595 = vrot.slane %v1593, 1
        %v1596 = vsel %vm1404, %v1592, %v1595
        %v1597 = vshrl.u32 %v1376, 16
        %v1599 = vor.u32 %v1597, %v1595
        %v1600 = vshrl.u32 %v1334, 16
        %v1602 = vshll.u32 %v1334, 16
        %v1604 = vrot.slane %v1602, 1
        %v1605 = vor.u32 %v1600, %v1604
        %v1606 = vshll.u32 %v1378, 16
        %v1608 = vrot.slane %v1606, 1
        %v1609 = vsel %vm1404, %v1605, %v1608
        %v1610 = vshrl.u32 %v1378, 16
        %v1612 = vor.u32 %v1610, %v1608
        %v1613 = vshrl.u32 %v1337, 16
        %v1615 = vshll.u32 %v1337, 16
        %v1617 = vrot.slane %v1615, 1
        %v1618 = vor.u32 %v1613, %v1617
        %v1619 = vshll.u32 %v1380, 16
        %v1621 = vrot.slane %v1619, 1
        %v1622 = vsel %vm1404, %v1618, %v1621
        %v1623 = vshrl.u32 %v1380, 16
        %v1625 = vor.u32 %v1623, %v1621
        %v1626 = vshrl.u32 %v1340, 16
        %v1628 = vshll.u32 %v1340, 16
        %v1630 = vrot.slane %v1628, 1
        %v1631 = vor.u32 %v1626, %v1630
        %v1632 = vshll.u32 %v1382, 16
        %v1634 = vrot.slane %v1632, 1
        %v1635 = vsel %vm1404, %v1631, %v1634
        %v1636 = vshrl.u32 %v1382, 16
        %v1638 = vor.u32 %v1636, %v1634
        %v1639 = vshrl.u32 %v1343, 16
        %v1641 = vshll.u32 %v1343, 16
        %v1643 = vrot.slane %v1641, 1
        %v1644 = vor.u32 %v1639, %v1643
        %v1645 = vshll.u32 %v1384, 16
        %v1647 = vrot.slane %v1645, 1
        %v1648 = vsel %vm1404, %v1644, %v1647
        %v1649 = vshrl.u32 %v1384, 16
        %v1651 = vor.u32 %v1649, %v1647
        %v1652 = vshrl.u32 %v1346, 16
        %v1654 = vshll.u32 %v1346, 16
        %v1656 = vrot.slane %v1654, 1
        %v1657 = vor.u32 %v1652, %v1656
        %v1658 = vshll.u32 %v1386, 16
        %v1660 = vrot.slane %v1658, 1
        %v1661 = vsel %vm1404, %v1657, %v1660
        %v1662 = vshrl.u32 %v1386, 16
        %v1664 = vor.u32 %v1662, %v1660
        %v1705 = vmax.bf16 %v1289, %v1414
        %v1706 = vmax.bf16 %v1348, %v1417
        %v1707 = vmax.bf16 %v1292, %v1427
        %v1708 = vmax.bf16 %v1350, %v1430
        %v1709 = vmax.bf16 %v1295, %v1440
        %v1710 = vmax.bf16 %v1352, %v1443
        %v1711 = vmax.bf16 %v1298, %v1453
        %v1712 = vmax.bf16 %v1354, %v1456
        %v1713 = vmax.bf16 %v1301, %v1466
        %v1714 = vmax.bf16 %v1356, %v1469
        %v1715 = vmax.bf16 %v1304, %v1479
        %v1716 = vmax.bf16 %v1358, %v1482
        %v1717 = vmax.bf16 %v1307, %v1492
        %v1718 = vmax.bf16 %v1360, %v1495
        %v1719 = vmax.bf16 %v1310, %v1505
        %v1720 = vmax.bf16 %v1362, %v1508
        %v1721 = vmax.bf16 %v1313, %v1518
        %v1722 = vmax.bf16 %v1364, %v1521
        %v1723 = vmax.bf16 %v1316, %v1531
        %v1724 = vmax.bf16 %v1366, %v1534
        %v1725 = vmax.bf16 %v1319, %v1544
        %v1726 = vmax.bf16 %v1368, %v1547
        %v1727 = vmax.bf16 %v1322, %v1557
        %v1728 = vmax.bf16 %v1370, %v1560
        %v1729 = vmax.bf16 %v1325, %v1570
        %v1730 = vmax.bf16 %v1372, %v1573
        %v1731 = vmax.bf16 %v1328, %v1583
        %v1732 = vmax.bf16 %v1374, %v1586
        %v1733 = vmax.bf16 %v1331, %v1596
        %v1734 = vmax.bf16 %v1376, %v1599
        %v1735 = vmax.bf16 %v1334, %v1609
        %v1736 = vmax.bf16 %v1378, %v1612
        %v1737 = vmax.bf16 %v1337, %v1622
        %v1738 = vmax.bf16 %v1380, %v1625
        %v1739 = vmax.bf16 %v1340, %v1635
        %v1740 = vmax.bf16 %v1382, %v1638
        %v1741 = vmax.bf16 %v1343, %v1648
        %v1742 = vmax.bf16 %v1384, %v1651
        %v1743 = vmax.bf16 %v1346, %v1661
        %v1744 = vmax.bf16 %v1386, %v1664
        %vm1785 = vcmask 1046528
        %v1786 = vrot.slane %v1289, 1
        %v1787 = vrot.slane %v1348, 1
        %v1788 = vsel %vm1785, %v1786, %v1787
        %v1789 = vrot.slane %v1292, 1
        %v1790 = vrot.slane %v1350, 1
        %v1791 = vsel %vm1785, %v1789, %v1790
        %v1792 = vrot.slane %v1295, 1
        %v1793 = vrot.slane %v1352, 1
        %v1794 = vsel %vm1785, %v1792, %v1793
        %v1795 = vrot.slane %v1298, 1
        %v1796 = vrot.slane %v1354, 1
        %v1797 = vsel %vm1785, %v1795, %v1796
        %v1798 = vrot.slane %v1301, 1
        %v1799 = vrot.slane %v1356, 1
        %v1800 = vsel %vm1785, %v1798, %v1799
        %v1801 = vrot.slane %v1304, 1
        %v1802 = vrot.slane %v1358, 1
        %v1803 = vsel %vm1785, %v1801, %v1802
        %v1804 = vrot.slane %v1307, 1
        %v1805 = vrot.slane %v1360, 1
        %v1806 = vsel %vm1785, %v1804, %v1805
        %v1807 = vrot.slane %v1310, 1
        %v1808 = vrot.slane %v1362, 1
        %v1809 = vsel %vm1785, %v1807, %v1808
        %v1810 = vrot.slane %v1313, 1
        %v1811 = vrot.slane %v1364, 1
        %v1812 = vsel %vm1785, %v1810, %v1811
        %v1813 = vrot.slane %v1316, 1
        %v1814 = vrot.slane %v1366, 1
        %v1815 = vsel %vm1785, %v1813, %v1814
        %v1816 = vrot.slane %v1319, 1
        %v1817 = vrot.slane %v1368, 1
        %v1818 = vsel %vm1785, %v1816, %v1817
        %v1819 = vrot.slane %v1322, 1
        %v1820 = vrot.slane %v1370, 1
        %v1821 = vsel %vm1785, %v1819, %v1820
        %v1822 = vrot.slane %v1325, 1
        %v1823 = vrot.slane %v1372, 1
        %v1824 = vsel %vm1785, %v1822, %v1823
        %v1825 = vrot.slane %v1328, 1
        %v1826 = vrot.slane %v1374, 1
        %v1827 = vsel %vm1785, %v1825, %v1826
        %v1828 = vrot.slane %v1331, 1
        %v1829 = vrot.slane %v1376, 1
        %v1830 = vsel %vm1785, %v1828, %v1829
        %v1831 = vrot.slane %v1334, 1
        %v1832 = vrot.slane %v1378, 1
        %v1833 = vsel %vm1785, %v1831, %v1832
        %v1834 = vrot.slane %v1337, 1
        %v1835 = vrot.slane %v1380, 1
        %v1836 = vsel %vm1785, %v1834, %v1835
        %v1837 = vrot.slane %v1340, 1
        %v1838 = vrot.slane %v1382, 1
        %v1839 = vsel %vm1785, %v1837, %v1838
        %v1840 = vrot.slane %v1343, 1
        %v1841 = vrot.slane %v1384, 1
        %v1842 = vsel %vm1785, %v1840, %v1841
        %v1843 = vrot.slane %v1346, 1
        %v1844 = vrot.slane %v1386, 1
        %v1845 = vsel %vm1785, %v1843, %v1844
        %v1886 = vmax.bf16 %v1705, %v1788
        %v1887 = vmax.bf16 %v1706, %v1787
        %v1888 = vmax.bf16 %v1707, %v1791
        %v1889 = vmax.bf16 %v1708, %v1790
        %v1890 = vmax.bf16 %v1709, %v1794
        %v1891 = vmax.bf16 %v1710, %v1793
        %v1892 = vmax.bf16 %v1711, %v1797
        %v1893 = vmax.bf16 %v1712, %v1796
        %v1894 = vmax.bf16 %v1713, %v1800
        %v1895 = vmax.bf16 %v1714, %v1799
        %v1896 = vmax.bf16 %v1715, %v1803
        %v1897 = vmax.bf16 %v1716, %v1802
        %v1898 = vmax.bf16 %v1717, %v1806
        %v1899 = vmax.bf16 %v1718, %v1805
        %v1900 = vmax.bf16 %v1719, %v1809
        %v1901 = vmax.bf16 %v1720, %v1808
        %v1902 = vmax.bf16 %v1721, %v1812
        %v1903 = vmax.bf16 %v1722, %v1811
        %v1904 = vmax.bf16 %v1723, %v1815
        %v1905 = vmax.bf16 %v1724, %v1814
        %v1906 = vmax.bf16 %v1725, %v1818
        %v1907 = vmax.bf16 %v1726, %v1817
        %v1908 = vmax.bf16 %v1727, %v1821
        %v1909 = vmax.bf16 %v1728, %v1820
        %v1910 = vmax.bf16 %v1729, %v1824
        %v1911 = vmax.bf16 %v1730, %v1823
        %v1912 = vmax.bf16 %v1731, %v1827
        %v1913 = vmax.bf16 %v1732, %v1826
        %v1914 = vmax.bf16 %v1733, %v1830
        %v1915 = vmax.bf16 %v1734, %v1829
        %v1916 = vmax.bf16 %v1735, %v1833
        %v1917 = vmax.bf16 %v1736, %v1832
        %v1918 = vmax.bf16 %v1737, %v1836
        %v1919 = vmax.bf16 %v1738, %v1835
        %v1920 = vmax.bf16 %v1739, %v1839
        %v1921 = vmax.bf16 %v1740, %v1838
        %v1922 = vmax.bf16 %v1741, %v1842
        %v1923 = vmax.bf16 %v1742, %v1841
        %v1924 = vmax.bf16 %v1743, %v1845
        %v1925 = vmax.bf16 %v1744, %v1844
        %vm1926 = vsmask.f32 6400
        %v1927 = vrot.slane %v1405, 1
        %v1928 = vrot.slane %v1407, 2
        %v1929 = vor.u32 %v1927, %v1928
        %v1930 = vrot.slane %v1415, 1
        %v1931 = vrot.slane %v1411, 2
        %v1932 = vor.u32 %v1930, %v1931
        %v1933 = vsel %vm1926, %v1929, %v1932
        %v1934 = vrot.slane %v1418, 1
        %v1935 = vrot.slane %v1420, 2
        %v1936 = vor.u32 %v1934, %v1935
        %v1937 = vrot.slane %v1428, 1
        %v1938 = vrot.slane %v1424, 2
        %v1939 = vor.u32 %v1937, %v1938
        %v1940 = vsel %vm1926, %v1936, %v1939
        %v1941 = vrot.slane %v1431, 1
        %v1942 = vrot.slane %v1433, 2
        %v1943 = vor.u32 %v1941, %v1942
        %v1944 = vrot.slane %v1441, 1
        %v1945 = vrot.slane %v1437, 2
        %v1946 = vor.u32 %v1944, %v1945
        %v1947 = vsel %vm1926, %v1943, %v1946
        %v1948 = vrot.slane %v1444, 1
        %v1949 = vrot.slane %v1446, 2
        %v1950 = vor.u32 %v1948, %v1949
        %v1951 = vrot.slane %v1454, 1
        %v1952 = vrot.slane %v1450, 2
        %v1953 = vor.u32 %v1951, %v1952
        %v1954 = vsel %vm1926, %v1950, %v1953
        %v1955 = vrot.slane %v1457, 1
        %v1956 = vrot.slane %v1459, 2
        %v1957 = vor.u32 %v1955, %v1956
        %v1958 = vrot.slane %v1467, 1
        %v1959 = vrot.slane %v1463, 2
        %v1960 = vor.u32 %v1958, %v1959
        %v1961 = vsel %vm1926, %v1957, %v1960
        %v1962 = vrot.slane %v1470, 1
        %v1963 = vrot.slane %v1472, 2
        %v1964 = vor.u32 %v1962, %v1963
        %v1965 = vrot.slane %v1480, 1
        %v1966 = vrot.slane %v1476, 2
        %v1967 = vor.u32 %v1965, %v1966
        %v1968 = vsel %vm1926, %v1964, %v1967
        %v1969 = vrot.slane %v1483, 1
        %v1970 = vrot.slane %v1485, 2
        %v1971 = vor.u32 %v1969, %v1970
        %v1972 = vrot.slane %v1493, 1
        %v1973 = vrot.slane %v1489, 2
        %v1974 = vor.u32 %v1972, %v1973
        %v1975 = vsel %vm1926, %v1971, %v1974
        %v1976 = vrot.slane %v1496, 1
        %v1977 = vrot.slane %v1498, 2
        %v1978 = vor.u32 %v1976, %v1977
        %v1979 = vrot.slane %v1506, 1
        %v1980 = vrot.slane %v1502, 2
        %v1981 = vor.u32 %v1979, %v1980
        %v1982 = vsel %vm1926, %v1978, %v1981
        %v1983 = vrot.slane %v1509, 1
        %v1984 = vrot.slane %v1511, 2
        %v1985 = vor.u32 %v1983, %v1984
        %v1986 = vrot.slane %v1519, 1
        %v1987 = vrot.slane %v1515, 2
        %v1988 = vor.u32 %v1986, %v1987
        %v1989 = vsel %vm1926, %v1985, %v1988
        %v1990 = vrot.slane %v1522, 1
        %v1991 = vrot.slane %v1524, 2
        %v1992 = vor.u32 %v1990, %v1991
        %v1993 = vrot.slane %v1532, 1
        %v1994 = vrot.slane %v1528, 2
        %v1995 = vor.u32 %v1993, %v1994
        %v1996 = vsel %vm1926, %v1992, %v1995
        %v1997 = vrot.slane %v1535, 1
        %v1998 = vrot.slane %v1537, 2
        %v1999 = vor.u32 %v1997, %v1998
        %v2000 = vrot.slane %v1545, 1
        %v2001 = vrot.slane %v1541, 2
        %v2002 = vor.u32 %v2000, %v2001
        %v2003 = vsel %vm1926, %v1999, %v2002
        %v2004 = vrot.slane %v1548, 1
        %v2005 = vrot.slane %v1550, 2
        %v2006 = vor.u32 %v2004, %v2005
        %v2007 = vrot.slane %v1558, 1
        %v2008 = vrot.slane %v1554, 2
        %v2009 = vor.u32 %v2007, %v2008
        %v2010 = vsel %vm1926, %v2006, %v2009
        %v2011 = vrot.slane %v1561, 1
        %v2012 = vrot.slane %v1563, 2
        %v2013 = vor.u32 %v2011, %v2012
        %v2014 = vrot.slane %v1571, 1
        %v2015 = vrot.slane %v1567, 2
        %v2016 = vor.u32 %v2014, %v2015
        %v2017 = vsel %vm1926, %v2013, %v2016
        %v2018 = vrot.slane %v1574, 1
        %v2019 = vrot.slane %v1576, 2
        %v2020 = vor.u32 %v2018, %v2019
        %v2021 = vrot.slane %v1584, 1
        %v2022 = vrot.slane %v1580, 2
        %v2023 = vor.u32 %v2021, %v2022
        %v2024 = vsel %vm1926, %v2020, %v2023
        %v2025 = vrot.slane %v1587, 1
        %v2026 = vrot.slane %v1589, 2
        %v2027 = vor.u32 %v2025, %v2026
        %v2028 = vrot.slane %v1597, 1
        %v2029 = vrot.slane %v1593, 2
        %v2030 = vor.u32 %v2028, %v2029
        %v2031 = vsel %vm1926, %v2027, %v2030
        %v2032 = vrot.slane %v1600, 1
        %v2033 = vrot.slane %v1602, 2
        %v2034 = vor.u32 %v2032, %v2033
        %v2035 = vrot.slane %v1610, 1
        %v2036 = vrot.slane %v1606, 2
        %v2037 = vor.u32 %v2035, %v2036
        %v2038 = vsel %vm1926, %v2034, %v2037
        %v2039 = vrot.slane %v1613, 1
        %v2040 = vrot.slane %v1615, 2
        %v2041 = vor.u32 %v2039, %v2040
        %v2042 = vrot.slane %v1623, 1
        %v2043 = vrot.slane %v1619, 2
        %v2044 = vor.u32 %v2042, %v2043
        %v2045 = vsel %vm1926, %v2041, %v2044
        %v2046 = vrot.slane %v1626, 1
        %v2047 = vrot.slane %v1628, 2
        %v2048 = vor.u32 %v2046, %v2047
        %v2049 = vrot.slane %v1636, 1
        %v2050 = vrot.slane %v1632, 2
        %v2051 = vor.u32 %v2049, %v2050
        %v2052 = vsel %vm1926, %v2048, %v2051
        %v2053 = vrot.slane %v1639, 1
        %v2054 = vrot.slane %v1641, 2
        %v2055 = vor.u32 %v2053, %v2054
        %v2056 = vrot.slane %v1649, 1
        %v2057 = vrot.slane %v1645, 2
        %v2058 = vor.u32 %v2056, %v2057
        %v2059 = vsel %vm1926, %v2055, %v2058
        %v2060 = vrot.slane %v1652, 1
        %v2061 = vrot.slane %v1654, 2
        %v2062 = vor.u32 %v2060, %v2061
        %v2063 = vrot.slane %v1662, 1
        %v2064 = vrot.slane %v1658, 2
        %v2065 = vor.u32 %v2063, %v2064
        %v2066 = vsel %vm1926, %v2062, %v2065
        %v2107 = vmax.bf16 %v1886, %v1933
        %v2108 = vmax.bf16 %v1887, %v1932
        %v2109 = vmax.bf16 %v1888, %v1940
        %v2110 = vmax.bf16 %v1889, %v1939
        %v2111 = vmax.bf16 %v1890, %v1947
        %v2112 = vmax.bf16 %v1891, %v1946
        %v2113 = vmax.bf16 %v1892, %v1954
        %v2114 = vmax.bf16 %v1893, %v1953
        %v2115 = vmax.bf16 %v1894, %v1961
        %v2116 = vmax.bf16 %v1895, %v1960
        %v2117 = vmax.bf16 %v1896, %v1968
        %v2118 = vmax.bf16 %v1897, %v1967
        %v2119 = vmax.bf16 %v1898, %v1975
        %v2120 = vmax.bf16 %v1899, %v1974
        %v2121 = vmax.bf16 %v1900, %v1982
        %v2122 = vmax.bf16 %v1901, %v1981
        %v2123 = vmax.bf16 %v1902, %v1989
        %v2124 = vmax.bf16 %v1903, %v1988
        %v2125 = vmax.bf16 %v1904, %v1996
        %v2126 = vmax.bf16 %v1905, %v1995
        %v2127 = vmax.bf16 %v1906, %v2003
        %v2128 = vmax.bf16 %v1907, %v2002
        %v2129 = vmax.bf16 %v1908, %v2010
        %v2130 = vmax.bf16 %v1909, %v2009
        %v2131 = vmax.bf16 %v1910, %v2017
        %v2132 = vmax.bf16 %v1911, %v2016
        %v2133 = vmax.bf16 %v1912, %v2024
        %v2134 = vmax.bf16 %v1913, %v2023
        %v2135 = vmax.bf16 %v1914, %v2031
        %v2136 = vmax.bf16 %v1915, %v2030
        %v2137 = vmax.bf16 %v1916, %v2038
        %v2138 = vmax.bf16 %v1917, %v2037
        %v2139 = vmax.bf16 %v1918, %v2045
        %v2140 = vmax.bf16 %v1919, %v2044
        %v2141 = vmax.bf16 %v1920, %v2052
        %v2142 = vmax.bf16 %v1921, %v2051
        %v2143 = vmax.bf16 %v1922, %v2059
        %v2144 = vmax.bf16 %v1923, %v2058
        %v2145 = vmax.bf16 %v1924, %v2066
        %v2146 = vmax.bf16 %v1925, %v2065
        %vm2147 = vcmask 1045504
        %v2148 = vrot.slane %v1289, 2
        %v2149 = vrot.slane %v1348, 2
        %v2150 = vsel %vm2147, %v2148, %v2149
        %v2151 = vrot.slane %v1292, 2
        %v2152 = vrot.slane %v1350, 2
        %v2153 = vsel %vm2147, %v2151, %v2152
        %v2154 = vrot.slane %v1295, 2
        %v2155 = vrot.slane %v1352, 2
        %v2156 = vsel %vm2147, %v2154, %v2155
        %v2157 = vrot.slane %v1298, 2
        %v2158 = vrot.slane %v1354, 2
        %v2159 = vsel %vm2147, %v2157, %v2158
        %v2160 = vrot.slane %v1301, 2
        %v2161 = vrot.slane %v1356, 2
        %v2162 = vsel %vm2147, %v2160, %v2161
        %v2163 = vrot.slane %v1304, 2
        %v2164 = vrot.slane %v1358, 2
        %v2165 = vsel %vm2147, %v2163, %v2164
        %v2166 = vrot.slane %v1307, 2
        %v2167 = vrot.slane %v1360, 2
        %v2168 = vsel %vm2147, %v2166, %v2167
        %v2169 = vrot.slane %v1310, 2
        %v2170 = vrot.slane %v1362, 2
        %v2171 = vsel %vm2147, %v2169, %v2170
        %v2172 = vrot.slane %v1313, 2
        %v2173 = vrot.slane %v1364, 2
        %v2174 = vsel %vm2147, %v2172, %v2173
        %v2175 = vrot.slane %v1316, 2
        %v2176 = vrot.slane %v1366, 2
        %v2177 = vsel %vm2147, %v2175, %v2176
        %v2178 = vrot.slane %v1319, 2
        %v2179 = vrot.slane %v1368, 2
        %v2180 = vsel %vm2147, %v2178, %v2179
        %v2181 = vrot.slane %v1322, 2
        %v2182 = vrot.slane %v1370, 2
        %v2183 = vsel %vm2147, %v2181, %v2182
        %v2184 = vrot.slane %v1325, 2
        %v2185 = vrot.slane %v1372, 2
        %v2186 = vsel %vm2147, %v2184, %v2185
        %v2187 = vrot.slane %v1328, 2
        %v2188 = vrot.slane %v1374, 2
        %v2189 = vsel %vm2147, %v2187, %v2188
        %v2190 = vrot.slane %v1331, 2
        %v2191 = vrot.slane %v1376, 2
        %v2192 = vsel %vm2147, %v2190, %v2191
        %v2193 = vrot.slane %v1334, 2
        %v2194 = vrot.slane %v1378, 2
        %v2195 = vsel %vm2147, %v2193, %v2194
        %v2196 = vrot.slane %v1337, 2
        %v2197 = vrot.slane %v1380, 2
        %v2198 = vsel %vm2147, %v2196, %v2197
        %v2199 = vrot.slane %v1340, 2
        %v2200 = vrot.slane %v1382, 2
        %v2201 = vsel %vm2147, %v2199, %v2200
        %v2202 = vrot.slane %v1343, 2
        %v2203 = vrot.slane %v1384, 2
        %v2204 = vsel %vm2147, %v2202, %v2203
        %v2205 = vrot.slane %v1346, 2
        %v2206 = vrot.slane %v1386, 2
        %v2207 = vsel %vm2147, %v2205, %v2206
        %v2248 = vmax.bf16 %v2107, %v2150
        %v2249 = vmax.bf16 %v2108, %v2149
        %v2250 = vmax.bf16 %v2109, %v2153
        %v2251 = vmax.bf16 %v2110, %v2152
        %v2252 = vmax.bf16 %v2111, %v2156
        %v2253 = vmax.bf16 %v2112, %v2155
        %v2254 = vmax.bf16 %v2113, %v2159
        %v2255 = vmax.bf16 %v2114, %v2158
        %v2256 = vmax.bf16 %v2115, %v2162
        %v2257 = vmax.bf16 %v2116, %v2161
        %v2258 = vmax.bf16 %v2117, %v2165
        %v2259 = vmax.bf16 %v2118, %v2164
        %v2260 = vmax.bf16 %v2119, %v2168
        %v2261 = vmax.bf16 %v2120, %v2167
        %v2262 = vmax.bf16 %v2121, %v2171
        %v2263 = vmax.bf16 %v2122, %v2170
        %v2264 = vmax.bf16 %v2123, %v2174
        %v2265 = vmax.bf16 %v2124, %v2173
        %v2266 = vmax.bf16 %v2125, %v2177
        %v2267 = vmax.bf16 %v2126, %v2176
        %v2268 = vmax.bf16 %v2127, %v2180
        %v2269 = vmax.bf16 %v2128, %v2179
        %v2270 = vmax.bf16 %v2129, %v2183
        %v2271 = vmax.bf16 %v2130, %v2182
        %v2272 = vmax.bf16 %v2131, %v2186
        %v2273 = vmax.bf16 %v2132, %v2185
        %v2274 = vmax.bf16 %v2133, %v2189
        %v2275 = vmax.bf16 %v2134, %v2188
        %v2276 = vmax.bf16 %v2135, %v2192
        %v2277 = vmax.bf16 %v2136, %v2191
        %v2278 = vmax.bf16 %v2137, %v2195
        %v2279 = vmax.bf16 %v2138, %v2194
        %v2280 = vmax.bf16 %v2139, %v2198
        %v2281 = vmax.bf16 %v2140, %v2197
        %v2282 = vmax.bf16 %v2141, %v2201
        %v2283 = vmax.bf16 %v2142, %v2200
        %v2284 = vmax.bf16 %v2143, %v2204
        %v2285 = vmax.bf16 %v2144, %v2203
        %v2286 = vmax.bf16 %v2145, %v2207
        %v2287 = vmax.bf16 %v2146, %v2206
        %v2288 = vmax.bf16 %v2248, %v2250
        %v2289 = vmax.bf16 %v2249, %v2251
        %v2290 = vmax.bf16 %v2250, %v2252
        %v2291 = vmax.bf16 %v2251, %v2253
        %v2292 = vmax.bf16 %v2252, %v2254
        %v2293 = vmax.bf16 %v2253, %v2255
        %v2294 = vmax.bf16 %v2254, %v2256
        %v2295 = vmax.bf16 %v2255, %v2257
        %v2296 = vmax.bf16 %v2256, %v2258
        %v2297 = vmax.bf16 %v2257, %v2259
        %v2298 = vmax.bf16 %v2258, %v2260
        %v2299 = vmax.bf16 %v2259, %v2261
        %v2300 = vmax.bf16 %v2260, %v2262
        %v2301 = vmax.bf16 %v2261, %v2263
        %v2302 = vmax.bf16 %v2262, %v2264
        %v2303 = vmax.bf16 %v2263, %v2265
        %v2304 = vmax.bf16 %v2264, %v2266
        %v2305 = vmax.bf16 %v2265, %v2267
        %v2306 = vmax.bf16 %v2266, %v2268
        %v2307 = vmax.bf16 %v2267, %v2269
        %v2308 = vmax.bf16 %v2268, %v2270
        %v2309 = vmax.bf16 %v2269, %v2271
        %v2310 = vmax.bf16 %v2270, %v2272
        %v2311 = vmax.bf16 %v2271, %v2273
        %v2312 = vmax.bf16 %v2272, %v2274
        %v2313 = vmax.bf16 %v2273, %v2275
        %v2314 = vmax.bf16 %v2274, %v2276
        %v2315 = vmax.bf16 %v2275, %v2277
        %v2316 = vmax.bf16 %v2276, %v2278
        %v2317 = vmax.bf16 %v2277, %v2279
        %v2318 = vmax.bf16 %v2278, %v2280
        %v2319 = vmax.bf16 %v2279, %v2281
        %v2320 = vmax.bf16 %v2288, %v2252
        %v2321 = vmax.bf16 %v2289, %v2253
        %v2322 = vmax.bf16 %v2290, %v2254
        %v2323 = vmax.bf16 %v2291, %v2255
        %v2324 = vmax.bf16 %v2292, %v2256
        %v2325 = vmax.bf16 %v2293, %v2257
        %v2326 = vmax.bf16 %v2294, %v2258
        %v2327 = vmax.bf16 %v2295, %v2259
        %v2328 = vmax.bf16 %v2296, %v2260
        %v2329 = vmax.bf16 %v2297, %v2261
        %v2330 = vmax.bf16 %v2298, %v2262
        %v2331 = vmax.bf16 %v2299, %v2263
        %v2332 = vmax.bf16 %v2300, %v2264
        %v2333 = vmax.bf16 %v2301, %v2265
        %v2334 = vmax.bf16 %v2302, %v2266
        %v2335 = vmax.bf16 %v2303, %v2267
        %v2336 = vmax.bf16 %v2304, %v2268
        %v2337 = vmax.bf16 %v2305, %v2269
        %v2338 = vmax.bf16 %v2306, %v2270
        %v2339 = vmax.bf16 %v2307, %v2271
        %v2340 = vmax.bf16 %v2308, %v2272
        %v2341 = vmax.bf16 %v2309, %v2273
        %v2342 = vmax.bf16 %v2310, %v2274
        %v2343 = vmax.bf16 %v2311, %v2275
        %v2344 = vmax.bf16 %v2312, %v2276
        %v2345 = vmax.bf16 %v2313, %v2277
        %v2346 = vmax.bf16 %v2314, %v2278
        %v2347 = vmax.bf16 %v2315, %v2279
        %v2348 = vmax.bf16 %v2316, %v2280
        %v2349 = vmax.bf16 %v2317, %v2281
        %v2350 = vmax.bf16 %v2318, %v2282
        %v2351 = vmax.bf16 %v2319, %v2283
        %v2352 = vmax.bf16 %v2320, %v2254
        %v2353 = vmax.bf16 %v2321, %v2255
        %v2354 = vmax.bf16 %v2322, %v2256
        %v2355 = vmax.bf16 %v2323, %v2257
        %v2356 = vmax.bf16 %v2324, %v2258
        %v2357 = vmax.bf16 %v2325, %v2259
        %v2358 = vmax.bf16 %v2326, %v2260
        %v2359 = vmax.bf16 %v2327, %v2261
        %v2360 = vmax.bf16 %v2328, %v2262
        %v2361 = vmax.bf16 %v2329, %v2263
        %v2362 = vmax.bf16 %v2330, %v2264
        %v2363 = vmax.bf16 %v2331, %v2265
        %v2364 = vmax.bf16 %v2332, %v2266
        %v2365 = vmax.bf16 %v2333, %v2267
        %v2366 = vmax.bf16 %v2334, %v2268
        %v2367 = vmax.bf16 %v2335, %v2269
        %v2368 = vmax.bf16 %v2336, %v2270
        %v2369 = vmax.bf16 %v2337, %v2271
        %v2370 = vmax.bf16 %v2338, %v2272
        %v2371 = vmax.bf16 %v2339, %v2273
        %v2372 = vmax.bf16 %v2340, %v2274
        %v2373 = vmax.bf16 %v2341, %v2275
        %v2374 = vmax.bf16 %v2342, %v2276
        %v2375 = vmax.bf16 %v2343, %v2277
        %v2376 = vmax.bf16 %v2344, %v2278
        %v2377 = vmax.bf16 %v2345, %v2279
        %v2378 = vmax.bf16 %v2346, %v2280
        %v2379 = vmax.bf16 %v2347, %v2281
        %v2380 = vmax.bf16 %v2348, %v2282
        %v2381 = vmax.bf16 %v2349, %v2283
        %v2382 = vmax.bf16 %v2350, %v2284
        %v2383 = vmax.bf16 %v2351, %v2285
        %v2384 = vmax.bf16 %v2352, %v2256
        %v2385 = vmax.bf16 %v2353, %v2257
        %v2386 = vmax.bf16 %v2354, %v2258
        %v2387 = vmax.bf16 %v2355, %v2259
        %v2388 = vmax.bf16 %v2356, %v2260
        %v2389 = vmax.bf16 %v2357, %v2261
        %v2390 = vmax.bf16 %v2358, %v2262
        %v2391 = vmax.bf16 %v2359, %v2263
        %v2392 = vmax.bf16 %v2360, %v2264
        %v2393 = vmax.bf16 %v2361, %v2265
        %v2394 = vmax.bf16 %v2362, %v2266
        %v2395 = vmax.bf16 %v2363, %v2267
        %v2396 = vmax.bf16 %v2364, %v2268
        %v2397 = vmax.bf16 %v2365, %v2269
        %v2398 = vmax.bf16 %v2366, %v2270
        %v2399 = vmax.bf16 %v2367, %v2271
        %v2400 = vmax.bf16 %v2368, %v2272
        %v2401 = vmax.bf16 %v2369, %v2273
        %v2402 = vmax.bf16 %v2370, %v2274
        %v2403 = vmax.bf16 %v2371, %v2275
        %v2404 = vmax.bf16 %v2372, %v2276
        %v2405 = vmax.bf16 %v2373, %v2277
        %v2406 = vmax.bf16 %v2374, %v2278
        %v2407 = vmax.bf16 %v2375, %v2279
        %v2408 = vmax.bf16 %v2376, %v2280
        %v2409 = vmax.bf16 %v2377, %v2281
        %v2410 = vmax.bf16 %v2378, %v2282
        %v2411 = vmax.bf16 %v2379, %v2283
        %v2412 = vmax.bf16 %v2380, %v2284
        %v2413 = vmax.bf16 %v2381, %v2285
        %v2414 = vmax.bf16 %v2382, %v2286
        %v2415 = vmax.bf16 %v2383, %v2287
        %v2432 = vrot.slane %v2392, 2
        %v2433 = vrot.slane %v2393, 2
        %v2434 = vsel %vm2147, %v2432, %v2433
        %v2435 = vrot.slane %v2394, 2
        %v2436 = vrot.slane %v2395, 2
        %v2437 = vsel %vm2147, %v2435, %v2436
        %v2438 = vrot.slane %v2396, 2
        %v2439 = vrot.slane %v2397, 2
        %v2440 = vsel %vm2147, %v2438, %v2439
        %v2441 = vrot.slane %v2398, 2
        %v2442 = vrot.slane %v2399, 2
        %v2443 = vsel %vm2147, %v2441, %v2442
        %v2444 = vrot.slane %v2400, 2
        %v2445 = vrot.slane %v2401, 2
        %v2446 = vsel %vm2147, %v2444, %v2445
        %v2447 = vrot.slane %v2402, 2
        %v2448 = vrot.slane %v2403, 2
        %v2449 = vsel %vm2147, %v2447, %v2448
        %v2450 = vrot.slane %v2404, 2
        %v2451 = vrot.slane %v2405, 2
        %v2452 = vsel %vm2147, %v2450, %v2451
        %v2453 = vrot.slane %v2406, 2
        %v2454 = vrot.slane %v2407, 2
        %v2455 = vsel %vm2147, %v2453, %v2454
        %s2464 = scalar_lea.vmem [#allocation10], 64
        %v2465 = vld [vmem:[%s2464] sm:$0xf]
        %v2466 = vld [vmem:[%s2464 + $0x4] sm:$0xf]
        %v2467 = vld [vmem:[%s2464 + $0x8] sm:$0xf]
        %v2468 = vld [vmem:[%s2464 + $0xc] sm:$0xf]
        %v2469 = vld [vmem:[%s2464 + $0x10] sm:$0xf]
        %v2470 = vld [vmem:[%s2464 + $0x14] sm:$0xf]
        %v2471 = vld [vmem:[%s2464 + $0x18] sm:$0xf]
        %v2472 = vld [vmem:[%s2464 + $0x1c] sm:$0xf]
        %v2473 = vld [vmem:[%s2464 + $0x20] sm:$0xf]
        %v2474 = vld [vmem:[%s2464 + $0x24] sm:$0xf]
        %v2475 = vld [vmem:[%s2464 + $0x28] sm:$0xf]
        %v2476 = vld [vmem:[%s2464 + $0x2c] sm:$0xf]
        %v2477 = vld [vmem:[%s2464 + $0x30] sm:$0xf]
        %v2478 = vld [vmem:[%s2464 + $0x34] sm:$0xf]
        %v2479 = vld [vmem:[%s2464 + $0x38] sm:$0xf]
        %v2480 = vld [vmem:[%s2464 + $0x3c] sm:$0xf]
        %v2497 = vunpack.c.l.b16 %v2465
        %v2498 = vunpack.c.l.b16 %v2466
        %v2499 = vunpack.c.l.b16 %v2467
        %v2500 = vunpack.c.l.b16 %v2468
        %v2501 = vunpack.c.l.b16 %v2469
        %v2502 = vunpack.c.l.b16 %v2470
        %v2503 = vunpack.c.l.b16 %v2471
        %v2504 = vunpack.c.l.b16 %v2472
        %v2505 = vunpack.c.l.b16 %v2473
        %v2506 = vunpack.c.l.b16 %v2474
        %v2507 = vunpack.c.l.b16 %v2475
        %v2508 = vunpack.c.l.b16 %v2476
        %v2509 = vunpack.c.l.b16 %v2477
        %v2510 = vunpack.c.l.b16 %v2478
        %v2511 = vunpack.c.l.b16 %v2479
        %v2512 = vunpack.c.l.b16 %v2480
        %v2513 = vpack.c.b16 %v2498, %v2497
        %v2514 = vpack.c.b16 %v2500, %v2499
        %v2515 = vpack.c.b16 %v2502, %v2501
        %v2516 = vpack.c.b16 %v2504, %v2503
        %v2517 = vpack.c.b16 %v2506, %v2505
        %v2518 = vpack.c.b16 %v2508, %v2507
        %v2519 = vpack.c.b16 %v2510, %v2509
        %v2520 = vpack.c.b16 %v2512, %v2511
        %2529 = vmatprep.subr.bf16.mxu0 0
        %2530 = vmatpush1.bf16.msra.mxu0 %v2513
        %2531 = vmatprep.subr.bf16.mxu0 0
        %2532 = vmatpush1.bf16.msra.mxu0 %v2514
        %2533 = vmatprep.subr.bf16.mxu0 0
        %2534 = vmatpush1.bf16.msra.mxu0 %v2515
        %2535 = vmatprep.subr.bf16.mxu0 0
        %2536 = vmatpush1.bf16.msra.mxu0 %v2516
        %2537 = vmatprep.subr.bf16.mxu0 0
        %2538 = vmatpush1.bf16.msra.mxu0 %v2517
        %2539 = vmatprep.subr.bf16.mxu0 0
        %2540 = vmatpush1.bf16.msra.mxu0 %v2518
        %2541 = vmatprep.subr.bf16.mxu0 0
        %2542 = vmatpush1.bf16.msra.mxu0 %v2519
        %2543 = vmatprep.subr.bf16.mxu0 0
        %2544 = vmatpush1.bf16.msra.mxu0 %v2520
        %2545 = vmatprep.subr.bf16.mxu0 0
        %2546 = vmatpush1.bf16.msra.mxu0 0
        %2547 = vmatprep.subr.bf16.mxu0 0
        %2548 = vmatpush1.bf16.msra.mxu0 0
        %2549 = vmatprep.subr.bf16.mxu0 0
        %2550 = vmatpush1.bf16.msra.mxu0 0
        %2551 = vmatprep.subr.bf16.mxu0 0
        %2552 = vmatpush1.bf16.msra.mxu0 0
        %2553 = vmatprep.subr.bf16.mxu0 0
        %2554 = vmatpush1.bf16.msra.mxu0 0
        %2555 = vmatprep.subr.bf16.mxu0 0
        %2556 = vmatpush1.bf16.msra.mxu0 0
        %2557 = vmatprep.subr.bf16.mxu0 0
        %2558 = vmatpush1.bf16.msra.mxu0 0
        %2559 = vmatprep.subr.bf16.mxu0 0
        %2560 = vmatpush1.bf16.msra.mxu0 0
        %2561 = vmatprep.mubr.bf16.mxu0 0
        %2562 = vmatmul.mubr.bf16.gmra.mrb[0].mxu0 %v2434
        %v2563 = vpop.f32.mrb[0].mxu0
        %v2564 = vadd.f32 0.0, %v2563
        %v2565 = vpop.f32.mrb[0].mxu0
        %v2566 = vpop.f32.mrb[0].mxu0
        %v2567 = vadd.f32 0.0, %v2566
        %v2568 = vpop.f32.mrb[0].mxu0
        %2569 = vmatprep.mubr.bf16.mxu0 0
        %2570 = vmatmul.mubr.bf16.gmra.mrb[0].mxu0 %v2437
        %v2571 = vpop.f32.mrb[0].mxu0
        %v2572 = vadd.f32 0.0, %v2571
        %v2573 = vpop.f32.mrb[0].mxu0
        %v2574 = vpop.f32.mrb[0].mxu0
        %v2575 = vadd.f32 0.0, %v2574
        %v2576 = vpop.f32.mrb[0].mxu0
        %2577 = vmatprep.mubr.bf16.mxu0 0
        %2578 = vmatmul.mubr.bf16.gmra.mrb[0].mxu0 %v2440
        %v2579 = vpop.f32.mrb[0].mxu0
        %v2580 = vadd.f32 0.0, %v2579
        %v2581 = vpop.f32.mrb[0].mxu0
        %v2582 = vpop.f32.mrb[0].mxu0
        %v2583 = vadd.f32 0.0, %v2582
        %v2584 = vpop.f32.mrb[0].mxu0
        %2585 = vmatprep.mubr.bf16.mxu0 0
        %2586 = vmatmul.mubr.bf16.gmra.mrb[0].mxu0 %v2443
        %v2587 = vpop.f32.mrb[0].mxu0
        %v2588 = vadd.f32 0.0, %v2587
        %v2589 = vpop.f32.mrb[0].mxu0
        %v2590 = vpop.f32.mrb[0].mxu0
        %v2591 = vadd.f32 0.0, %v2590
        %v2592 = vpop.f32.mrb[0].mxu0
        %2593 = vmatprep.mubr.bf16.mxu0 0
        %2594 = vmatmul.mubr.bf16.gmra.mrb[0].mxu0 %v2446
        %v2595 = vpop.f32.mrb[0].mxu0
        %v2596 = vadd.f32 0.0, %v2595
        %v2597 = vpop.f32.mrb[0].mxu0
        %v2598 = vpop.f32.mrb[0].mxu0
        %v2599 = vadd.f32 0.0, %v2598
        %v2600 = vpop.f32.mrb[0].mxu0
        %2601 = vmatprep.mubr.bf16.mxu0 0
        %2602 = vmatmul.mubr.bf16.gmra.mrb[0].mxu0 %v2449
        %v2603 = vpop.f32.mrb[0].mxu0
        %v2604 = vadd.f32 0.0, %v2603
        %v2605 = vpop.f32.mrb[0].mxu0
        %v2606 = vpop.f32.mrb[0].mxu0
        %v2607 = vadd.f32 0.0, %v2606
        %v2608 = vpop.f32.mrb[0].mxu0
        %2609 = vmatprep.mubr.bf16.mxu0 0
        %2610 = vmatmul.mubr.bf16.gmra.mrb[0].mxu0 %v2452
        %v2611 = vpop.f32.mrb[0].mxu0
        %v2612 = vadd.f32 0.0, %v2611
        %v2613 = vpop.f32.mrb[0].mxu0
        %v2614 = vpop.f32.mrb[0].mxu0
        %v2615 = vadd.f32 0.0, %v2614
        %v2616 = vpop.f32.mrb[0].mxu0
        %2617 = vmatprep.mubr.bf16.mxu0 0
        %2618 = vmatmul.mubr.bf16.gmra.mrb[0].mxu0 %v2455
        %v2619 = vpop.f32.mrb[0].mxu0
        %v2620 = vadd.f32 0.0, %v2619
        %v2621 = vpop.f32.mrb[0].mxu0
        %v2622 = vpop.f32.mrb[0].mxu0
        %v2623 = vadd.f32 0.0, %v2622
        %v2624 = vpop.f32.mrb[0].mxu0
        %2625 = vdwg.mxu0
        %v2642 = vunpack.c.l.b16 %v1388
        %v2643 = vunpack.c.l.b16 %v1389
        %v2644 = vunpack.c.l.b16 %v1390
        %v2645 = vunpack.c.l.b16 %v1391
        %v2646 = vunpack.c.l.b16 %v1392
        %v2647 = vunpack.c.l.b16 %v1393
        %v2648 = vunpack.c.l.b16 %v1394
        %v2649 = vunpack.c.l.b16 %v1395
        %v2650 = vunpack.c.l.b16 %v1396
        %v2651 = vunpack.c.l.b16 %v1397
        %v2652 = vunpack.c.l.b16 %v1398
        %v2653 = vunpack.c.l.b16 %v1399
        %v2654 = vunpack.c.l.b16 %v1400
        %v2655 = vunpack.c.l.b16 %v1401
        %v2656 = vunpack.c.l.b16 %v1402
        %v2657 = vunpack.c.l.b16 %v1403
        %v2658 = vpack.c.b16 %v2643, %v2642
        %v2659 = vpack.c.b16 %v2645, %v2644
        %v2660 = vpack.c.b16 %v2647, %v2646
        %v2661 = vpack.c.b16 %v2649, %v2648
        %v2662 = vpack.c.b16 %v2651, %v2650
        %v2663 = vpack.c.b16 %v2653, %v2652
        %v2664 = vpack.c.b16 %v2655, %v2654
        %v2665 = vpack.c.b16 %v2657, %v2656
        %2674 = vmatprep.subr.bf16.mxu0 0
        %2675 = vmatpush1.bf16.msra.mxu0 %v2658
        %2676 = vmatprep.subr.bf16.mxu0 0
        %2677 = vmatpush1.bf16.msra.mxu0 %v2659
        %2678 = vmatprep.subr.bf16.mxu0 0
        %2679 = vmatpush1.bf16.msra.mxu0 %v2660
        %2680 = vmatprep.subr.bf16.mxu0 0
        %2681 = vmatpush1.bf16.msra.mxu0 %v2661
        %2682 = vmatprep.subr.bf16.mxu0 0
        %2683 = vmatpush1.bf16.msra.mxu0 %v2662
        %2684 = vmatprep.subr.bf16.mxu0 0
        %2685 = vmatpush1.bf16.msra.mxu0 %v2663
        %2686 = vmatprep.subr.bf16.mxu0 0
        %2687 = vmatpush1.bf16.msra.mxu0 %v2664
        %2688 = vmatprep.subr.bf16.mxu0 0
        %2689 = vmatpush1.bf16.msra.mxu0 %v2665
        %2690 = vmatprep.subr.bf16.mxu0 0
        %2691 = vmatpush1.bf16.msra.mxu0 0
        %2692 = vmatprep.subr.bf16.mxu0 0
        %2693 = vmatpush1.bf16.msra.mxu0 0
        %2694 = vmatprep.subr.bf16.mxu0 0
        %2695 = vmatpush1.bf16.msra.mxu0 0
        %2696 = vmatprep.subr.bf16.mxu0 0
        %2697 = vmatpush1.bf16.msra.mxu0 0
        %2698 = vmatprep.subr.bf16.mxu0 0
        %2699 = vmatpush1.bf16.msra.mxu0 0
        %2700 = vmatprep.subr.bf16.mxu0 0
        %2701 = vmatpush1.bf16.msra.mxu0 0
        %2702 = vmatprep.subr.bf16.mxu0 0
        %2703 = vmatpush1.bf16.msra.mxu0 0
        %2704 = vmatprep.subr.bf16.mxu0 0
        %2705 = vmatpush1.bf16.msra.mxu0 0
        %2706 = vmatprep.mubr.bf16.mxu0 0
        %2707 = vmatmul.mubr.bf16.gmra.mrb[0].mxu0 %v1188
        %v2708 = vpop.f32.mrb[0].mxu0
        %v2709 = vadd.f32 %v2564, %v2708
        %v2710 = vpop.f32.mrb[0].mxu0
        %v2711 = vpop.f32.mrb[0].mxu0
        %v2712 = vadd.f32 %v2567, %v2711
        %v2713 = vpop.f32.mrb[0].mxu0
        %2714 = vmatprep.mubr.bf16.mxu0 0
        %2715 = vmatmul.mubr.bf16.gmra.mrb[0].mxu0 %v1189
        %v2716 = vpop.f32.mrb[0].mxu0
        %v2717 = vadd.f32 %v2572, %v2716
        %v2718 = vpop.f32.mrb[0].mxu0
        %v2719 = vpop.f32.mrb[0].mxu0
        %v2720 = vadd.f32 %v2575, %v2719
        %v2721 = vpop.f32.mrb[0].mxu0
        %2722 = vmatprep.mubr.bf16.mxu0 0
        %2723 = vmatmul.mubr.bf16.gmra.mrb[0].mxu0 %v1190
        %v2724 = vpop.f32.mrb[0].mxu0
        %v2725 = vadd.f32 %v2580, %v2724
        %v2726 = vpop.f32.mrb[0].mxu0
        %v2727 = vpop.f32.mrb[0].mxu0
        %v2728 = vadd.f32 %v2583, %v2727
        %v2729 = vpop.f32.mrb[0].mxu0
        %2730 = vmatprep.mubr.bf16.mxu0 0
        %2731 = vmatmul.mubr.bf16.gmra.mrb[0].mxu0 %v1191
        %v2732 = vpop.f32.mrb[0].mxu0
        %v2733 = vadd.f32 %v2588, %v2732
        %v2734 = vpop.f32.mrb[0].mxu0
        %v2735 = vpop.f32.mrb[0].mxu0
        %v2736 = vadd.f32 %v2591, %v2735
        %v2737 = vpop.f32.mrb[0].mxu0
        %2738 = vmatprep.mubr.bf16.mxu0 0
        %2739 = vmatmul.mubr.bf16.gmra.mrb[0].mxu0 %v1192
        %v2740 = vpop.f32.mrb[0].mxu0
        %v2741 = vadd.f32 %v2596, %v2740
        %v2742 = vpop.f32.mrb[0].mxu0
        %v2743 = vpop.f32.mrb[0].mxu0
        %v2744 = vadd.f32 %v2599, %v2743
        %v2745 = vpop.f32.mrb[0].mxu0
        %2746 = vmatprep.mubr.bf16.mxu0 0
        %2747 = vmatmul.mubr.bf16.gmra.mrb[0].mxu0 %v1193
        %v2748 = vpop.f32.mrb[0].mxu0
        %v2749 = vadd.f32 %v2604, %v2748
        %v2750 = vpop.f32.mrb[0].mxu0
        %v2751 = vpop.f32.mrb[0].mxu0
        %v2752 = vadd.f32 %v2607, %v2751
        %v2753 = vpop.f32.mrb[0].mxu0
        %2754 = vmatprep.mubr.bf16.mxu0 0
        %2755 = vmatmul.mubr.bf16.gmra.mrb[0].mxu0 %v1194
        %v2756 = vpop.f32.mrb[0].mxu0
        %v2757 = vadd.f32 %v2612, %v2756
        %v2758 = vpop.f32.mrb[0].mxu0
        %v2759 = vpop.f32.mrb[0].mxu0
        %v2760 = vadd.f32 %v2615, %v2759
        %v2761 = vpop.f32.mrb[0].mxu0
        %2762 = vmatprep.mubr.bf16.mxu0 0
        %2763 = vmatmul.mubr.bf16.gmra.mrb[0].mxu0 %v1195
        %v2764 = vpop.f32.mrb[0].mxu0
        %v2765 = vadd.f32 %v2620, %v2764
        %v2766 = vpop.f32.mrb[0].mxu0
        %v2767 = vpop.f32.mrb[0].mxu0
        %v2768 = vadd.f32 %v2623, %v2767
        %v2769 = vpop.f32.mrb[0].mxu0
        %2770 = vdwg.mxu0
        %v2772 = vshrl.u32 %v2384, 16
        %v2774 = vshll.u32 %v2384, 16
        %v2776 = vrot.slane %v2774, 1
        %v2777 = vor.u32 %v2772, %v2776
        %v2779 = vshll.u32 %v2385, 16
        %v2781 = vrot.slane %v2779, 1
        %v2782 = vsel %vm1404, %v2777, %v2781
        %v2783 = vshrl.u32 %v2385, 16
        %v2785 = vor.u32 %v2783, %v2781
        %v2787 = vshrl.u32 %v2386, 16
        %v2789 = vshll.u32 %v2386, 16
        %v2791 = vrot.slane %v2789, 1
        %v2792 = vor.u32 %v2787, %v2791
        %v2794 = vshll.u32 %v2387, 16
        %v2796 = vrot.slane %v2794, 1
        %v2797 = vsel %vm1404, %v2792, %v2796
        %v2798 = vshrl.u32 %v2387, 16
        %v2800 = vor.u32 %v2798, %v2796
        %v2802 = vshrl.u32 %v2388, 16
        %v2804 = vshll.u32 %v2388, 16
        %v2806 = vrot.slane %v2804, 1
        %v2807 = vor.u32 %v2802, %v2806
        %v2809 = vshll.u32 %v2389, 16
        %v2811 = vrot.slane %v2809, 1
        %v2812 = vsel %vm1404, %v2807, %v2811
        %v2813 = vshrl.u32 %v2389, 16
        %v2815 = vor.u32 %v2813, %v2811
        %v2817 = vshrl.u32 %v2390, 16
        %v2819 = vshll.u32 %v2390, 16
        %v2821 = vrot.slane %v2819, 1
        %v2822 = vor.u32 %v2817, %v2821
        %v2824 = vshll.u32 %v2391, 16
        %v2826 = vrot.slane %v2824, 1
        %v2827 = vsel %vm1404, %v2822, %v2826
        %v2828 = vshrl.u32 %v2391, 16
        %v2830 = vor.u32 %v2828, %v2826
        %v2832 = vshrl.u32 %v2392, 16
        %v2834 = vshll.u32 %v2392, 16
        %v2836 = vrot.slane %v2834, 1
        %v2837 = vor.u32 %v2832, %v2836
        %v2839 = vshll.u32 %v2393, 16
        %v2841 = vrot.slane %v2839, 1
        %v2842 = vsel %vm1404, %v2837, %v2841
        %v2843 = vshrl.u32 %v2393, 16
        %v2845 = vor.u32 %v2843, %v2841
        %v2847 = vshrl.u32 %v2394, 16
        %v2849 = vshll.u32 %v2394, 16
        %v2851 = vrot.slane %v2849, 1
        %v2852 = vor.u32 %v2847, %v2851
        %v2854 = vshll.u32 %v2395, 16
        %v2856 = vrot.slane %v2854, 1
        %v2857 = vsel %vm1404, %v2852, %v2856
        %v2858 = vshrl.u32 %v2395, 16
        %v2860 = vor.u32 %v2858, %v2856
        %v2862 = vshrl.u32 %v2396, 16
        %v2864 = vshll.u32 %v2396, 16
        %v2866 = vrot.slane %v2864, 1
        %v2867 = vor.u32 %v2862, %v2866
        %v2869 = vshll.u32 %v2397, 16
        %v2871 = vrot.slane %v2869, 1
        %v2872 = vsel %vm1404, %v2867, %v2871
        %v2873 = vshrl.u32 %v2397, 16
        %v2875 = vor.u32 %v2873, %v2871
        %v2877 = vshrl.u32 %v2398, 16
        %v2879 = vshll.u32 %v2398, 16
        %v2881 = vrot.slane %v2879, 1
        %v2882 = vor.u32 %v2877, %v2881
        %v2884 = vshll.u32 %v2399, 16
        %v2886 = vrot.slane %v2884, 1
        %v2887 = vsel %vm1404, %v2882, %v2886
        %v2888 = vshrl.u32 %v2399, 16
        %v2890 = vor.u32 %v2888, %v2886
        %v2892 = vshrl.u32 %v2400, 16
        %v2894 = vshll.u32 %v2400, 16
        %v2896 = vrot.slane %v2894, 1
        %v2897 = vor.u32 %v2892, %v2896
        %v2899 = vshll.u32 %v2401, 16
        %v2901 = vrot.slane %v2899, 1
        %v2902 = vsel %vm1404, %v2897, %v2901
        %v2903 = vshrl.u32 %v2401, 16
        %v2905 = vor.u32 %v2903, %v2901
        %v2907 = vshrl.u32 %v2402, 16
        %v2909 = vshll.u32 %v2402, 16
        %v2911 = vrot.slane %v2909, 1
        %v2912 = vor.u32 %v2907, %v2911
        %v2914 = vshll.u32 %v2403, 16
        %v2916 = vrot.slane %v2914, 1
        %v2917 = vsel %vm1404, %v2912, %v2916
        %v2918 = vshrl.u32 %v2403, 16
        %v2920 = vor.u32 %v2918, %v2916
        %v2922 = vshrl.u32 %v2404, 16
        %v2924 = vshll.u32 %v2404, 16
        %v2926 = vrot.slane %v2924, 1
        %v2927 = vor.u32 %v2922, %v2926
        %v2929 = vshll.u32 %v2405, 16
        %v2931 = vrot.slane %v2929, 1
        %v2932 = vsel %vm1404, %v2927, %v2931
        %v2933 = vshrl.u32 %v2405, 16
        %v2935 = vor.u32 %v2933, %v2931
        %v2937 = vshrl.u32 %v2406, 16
        %v2939 = vshll.u32 %v2406, 16
        %v2941 = vrot.slane %v2939, 1
        %v2942 = vor.u32 %v2937, %v2941
        %v2944 = vshll.u32 %v2407, 16
        %v2946 = vrot.slane %v2944, 1
        %v2947 = vsel %vm1404, %v2942, %v2946
        %v2948 = vshrl.u32 %v2407, 16
        %v2950 = vor.u32 %v2948, %v2946
        %v2952 = vshrl.u32 %v2408, 16
        %v2954 = vshll.u32 %v2408, 16
        %v2956 = vrot.slane %v2954, 1
        %v2957 = vor.u32 %v2952, %v2956
        %v2959 = vshll.u32 %v2409, 16
        %v2961 = vrot.slane %v2959, 1
        %v2962 = vsel %vm1404, %v2957, %v2961
        %v2963 = vshrl.u32 %v2409, 16
        %v2965 = vor.u32 %v2963, %v2961
        %v2967 = vshrl.u32 %v2410, 16
        %v2969 = vshll.u32 %v2410, 16
        %v2971 = vrot.slane %v2969, 1
        %v2972 = vor.u32 %v2967, %v2971
        %v2974 = vshll.u32 %v2411, 16
        %v2976 = vrot.slane %v2974, 1
        %v2977 = vsel %vm1404, %v2972, %v2976
        %v2978 = vshrl.u32 %v2411, 16
        %v2980 = vor.u32 %v2978, %v2976
        %v2982 = vshrl.u32 %v2412, 16
        %v2984 = vshll.u32 %v2412, 16
        %v2986 = vrot.slane %v2984, 1
        %v2987 = vor.u32 %v2982, %v2986
        %v2989 = vshll.u32 %v2413, 16
        %v2991 = vrot.slane %v2989, 1
        %v2992 = vsel %vm1404, %v2987, %v2991
        %v2993 = vshrl.u32 %v2413, 16
        %v2995 = vor.u32 %v2993, %v2991
        %v2997 = vshrl.u32 %v2414, 16
        %v2999 = vshll.u32 %v2414, 16
        %v3001 = vrot.slane %v2999, 1
        %v3002 = vor.u32 %v2997, %v3001
        %v3004 = vshll.u32 %v2415, 16
        %v3006 = vrot.slane %v3004, 1
        %v3007 = vsel %vm1404, %v3002, %v3006
        %v3008 = vshrl.u32 %v2415, 16
        %v3010 = vor.u32 %v3008, %v3006
        %v3043 = vmax.bf16 %v2384, %v2782
        %v3044 = vmax.bf16 %v2385, %v2785
        %v3045 = vmax.bf16 %v2386, %v2797
        %v3046 = vmax.bf16 %v2387, %v2800
        %v3047 = vmax.bf16 %v2388, %v2812
        %v3048 = vmax.bf16 %v2389, %v2815
        %v3049 = vmax.bf16 %v2390, %v2827
        %v3050 = vmax.bf16 %v2391, %v2830
        %v3051 = vmax.bf16 %v2392, %v2842
        %v3052 = vmax.bf16 %v2393, %v2845
        %v3053 = vmax.bf16 %v2394, %v2857
        %v3054 = vmax.bf16 %v2395, %v2860
        %v3055 = vmax.bf16 %v2396, %v2872
        %v3056 = vmax.bf16 %v2397, %v2875
        %v3057 = vmax.bf16 %v2398, %v2887
        %v3058 = vmax.bf16 %v2399, %v2890
        %v3059 = vmax.bf16 %v2400, %v2902
        %v3060 = vmax.bf16 %v2401, %v2905
        %v3061 = vmax.bf16 %v2402, %v2917
        %v3062 = vmax.bf16 %v2403, %v2920
        %v3063 = vmax.bf16 %v2404, %v2932
        %v3064 = vmax.bf16 %v2405, %v2935
        %v3065 = vmax.bf16 %v2406, %v2947
        %v3066 = vmax.bf16 %v2407, %v2950
        %v3067 = vmax.bf16 %v2408, %v2962
        %v3068 = vmax.bf16 %v2409, %v2965
        %v3069 = vmax.bf16 %v2410, %v2977
        %v3070 = vmax.bf16 %v2411, %v2980
        %v3071 = vmax.bf16 %v2412, %v2992
        %v3072 = vmax.bf16 %v2413, %v2995
        %v3073 = vmax.bf16 %v2414, %v3007
        %v3074 = vmax.bf16 %v2415, %v3010
        %v3091 = vrot.slane %v2384, 1
        %v3092 = vrot.slane %v2385, 1
        %v3093 = vsel %vm1785, %v3091, %v3092
        %v3094 = vrot.slane %v2386, 1
        %v3095 = vrot.slane %v2387, 1
        %v3096 = vsel %vm1785, %v3094, %v3095
        %v3097 = vrot.slane %v2388, 1
        %v3098 = vrot.slane %v2389, 1
        %v3099 = vsel %vm1785, %v3097, %v3098
        %v3100 = vrot.slane %v2390, 1
        %v3101 = vrot.slane %v2391, 1
        %v3102 = vsel %vm1785, %v3100, %v3101
        %v3103 = vrot.slane %v2392, 1
        %v3104 = vrot.slane %v2393, 1
        %v3105 = vsel %vm1785, %v3103, %v3104
        %v3106 = vrot.slane %v2394, 1
        %v3107 = vrot.slane %v2395, 1
        %v3108 = vsel %vm1785, %v3106, %v3107
        %v3109 = vrot.slane %v2396, 1
        %v3110 = vrot.slane %v2397, 1
        %v3111 = vsel %vm1785, %v3109, %v3110
        %v3112 = vrot.slane %v2398, 1
        %v3113 = vrot.slane %v2399, 1
        %v3114 = vsel %vm1785, %v3112, %v3113
        %v3115 = vrot.slane %v2400, 1
        %v3116 = vrot.slane %v2401, 1
        %v3117 = vsel %vm1785, %v3115, %v3116
        %v3118 = vrot.slane %v2402, 1
        %v3119 = vrot.slane %v2403, 1
        %v3120 = vsel %vm1785, %v3118, %v3119
        %v3121 = vrot.slane %v2404, 1
        %v3122 = vrot.slane %v2405, 1
        %v3123 = vsel %vm1785, %v3121, %v3122
        %v3124 = vrot.slane %v2406, 1
        %v3125 = vrot.slane %v2407, 1
        %v3126 = vsel %vm1785, %v3124, %v3125
        %v3127 = vrot.slane %v2408, 1
        %v3128 = vrot.slane %v2409, 1
        %v3129 = vsel %vm1785, %v3127, %v3128
        %v3130 = vrot.slane %v2410, 1
        %v3131 = vrot.slane %v2411, 1
        %v3132 = vsel %vm1785, %v3130, %v3131
        %v3133 = vrot.slane %v2412, 1
        %v3134 = vrot.slane %v2413, 1
        %v3135 = vsel %vm1785, %v3133, %v3134
        %v3136 = vrot.slane %v2414, 1
        %v3137 = vrot.slane %v2415, 1
        %v3138 = vsel %vm1785, %v3136, %v3137
        %v3171 = vmax.bf16 %v3043, %v3093
        %v3172 = vmax.bf16 %v3044, %v3092
        %v3173 = vmax.bf16 %v3045, %v3096
        %v3174 = vmax.bf16 %v3046, %v3095
        %v3175 = vmax.bf16 %v3047, %v3099
        %v3176 = vmax.bf16 %v3048, %v3098
        %v3177 = vmax.bf16 %v3049, %v3102
        %v3178 = vmax.bf16 %v3050, %v3101
        %v3179 = vmax.bf16 %v3051, %v3105
        %v3180 = vmax.bf16 %v3052, %v3104
        %v3181 = vmax.bf16 %v3053, %v3108
        %v3182 = vmax.bf16 %v3054, %v3107
        %v3183 = vmax.bf16 %v3055, %v3111
        %v3184 = vmax.bf16 %v3056, %v3110
        %v3185 = vmax.bf16 %v3057, %v3114
        %v3186 = vmax.bf16 %v3058, %v3113
        %v3187 = vmax.bf16 %v3059, %v3117
        %v3188 = vmax.bf16 %v3060, %v3116
        %v3189 = vmax.bf16 %v3061, %v3120
        %v3190 = vmax.bf16 %v3062, %v3119
        %v3191 = vmax.bf16 %v3063, %v3123
        %v3192 = vmax.bf16 %v3064, %v3122
        %v3193 = vmax.bf16 %v3065, %v3126
        %v3194 = vmax.bf16 %v3066, %v3125
        %v3195 = vmax.bf16 %v3067, %v3129
        %v3196 = vmax.bf16 %v3068, %v3128
        %v3197 = vmax.bf16 %v3069, %v3132
        %v3198 = vmax.bf16 %v3070, %v3131
        %v3199 = vmax.bf16 %v3071, %v3135
        %v3200 = vmax.bf16 %v3072, %v3134
        %v3201 = vmax.bf16 %v3073, %v3138
        %v3202 = vmax.bf16 %v3074, %v3137
        %v3203 = vrot.slane %v2772, 1
        %v3204 = vrot.slane %v2774, 2
        %v3205 = vor.u32 %v3203, %v3204
        %v3206 = vrot.slane %v2783, 1
        %v3207 = vrot.slane %v2779, 2
        %v3208 = vor.u32 %v3206, %v3207
        %v3209 = vsel %vm1926, %v3205, %v3208
        %v3210 = vrot.slane %v2787, 1
        %v3211 = vrot.slane %v2789, 2
        %v3212 = vor.u32 %v3210, %v3211
        %v3213 = vrot.slane %v2798, 1
        %v3214 = vrot.slane %v2794, 2
        %v3215 = vor.u32 %v3213, %v3214
        %v3216 = vsel %vm1926, %v3212, %v3215
        %v3217 = vrot.slane %v2802, 1
        %v3218 = vrot.slane %v2804, 2
        %v3219 = vor.u32 %v3217, %v3218
        %v3220 = vrot.slane %v2813, 1
        %v3221 = vrot.slane %v2809, 2
        %v3222 = vor.u32 %v3220, %v3221
        %v3223 = vsel %vm1926, %v3219, %v3222
        %v3224 = vrot.slane %v2817, 1
        %v3225 = vrot.slane %v2819, 2
        %v3226 = vor.u32 %v3224, %v3225
        %v3227 = vrot.slane %v2828, 1
        %v3228 = vrot.slane %v2824, 2
        %v3229 = vor.u32 %v3227, %v3228
        %v3230 = vsel %vm1926, %v3226, %v3229
        %v3231 = vrot.slane %v2832, 1
        %v3232 = vrot.slane %v2834, 2
        %v3233 = vor.u32 %v3231, %v3232
        %v3234 = vrot.slane %v2843, 1
        %v3235 = vrot.slane %v2839, 2
        %v3236 = vor.u32 %v3234, %v3235
        %v3237 = vsel %vm1926, %v3233, %v3236
        %v3238 = vrot.slane %v2847, 1
        %v3239 = vrot.slane %v2849, 2
        %v3240 = vor.u32 %v3238, %v3239
        %v3241 = vrot.slane %v2858, 1
        %v3242 = vrot.slane %v2854, 2
        %v3243 = vor.u32 %v3241, %v3242
        %v3244 = vsel %vm1926, %v3240, %v3243
        %v3245 = vrot.slane %v2862, 1
        %v3246 = vrot.slane %v2864, 2
        %v3247 = vor.u32 %v3245, %v3246
        %v3248 = vrot.slane %v2873, 1
        %v3249 = vrot.slane %v2869, 2
        %v3250 = vor.u32 %v3248, %v3249
        %v3251 = vsel %vm1926, %v3247, %v3250
        %v3252 = vrot.slane %v2877, 1
        %v3253 = vrot.slane %v2879, 2
        %v3254 = vor.u32 %v3252, %v3253
        %v3255 = vrot.slane %v2888, 1
        %v3256 = vrot.slane %v2884, 2
        %v3257 = vor.u32 %v3255, %v3256
        %v3258 = vsel %vm1926, %v3254, %v3257
        %v3259 = vrot.slane %v2892, 1
        %v3260 = vrot.slane %v2894, 2
        %v3261 = vor.u32 %v3259, %v3260
        %v3262 = vrot.slane %v2903, 1
        %v3263 = vrot.slane %v2899, 2
        %v3264 = vor.u32 %v3262, %v3263
        %v3265 = vsel %vm1926, %v3261, %v3264
        %v3266 = vrot.slane %v2907, 1
        %v3267 = vrot.slane %v2909, 2
        %v3268 = vor.u32 %v3266, %v3267
        %v3269 = vrot.slane %v2918, 1
        %v3270 = vrot.slane %v2914, 2
        %v3271 = vor.u32 %v3269, %v3270
        %v3272 = vsel %vm1926, %v3268, %v3271
        %v3273 = vrot.slane %v2922, 1
        %v3274 = vrot.slane %v2924, 2
        %v3275 = vor.u32 %v3273, %v3274
        %v3276 = vrot.slane %v2933, 1
        %v3277 = vrot.slane %v2929, 2
        %v3278 = vor.u32 %v3276, %v3277
        %v3279 = vsel %vm1926, %v3275, %v3278
        %v3280 = vrot.slane %v2937, 1
        %v3281 = vrot.slane %v2939, 2
        %v3282 = vor.u32 %v3280, %v3281
        %v3283 = vrot.slane %v2948, 1
        %v3284 = vrot.slane %v2944, 2
        %v3285 = vor.u32 %v3283, %v3284
        %v3286 = vsel %vm1926, %v3282, %v3285
        %v3287 = vrot.slane %v2952, 1
        %v3288 = vrot.slane %v2954, 2
        %v3289 = vor.u32 %v3287, %v3288
        %v3290 = vrot.slane %v2963, 1
        %v3291 = vrot.slane %v2959, 2
        %v3292 = vor.u32 %v3290, %v3291
        %v3293 = vsel %vm1926, %v3289, %v3292
        %v3294 = vrot.slane %v2967, 1
        %v3295 = vrot.slane %v2969, 2
        %v3296 = vor.u32 %v3294, %v3295
        %v3297 = vrot.slane %v2978, 1
        %v3298 = vrot.slane %v2974, 2
        %v3299 = vor.u32 %v3297, %v3298
        %v3300 = vsel %vm1926, %v3296, %v3299
        %v3301 = vrot.slane %v2982, 1
        %v3302 = vrot.slane %v2984, 2
        %v3303 = vor.u32 %v3301, %v3302
        %v3304 = vrot.slane %v2993, 1
        %v3305 = vrot.slane %v2989, 2
        %v3306 = vor.u32 %v3304, %v3305
        %v3307 = vsel %vm1926, %v3303, %v3306
        %v3308 = vrot.slane %v2997, 1
        %v3309 = vrot.slane %v2999, 2
        %v3310 = vor.u32 %v3308, %v3309
        %v3311 = vrot.slane %v3008, 1
        %v3312 = vrot.slane %v3004, 2
        %v3313 = vor.u32 %v3311, %v3312
        %v3314 = vsel %vm1926, %v3310, %v3313
        %v3347 = vmax.bf16 %v3171, %v3209
        %v3348 = vmax.bf16 %v3172, %v3208
        %v3349 = vmax.bf16 %v3173, %v3216
        %v3350 = vmax.bf16 %v3174, %v3215
        %v3351 = vmax.bf16 %v3175, %v3223
        %v3352 = vmax.bf16 %v3176, %v3222
        %v3353 = vmax.bf16 %v3177, %v3230
        %v3354 = vmax.bf16 %v3178, %v3229
        %v3355 = vmax.bf16 %v3179, %v3237
        %v3356 = vmax.bf16 %v3180, %v3236
        %v3357 = vmax.bf16 %v3181, %v3244
        %v3358 = vmax.bf16 %v3182, %v3243
        %v3359 = vmax.bf16 %v3183, %v3251
        %v3360 = vmax.bf16 %v3184, %v3250
        %v3361 = vmax.bf16 %v3185, %v3258
        %v3362 = vmax.bf16 %v3186, %v3257
        %v3363 = vmax.bf16 %v3187, %v3265
        %v3364 = vmax.bf16 %v3188, %v3264
        %v3365 = vmax.bf16 %v3189, %v3272
        %v3366 = vmax.bf16 %v3190, %v3271
        %v3367 = vmax.bf16 %v3191, %v3279
        %v3368 = vmax.bf16 %v3192, %v3278
        %v3369 = vmax.bf16 %v3193, %v3286
        %v3370 = vmax.bf16 %v3194, %v3285
        %v3371 = vmax.bf16 %v3195, %v3293
        %v3372 = vmax.bf16 %v3196, %v3292
        %v3373 = vmax.bf16 %v3197, %v3300
        %v3374 = vmax.bf16 %v3198, %v3299
        %v3375 = vmax.bf16 %v3199, %v3307
        %v3376 = vmax.bf16 %v3200, %v3306
        %v3377 = vmax.bf16 %v3201, %v3314
        %v3378 = vmax.bf16 %v3202, %v3313
        %v3379 = vrot.slane %v2384, 2
        %v3380 = vrot.slane %v2385, 2
        %v3381 = vsel %vm2147, %v3379, %v3380
        %v3382 = vrot.slane %v2386, 2
        %v3383 = vrot.slane %v2387, 2
        %v3384 = vsel %vm2147, %v3382, %v3383
        %v3385 = vrot.slane %v2388, 2
        %v3386 = vrot.slane %v2389, 2
        %v3387 = vsel %vm2147, %v3385, %v3386
        %v3388 = vrot.slane %v2390, 2
        %v3389 = vrot.slane %v2391, 2
        %v3390 = vsel %vm2147, %v3388, %v3389
        %v3391 = vrot.slane %v2408, 2
        %v3392 = vrot.slane %v2409, 2
        %v3393 = vsel %vm2147, %v3391, %v3392
        %v3394 = vrot.slane %v2410, 2
        %v3395 = vrot.slane %v2411, 2
        %v3396 = vsel %vm2147, %v3394, %v3395
        %v3397 = vrot.slane %v2412, 2
        %v3398 = vrot.slane %v2413, 2
        %v3399 = vsel %vm2147, %v3397, %v3398
        %v3400 = vrot.slane %v2414, 2
        %v3401 = vrot.slane %v2415, 2
        %v3402 = vsel %vm2147, %v3400, %v3401
        %v3427 = vmax.bf16 %v3347, %v3381
        %v3428 = vmax.bf16 %v3348, %v3380
        %v3429 = vmax.bf16 %v3349, %v3384
        %v3430 = vmax.bf16 %v3350, %v3383
        %v3431 = vmax.bf16 %v3351, %v3387
        %v3432 = vmax.bf16 %v3352, %v3386
        %v3433 = vmax.bf16 %v3353, %v3390
        %v3434 = vmax.bf16 %v3354, %v3389
        %v3435 = vmax.bf16 %v3355, %v2434
        %v3436 = vmax.bf16 %v3356, %v2433
        %v3437 = vmax.bf16 %v3357, %v2437
        %v3438 = vmax.bf16 %v3358, %v2436
        %v3439 = vmax.bf16 %v3359, %v2440
        %v3440 = vmax.bf16 %v3360, %v2439
        %v3441 = vmax.bf16 %v3361, %v2443
        %v3442 = vmax.bf16 %v3362, %v2442
        %v3443 = vmax.bf16 %v3363, %v2446
        %v3444 = vmax.bf16 %v3364, %v2445
        %v3445 = vmax.bf16 %v3365, %v2449
        %v3446 = vmax.bf16 %v3366, %v2448
        %v3447 = vmax.bf16 %v3367, %v2452
        %v3448 = vmax.bf16 %v3368, %v2451
        %v3449 = vmax.bf16 %v3369, %v2455
        %v3450 = vmax.bf16 %v3370, %v2454
        %v3451 = vmax.bf16 %v3371, %v3393
        %v3452 = vmax.bf16 %v3372, %v3392
        %v3453 = vmax.bf16 %v3373, %v3396
        %v3454 = vmax.bf16 %v3374, %v3395
        %v3455 = vmax.bf16 %v3375, %v3399
        %v3456 = vmax.bf16 %v3376, %v3398
        %v3457 = vmax.bf16 %v3377, %v3402
        %v3458 = vmax.bf16 %v3378, %v3401
        %v3459 = vmax.bf16 %v3427, %v3429
        %v3460 = vmax.bf16 %v3428, %v3430
        %v3461 = vmax.bf16 %v3429, %v3431
        %v3462 = vmax.bf16 %v3430, %v3432
        %v3463 = vmax.bf16 %v3431, %v3433
        %v3464 = vmax.bf16 %v3432, %v3434
        %v3465 = vmax.bf16 %v3433, %v3435
        %v3466 = vmax.bf16 %v3434, %v3436
        %v3467 = vmax.bf16 %v3435, %v3437
        %v3468 = vmax.bf16 %v3436, %v3438
        %v3469 = vmax.bf16 %v3437, %v3439
        %v3470 = vmax.bf16 %v3438, %v3440
        %v3471 = vmax.bf16 %v3439, %v3441
        %v3472 = vmax.bf16 %v3440, %v3442
        %v3473 = vmax.bf16 %v3441, %v3443
        %v3474 = vmax.bf16 %v3442, %v3444
        %v3475 = vmax.bf16 %v3443, %v3445
        %v3476 = vmax.bf16 %v3444, %v3446
        %v3477 = vmax.bf16 %v3445, %v3447
        %v3478 = vmax.bf16 %v3446, %v3448
        %v3479 = vmax.bf16 %v3447, %v3449
        %v3480 = vmax.bf16 %v3448, %v3450
        %v3481 = vmax.bf16 %v3449, %v3451
        %v3482 = vmax.bf16 %v3450, %v3452
        %v3483 = vmax.bf16 %v3459, %v3431
        %v3484 = vmax.bf16 %v3460, %v3432
        %v3485 = vmax.bf16 %v3461, %v3433
        %v3486 = vmax.bf16 %v3462, %v3434
        %v3487 = vmax.bf16 %v3463, %v3435
        %v3488 = vmax.bf16 %v3464, %v3436
        %v3489 = vmax.bf16 %v3465, %v3437
        %v3490 = vmax.bf16 %v3466, %v3438
        %v3491 = vmax.bf16 %v3467, %v3439
        %v3492 = vmax.bf16 %v3468, %v3440
        %v3493 = vmax.bf16 %v3469, %v3441
        %v3494 = vmax.bf16 %v3470, %v3442
        %v3495 = vmax.bf16 %v3471, %v3443
        %v3496 = vmax.bf16 %v3472, %v3444
        %v3497 = vmax.bf16 %v3473, %v3445
        %v3498 = vmax.bf16 %v3474, %v3446
        %v3499 = vmax.bf16 %v3475, %v3447
        %v3500 = vmax.bf16 %v3476, %v3448
        %v3501 = vmax.bf16 %v3477, %v3449
        %v3502 = vmax.bf16 %v3478, %v3450
        %v3503 = vmax.bf16 %v3479, %v3451
        %v3504 = vmax.bf16 %v3480, %v3452
        %v3505 = vmax.bf16 %v3481, %v3453
        %v3506 = vmax.bf16 %v3482, %v3454
        %v3507 = vmax.bf16 %v3483, %v3433
        %v3508 = vmax.bf16 %v3484, %v3434
        %v3509 = vmax.bf16 %v3485, %v3435
        %v3510 = vmax.bf16 %v3486, %v3436
        %v3511 = vmax.bf16 %v3487, %v3437
        %v3512 = vmax.bf16 %v3488, %v3438
        %v3513 = vmax.bf16 %v3489, %v3439
        %v3514 = vmax.bf16 %v3490, %v3440
        %v3515 = vmax.bf16 %v3491, %v3441
        %v3516 = vmax.bf16 %v3492, %v3442
        %v3517 = vmax.bf16 %v3493, %v3443
        %v3518 = vmax.bf16 %v3494, %v3444
        %v3519 = vmax.bf16 %v3495, %v3445
        %v3520 = vmax.bf16 %v3496, %v3446
        %v3521 = vmax.bf16 %v3497, %v3447
        %v3522 = vmax.bf16 %v3498, %v3448
        %v3523 = vmax.bf16 %v3499, %v3449
        %v3524 = vmax.bf16 %v3500, %v3450
        %v3525 = vmax.bf16 %v3501, %v3451
        %v3526 = vmax.bf16 %v3502, %v3452
        %v3527 = vmax.bf16 %v3503, %v3453
        %v3528 = vmax.bf16 %v3504, %v3454
        %v3529 = vmax.bf16 %v3505, %v3455
        %v3530 = vmax.bf16 %v3506, %v3456
        %v3531 = vmax.bf16 %v3507, %v3435
        %v3532 = vmax.bf16 %v3508, %v3436
        %v3533 = vmax.bf16 %v3509, %v3437
        %v3534 = vmax.bf16 %v3510, %v3438
        %v3535 = vmax.bf16 %v3511, %v3439
        %v3536 = vmax.bf16 %v3512, %v3440
        %v3537 = vmax.bf16 %v3513, %v3441
        %v3538 = vmax.bf16 %v3514, %v3442
        %v3539 = vmax.bf16 %v3515, %v3443
        %v3540 = vmax.bf16 %v3516, %v3444
        %v3541 = vmax.bf16 %v3517, %v3445
        %v3542 = vmax.bf16 %v3518, %v3446
        %v3543 = vmax.bf16 %v3519, %v3447
        %v3544 = vmax.bf16 %v3520, %v3448
        %v3545 = vmax.bf16 %v3521, %v3449
        %v3546 = vmax.bf16 %v3522, %v3450
        %v3547 = vmax.bf16 %v3523, %v3451
        %v3548 = vmax.bf16 %v3524, %v3452
        %v3549 = vmax.bf16 %v3525, %v3453
        %v3550 = vmax.bf16 %v3526, %v3454
        %v3551 = vmax.bf16 %v3527, %v3455
        %v3552 = vmax.bf16 %v3528, %v3456
        %v3553 = vmax.bf16 %v3529, %v3457
        %v3554 = vmax.bf16 %v3530, %v3458
        %v3571 = vrot.slane %v3535, 1
        %v3572 = vrot.slane %v3536, 1
        %v3573 = vsel %vm1785, %v3571, %v3572
        %v3574 = vrot.slane %v3537, 1
        %v3575 = vrot.slane %v3538, 1
        %v3576 = vsel %vm1785, %v3574, %v3575
        %v3577 = vrot.slane %v3539, 1
        %v3578 = vrot.slane %v3540, 1
        %v3579 = vsel %vm1785, %v3577, %v3578
        %v3580 = vrot.slane %v3541, 1
        %v3581 = vrot.slane %v3542, 1
        %v3582 = vsel %vm1785, %v3580, %v3581
        %v3583 = vrot.slane %v3543, 1
        %v3584 = vrot.slane %v3544, 1
        %v3585 = vsel %vm1785, %v3583, %v3584
        %v3586 = vrot.slane %v3545, 1
        %v3587 = vrot.slane %v3546, 1
        %v3588 = vsel %vm1785, %v3586, %v3587
        %v3589 = vrot.slane %v3547, 1
        %v3590 = vrot.slane %v3548, 1
        %v3591 = vsel %vm1785, %v3589, %v3590
        %v3592 = vrot.slane %v3549, 1
        %v3593 = vrot.slane %v3550, 1
        %v3594 = vsel %vm1785, %v3592, %v3593
        %s3603 = scalar_lea.vmem [#allocation10], 128
        %v3604 = vld [vmem:[%s3603] sm:$0xf]
        %v3605 = vld [vmem:[%s3603 + $0x4] sm:$0xf]
        %v3606 = vld [vmem:[%s3603 + $0x8] sm:$0xf]
        %v3607 = vld [vmem:[%s3603 + $0xc] sm:$0xf]
        %v3608 = vld [vmem:[%s3603 + $0x10] sm:$0xf]
        %v3609 = vld [vmem:[%s3603 + $0x14] sm:$0xf]
        %v3610 = vld [vmem:[%s3603 + $0x18] sm:$0xf]
        %v3611 = vld [vmem:[%s3603 + $0x1c] sm:$0xf]
        %v3612 = vld [vmem:[%s3603 + $0x20] sm:$0xf]
        %v3613 = vld [vmem:[%s3603 + $0x24] sm:$0xf]
        %v3614 = vld [vmem:[%s3603 + $0x28] sm:$0xf]
        %v3615 = vld [vmem:[%s3603 + $0x2c] sm:$0xf]
        %v3616 = vld [vmem:[%s3603 + $0x30] sm:$0xf]
        %v3617 = vld [vmem:[%s3603 + $0x34] sm:$0xf]
        %v3618 = vld [vmem:[%s3603 + $0x38] sm:$0xf]
        %v3619 = vld [vmem:[%s3603 + $0x3c] sm:$0xf]
        %v3636 = vunpack.c.l.b16 %v3604
        %v3637 = vunpack.c.l.b16 %v3605
        %v3638 = vunpack.c.l.b16 %v3606
        %v3639 = vunpack.c.l.b16 %v3607
        %v3640 = vunpack.c.l.b16 %v3608
        %v3641 = vunpack.c.l.b16 %v3609
        %v3642 = vunpack.c.l.b16 %v3610
        %v3643 = vunpack.c.l.b16 %v3611
        %v3644 = vunpack.c.l.b16 %v3612
        %v3645 = vunpack.c.l.b16 %v3613
        %v3646 = vunpack.c.l.b16 %v3614
        %v3647 = vunpack.c.l.b16 %v3615
        %v3648 = vunpack.c.l.b16 %v3616
        %v3649 = vunpack.c.l.b16 %v3617
        %v3650 = vunpack.c.l.b16 %v3618
        %v3651 = vunpack.c.l.b16 %v3619
        %v3652 = vpack.c.b16 %v3637, %v3636
        %v3653 = vpack.c.b16 %v3639, %v3638
        %v3654 = vpack.c.b16 %v3641, %v3640
        %v3655 = vpack.c.b16 %v3643, %v3642
        %v3656 = vpack.c.b16 %v3645, %v3644
        %v3657 = vpack.c.b16 %v3647, %v3646
        %v3658 = vpack.c.b16 %v3649, %v3648
        %v3659 = vpack.c.b16 %v3651, %v3650
        %3668 = vmatprep.subr.bf16.mxu0 0
        %3669 = vmatpush1.bf16.msra.mxu0 %v3652
        %3670 = vmatprep.subr.bf16.mxu0 0
        %3671 = vmatpush1.bf16.msra.mxu0 %v3653
        %3672 = vmatprep.subr.bf16.mxu0 0
        %3673 = vmatpush1.bf16.msra.mxu0 %v3654
        %3674 = vmatprep.subr.bf16.mxu0 0
        %3675 = vmatpush1.bf16.msra.mxu0 %v3655
        %3676 = vmatprep.subr.bf16.mxu0 0
        %3677 = vmatpush1.bf16.msra.mxu0 %v3656
        %3678 = vmatprep.subr.bf16.mxu0 0
        %3679 = vmatpush1.bf16.msra.mxu0 %v3657
        %3680 = vmatprep.subr.bf16.mxu0 0
        %3681 = vmatpush1.bf16.msra.mxu0 %v3658
        %3682 = vmatprep.subr.bf16.mxu0 0
        %3683 = vmatpush1.bf16.msra.mxu0 %v3659
        %3684 = vmatprep.subr.bf16.mxu0 0
        %3685 = vmatpush1.bf16.msra.mxu0 0
        %3686 = vmatprep.subr.bf16.mxu0 0
        %3687 = vmatpush1.bf16.msra.mxu0 0
        %3688 = vmatprep.subr.bf16.mxu0 0
        %3689 = vmatpush1.bf16.msra.mxu0 0
        %3690 = vmatprep.subr.bf16.mxu0 0
        %3691 = vmatpush1.bf16.msra.mxu0 0
        %3692 = vmatprep.subr.bf16.mxu0 0
        %3693 = vmatpush1.bf16.msra.mxu0 0
        %3694 = vmatprep.subr.bf16.mxu0 0
        %3695 = vmatpush1.bf16.msra.mxu0 0
        %3696 = vmatprep.subr.bf16.mxu0 0
        %3697 = vmatpush1.bf16.msra.mxu0 0
        %3698 = vmatprep.subr.bf16.mxu0 0
        %3699 = vmatpush1.bf16.msra.mxu0 0
        %3700 = vmatprep.mubr.bf16.mxu0 0
        %3701 = vmatmul.mubr.bf16.gmra.mrb[0].mxu0 %v3573
        %v3702 = vpop.f32.mrb[0].mxu0
        %v3703 = vadd.f32 0.0, %v3702
        %v3704 = vpop.f32.mrb[0].mxu0
        %v3705 = vpop.f32.mrb[0].mxu0
        %v3706 = vadd.f32 0.0, %v3705
        %v3707 = vpop.f32.mrb[0].mxu0
        %3708 = vmatprep.mubr.bf16.mxu0 0
        %3709 = vmatmul.mubr.bf16.gmra.mrb[0].mxu0 %v3576
        %v3710 = vpop.f32.mrb[0].mxu0
        %v3711 = vadd.f32 0.0, %v3710
        %v3712 = vpop.f32.mrb[0].mxu0
        %v3713 = vpop.f32.mrb[0].mxu0
        %v3714 = vadd.f32 0.0, %v3713
        %v3715 = vpop.f32.mrb[0].mxu0
        %3716 = vmatprep.mubr.bf16.mxu0 0
        %3717 = vmatmul.mubr.bf16.gmra.mrb[0].mxu0 %v3579
        %v3718 = vpop.f32.mrb[0].mxu0
        %v3719 = vadd.f32 0.0, %v3718
        %v3720 = vpop.f32.mrb[0].mxu0
        %v3721 = vpop.f32.mrb[0].mxu0
        %v3722 = vadd.f32 0.0, %v3721
        %v3723 = vpop.f32.mrb[0].mxu0
        %3724 = vmatprep.mubr.bf16.mxu0 0
        %3725 = vmatmul.mubr.bf16.gmra.mrb[0].mxu0 %v3582
        %v3726 = vpop.f32.mrb[0].mxu0
        %v3727 = vadd.f32 0.0, %v3726
        %v3728 = vpop.f32.mrb[0].mxu0
        %v3729 = vpop.f32.mrb[0].mxu0
        %v3730 = vadd.f32 0.0, %v3729
        %v3731 = vpop.f32.mrb[0].mxu0
        %3732 = vmatprep.mubr.bf16.mxu0 0
        %3733 = vmatmul.mubr.bf16.gmra.mrb[0].mxu0 %v3585
        %v3734 = vpop.f32.mrb[0].mxu0
        %v3735 = vadd.f32 0.0, %v3734
        %v3736 = vpop.f32.mrb[0].mxu0
        %v3737 = vpop.f32.mrb[0].mxu0
        %v3738 = vadd.f32 0.0, %v3737
        %v3739 = vpop.f32.mrb[0].mxu0
        %3740 = vmatprep.mubr.bf16.mxu0 0
        %3741 = vmatmul.mubr.bf16.gmra.mrb[0].mxu0 %v3588
        %v3742 = vpop.f32.mrb[0].mxu0
        %v3743 = vadd.f32 0.0, %v3742
        %v3744 = vpop.f32.mrb[0].mxu0
        %v3745 = vpop.f32.mrb[0].mxu0
        %v3746 = vadd.f32 0.0, %v3745
        %v3747 = vpop.f32.mrb[0].mxu0
        %3748 = vmatprep.mubr.bf16.mxu0 0
        %3749 = vmatmul.mubr.bf16.gmra.mrb[0].mxu0 %v3591
        %v3750 = vpop.f32.mrb[0].mxu0
        %v3751 = vadd.f32 0.0, %v3750
        %v3752 = vpop.f32.mrb[0].mxu0
        %v3753 = vpop.f32.mrb[0].mxu0
        %v3754 = vadd.f32 0.0, %v3753
        %v3755 = vpop.f32.mrb[0].mxu0
        %3756 = vmatprep.mubr.bf16.mxu0 0
        %3757 = vmatmul.mubr.bf16.gmra.mrb[0].mxu0 %v3594
        %v3758 = vpop.f32.mrb[0].mxu0
        %v3759 = vadd.f32 0.0, %v3758
        %v3760 = vpop.f32.mrb[0].mxu0
        %v3761 = vpop.f32.mrb[0].mxu0
        %v3762 = vadd.f32 0.0, %v3761
        %v3763 = vpop.f32.mrb[0].mxu0
        %3764 = vdwg.mxu0
        %v3765 = vadd.f32 %v2709, %v3703
        %v3766 = vadd.f32 %v2712, %v3706
        %v3767 = vadd.f32 %v2717, %v3711
        %v3768 = vadd.f32 %v2720, %v3714
        %v3769 = vadd.f32 %v2725, %v3719
        %v3770 = vadd.f32 %v2728, %v3722
        %v3771 = vadd.f32 %v2733, %v3727
        %v3772 = vadd.f32 %v2736, %v3730
        %v3773 = vadd.f32 %v2741, %v3735
        %v3774 = vadd.f32 %v2744, %v3738
        %v3775 = vadd.f32 %v2749, %v3743
        %v3776 = vadd.f32 %v2752, %v3746
        %v3777 = vadd.f32 %v2757, %v3751
        %v3778 = vadd.f32 %v2760, %v3754
        %v3779 = vadd.f32 %v2765, %v3759
        %v3780 = vadd.f32 %v2768, %v3762
        %v3782 = vshrl.u32 %v3531, 16
        %v3784 = vshll.u32 %v3531, 16
        %v3786 = vrot.slane %v3784, 1
        %v3787 = vor.u32 %v3782, %v3786
        %v3789 = vshll.u32 %v3532, 16
        %v3791 = vrot.slane %v3789, 1
        %v3792 = vsel %vm1404, %v3787, %v3791
        %v3794 = vshrl.u32 %v3533, 16
        %v3796 = vshll.u32 %v3533, 16
        %v3798 = vrot.slane %v3796, 1
        %v3799 = vor.u32 %v3794, %v3798
        %v3801 = vshll.u32 %v3534, 16
        %v3803 = vrot.slane %v3801, 1
        %v3804 = vsel %vm1404, %v3799, %v3803
        %v3806 = vshrl.u32 %v3535, 16
        %v3808 = vshll.u32 %v3535, 16
        %v3810 = vrot.slane %v3808, 1
        %v3811 = vor.u32 %v3806, %v3810
        %v3813 = vshll.u32 %v3536, 16
        %v3815 = vrot.slane %v3813, 1
        %v3816 = vsel %vm1404, %v3811, %v3815
        %v3818 = vshrl.u32 %v3537, 16
        %v3820 = vshll.u32 %v3537, 16
        %v3822 = vrot.slane %v3820, 1
        %v3823 = vor.u32 %v3818, %v3822
        %v3825 = vshll.u32 %v3538, 16
        %v3827 = vrot.slane %v3825, 1
        %v3828 = vsel %vm1404, %v3823, %v3827
        %v3830 = vshrl.u32 %v3539, 16
        %v3832 = vshll.u32 %v3539, 16
        %v3834 = vrot.slane %v3832, 1
        %v3835 = vor.u32 %v3830, %v3834
        %v3837 = vshll.u32 %v3540, 16
        %v3839 = vrot.slane %v3837, 1
        %v3840 = vsel %vm1404, %v3835, %v3839
        %v3842 = vshrl.u32 %v3541, 16
        %v3844 = vshll.u32 %v3541, 16
        %v3846 = vrot.slane %v3844, 1
        %v3847 = vor.u32 %v3842, %v3846
        %v3849 = vshll.u32 %v3542, 16
        %v3851 = vrot.slane %v3849, 1
        %v3852 = vsel %vm1404, %v3847, %v3851
        %v3854 = vshrl.u32 %v3543, 16
        %v3856 = vshll.u32 %v3543, 16
        %v3858 = vrot.slane %v3856, 1
        %v3859 = vor.u32 %v3854, %v3858
        %v3861 = vshll.u32 %v3544, 16
        %v3863 = vrot.slane %v3861, 1
        %v3864 = vsel %vm1404, %v3859, %v3863
        %v3866 = vshrl.u32 %v3545, 16
        %v3868 = vshll.u32 %v3545, 16
        %v3870 = vrot.slane %v3868, 1
        %v3871 = vor.u32 %v3866, %v3870
        %v3873 = vshll.u32 %v3546, 16
        %v3875 = vrot.slane %v3873, 1
        %v3876 = vsel %vm1404, %v3871, %v3875
        %v3878 = vshrl.u32 %v3547, 16
        %v3880 = vshll.u32 %v3547, 16
        %v3882 = vrot.slane %v3880, 1
        %v3883 = vor.u32 %v3878, %v3882
        %v3885 = vshll.u32 %v3548, 16
        %v3887 = vrot.slane %v3885, 1
        %v3888 = vsel %vm1404, %v3883, %v3887
        %v3890 = vshrl.u32 %v3549, 16
        %v3892 = vshll.u32 %v3549, 16
        %v3894 = vrot.slane %v3892, 1
        %v3895 = vor.u32 %v3890, %v3894
        %v3897 = vshll.u32 %v3550, 16
        %v3899 = vrot.slane %v3897, 1
        %v3900 = vsel %vm1404, %v3895, %v3899
        %v3902 = vshrl.u32 %v3551, 16
        %v3904 = vshll.u32 %v3551, 16
        %v3906 = vrot.slane %v3904, 1
        %v3907 = vor.u32 %v3902, %v3906
        %v3909 = vshll.u32 %v3552, 16
        %v3911 = vrot.slane %v3909, 1
        %v3912 = vsel %vm1404, %v3907, %v3911
        %v3914 = vshrl.u32 %v3553, 16
        %v3916 = vshll.u32 %v3553, 16
        %v3918 = vrot.slane %v3916, 1
        %v3919 = vor.u32 %v3914, %v3918
        %v3921 = vshll.u32 %v3554, 16
        %v3923 = vrot.slane %v3921, 1
        %v3924 = vsel %vm1404, %v3919, %v3923
        %v3937 = vmax.bf16 %v3531, %v3792
        %v3938 = vmax.bf16 %v3533, %v3804
        %v3939 = vmax.bf16 %v3535, %v3816
        %v3940 = vmax.bf16 %v3537, %v3828
        %v3941 = vmax.bf16 %v3539, %v3840
        %v3942 = vmax.bf16 %v3541, %v3852
        %v3943 = vmax.bf16 %v3543, %v3864
        %v3944 = vmax.bf16 %v3545, %v3876
        %v3945 = vmax.bf16 %v3547, %v3888
        %v3946 = vmax.bf16 %v3549, %v3900
        %v3947 = vmax.bf16 %v3551, %v3912
        %v3948 = vmax.bf16 %v3553, %v3924
        %v3957 = vrot.slane %v3531, 1
        %v3958 = vrot.slane %v3532, 1
        %v3959 = vsel %vm1785, %v3957, %v3958
        %v3960 = vrot.slane %v3533, 1
        %v3961 = vrot.slane %v3534, 1
        %v3962 = vsel %vm1785, %v3960, %v3961
        %v3963 = vrot.slane %v3551, 1
        %v3964 = vrot.slane %v3552, 1
        %v3965 = vsel %vm1785, %v3963, %v3964
        %v3966 = vrot.slane %v3553, 1
        %v3967 = vrot.slane %v3554, 1
        %v3968 = vsel %vm1785, %v3966, %v3967
        %v3973 = vmax.bf16 %v3937, %v3959
        %v3974 = vmax.bf16 %v3938, %v3962
        %v3975 = vmax.bf16 %v3939, %v3573
        %v3976 = vmax.bf16 %v3940, %v3576
        %v3977 = vmax.bf16 %v3941, %v3579
        %v3978 = vmax.bf16 %v3942, %v3582
        %v3979 = vmax.bf16 %v3943, %v3585
        %v3980 = vmax.bf16 %v3944, %v3588
        %v3981 = vmax.bf16 %v3945, %v3591
        %v3982 = vmax.bf16 %v3946, %v3594
        %v3983 = vmax.bf16 %v3947, %v3965
        %v3984 = vmax.bf16 %v3948, %v3968
        %v3985 = vrot.slane %v3782, 1
        %v3986 = vrot.slane %v3784, 2
        %v3987 = vor.u32 %v3985, %v3986
        %v3988 = vshrl.u32 %v3532, 16
        %v3990 = vrot.slane %v3988, 1
        %v3991 = vrot.slane %v3789, 2
        %v3992 = vor.u32 %v3990, %v3991
        %v3993 = vsel %vm1926, %v3987, %v3992
        %v3994 = vrot.slane %v3794, 1
        %v3995 = vrot.slane %v3796, 2
        %v3996 = vor.u32 %v3994, %v3995
        %v3997 = vshrl.u32 %v3534, 16
        %v3999 = vrot.slane %v3997, 1
        %v4000 = vrot.slane %v3801, 2
        %v4001 = vor.u32 %v3999, %v4000
        %v4002 = vsel %vm1926, %v3996, %v4001
        %v4003 = vrot.slane %v3806, 1
        %v4004 = vrot.slane %v3808, 2
        %v4005 = vor.u32 %v4003, %v4004
        %v4006 = vshrl.u32 %v3536, 16
        %v4008 = vrot.slane %v4006, 1
        %v4009 = vrot.slane %v3813, 2
        %v4010 = vor.u32 %v4008, %v4009
        %v4011 = vsel %vm1926, %v4005, %v4010
        %v4012 = vrot.slane %v3818, 1
        %v4013 = vrot.slane %v3820, 2
        %v4014 = vor.u32 %v4012, %v4013
        %v4015 = vshrl.u32 %v3538, 16
        %v4017 = vrot.slane %v4015, 1
        %v4018 = vrot.slane %v3825, 2
        %v4019 = vor.u32 %v4017, %v4018
        %v4020 = vsel %vm1926, %v4014, %v4019
        %v4021 = vrot.slane %v3830, 1
        %v4022 = vrot.slane %v3832, 2
        %v4023 = vor.u32 %v4021, %v4022
        %v4024 = vshrl.u32 %v3540, 16
        %v4026 = vrot.slane %v4024, 1
        %v4027 = vrot.slane %v3837, 2
        %v4028 = vor.u32 %v4026, %v4027
        %v4029 = vsel %vm1926, %v4023, %v4028
        %v4030 = vrot.slane %v3842, 1
        %v4031 = vrot.slane %v3844, 2
        %v4032 = vor.u32 %v4030, %v4031
        %v4033 = vshrl.u32 %v3542, 16
        %v4035 = vrot.slane %v4033, 1
        %v4036 = vrot.slane %v3849, 2
        %v4037 = vor.u32 %v4035, %v4036
        %v4038 = vsel %vm1926, %v4032, %v4037
        %v4039 = vrot.slane %v3854, 1
        %v4040 = vrot.slane %v3856, 2
        %v4041 = vor.u32 %v4039, %v4040
        %v4042 = vshrl.u32 %v3544, 16
        %v4044 = vrot.slane %v4042, 1
        %v4045 = vrot.slane %v3861, 2
        %v4046 = vor.u32 %v4044, %v4045
        %v4047 = vsel %vm1926, %v4041, %v4046
        %v4048 = vrot.slane %v3866, 1
        %v4049 = vrot.slane %v3868, 2
        %v4050 = vor.u32 %v4048, %v4049
        %v4051 = vshrl.u32 %v3546, 16
        %v4053 = vrot.slane %v4051, 1
        %v4054 = vrot.slane %v3873, 2
        %v4055 = vor.u32 %v4053, %v4054
        %v4056 = vsel %vm1926, %v4050, %v4055
        %v4057 = vrot.slane %v3878, 1
        %v4058 = vrot.slane %v3880, 2
        %v4059 = vor.u32 %v4057, %v4058
        %v4060 = vshrl.u32 %v3548, 16
        %v4062 = vrot.slane %v4060, 1
        %v4063 = vrot.slane %v3885, 2
        %v4064 = vor.u32 %v4062, %v4063
        %v4065 = vsel %vm1926, %v4059, %v4064
        %v4066 = vrot.slane %v3890, 1
        %v4067 = vrot.slane %v3892, 2
        %v4068 = vor.u32 %v4066, %v4067
        %v4069 = vshrl.u32 %v3550, 16
        %v4071 = vrot.slane %v4069, 1
        %v4072 = vrot.slane %v3897, 2
        %v4073 = vor.u32 %v4071, %v4072
        %v4074 = vsel %vm1926, %v4068, %v4073
        %v4075 = vrot.slane %v3902, 1
        %v4076 = vrot.slane %v3904, 2
        %v4077 = vor.u32 %v4075, %v4076
        %v4078 = vshrl.u32 %v3552, 16
        %v4080 = vrot.slane %v4078, 1
        %v4081 = vrot.slane %v3909, 2
        %v4082 = vor.u32 %v4080, %v4081
        %v4083 = vsel %vm1926, %v4077, %v4082
        %v4084 = vrot.slane %v3914, 1
        %v4085 = vrot.slane %v3916, 2
        %v4086 = vor.u32 %v4084, %v4085
        %v4087 = vshrl.u32 %v3554, 16
        %v4089 = vrot.slane %v4087, 1
        %v4090 = vrot.slane %v3921, 2
        %v4091 = vor.u32 %v4089, %v4090
        %v4092 = vsel %vm1926, %v4086, %v4091
        %v4105 = vmax.bf16 %v3973, %v3993
        %v4106 = vmax.bf16 %v3974, %v4002
        %v4107 = vmax.bf16 %v3975, %v4011
        %v4108 = vmax.bf16 %v3976, %v4020
        %v4109 = vmax.bf16 %v3977, %v4029
        %v4110 = vmax.bf16 %v3978, %v4038
        %v4111 = vmax.bf16 %v3979, %v4047
        %v4112 = vmax.bf16 %v3980, %v4056
        %v4113 = vmax.bf16 %v3981, %v4065
        %v4114 = vmax.bf16 %v3982, %v4074
        %v4115 = vmax.bf16 %v3983, %v4083
        %v4116 = vmax.bf16 %v3984, %v4092
        %v4117 = vrot.slane %v3531, 2
        %v4118 = vrot.slane %v3532, 2
        %v4119 = vsel %vm2147, %v4117, %v4118
        %v4120 = vrot.slane %v3533, 2
        %v4121 = vrot.slane %v3534, 2
        %v4122 = vsel %vm2147, %v4120, %v4121
        %v4123 = vrot.slane %v3535, 2
        %v4124 = vrot.slane %v3536, 2
        %v4125 = vsel %vm2147, %v4123, %v4124
        %v4126 = vrot.slane %v3537, 2
        %v4127 = vrot.slane %v3538, 2
        %v4128 = vsel %vm2147, %v4126, %v4127
        %v4129 = vrot.slane %v3539, 2
        %v4130 = vrot.slane %v3540, 2
        %v4131 = vsel %vm2147, %v4129, %v4130
        %v4132 = vrot.slane %v3541, 2
        %v4133 = vrot.slane %v3542, 2
        %v4134 = vsel %vm2147, %v4132, %v4133
        %v4135 = vrot.slane %v3543, 2
        %v4136 = vrot.slane %v3544, 2
        %v4137 = vsel %vm2147, %v4135, %v4136
        %v4138 = vrot.slane %v3545, 2
        %v4139 = vrot.slane %v3546, 2
        %v4140 = vsel %vm2147, %v4138, %v4139
        %v4141 = vrot.slane %v3547, 2
        %v4142 = vrot.slane %v3548, 2
        %v4143 = vsel %vm2147, %v4141, %v4142
        %v4144 = vrot.slane %v3549, 2
        %v4145 = vrot.slane %v3550, 2
        %v4146 = vsel %vm2147, %v4144, %v4145
        %v4147 = vrot.slane %v3551, 2
        %v4148 = vrot.slane %v3552, 2
        %v4149 = vsel %vm2147, %v4147, %v4148
        %v4150 = vrot.slane %v3553, 2
        %v4151 = vrot.slane %v3554, 2
        %v4152 = vsel %vm2147, %v4150, %v4151
        %v4165 = vmax.bf16 %v4105, %v4119
        %v4166 = vmax.bf16 %v4106, %v4122
        %v4167 = vmax.bf16 %v4107, %v4125
        %v4168 = vmax.bf16 %v4108, %v4128
        %v4169 = vmax.bf16 %v4109, %v4131
        %v4170 = vmax.bf16 %v4110, %v4134
        %v4171 = vmax.bf16 %v4111, %v4137
        %v4172 = vmax.bf16 %v4112, %v4140
        %v4173 = vmax.bf16 %v4113, %v4143
        %v4174 = vmax.bf16 %v4114, %v4146
        %v4175 = vmax.bf16 %v4115, %v4149
        %v4176 = vmax.bf16 %v4116, %v4152
        %v4177 = vmax.bf16 %v4165, %v4166
        %v4178 = vmax.bf16 %v4166, %v4167
        %v4179 = vmax.bf16 %v4167, %v4168
        %v4180 = vmax.bf16 %v4168, %v4169
        %v4181 = vmax.bf16 %v4169, %v4170
        %v4182 = vmax.bf16 %v4170, %v4171
        %v4183 = vmax.bf16 %v4171, %v4172
        %v4184 = vmax.bf16 %v4172, %v4173
        %v4185 = vmax.bf16 %v4177, %v4167
        %v4186 = vmax.bf16 %v4178, %v4168
        %v4187 = vmax.bf16 %v4179, %v4169
        %v4188 = vmax.bf16 %v4180, %v4170
        %v4189 = vmax.bf16 %v4181, %v4171
        %v4190 = vmax.bf16 %v4182, %v4172
        %v4191 = vmax.bf16 %v4183, %v4173
        %v4192 = vmax.bf16 %v4184, %v4174
        %v4193 = vmax.bf16 %v4185, %v4168
        %v4194 = vmax.bf16 %v4186, %v4169
        %v4195 = vmax.bf16 %v4187, %v4170
        %v4196 = vmax.bf16 %v4188, %v4171
        %v4197 = vmax.bf16 %v4189, %v4172
        %v4198 = vmax.bf16 %v4190, %v4173
        %v4199 = vmax.bf16 %v4191, %v4174
        %v4200 = vmax.bf16 %v4192, %v4175
        %v4201 = vmax.bf16 %v4193, %v4169
        %v4202 = vmax.bf16 %v4194, %v4170
        %v4203 = vmax.bf16 %v4195, %v4171
        %v4204 = vmax.bf16 %v4196, %v4172
        %v4205 = vmax.bf16 %v4197, %v4173
        %v4206 = vmax.bf16 %v4198, %v4174
        %v4207 = vmax.bf16 %v4199, %v4175
        %v4208 = vmax.bf16 %v4200, %v4176
        %s4209 = scalar_lea.vmem [#allocation10], 192
        %v4210 = vld [vmem:[%s4209] sm:$0xf]
        %v4211 = vld [vmem:[%s4209 + $0x4] sm:$0xf]
        %v4212 = vld [vmem:[%s4209 + $0x8] sm:$0xf]
        %v4213 = vld [vmem:[%s4209 + $0xc] sm:$0xf]
        %v4214 = vld [vmem:[%s4209 + $0x10] sm:$0xf]
        %v4215 = vld [vmem:[%s4209 + $0x14] sm:$0xf]
        %v4216 = vld [vmem:[%s4209 + $0x18] sm:$0xf]
        %v4217 = vld [vmem:[%s4209 + $0x1c] sm:$0xf]
        %v4218 = vld [vmem:[%s4209 + $0x20] sm:$0xf]
        %v4219 = vld [vmem:[%s4209 + $0x24] sm:$0xf]
        %v4220 = vld [vmem:[%s4209 + $0x28] sm:$0xf]
        %v4221 = vld [vmem:[%s4209 + $0x2c] sm:$0xf]
        %v4222 = vld [vmem:[%s4209 + $0x30] sm:$0xf]
        %v4223 = vld [vmem:[%s4209 + $0x34] sm:$0xf]
        %v4224 = vld [vmem:[%s4209 + $0x38] sm:$0xf]
        %v4225 = vld [vmem:[%s4209 + $0x3c] sm:$0xf]
        %v4242 = vunpack.c.l.b16 %v4210
        %v4243 = vunpack.c.l.b16 %v4211
        %v4244 = vunpack.c.l.b16 %v4212
        %v4245 = vunpack.c.l.b16 %v4213
        %v4246 = vunpack.c.l.b16 %v4214
        %v4247 = vunpack.c.l.b16 %v4215
        %v4248 = vunpack.c.l.b16 %v4216
        %v4249 = vunpack.c.l.b16 %v4217
        %v4250 = vunpack.c.l.b16 %v4218
        %v4251 = vunpack.c.l.b16 %v4219
        %v4252 = vunpack.c.l.b16 %v4220
        %v4253 = vunpack.c.l.b16 %v4221
        %v4254 = vunpack.c.l.b16 %v4222
        %v4255 = vunpack.c.l.b16 %v4223
        %v4256 = vunpack.c.l.b16 %v4224
        %v4257 = vunpack.c.l.b16 %v4225
        %v4258 = vpack.c.b16 %v4243, %v4242
        %v4259 = vpack.c.b16 %v4245, %v4244
        %v4260 = vpack.c.b16 %v4247, %v4246
        %v4261 = vpack.c.b16 %v4249, %v4248
        %v4262 = vpack.c.b16 %v4251, %v4250
        %v4263 = vpack.c.b16 %v4253, %v4252
        %v4264 = vpack.c.b16 %v4255, %v4254
        %v4265 = vpack.c.b16 %v4257, %v4256
        %4274 = vmatprep.subr.bf16.mxu0 0
        %4275 = vmatpush1.bf16.msra.mxu0 %v4258
        %4276 = vmatprep.subr.bf16.mxu0 0
        %4277 = vmatpush1.bf16.msra.mxu0 %v4259
        %4278 = vmatprep.subr.bf16.mxu0 0
        %4279 = vmatpush1.bf16.msra.mxu0 %v4260
        %4280 = vmatprep.subr.bf16.mxu0 0
        %4281 = vmatpush1.bf16.msra.mxu0 %v4261
        %4282 = vmatprep.subr.bf16.mxu0 0
        %4283 = vmatpush1.bf16.msra.mxu0 %v4262
        %4284 = vmatprep.subr.bf16.mxu0 0
        %4285 = vmatpush1.bf16.msra.mxu0 %v4263
        %4286 = vmatprep.subr.bf16.mxu0 0
        %4287 = vmatpush1.bf16.msra.mxu0 %v4264
        %4288 = vmatprep.subr.bf16.mxu0 0
        %4289 = vmatpush1.bf16.msra.mxu0 %v4265
        %4290 = vmatprep.subr.bf16.mxu0 0
        %4291 = vmatpush1.bf16.msra.mxu0 0
        %4292 = vmatprep.subr.bf16.mxu0 0
        %4293 = vmatpush1.bf16.msra.mxu0 0
        %4294 = vmatprep.subr.bf16.mxu0 0
        %4295 = vmatpush1.bf16.msra.mxu0 0
        %4296 = vmatprep.subr.bf16.mxu0 0
        %4297 = vmatpush1.bf16.msra.mxu0 0
        %4298 = vmatprep.subr.bf16.mxu0 0
        %4299 = vmatpush1.bf16.msra.mxu0 0
        %4300 = vmatprep.subr.bf16.mxu0 0
        %4301 = vmatpush1.bf16.msra.mxu0 0
        %4302 = vmatprep.subr.bf16.mxu0 0
        %4303 = vmatpush1.bf16.msra.mxu0 0
        %4304 = vmatprep.subr.bf16.mxu0 0
        %4305 = vmatpush1.bf16.msra.mxu0 0
        %4306 = vmatprep.mubr.bf16.mxu0 0
        %4307 = vmatmul.mubr.bf16.gmra.mrb[0].mxu0 %v4201
        %v4308 = vpop.f32.mrb[0].mxu0
        %v4309 = vadd.f32 0.0, %v4308
        %v4310 = vpop.f32.mrb[0].mxu0
        %v4311 = vpop.f32.mrb[0].mxu0
        %v4312 = vadd.f32 0.0, %v4311
        %v4313 = vpop.f32.mrb[0].mxu0
        %4314 = vmatprep.mubr.bf16.mxu0 0
        %4315 = vmatmul.mubr.bf16.gmra.mrb[0].mxu0 %v4202
        %v4316 = vpop.f32.mrb[0].mxu0
        %v4317 = vadd.f32 0.0, %v4316
        %v4318 = vpop.f32.mrb[0].mxu0
        %v4319 = vpop.f32.mrb[0].mxu0
        %v4320 = vadd.f32 0.0, %v4319
        %v4321 = vpop.f32.mrb[0].mxu0
        %4322 = vmatprep.mubr.bf16.mxu0 0
        %4323 = vmatmul.mubr.bf16.gmra.mrb[0].mxu0 %v4203
        %v4324 = vpop.f32.mrb[0].mxu0
        %v4325 = vadd.f32 0.0, %v4324
        %v4326 = vpop.f32.mrb[0].mxu0
        %v4327 = vpop.f32.mrb[0].mxu0
        %v4328 = vadd.f32 0.0, %v4327
        %v4329 = vpop.f32.mrb[0].mxu0
        %4330 = vmatprep.mubr.bf16.mxu0 0
        %4331 = vmatmul.mubr.bf16.gmra.mrb[0].mxu0 %v4204
        %v4332 = vpop.f32.mrb[0].mxu0
        %v4333 = vadd.f32 0.0, %v4332
        %v4334 = vpop.f32.mrb[0].mxu0
        %v4335 = vpop.f32.mrb[0].mxu0
        %v4336 = vadd.f32 0.0, %v4335
        %v4337 = vpop.f32.mrb[0].mxu0
        %4338 = vmatprep.mubr.bf16.mxu0 0
        %4339 = vmatmul.mubr.bf16.gmra.mrb[0].mxu0 %v4205
        %v4340 = vpop.f32.mrb[0].mxu0
        %v4341 = vadd.f32 0.0, %v4340
        %v4342 = vpop.f32.mrb[0].mxu0
        %v4343 = vpop.f32.mrb[0].mxu0
        %v4344 = vadd.f32 0.0, %v4343
        %v4345 = vpop.f32.mrb[0].mxu0
        %4346 = vmatprep.mubr.bf16.mxu0 0
        %4347 = vmatmul.mubr.bf16.gmra.mrb[0].mxu0 %v4206
        %v4348 = vpop.f32.mrb[0].mxu0
        %v4349 = vadd.f32 0.0, %v4348
        %v4350 = vpop.f32.mrb[0].mxu0
        %v4351 = vpop.f32.mrb[0].mxu0
        %v4352 = vadd.f32 0.0, %v4351
        %v4353 = vpop.f32.mrb[0].mxu0
        %4354 = vmatprep.mubr.bf16.mxu0 0
        %4355 = vmatmul.mubr.bf16.gmra.mrb[0].mxu0 %v4207
        %v4356 = vpop.f32.mrb[0].mxu0
        %v4357 = vadd.f32 0.0, %v4356
        %v4358 = vpop.f32.mrb[0].mxu0
        %v4359 = vpop.f32.mrb[0].mxu0
        %v4360 = vadd.f32 0.0, %v4359
        %v4361 = vpop.f32.mrb[0].mxu0
        %4362 = vmatprep.mubr.bf16.mxu0 0
        %4363 = vmatmul.mubr.bf16.gmra.mrb[0].mxu0 %v4208
        %v4364 = vpop.f32.mrb[0].mxu0
        %v4365 = vadd.f32 0.0, %v4364
        %v4366 = vpop.f32.mrb[0].mxu0
        %v4367 = vpop.f32.mrb[0].mxu0
        %v4368 = vadd.f32 0.0, %v4367
        %v4369 = vpop.f32.mrb[0].mxu0
        %4370 = vdwg.mxu0
        %v4371 = vadd.f32 %v3765, %v4309
        %v4372 = vadd.f32 %v3766, %v4312
        %v4373 = vadd.f32 %v3767, %v4317
        %v4374 = vadd.f32 %v3768, %v4320
        %v4375 = vadd.f32 %v3769, %v4325
        %v4376 = vadd.f32 %v3770, %v4328
        %v4377 = vadd.f32 %v3771, %v4333
        %v4378 = vadd.f32 %v3772, %v4336
        %v4379 = vadd.f32 %v3773, %v4341
        %v4380 = vadd.f32 %v3774, %v4344
        %v4381 = vadd.f32 %v3775, %v4349
        %v4382 = vadd.f32 %v3776, %v4352
        %v4383 = vadd.f32 %v3777, %v4357
        %v4384 = vadd.f32 %v3778, %v4360
        %v4385 = vadd.f32 %v3779, %v4365
        %v4386 = vadd.f32 %v3780, %v4368
        %v4387 = vld [vmem:[%s6] sm:$0x1]
        %v4389 = vlaneseq
        %v4390 = vshrl.u32 %v4389, 7
        %v4391 = vsub.s32 0, %v4390
        %v4392 = vrot.slane %v4387, %v4391
        %v4394 = vadd.f32 %v4371, %v4392
        %v4395 = vadd.f32 %v4372, %v4392
        %v4396 = vadd.f32 %v4373, %v4392
        %v4397 = vadd.f32 %v4374, %v4392
        %v4398 = vadd.f32 %v4375, %v4392
        %v4399 = vadd.f32 %v4376, %v4392
        %v4400 = vadd.f32 %v4377, %v4392
        %v4401 = vadd.f32 %v4378, %v4392
        %v4402 = vadd.f32 %v4379, %v4392
        %v4403 = vadd.f32 %v4380, %v4392
        %v4404 = vadd.f32 %v4381, %v4392
        %v4405 = vadd.f32 %v4382, %v4392
        %v4406 = vadd.f32 %v4383, %v4392
        %v4407 = vadd.f32 %v4384, %v4392
        %v4408 = vadd.f32 %v4385, %v4392
        %v4409 = vadd.f32 %v4386, %v4392
        %v4410 = vsub.f32 0.0, %v4394
        %v4411 = vsub.f32 0.0, %v4395
        %v4412 = vsub.f32 0.0, %v4396
        %v4413 = vsub.f32 0.0, %v4397
        %v4414 = vsub.f32 0.0, %v4398
        %v4415 = vsub.f32 0.0, %v4399
        %v4416 = vsub.f32 0.0, %v4400
        %v4417 = vsub.f32 0.0, %v4401
        %v4418 = vsub.f32 0.0, %v4402
        %v4419 = vsub.f32 0.0, %v4403
        %v4420 = vsub.f32 0.0, %v4404
        %v4421 = vsub.f32 0.0, %v4405
        %v4422 = vsub.f32 0.0, %v4406
        %v4423 = vsub.f32 0.0, %v4407
        %v4424 = vsub.f32 0.0, %v4408
        %v4425 = vsub.f32 0.0, %v4409
        %v4426 = vmul.f32 %v4410, 1.442695
        %v4427 = vpow.pop %v4426
        %v4428 = vmul.f32 %v4411, 1.442695
        %v4429 = vpow.pop %v4428
        %v4430 = vmul.f32 %v4412, 1.442695
        %v4431 = vpow.pop %v4430
        %v4432 = vmul.f32 %v4413, 1.442695
        %v4433 = vpow.pop %v4432
        %v4434 = vmul.f32 %v4414, 1.442695
        %v4435 = vpow.pop %v4434
        %v4436 = vmul.f32 %v4415, 1.442695
        %v4437 = vpow.pop %v4436
        %v4438 = vmul.f32 %v4416, 1.442695
        %v4439 = vpow.pop %v4438
        %v4440 = vmul.f32 %v4417, 1.442695
        %v4441 = vpow.pop %v4440
        %v4442 = vmul.f32 %v4418, 1.442695
        %v4443 = vpow.pop %v4442
        %v4444 = vmul.f32 %v4419, 1.442695
        %v4445 = vpow.pop %v4444
        %v4446 = vmul.f32 %v4420, 1.442695
        %v4447 = vpow.pop %v4446
        %v4448 = vmul.f32 %v4421, 1.442695
        %v4449 = vpow.pop %v4448
        %v4450 = vmul.f32 %v4422, 1.442695
        %v4451 = vpow.pop %v4450
        %v4452 = vmul.f32 %v4423, 1.442695
        %v4453 = vpow.pop %v4452
        %v4454 = vmul.f32 %v4424, 1.442695
        %v4455 = vpow.pop %v4454
        %v4456 = vmul.f32 %v4425, 1.442695
        %v4457 = vpow.pop %v4456
        %v4458 = vadd.f32 %v4427, 1.0
        %v4459 = vadd.f32 %v4429, 1.0
        %v4460 = vadd.f32 %v4431, 1.0
        %v4461 = vadd.f32 %v4433, 1.0
        %v4462 = vadd.f32 %v4435, 1.0
        %v4463 = vadd.f32 %v4437, 1.0
        %v4464 = vadd.f32 %v4439, 1.0
        %v4465 = vadd.f32 %v4441, 1.0
        %v4466 = vadd.f32 %v4443, 1.0
        %v4467 = vadd.f32 %v4445, 1.0
        %v4468 = vadd.f32 %v4447, 1.0
        %v4469 = vadd.f32 %v4449, 1.0
        %v4470 = vadd.f32 %v4451, 1.0
        %v4471 = vadd.f32 %v4453, 1.0
        %v4472 = vadd.f32 %v4455, 1.0
        %v4473 = vadd.f32 %v4457, 1.0
        %v4474 = vrcp.pop %v4458
        %v4475 = vrcp.pop %v4459
        %v4476 = vrcp.pop %v4460
        %v4477 = vrcp.pop %v4461
        %v4478 = vrcp.pop %v4462
        %v4479 = vrcp.pop %v4463
        %v4480 = vrcp.pop %v4464
        %v4481 = vrcp.pop %v4465
        %v4482 = vrcp.pop %v4466
        %v4483 = vrcp.pop %v4467
        %v4484 = vrcp.pop %v4468
        %v4485 = vrcp.pop %v4469
        %v4486 = vrcp.pop %v4470
        %v4487 = vrcp.pop %v4471
        %v4488 = vrcp.pop %v4472
        %v4489 = vrcp.pop %v4473
        %v4490 = vmul.f32 %v4394, %v4474
        %v4491 = vmul.f32 %v4395, %v4475
        %v4492 = vmul.f32 %v4396, %v4476
        %v4493 = vmul.f32 %v4397, %v4477
        %v4494 = vmul.f32 %v4398, %v4478
        %v4495 = vmul.f32 %v4399, %v4479
        %v4496 = vmul.f32 %v4400, %v4480
        %v4497 = vmul.f32 %v4401, %v4481
        %v4498 = vmul.f32 %v4402, %v4482
        %v4499 = vmul.f32 %v4403, %v4483
        %v4500 = vmul.f32 %v4404, %v4484
        %v4501 = vmul.f32 %v4405, %v4485
        %v4502 = vmul.f32 %v4406, %v4486
        %v4503 = vmul.f32 %v4407, %v4487
        %v4504 = vmul.f32 %v4408, %v4488
        %v4505 = vmul.f32 %v4409, %v4489
        %v4506 = vpack.c.bf16 %v4491, %v4490
        %v4507 = vpack.c.bf16 %v4493, %v4492
        %v4508 = vpack.c.bf16 %v4495, %v4494
        %v4509 = vpack.c.bf16 %v4497, %v4496
        %v4510 = vpack.c.bf16 %v4499, %v4498
        %v4511 = vpack.c.bf16 %v4501, %v4500
        %v4512 = vpack.c.bf16 %v4503, %v4502
        %v4513 = vpack.c.bf16 %v4505, %v4504
        %v4522 = vunpack.c.l.b16 %v4506
        %v4523 = vunpack.c.h.b16 %v4506
        %v4524 = vunpack.c.l.b16 %v4507
        %v4525 = vunpack.c.h.b16 %v4507
        %v4526 = vunpack.c.l.b16 %v4508
        %v4527 = vunpack.c.h.b16 %v4508
        %v4528 = vunpack.c.l.b16 %v4509
        %v4529 = vunpack.c.h.b16 %v4509
        %v4530 = vunpack.c.l.b16 %v4510
        %v4531 = vunpack.c.h.b16 %v4510
        %v4532 = vunpack.c.l.b16 %v4511
        %v4533 = vunpack.c.h.b16 %v4511
        %v4534 = vunpack.c.l.b16 %v4512
        %v4535 = vunpack.c.h.b16 %v4512
        %v4536 = vunpack.c.l.b16 %v4513
        %v4537 = vunpack.c.h.b16 %v4513
        %v4538 = vpack.c.b16 %v4522, %v4522
        %v4539 = vpack.c.b16 %v4523, %v4523
        %v4540 = vpack.c.b16 %v4524, %v4524
        %v4541 = vpack.c.b16 %v4525, %v4525
        %v4542 = vpack.c.b16 %v4526, %v4526
        %v4543 = vpack.c.b16 %v4527, %v4527
        %v4544 = vpack.c.b16 %v4528, %v4528
        %v4545 = vpack.c.b16 %v4529, %v4529
        %v4546 = vpack.c.b16 %v4530, %v4530
        %v4547 = vpack.c.b16 %v4531, %v4531
        %v4548 = vpack.c.b16 %v4532, %v4532
        %v4549 = vpack.c.b16 %v4533, %v4533
        %v4550 = vpack.c.b16 %v4534, %v4534
        %v4551 = vpack.c.b16 %v4535, %v4535
        %v4552 = vpack.c.b16 %v4536, %v4536
        %v4553 = vpack.c.b16 %v4537, %v4537
        %4570 = vst [vmem:[%s449] sm:$0xf] %v4538
        %4571 = vst [vmem:[%s449 + $0x4] sm:$0xf] %v4539
        %4572 = vst [vmem:[%s449 + $0x8] sm:$0xf] %v4540
        %4573 = vst [vmem:[%s449 + $0xc] sm:$0xf] %v4541
        %4574 = vst [vmem:[%s449 + $0x10] sm:$0xf] %v4542
        %4575 = vst [vmem:[%s449 + $0x14] sm:$0xf] %v4543
        %4576 = vst [vmem:[%s449 + $0x18] sm:$0xf] %v4544
        %4577 = vst [vmem:[%s449 + $0x1c] sm:$0xf] %v4545
        %4578 = vst [vmem:[%s449 + $0x20] sm:$0xf] %v4546
        %4579 = vst [vmem:[%s449 + $0x24] sm:$0xf] %v4547
        %4580 = vst [vmem:[%s449 + $0x28] sm:$0xf] %v4548
        %4581 = vst [vmem:[%s449 + $0x2c] sm:$0xf] %v4549
        %4582 = vst [vmem:[%s449 + $0x30] sm:$0xf] %v4550
        %4583 = vst [vmem:[%s449 + $0x34] sm:$0xf] %v4551
        %4584 = vst [vmem:[%s449 + $0x38] sm:$0xf] %v4552
        %4585 = vst [vmem:[%s449 + $0x3c] sm:$0xf] %v4553
        %s4586 = sand.u32 %s230, 1
        %s4587 = scalar_lea.sflag [#allocation4], %s4586
        %s4588 = sand.u32 %s230, 1
        %s4589 = smul.addr %s4588, 64
        %s4590 = scalar_lea.vmem [#allocation11], %s4589
        // Predicated region
        $region69: #{tpu_custom_call.1} parent=47 // pred_check
          %p4591 = pneg %p240
        $region70: #{tpu_custom_call.1} parent=47 // pred_check_branch
          %4593 = sbr.rel (%p4591) target = $region72
        $region71: #{tpu_custom_call.1} parent=47 // pred_region
          %s4594 = smul.u32 8, %s33
          %s4596 = ssub.s32 1024, 1024
          %4597 = vsyncadd %s4587, %s4596
          %s4598 = smul.addr %s4594, 2
          %s4599 = smul.addr %s32, 32
          %s4600 = sadd.s32 %s4598, %s4599
          %s4601 = smul.addr %s4600, 64
          %s4602 = scalar_lea.hbm %s7, %s4601
          %s4603 = sshll.u32 %s4590, 4
          %s4604 = int_to_ptr.vmem [resolvable:$true] %s4603
          %4609 = dma.vmem_to_hbm [thread:$0]  %s4604, 1024, %s4602, %s4587, 64, 64, 4
        $region72: #{tpu_custom_call.1} parent=47 // pred_fallthru
          _
      $region48: #{tpu_custom_call.1} parent=5 // pred_fallthru
        _
      %p4610 = scmp.le.s32.totalorder 2, %s23
      // Predicated region
      $region73: #{tpu_custom_call.1} parent=5 // pred_check
        %p4611 = pneg %p4610
      $region74: #{tpu_custom_call.1} parent=5 // pred_check_branch
        %4613 = sbr.rel (%p4611) target = $region76
      $region75: #{tpu_custom_call.1} parent=5 // pred_region
        %s4614 = ssub.s32 %s23, 2
        // Predicated region
        $region77: #{tpu_custom_call.1} parent=75 // pred_check
          %p4615 = pneg %p246
        $region78: #{tpu_custom_call.1} parent=75 // pred_check_branch
          %4617 = sbr.rel (%p4615) target = $region80
        $region79: #{tpu_custom_call.1} parent=75 // pred_region
          %s4618 = sand.u32 %s231, 1
          %s4619 = scalar_lea.sflag [#allocation4], %s4618
          %s4620 = sand.u32 %s231, 1
          %s4621 = smul.addr %s4620, 64
          %s4622 = scalar_lea.vmem [#allocation11], %s4621
          %4623 = dma.done %s4619, 1024
        $region80: #{tpu_custom_call.1} parent=75 // pred_fallthru
          _
      $region76: #{tpu_custom_call.1} parent=5 // pred_fallthru
        _
    $region6: #{tpu_custom_call.1} parent=1 // loop_footer
      %s27 = sadd.s32 1, %s23
    $region7: #{tpu_custom_call.1} parent=1 // loop_footer_branch
      %22 = sbr.rel target = $region3
    $region8: #{tpu_custom_call.1} parent=1 // loop_exit
      _
    %4624 = vsyncpa [#allocation3], 1
    %s4625 = scalar_lea.sflag [#allocation3], 1
    %4626 = vsyncpa %s4625, 1
    %4627 = vsyncpa [#allocation6], 1
    %s4628 = scalar_lea.sflag [#allocation6], 1
    %4629 = vsyncpa %s4628, 1
    %4630 = vsyncpa [#allocation9], 1
    %4631 = vsyncpa [#allocation4], 1
    %s4632 = scalar_lea.sflag [#allocation4], 1
    %4633 = vsyncpa %s4632, 1

// kernel: tpu_custom_call.1
$region0: #{tpu_custom_call.1}
  #allocation0 [shape = 'u32[]', space=smem, size = 0x4, offset = 0x4, fixed_abs, tag = 'smem constant byte address 0x4 - core index']
  #allocation1 [shape = 'u32[144,128]{1,0:T(1,128)}', space=vmem, size = 0x12000, scoped, tag = 'internal scratch']
  %s0 = inlined_call_operand.hbm [shape: bf16[2,16,16,128], index: 0, kind: input, shape index: {}]
  %s1 = inlined_call_operand.hbm [shape: bf16[2,16,16,128], index: 1, kind: input, shape index: {}]
  %s2 = inlined_call_operand.hbm [shape: bf16[2,16,16,128], index: 2, kind: input, shape index: {}]
  %s3 = inlined_call_operand.hbm [shape: bf16[128,128], index: 3, kind: input, shape index: {}]
  %s4 = inlined_call_operand.vmem [shape: f32[1,128], index: 4, kind: input, shape index: {}]
  %s5 = inlined_call_operand.hbm [shape: bf16[4,128,128], index: 5, kind: input, shape index: {}]
  %s6 = inlined_call_operand.vmem [shape: f32[1,128], index: 6, kind: input, shape index: {}]
  %s7 = inlined_call_operand.hbm [shape: bf16[2,16,16,128], index: 7, kind: output, shape index: {}]
  %s8 = sld [smem:[#allocation0]]
  $region81: #{tpu_custom_call.1} parent=0
    _
  %s10 = ssub.s32 1, %s8
  %s11 = scalar_select 0, %s10, %s8
  $region1: #{tpu_custom_call.1} parent=0
    #allocation2 [shape = 'u8[65536]{0}', space=vmem, size = 0x10000, scoped, tag = 'input window, operand 0']
    #allocation3 [shape = 's32[2]{0}', space=sflag, size = 0x8, scoped, tag = 'scoped memory for tpu_custom_call.1']
    #allocation4 [shape = 's32[2]{0}', space=sflag, size = 0x8, scoped, tag = 'scoped memory for tpu_custom_call.1']
    #allocation5 [shape = 'u8[65536]{0}', space=vmem, size = 0x10000, scoped, tag = 'input window, operand 1']
    #allocation6 [shape = 's32[2]{0}', space=sflag, size = 0x8, scoped, tag = 'scoped memory for tpu_custom_call.1']
    #allocation7 [shape = 'u8[65536]{0}', space=vmem, size = 0x10000, scoped, tag = 'input window, operand 2']
    #allocation8 [shape = 'u8[32768]{0}', space=vmem, size = 0x8000, scoped, tag = 'input window, operand 3, single buffered']
    #allocation9 [shape = 's32[1]{0}', space=sflag, size = 0x4, scoped, tag = 'scoped memory for tpu_custom_call.1']
    #allocation10 [shape = 'u8[131072]{0}', space=vmem, size = 0x20000, scoped, tag = 'input window, operand 5, single buffered']
    #allocation11 [shape = 'u8[65536]{0}', space=vmem, size = 0x10000, scoped, tag = 'output window, operand 0']
    %12 = vsyncpa [#allocation3], 0
    %s13 = scalar_lea.sflag [#allocation3], 1
    %14 = vsyncpa %s13, 0
    %15 = vsyncpa [#allocation6], 0
    %s16 = scalar_lea.sflag [#allocation6], 1
    %17 = vsyncpa %s16, 0
    %18 = vsyncpa [#allocation9], 0
    %19 = vsyncpa [#allocation4], 0
    %s20 = scalar_lea.sflag [#allocation4], 1
    %21 = vsyncpa %s20, 0
    loop: start=0, step=1, limit=6
    $region2: #{tpu_custom_call.1} parent=1 // loop_pre_header
      _
    $region3: #{tpu_custom_call.1} parent=1 // loop_header
      %s23 = sphi 0, %s27
      %p24 = scmp.ge.s32.totalorder %s23, 6
      %s30 = sphi 0, %s42
      %s31 = sphi 0, %s38
      %s32 = sphi 0, %s30
      %s33 = sphi 0, %s31
      %s34 = sphi 0, %s32
      %s35 = sphi 0, %s33
      %s47 = sphi 0, %s49
      %s50 = sphi 0, %s47
      %s51 = sphi 0, %s50
      %s67 = sphi 0, %s51
      %s81 = sphi 0, %s83
      %s84 = sphi 0, %s81
      %s85 = sphi 0, %s84
      %s101 = sphi 0, %s85
      %s115 = sphi 0, %s117
      %s118 = sphi 0, %s115
      %s119 = sphi 0, %s118
      %s135 = sphi 0, %s119
      %s139 = sphi 0, %s139
      %s141 = sphi 0, %s139
      %s142 = sphi 0, %s141
      %s156 = sphi 0, %s142
      %s160 = sphi 0, %s160
      %s162 = sphi 0, %s160
      %s163 = sphi 0, %s162
      %s177 = sphi 0, %s163
      %s181 = sphi 0, %s181
      %s183 = sphi 0, %s181
      %s184 = sphi 0, %s183
      %s198 = sphi 0, %s184
      %s202 = sphi 0, %s202
      %s204 = sphi 0, %s202
      %s205 = sphi 0, %s204
      %s219 = sphi 0, %s205
      %s227 = sphi 0, %s229
      %s230 = sphi 0, %s227
      %s231 = sphi 0, %s230
      %s247 = sphi 0, %s231
    $region4: #{tpu_custom_call.1} parent=1 // loop_header_branch
      %26 = sbr.rel (%p24) target = $region8
    $region5: #{tpu_custom_call.1} parent=1 // loop_body
      %s28 = ssub.s32 %s23, 1
      %s29 = ssub.s32 %s23, 2
      %s36 = sadd.s32 1, %s31
      %p37 = scmp.ge.s32.totalorder %s36, 2
      %s38 = scalar_select %p37, 0, %s36
      %s39 = sadd.s32 1, %s30
      %s40 = scalar_select %p37, %s39, %s30
      %p41 = scmp.ge.s32.totalorder %s40, 2
      %s42 = scalar_select %p41, 0, %s40
      %s43 = ssub.s32 %s30, %s42
      %s44 = ssub.s32 %s31, %s38
      %s45 = sor.u32 %s43, %s44
      %p46 = scmp.eq.s32.totalorder %s45, 0
      %s48 = sadd.s32 %s47, 1
      %s49 = scalar_select %p46, %s47, %s48
      %p52 = pneg %p46
      %p53 = scmp.eq.s32.totalorder %s23, 3
      %p54 = por %p52, %p53
      %p55 = scmp.ne.s32.totalorder %s47, %s50
      %p56 = scmp.eq.s32.totalorder %s23, 0
      %p57 = por %p55, %p56
      %p58 = scmp.ne.s32.totalorder %s47, %s50
      %p59 = scmp.eq.s32.totalorder %s28, 3
      %p60 = por %p58, %p59
      %p61 = scmp.ne.s32.totalorder %s50, %s51
      %p62 = scmp.eq.s32.totalorder %s28, 0
      %p63 = por %p61, %p62
      %p64 = scmp.ne.s32.totalorder %s50, %s51
      %p65 = scmp.eq.s32.totalorder %s29, 3
      %p66 = por %p64, %p65
      %p68 = scmp.ne.s32.totalorder %s51, %s67
      %p69 = scmp.eq.s32.totalorder %s29, 0
      %p70 = por %p68, %p69
      %s71 = ssub.s32 %s31, 1
      %p72 = scmp.gt.s32.totalorder %s71, 0
      %s73 = scalar_select %p72, %s71, 0
      %s74 = ssub.s32 %s38, 1
      %p75 = scmp.gt.s32.totalorder %s74, 0
      %s76 = scalar_select %p75, %s74, 0
      %s77 = ssub.s32 %s30, %s42
      %s78 = ssub.s32 %s73, %s76
      %s79 = sor.u32 %s77, %s78
      %p80 = scmp.eq.s32.totalorder %s79, 0
      %s82 = sadd.s32 %s81, 1
      %s83 = scalar_select %p80, %s81, %s82
      %p86 = pneg %p80
      %p87 = scmp.eq.s32.totalorder %s23, 3
      %p88 = por %p86, %p87
      %p89 = scmp.ne.s32.totalorder %s81, %s84
      %p90 = scmp.eq.s32.totalorder %s23, 0
      %p91 = por %p89, %p90
      %p92 = scmp.ne.s32.totalorder %s81, %s84
      %p93 = scmp.eq.s32.totalorder %s28, 3
      %p94 = por %p92, %p93
      %p95 = scmp.ne.s32.totalorder %s84, %s85
      %p96 = scmp.eq.s32.totalorder %s28, 0
      %p97 = por %p95, %p96
      %p98 = scmp.ne.s32.totalorder %s84, %s85
      %p99 = scmp.eq.s32.totalorder %s29, 3
      %p100 = por %p98, %p99
      %p102 = scmp.ne.s32.totalorder %s85, %s101
      %p103 = scmp.eq.s32.totalorder %s29, 0
      %p104 = por %p102, %p103
      %s105 = sadd.s32 %s31, 1
      %p106 = scmp.lt.s32.totalorder %s105, 1
      %s107 = scalar_select %p106, %s105, 1
      %s108 = sadd.s32 %s38, 1
      %p109 = scmp.lt.s32.totalorder %s108, 1
      %s110 = scalar_select %p109, %s108, 1
      %s111 = ssub.s32 %s30, %s42
      %s112 = ssub.s32 %s107, %s110
      %s113 = sor.u32 %s111, %s112
      %p114 = scmp.eq.s32.totalorder %s113, 0
      %s116 = sadd.s32 %s115, 1
      %s117 = scalar_select %p114, %s115, %s116
      %p120 = pneg %p114
      %p121 = scmp.eq.s32.totalorder %s23, 3
      %p122 = por %p120, %p121
      %p123 = scmp.ne.s32.totalorder %s115, %s118
      %p124 = scmp.eq.s32.totalorder %s23, 0
      %p125 = por %p123, %p124
      %p126 = scmp.ne.s32.totalorder %s115, %s118
      %p127 = scmp.eq.s32.totalorder %s28, 3
      %p128 = por %p126, %p127
      %p129 = scmp.ne.s32.totalorder %s118, %s119
      %p130 = scmp.eq.s32.totalorder %s28, 0
      %p131 = por %p129, %p130
      %p132 = scmp.ne.s32.totalorder %s118, %s119
      %p133 = scmp.eq.s32.totalorder %s29, 3
      %p134 = por %p132, %p133
      %p136 = scmp.ne.s32.totalorder %s119, %s135
      %p137 = scmp.eq.s32.totalorder %s29, 0
      %p138 = por %p136, %p137
      %s140 = sadd.s32 %s139, 1
      %p143 = scmp.eq.s32.totalorder %s23, 3
      %p144 = scmp.ne.s32.totalorder %s139, %s141
      %p145 = scmp.eq.s32.totalorder %s23, 0
      %p146 = por %p144, %p145
      %p147 = scmp.ne.s32.totalorder %s139, %s141
      %p148 = scmp.eq.s32.totalorder %s28, 3
      %p149 = por %p147, %p148
      %p150 = scmp.ne.s32.totalorder %s141, %s142
      %p151 = scmp.eq.s32.totalorder %s28, 0
      %p152 = por %p150, %p151
      %p153 = scmp.ne.s32.totalorder %s141, %s142
      %p154 = scmp.eq.s32.totalorder %s29, 3
      %p155 = por %p153, %p154
      %p157 = scmp.ne.s32.totalorder %s142, %s156
      %p158 = scmp.eq.s32.totalorder %s29, 0
      %p159 = por %p157, %p158
      %s161 = sadd.s32 %s160, 1
      %p164 = scmp.eq.s32.totalorder %s23, 3
      %p165 = scmp.ne.s32.totalorder %s160, %s162
      %p166 = scmp.eq.s32.totalorder %s23, 0
      %p167 = por %p165, %p166
      %p168 = scmp.ne.s32.totalorder %s160, %s162
      %p169 = scmp.eq.s32.totalorder %s28, 3
      %p170 = por %p168, %p169
      %p171 = scmp.ne.s32.totalorder %s162, %s163
      %p172 = scmp.eq.s32.totalorder %s28, 0
      %p173 = por %p171, %p172
      %p174 = scmp.ne.s32.totalorder %s162, %s163
      %p175 = scmp.eq.s32.totalorder %s29, 3
      %p176 = por %p174, %p175
      %p178 = scmp.ne.s32.totalorder %s163, %s177
      %p179 = scmp.eq.s32.totalorder %s29, 0
      %p180 = por %p178, %p179
      %s182 = sadd.s32 %s181, 1
      %p185 = scmp.eq.s32.totalorder %s23, 3
      %p186 = scmp.ne.s32.totalorder %s181, %s183
      %p187 = scmp.eq.s32.totalorder %s23, 0
      %p188 = por %p186, %p187
      %p189 = scmp.ne.s32.totalorder %s181, %s183
      %p190 = scmp.eq.s32.totalorder %s28, 3
      %p191 = por %p189, %p190
      %p192 = scmp.ne.s32.totalorder %s183, %s184
      %p193 = scmp.eq.s32.totalorder %s28, 0
      %p194 = por %p192, %p193
      %p195 = scmp.ne.s32.totalorder %s183, %s184
      %p196 = scmp.eq.s32.totalorder %s29, 3
      %p197 = por %p195, %p196
      %p199 = scmp.ne.s32.totalorder %s184, %s198
      %p200 = scmp.eq.s32.totalorder %s29, 0
      %p201 = por %p199, %p200
      %s203 = sadd.s32 %s202, 1
      %p206 = scmp.eq.s32.totalorder %s23, 3
      %p207 = scmp.ne.s32.totalorder %s202, %s204
      %p208 = scmp.eq.s32.totalorder %s23, 0
      %p209 = por %p207, %p208
      %p210 = scmp.ne.s32.totalorder %s202, %s204
      %p211 = scmp.eq.s32.totalorder %s28, 3
      %p212 = por %p210, %p211
      %p213 = scmp.ne.s32.totalorder %s204, %s205
      %p214 = scmp.eq.s32.totalorder %s28, 0
      %p215 = por %p213, %p214
      %p216 = scmp.ne.s32.totalorder %s204, %s205
      %p217 = scmp.eq.s32.totalorder %s29, 3
      %p218 = por %p216, %p217
      %p220 = scmp.ne.s32.totalorder %s205, %s219
      %p221 = scmp.eq.s32.totalorder %s29, 0
      %p222 = por %p220, %p221
      %s223 = ssub.s32 %s30, %s42
      %s224 = ssub.s32 %s31, %s38
      %s225 = sor.u32 %s223, %s224
      %p226 = scmp.eq.s32.totalorder %s225, 0
      %s228 = sadd.s32 %s227, 1
      %s229 = scalar_select %p226, %s227, %s228
      %p232 = pneg %p226
      %p233 = scmp.eq.s32.totalorder %s23, 3
      %p234 = por %p232, %p233
      %p235 = scmp.ne.s32.totalorder %s227, %s230
      %p236 = scmp.eq.s32.totalorder %s23, 0
      %p237 = por %p235, %p236
      %p238 = scmp.ne.s32.totalorder %s227, %s230
      %p239 = scmp.eq.s32.totalorder %s28, 3
      %p240 = por %p238, %p239
      %p241 = scmp.ne.s32.totalorder %s230, %s231
      %p242 = scmp.eq.s32.totalorder %s28, 0
      %p243 = por %p241, %p242
      %p244 = scmp.ne.s32.totalorder %s230, %s231
      %p245 = scmp.eq.s32.totalorder %s29, 3
      %p246 = por %p244, %p245
      %p248 = scmp.ne.s32.totalorder %s231, %s247
      %p249 = scmp.eq.s32.totalorder %s29, 0
      %p250 = por %p248, %p249
      %p251 = scmp.le.s32.totalorder 1, %s23
      %p252 = scmp.lt.s32.totalorder %s23, 5
      %p253 = pnand %p251, %p252
      %p254 = pneg %p253
      // Predicated region
      $region9: #{tpu_custom_call.1} parent=5 // pred_check
        _
      $region10: #{tpu_custom_call.1} parent=5 // pred_check_branch
        %256 = sbr.rel (%p253) target = $region12
      $region11: #{tpu_custom_call.1} parent=5 // pred_region
        %s257 = ssub.s32 %s23, 1
        // Predicated region
        $region13: #{tpu_custom_call.1} parent=11 // pred_check
          %p258 = pneg %p152
        $region14: #{tpu_custom_call.1} parent=11 // pred_check_branch
          %260 = sbr.rel (%p258) target = $region16
        $region15: #{tpu_custom_call.1} parent=11 // pred_region
          %s262 = ssub.s32 1024, 1024
          %263 = vsyncadd [#allocation9], %s262
          %s264 = sshll.u32 [#allocation8], 4
          %s265 = int_to_ptr.vmem [resolvable:$true] %s264
          %270 = dma.hbm_to_vmem [thread:$0]  %s3, 1024, %s265, [#allocation9], 64, 64, 4
        $region16: #{tpu_custom_call.1} parent=11 // pred_fallthru
          _
        // Predicated region
        $region17: #{tpu_custom_call.1} parent=11 // pred_check
          %p271 = pneg %p173
        $region18: #{tpu_custom_call.1} parent=11 // pred_check_branch
          %273 = sbr.rel (%p271) target = $region20
        $region19: #{tpu_custom_call.1} parent=11 // pred_region
          _
        $region20: #{tpu_custom_call.1} parent=11 // pred_fallthru
          _
        // Predicated region
        $region21: #{tpu_custom_call.1} parent=11 // pred_check
          %p274 = pneg %p194
        $region22: #{tpu_custom_call.1} parent=11 // pred_check_branch
          %276 = sbr.rel (%p274) target = $region24
        $region23: #{tpu_custom_call.1} parent=11 // pred_region
          %s278 = ssub.s32 4096, 4096
          %279 = vsyncadd [#allocation9], %s278
          %s280 = sshll.u32 [#allocation10], 4
          %s281 = int_to_ptr.vmem [resolvable:$true] %s280
          %286 = dma.hbm_to_vmem [thread:$0]  %s5, 4096, %s281, [#allocation9], 64, 64, 4
        $region24: #{tpu_custom_call.1} parent=11 // pred_fallthru
          _
        // Predicated region
        $region25: #{tpu_custom_call.1} parent=11 // pred_check
          %p287 = pneg %p215
        $region26: #{tpu_custom_call.1} parent=11 // pred_check_branch
          %289 = sbr.rel (%p287) target = $region28
        $region27: #{tpu_custom_call.1} parent=11 // pred_region
          _
        $region28: #{tpu_custom_call.1} parent=11 // pred_fallthru
          _
      $region12: #{tpu_custom_call.1} parent=5 // pred_fallthru
        _
      %p290 = scmp.lt.s32.totalorder %s23, 4
      // Predicated region
      $region29: #{tpu_custom_call.1} parent=5 // pred_check
        %p291 = pneg %p290
      $region30: #{tpu_custom_call.1} parent=5 // pred_check_branch
        %293 = sbr.rel (%p291) target = $region32
      $region31: #{tpu_custom_call.1} parent=5 // pred_region
        // Predicated region
        $region33: #{tpu_custom_call.1} parent=31 // pred_check
          %p294 = pneg %p57
        $region34: #{tpu_custom_call.1} parent=31 // pred_check_branch
          %296 = sbr.rel (%p294) target = $region36
        $region35: #{tpu_custom_call.1} parent=31 // pred_region
          %s297 = sand.u32 %s47, 1
          %s298 = scalar_lea.sflag [#allocation3], %s297
          %s299 = sand.u32 %s47, 1
          %s300 = smul.addr %s299, 64
          %s301 = scalar_lea.vmem [#allocation2], %s300
          %s302 = smul.u32 8, %s31
          %s304 = ssub.s32 1024, 1024
          %305 = vsyncadd %s298, %s304
          %s306 = smul.addr %s302, 2
          %s307 = smul.addr %s30, 32
          %s308 = sadd.s32 %s306, %s307
          %s309 = smul.addr %s308, 64
          %s310 = scalar_lea.hbm %s0, %s309
          %s311 = sshll.u32 %s301, 4
          %s312 = int_to_ptr.vmem [resolvable:$true] %s311
          %317 = dma.hbm_to_vmem [thread:$0]  %s310, 1024, %s312, %s298, 64, 64, 4
        $region36: #{tpu_custom_call.1} parent=31 // pred_fallthru
          _
        // Predicated region
        $region37: #{tpu_custom_call.1} parent=31 // pred_check
          %p318 = pneg %p91
        $region38: #{tpu_custom_call.1} parent=31 // pred_check_branch
          %320 = sbr.rel (%p318) target = $region40
        $region39: #{tpu_custom_call.1} parent=31 // pred_region
          %s321 = sand.u32 %s23, 1
          %s322 = scalar_lea.sflag [#allocation6], %s321
          %s323 = sand.u32 %s81, 1
          %s324 = smul.addr %s323, 64
          %s325 = scalar_lea.vmem [#allocation5], %s324
          %s326 = ssub.s32 %s31, 1
          %p327 = scmp.gt.s32.totalorder %s326, 0
          %s328 = scalar_select %p327, %s326, 0
          %s329 = smul.u32 8, %s328
          %s331 = ssub.s32 1024, 1024
          %332 = vsyncadd %s322, %s331
          %s333 = smul.addr %s329, 2
          %s334 = smul.addr %s30, 32
          %s335 = sadd.s32 %s333, %s334
          %s336 = smul.addr %s335, 64
          %s337 = scalar_lea.hbm %s1, %s336
          %s338 = sshll.u32 %s325, 4
          %s339 = int_to_ptr.vmem [resolvable:$true] %s338
          %344 = dma.hbm_to_vmem [thread:$0]  %s337, 1024, %s339, %s322, 64, 64, 4
        $region40: #{tpu_custom_call.1} parent=31 // pred_fallthru
          _
        // Predicated region
        $region41: #{tpu_custom_call.1} parent=31 // pred_check
          %p345 = pneg %p125
        $region42: #{tpu_custom_call.1} parent=31 // pred_check_branch
          %347 = sbr.rel (%p345) target = $region44
        $region43: #{tpu_custom_call.1} parent=31 // pred_region
          %s348 = sand.u32 %s23, 1
          %s349 = scalar_lea.sflag [#allocation6], %s348
          %s350 = sand.u32 %s115, 1
          %s351 = smul.addr %s350, 64
          %s352 = scalar_lea.vmem [#allocation7], %s351
          %s353 = sadd.s32 %s31, 1
          %p354 = scmp.lt.s32.totalorder %s353, 1
          %s355 = scalar_select %p354, %s353, 1
          %s356 = smul.u32 8, %s355
          %s358 = ssub.s32 1024, 1024
          %359 = vsyncadd %s349, %s358
          %s360 = smul.addr %s356, 2
          %s361 = smul.addr %s30, 32
          %s362 = sadd.s32 %s360, %s361
          %s363 = smul.addr %s362, 64
          %s364 = scalar_lea.hbm %s2, %s363
          %s365 = sshll.u32 %s352, 4
          %s366 = int_to_ptr.vmem [resolvable:$true] %s365
          %371 = dma.hbm_to_vmem [thread:$0]  %s364, 1024, %s366, %s349, 64, 64, 4
        $region44: #{tpu_custom_call.1} parent=31 // pred_fallthru
          _
      $region32: #{tpu_custom_call.1} parent=5 // pred_fallthru
        _
      %p372 = scmp.le.s32.totalorder 1, %s23
      %p373 = scmp.lt.s32.totalorder %s23, 5
      %p374 = pnand %p372, %p373
      %p375 = pneg %p374
      // Predicated region
      $region45: #{tpu_custom_call.1} parent=5 // pred_check
        _
      $region46: #{tpu_custom_call.1} parent=5 // pred_check_branch
        %377 = sbr.rel (%p374) target = $region48
      $region47: #{tpu_custom_call.1} parent=5 // pred_region
        %s378 = ssub.s32 %s23, 1
        %s379 = sand.u32 %s50, 1
        %s380 = scalar_lea.sflag [#allocation3], %s379
        %s381 = sand.u32 %s50, 1
        %s382 = smul.addr %s381, 64
        %s383 = scalar_lea.vmem [#allocation2], %s382
        // Predicated region
        $region49: #{tpu_custom_call.1} parent=47 // pred_check
          %p384 = pneg %p63
        $region50: #{tpu_custom_call.1} parent=47 // pred_check_branch
          %386 = sbr.rel (%p384) target = $region52
        $region51: #{tpu_custom_call.1} parent=47 // pred_region
          %387 = dma.done %s380, 1024
        $region52: #{tpu_custom_call.1} parent=47 // pred_fallthru
          _
        %s388 = sand.u32 %s28, 1
        %s389 = scalar_lea.sflag [#allocation6], %s388
        %s390 = sand.u32 %s84, 1
        %s391 = smul.addr %s390, 64
        %s392 = scalar_lea.vmem [#allocation5], %s391
        // Predicated region
        $region53: #{tpu_custom_call.1} parent=47 // pred_check
          %p393 = pneg %p97
        $region54: #{tpu_custom_call.1} parent=47 // pred_check_branch
          %395 = sbr.rel (%p393) target = $region56
        $region55: #{tpu_custom_call.1} parent=47 // pred_region
          %396 = dma.done %s389, 1024
        $region56: #{tpu_custom_call.1} parent=47 // pred_fallthru
          _
        %s397 = sand.u32 %s28, 1
        %s398 = scalar_lea.sflag [#allocation6], %s397
        %s399 = sand.u32 %s118, 1
        %s400 = smul.addr %s399, 64
        %s401 = scalar_lea.vmem [#allocation7], %s400
        // Predicated region
        $region57: #{tpu_custom_call.1} parent=47 // pred_check
          %p402 = pneg %p131
        $region58: #{tpu_custom_call.1} parent=47 // pred_check_branch
          %404 = sbr.rel (%p402) target = $region60
        $region59: #{tpu_custom_call.1} parent=47 // pred_region
          %405 = dma.done %s398, 1024
        $region60: #{tpu_custom_call.1} parent=47 // pred_fallthru
          _
        // Predicated region
        $region61: #{tpu_custom_call.1} parent=47 // pred_check
          %p406 = pneg %p152
        $region62: #{tpu_custom_call.1} parent=47 // pred_check_branch
          %408 = sbr.rel (%p406) target = $region64
        $region63: #{tpu_custom_call.1} parent=47 // pred_region
          %409 = dma.done [#allocation9], 1024
        $region64: #{tpu_custom_call.1} parent=47 // pred_fallthru
          _
        // Predicated region
        $region65: #{tpu_custom_call.1} parent=47 // pred_check
          %p410 = pneg %p194
        $region66: #{tpu_custom_call.1} parent=47 // pred_check_branch
          %412 = sbr.rel (%p410) target = $region68
        $region67: #{tpu_custom_call.1} parent=47 // pred_region
          %413 = dma.done [#allocation9], 4096
        $region68: #{tpu_custom_call.1} parent=47 // pred_fallthru
          _
        %s414 = sand.u32 %s50, 1
        %s415 = scalar_lea.sflag [#allocation3], %s414
        %s416 = sand.u32 %s50, 1
        %s417 = smul.addr %s416, 64
        %s418 = scalar_lea.vmem [#allocation2], %s417
        %p419 = pneg %p63
        %p420 = pneg %p60
        %s421 = sand.u32 %s28, 1
        %s422 = scalar_lea.sflag [#allocation6], %s421
        %s423 = sand.u32 %s84, 1
        %s424 = smul.addr %s423, 64
        %s425 = scalar_lea.vmem [#allocation5], %s424
        %p426 = pneg %p97
        %p427 = pneg %p94
        %s428 = sand.u32 %s28, 1
        %s429 = scalar_lea.sflag [#allocation6], %s428
        %s430 = sand.u32 %s118, 1
        %s431 = smul.addr %s430, 64
        %s432 = scalar_lea.vmem [#allocation7], %s431
        %p433 = pneg %p131
        %p434 = pneg %p128
        %p435 = pneg %p152
        %p436 = pneg %p149
        %p437 = pneg %p173
        %p438 = pneg %p170
        %p439 = pneg %p194
        %p440 = pneg %p191
        %p441 = pneg %p215
        %p442 = pneg %p212
        %p443 = pneg %p243
        %p444 = pneg %p240
        %s445 = sand.u32 %s230, 1
        %s446 = scalar_lea.sflag [#allocation4], %s445
        %s447 = sand.u32 %s230, 1
        %s448 = smul.addr %s447, 64
        %s449 = scalar_lea.vmem [#allocation11], %s448
        %s450 = smul.u32 8, %s33
        %s451 = ssub.s32 %s33, 1
        %p452 = scmp.gt.s32.totalorder %s451, 0
        %s453 = scalar_select %p452, %s451, 0
        %s454 = smul.u32 8, %s453
        %s455 = sadd.s32 %s33, 1
        %p456 = scmp.lt.s32.totalorder %s455, 1
        %s457 = scalar_select %p456, %s455, 1
        %s458 = smul.u32 8, %s457
        %s459 = smul.u32 8, %s33
        %v462 = vld [vmem:[%s392] sm:$0xf]
        %v463 = vld [vmem:[%s392 + $0x4] sm:$0xf]
        %v464 = vld [vmem:[%s392 + $0x8] sm:$0xf]
        %v465 = vld [vmem:[%s392 + $0xc] sm:$0xf]
        %v466 = vld [vmem:[%s392 + $0x10] sm:$0xf]
        %v467 = vld [vmem:[%s392 + $0x14] sm:$0xf]
        %v468 = vld [vmem:[%s392 + $0x18] sm:$0xf]
        %v469 = vld [vmem:[%s392 + $0x1c] sm:$0xf]
        %v470 = vld [vmem:[%s392 + $0x20] sm:$0xf]
        %v471 = vld [vmem:[%s392 + $0x24] sm:$0xf]
        %v472 = vld [vmem:[%s392 + $0x28] sm:$0xf]
        %v473 = vld [vmem:[%s392 + $0x2c] sm:$0xf]
        %v474 = vld [vmem:[%s392 + $0x30] sm:$0xf]
        %v475 = vld [vmem:[%s392 + $0x34] sm:$0xf]
        %v476 = vld [vmem:[%s392 + $0x38] sm:$0xf]
        %v477 = vld [vmem:[%s392 + $0x3c] sm:$0xf]
        %v478 = vld [vmem:[%s383] sm:$0xf]
        %v479 = vld [vmem:[%s383 + $0x4] sm:$0xf]
        %v480 = vld [vmem:[%s383 + $0x8] sm:$0xf]
        %v481 = vld [vmem:[%s383 + $0xc] sm:$0xf]
        %v482 = vld [vmem:[%s383 + $0x10] sm:$0xf]
        %v483 = vld [vmem:[%s383 + $0x14] sm:$0xf]
        %v484 = vld [vmem:[%s383 + $0x18] sm:$0xf]
        %v485 = vld [vmem:[%s383 + $0x1c] sm:$0xf]
        %v486 = vld [vmem:[%s383 + $0x20] sm:$0xf]
        %v487 = vld [vmem:[%s383 + $0x24] sm:$0xf]
        %v488 = vld [vmem:[%s383 + $0x28] sm:$0xf]
        %v489 = vld [vmem:[%s383 + $0x2c] sm:$0xf]
        %v490 = vld [vmem:[%s383 + $0x30] sm:$0xf]
        %v491 = vld [vmem:[%s383 + $0x34] sm:$0xf]
        %v492 = vld [vmem:[%s383 + $0x38] sm:$0xf]
        %v493 = vld [vmem:[%s383 + $0x3c] sm:$0xf]
        %v494 = vld [vmem:[%s401] sm:$0xf]
        %v495 = vld [vmem:[%s401 + $0x4] sm:$0xf]
        %v496 = vld [vmem:[%s401 + $0x8] sm:$0xf]
        %v497 = vld [vmem:[%s401 + $0xc] sm:$0xf]
        %v498 = vld [vmem:[%s401 + $0x10] sm:$0xf]
        %v499 = vld [vmem:[%s401 + $0x14] sm:$0xf]
        %v500 = vld [vmem:[%s401 + $0x18] sm:$0xf]
        %v501 = vld [vmem:[%s401 + $0x1c] sm:$0xf]
        %v502 = vld [vmem:[%s401 + $0x20] sm:$0xf]
        %v503 = vld [vmem:[%s401 + $0x24] sm:$0xf]
        %v504 = vld [vmem:[%s401 + $0x28] sm:$0xf]
        %v505 = vld [vmem:[%s401 + $0x2c] sm:$0xf]
        %v506 = vld [vmem:[%s401 + $0x30] sm:$0xf]
        %v507 = vld [vmem:[%s401 + $0x34] sm:$0xf]
        %v508 = vld [vmem:[%s401 + $0x38] sm:$0xf]
        %v509 = vld [vmem:[%s401 + $0x3c] sm:$0xf]
        %v510 = vld [vmem:[#allocation8] sm:$0xf]
        %v511 = vld [vmem:[#allocation8 + $0x4] sm:$0xf]
        %v512 = vld [vmem:[#allocation8 + $0x8] sm:$0xf]
        %v513 = vld [vmem:[#allocation8 + $0xc] sm:$0xf]
        %v514 = vld [vmem:[#allocation8 + $0x10] sm:$0xf]
        %v515 = vld [vmem:[#allocation8 + $0x14] sm:$0xf]
        %v516 = vld [vmem:[#allocation8 + $0x18] sm:$0xf]
        %v517 = vld [vmem:[#allocation8 + $0x1c] sm:$0xf]
        %v518 = vld [vmem:[#allocation8 + $0x20] sm:$0xf]
        %v519 = vld [vmem:[#allocation8 + $0x24] sm:$0xf]
        %v520 = vld [vmem:[#allocation8 + $0x28] sm:$0xf]
        %v521 = vld [vmem:[#allocation8 + $0x2c] sm:$0xf]
        %v522 = vld [vmem:[#allocation8 + $0x30] sm:$0xf]
        %v523 = vld [vmem:[#allocation8 + $0x34] sm:$0xf]
        %v524 = vld [vmem:[#allocation8 + $0x38] sm:$0xf]
        %v525 = vld [vmem:[#allocation8 + $0x3c] sm:$0xf]
        %v526 = vld [vmem:[%s4] sm:$0x1]
        %v528 = vlaneseq
        %v529 = vshrl.u32 %v528, 7
        %v530 = vsub.s32 0, %v529
        %v531 = vrot.slane %v526, %v530
        %v581 = vunpack.c.l.b16 %v462
        %v582 = vunpack.c.l.b16 %v463
        %v583 = vunpack.c.l.b16 %v464
        %v584 = vunpack.c.l.b16 %v465
        %v585 = vunpack.c.l.b16 %v466
        %v586 = vunpack.c.l.b16 %v467
        %v587 = vunpack.c.l.b16 %v468
        %v588 = vunpack.c.l.b16 %v469
        %v589 = vunpack.c.l.b16 %v470
        %v590 = vunpack.c.l.b16 %v471
        %v591 = vunpack.c.l.b16 %v472
        %v592 = vunpack.c.l.b16 %v473
        %v593 = vunpack.c.l.b16 %v474
        %v594 = vunpack.c.l.b16 %v475
        %v595 = vunpack.c.l.b16 %v476
        %v596 = vunpack.c.l.b16 %v477
        %v597 = vunpack.c.l.b16 %v478
        %v598 = vunpack.c.l.b16 %v479
        %v599 = vunpack.c.l.b16 %v480
        %v600 = vunpack.c.l.b16 %v481
        %v601 = vunpack.c.l.b16 %v482
        %v602 = vunpack.c.l.b16 %v483
        %v603 = vunpack.c.l.b16 %v484
        %v604 = vunpack.c.l.b16 %v485
        %v605 = vunpack.c.l.b16 %v486
        %v606 = vunpack.c.l.b16 %v487
        %v607 = vunpack.c.l.b16 %v488
        %v608 = vunpack.c.l.b16 %v489
        %v609 = vunpack.c.l.b16 %v490
        %v610 = vunpack.c.l.b16 %v491
        %v611 = vunpack.c.l.b16 %v492
        %v612 = vunpack.c.l.b16 %v493
        %v613 = vunpack.c.l.b16 %v494
        %v614 = vunpack.c.l.b16 %v495
        %v615 = vunpack.c.l.b16 %v496
        %v616 = vunpack.c.l.b16 %v497
        %v617 = vunpack.c.l.b16 %v498
        %v618 = vunpack.c.l.b16 %v499
        %v619 = vunpack.c.l.b16 %v500
        %v620 = vunpack.c.l.b16 %v501
        %v621 = vunpack.c.l.b16 %v502
        %v622 = vunpack.c.l.b16 %v503
        %v623 = vunpack.c.l.b16 %v504
        %v624 = vunpack.c.l.b16 %v505
        %v625 = vunpack.c.l.b16 %v506
        %v626 = vunpack.c.l.b16 %v507
        %v627 = vunpack.c.l.b16 %v508
        %v628 = vunpack.c.l.b16 %v509
        %v629 = vpack.c.b16 %v582, %v581
        %v630 = vpack.c.b16 %v584, %v583
        %v631 = vpack.c.b16 %v586, %v585
        %v632 = vpack.c.b16 %v588, %v587
        %v633 = vpack.c.b16 %v590, %v589
        %v634 = vpack.c.b16 %v592, %v591
        %v635 = vpack.c.b16 %v594, %v593
        %v636 = vpack.c.b16 %v596, %v595
        %v637 = vpack.c.b16 %v598, %v597
        %v638 = vpack.c.b16 %v600, %v599
        %v639 = vpack.c.b16 %v602, %v601
        %v640 = vpack.c.b16 %v604, %v603
        %v641 = vpack.c.b16 %v606, %v605
        %v642 = vpack.c.b16 %v608, %v607
        %v643 = vpack.c.b16 %v610, %v609
        %v644 = vpack.c.b16 %v612, %v611
        %v645 = vpack.c.b16 %v614, %v613
        %v646 = vpack.c.b16 %v616, %v615
        %v647 = vpack.c.b16 %v618, %v617
        %v648 = vpack.c.b16 %v620, %v619
        %v649 = vpack.c.b16 %v622, %v621
        %v650 = vpack.c.b16 %v624, %v623
        %v651 = vpack.c.b16 %v626, %v625
        %v652 = vpack.c.b16 %v628, %v627
        %v693 = vunpack.c.l.b16 %v510
        %v694 = vunpack.c.l.b16 %v511
        %v695 = vunpack.c.l.b16 %v512
        %v696 = vunpack.c.l.b16 %v513
        %v697 = vunpack.c.l.b16 %v514
        %v698 = vunpack.c.l.b16 %v515
        %v699 = vunpack.c.l.b16 %v516
        %v700 = vunpack.c.l.b16 %v517
        %v701 = vunpack.c.l.b16 %v518
        %v702 = vunpack.c.l.b16 %v519
        %v703 = vunpack.c.l.b16 %v520
        %v704 = vunpack.c.l.b16 %v521
        %v705 = vunpack.c.l.b16 %v522
        %v706 = vunpack.c.l.b16 %v523
        %v707 = vunpack.c.l.b16 %v524
        %v708 = vunpack.c.l.b16 %v525
        %v709 = vpack.c.b16 %v694, %v693
        %v710 = vpack.c.b16 %v696, %v695
        %v711 = vpack.c.b16 %v698, %v697
        %v712 = vpack.c.b16 %v700, %v699
        %v713 = vpack.c.b16 %v702, %v701
        %v714 = vpack.c.b16 %v704, %v703
        %v715 = vpack.c.b16 %v706, %v705
        %v716 = vpack.c.b16 %v708, %v707
        %725 = vmatprep.subr.bf16.mxu0 0
        %726 = vmatpush1.bf16.msra.mxu0 %v709
        %727 = vmatprep.subr.bf16.mxu0 0
        %728 = vmatpush1.bf16.msra.mxu0 %v710
        %729 = vmatprep.subr.bf16.mxu0 0
        %730 = vmatpush1.bf16.msra.mxu0 %v711
        %731 = vmatprep.subr.bf16.mxu0 0
        %732 = vmatpush1.bf16.msra.mxu0 %v712
        %733 = vmatprep.subr.bf16.mxu0 0
        %734 = vmatpush1.bf16.msra.mxu0 %v713
        %735 = vmatprep.subr.bf16.mxu0 0
        %736 = vmatpush1.bf16.msra.mxu0 %v714
        %737 = vmatprep.subr.bf16.mxu0 0
        %738 = vmatpush1.bf16.msra.mxu0 %v715
        %739 = vmatprep.subr.bf16.mxu0 0
        %740 = vmatpush1.bf16.msra.mxu0 %v716
        %741 = vmatprep.subr.bf16.mxu0 0
        %742 = vmatpush1.bf16.msra.mxu0 0
        %743 = vmatprep.subr.bf16.mxu0 0
        %744 = vmatpush1.bf16.msra.mxu0 0
        %745 = vmatprep.subr.bf16.mxu0 0
        %746 = vmatpush1.bf16.msra.mxu0 0
        %747 = vmatprep.subr.bf16.mxu0 0
        %748 = vmatpush1.bf16.msra.mxu0 0
        %749 = vmatprep.subr.bf16.mxu0 0
        %750 = vmatpush1.bf16.msra.mxu0 0
        %751 = vmatprep.subr.bf16.mxu0 0
        %752 = vmatpush1.bf16.msra.mxu0 0
        %753 = vmatprep.subr.bf16.mxu0 0
        %754 = vmatpush1.bf16.msra.mxu0 0
        %755 = vmatprep.subr.bf16.mxu0 0
        %756 = vmatpush1.bf16.msra.mxu0 0
        %757 = vmatprep.mubr.bf16.mxu0 0
        %758 = vmatmul.mubr.bf16.gmra.mrb[0].mxu0 %v629
        %v759 = vpop.f32.mrb[0].mxu0
        %v760 = vpop.f32.mrb[0].mxu0
        %v761 = vpop.f32.mrb[0].mxu0
        %v762 = vpop.f32.mrb[0].mxu0
        %763 = vmatprep.mubr.bf16.mxu0 0
        %764 = vmatmul.mubr.bf16.gmra.mrb[0].mxu0 %v630
        %v765 = vpop.f32.mrb[0].mxu0
        %v766 = vpop.f32.mrb[0].mxu0
        %v767 = vpop.f32.mrb[0].mxu0
        %v768 = vpop.f32.mrb[0].mxu0
        %769 = vmatprep.mubr.bf16.mxu0 0
        %770 = vmatmul.mubr.bf16.gmra.mrb[0].mxu0 %v631
        %v771 = vpop.f32.mrb[0].mxu0
        %v772 = vadd.f32 %v531, %v771
        %v773 = vpop.f32.mrb[0].mxu0
        %v774 = vpop.f32.mrb[0].mxu0
        %v775 = vadd.f32 %v531, %v774
        %v776 = vpop.f32.mrb[0].mxu0
        %777 = vmatprep.mubr.bf16.mxu0 0
        %778 = vmatmul.mubr.bf16.gmra.mrb[0].mxu0 %v632
        %v779 = vpop.f32.mrb[0].mxu0
        %v780 = vadd.f32 %v531, %v779
        %v781 = vpop.f32.mrb[0].mxu0
        %v782 = vpop.f32.mrb[0].mxu0
        %v783 = vadd.f32 %v531, %v782
        %v784 = vpop.f32.mrb[0].mxu0
        %785 = vmatprep.mubr.bf16.mxu0 0
        %786 = vmatmul.mubr.bf16.gmra.mrb[0].mxu0 %v633
        %v787 = vpop.f32.mrb[0].mxu0
        %v788 = vadd.f32 %v531, %v787
        %v789 = vpop.f32.mrb[0].mxu0
        %v790 = vpop.f32.mrb[0].mxu0
        %v791 = vadd.f32 %v531, %v790
        %v792 = vpop.f32.mrb[0].mxu0
        %793 = vmatprep.mubr.bf16.mxu0 0
        %794 = vmatmul.mubr.bf16.gmra.mrb[0].mxu0 %v634
        %v795 = vpop.f32.mrb[0].mxu0
        %v796 = vadd.f32 %v531, %v795
        %v797 = vpop.f32.mrb[0].mxu0
        %v798 = vpop.f32.mrb[0].mxu0
        %v799 = vadd.f32 %v531, %v798
        %v800 = vpop.f32.mrb[0].mxu0
        %801 = vmatprep.mubr.bf16.mxu0 0
        %802 = vmatmul.mubr.bf16.gmra.mrb[0].mxu0 %v635
        %v803 = vpop.f32.mrb[0].mxu0
        %v804 = vadd.f32 %v531, %v803
        %v805 = vpop.f32.mrb[0].mxu0
        %v806 = vpop.f32.mrb[0].mxu0
        %v807 = vadd.f32 %v531, %v806
        %v808 = vpop.f32.mrb[0].mxu0
        %809 = vmatprep.mubr.bf16.mxu0 0
        %810 = vmatmul.mubr.bf16.gmra.mrb[0].mxu0 %v636
        %v811 = vpop.f32.mrb[0].mxu0
        %v812 = vadd.f32 %v531, %v811
        %v813 = vpop.f32.mrb[0].mxu0
        %v814 = vpop.f32.mrb[0].mxu0
        %v815 = vadd.f32 %v531, %v814
        %v816 = vpop.f32.mrb[0].mxu0
        %817 = vmatprep.mubr.bf16.mxu0 0
        %818 = vmatmul.mubr.bf16.gmra.mrb[0].mxu0 %v637
        %v819 = vpop.f32.mrb[0].mxu0
        %v820 = vadd.f32 %v531, %v819
        %v821 = vpop.f32.mrb[0].mxu0
        %v822 = vpop.f32.mrb[0].mxu0
        %v823 = vadd.f32 %v531, %v822
        %v824 = vpop.f32.mrb[0].mxu0
        %825 = vmatprep.mubr.bf16.mxu0 0
        %826 = vmatmul.mubr.bf16.gmra.mrb[0].mxu0 %v638
        %v827 = vpop.f32.mrb[0].mxu0
        %v828 = vadd.f32 %v531, %v827
        %v829 = vpop.f32.mrb[0].mxu0
        %v830 = vpop.f32.mrb[0].mxu0
        %v831 = vadd.f32 %v531, %v830
        %v832 = vpop.f32.mrb[0].mxu0
        %833 = vmatprep.mubr.bf16.mxu0 0
        %834 = vmatmul.mubr.bf16.gmra.mrb[0].mxu0 %v639
        %v835 = vpop.f32.mrb[0].mxu0
        %v836 = vadd.f32 %v531, %v835
        %v837 = vpop.f32.mrb[0].mxu0
        %v838 = vpop.f32.mrb[0].mxu0
        %v839 = vadd.f32 %v531, %v838
        %v840 = vpop.f32.mrb[0].mxu0
        %841 = vmatprep.mubr.bf16.mxu0 0
        %842 = vmatmul.mubr.bf16.gmra.mrb[0].mxu0 %v640
        %v843 = vpop.f32.mrb[0].mxu0
        %v844 = vadd.f32 %v531, %v843
        %v845 = vpop.f32.mrb[0].mxu0
        %v846 = vpop.f32.mrb[0].mxu0
        %v847 = vadd.f32 %v531, %v846
        %v848 = vpop.f32.mrb[0].mxu0
        %849 = vmatprep.mubr.bf16.mxu0 0
        %850 = vmatmul.mubr.bf16.gmra.mrb[0].mxu0 %v641
        %v851 = vpop.f32.mrb[0].mxu0
        %v852 = vadd.f32 %v531, %v851
        %v853 = vpop.f32.mrb[0].mxu0
        %v854 = vpop.f32.mrb[0].mxu0
        %v855 = vadd.f32 %v531, %v854
        %v856 = vpop.f32.mrb[0].mxu0
        %857 = vmatprep.mubr.bf16.mxu0 0
        %858 = vmatmul.mubr.bf16.gmra.mrb[0].mxu0 %v642
        %v859 = vpop.f32.mrb[0].mxu0
        %v860 = vadd.f32 %v531, %v859
        %v861 = vpop.f32.mrb[0].mxu0
        %v862 = vpop.f32.mrb[0].mxu0
        %v863 = vadd.f32 %v531, %v862
        %v864 = vpop.f32.mrb[0].mxu0
        %865 = vmatprep.mubr.bf16.mxu0 0
        %866 = vmatmul.mubr.bf16.gmra.mrb[0].mxu0 %v643
        %v867 = vpop.f32.mrb[0].mxu0
        %v868 = vadd.f32 %v531, %v867
        %v869 = vpop.f32.mrb[0].mxu0
        %v870 = vpop.f32.mrb[0].mxu0
        %v871 = vadd.f32 %v531, %v870
        %v872 = vpop.f32.mrb[0].mxu0
        %873 = vmatprep.mubr.bf16.mxu0 0
        %874 = vmatmul.mubr.bf16.gmra.mrb[0].mxu0 %v644
        %v875 = vpop.f32.mrb[0].mxu0
        %v876 = vadd.f32 %v531, %v875
        %v877 = vpop.f32.mrb[0].mxu0
        %v878 = vpop.f32.mrb[0].mxu0
        %v879 = vadd.f32 %v531, %v878
        %v880 = vpop.f32.mrb[0].mxu0
        %881 = vmatprep.mubr.bf16.mxu0 0
        %882 = vmatmul.mubr.bf16.gmra.mrb[0].mxu0 %v645
        %v883 = vpop.f32.mrb[0].mxu0
        %v884 = vadd.f32 %v531, %v883
        %v885 = vpop.f32.mrb[0].mxu0
        %v886 = vpop.f32.mrb[0].mxu0
        %v887 = vadd.f32 %v531, %v886
        %v888 = vpop.f32.mrb[0].mxu0
        %889 = vmatprep.mubr.bf16.mxu0 0
        %890 = vmatmul.mubr.bf16.gmra.mrb[0].mxu0 %v646
        %v891 = vpop.f32.mrb[0].mxu0
        %v892 = vadd.f32 %v531, %v891
        %v893 = vpop.f32.mrb[0].mxu0
        %v894 = vpop.f32.mrb[0].mxu0
        %v895 = vadd.f32 %v531, %v894
        %v896 = vpop.f32.mrb[0].mxu0
        %897 = vmatprep.mubr.bf16.mxu0 0
        %898 = vmatmul.mubr.bf16.gmra.mrb[0].mxu0 %v647
        %v899 = vpop.f32.mrb[0].mxu0
        %v900 = vadd.f32 %v531, %v899
        %v901 = vpop.f32.mrb[0].mxu0
        %v902 = vpop.f32.mrb[0].mxu0
        %v903 = vadd.f32 %v531, %v902
        %v904 = vpop.f32.mrb[0].mxu0
        %905 = vmatprep.mubr.bf16.mxu0 0
        %906 = vmatmul.mubr.bf16.gmra.mrb[0].mxu0 %v648
        %v907 = vpop.f32.mrb[0].mxu0
        %v908 = vadd.f32 %v531, %v907
        %v909 = vpop.f32.mrb[0].mxu0
        %v910 = vpop.f32.mrb[0].mxu0
        %v911 = vadd.f32 %v531, %v910
        %v912 = vpop.f32.mrb[0].mxu0
        %913 = vmatprep.mubr.bf16.mxu0 0
        %914 = vmatmul.mubr.bf16.gmra.mrb[0].mxu0 %v649
        %v915 = vpop.f32.mrb[0].mxu0
        %v916 = vadd.f32 %v531, %v915
        %v917 = vpop.f32.mrb[0].mxu0
        %v918 = vpop.f32.mrb[0].mxu0
        %v919 = vadd.f32 %v531, %v918
        %v920 = vpop.f32.mrb[0].mxu0
        %921 = vmatprep.mubr.bf16.mxu0 0
        %922 = vmatmul.mubr.bf16.gmra.mrb[0].mxu0 %v650
        %v923 = vpop.f32.mrb[0].mxu0
        %v924 = vadd.f32 %v531, %v923
        %v925 = vpop.f32.mrb[0].mxu0
        %v926 = vpop.f32.mrb[0].mxu0
        %v927 = vadd.f32 %v531, %v926
        %v928 = vpop.f32.mrb[0].mxu0
        %929 = vmatprep.mubr.bf16.mxu0 0
        %930 = vmatmul.mubr.bf16.gmra.mrb[0].mxu0 %v651
        %v931 = vpop.f32.mrb[0].mxu0
        %v932 = vpop.f32.mrb[0].mxu0
        %v933 = vpop.f32.mrb[0].mxu0
        %v934 = vpop.f32.mrb[0].mxu0
        %935 = vmatprep.mubr.bf16.mxu0 0
        %936 = vmatmul.mubr.bf16.gmra.mrb[0].mxu0 %v652
        %v937 = vpop.f32.mrb[0].mxu0
        %v938 = vpop.f32.mrb[0].mxu0
        %v939 = vpop.f32.mrb[0].mxu0
        %v940 = vpop.f32.mrb[0].mxu0
        %941 = vdwg.mxu0
        %v942 = vsub.f32 0.0, %v772
        %v943 = vsub.f32 0.0, %v775
        %v944 = vsub.f32 0.0, %v780
        %v945 = vsub.f32 0.0, %v783
        %v946 = vsub.f32 0.0, %v788
        %v947 = vsub.f32 0.0, %v791
        %v948 = vsub.f32 0.0, %v796
        %v949 = vsub.f32 0.0, %v799
        %v950 = vsub.f32 0.0, %v804
        %v951 = vsub.f32 0.0, %v807
        %v952 = vsub.f32 0.0, %v812
        %v953 = vsub.f32 0.0, %v815
        %v954 = vsub.f32 0.0, %v820
        %v955 = vsub.f32 0.0, %v823
        %v956 = vsub.f32 0.0, %v828
        %v957 = vsub.f32 0.0, %v831
        %v958 = vsub.f32 0.0, %v836
        %v959 = vsub.f32 0.0, %v839
        %v960 = vsub.f32 0.0, %v844
        %v961 = vsub.f32 0.0, %v847
        %v962 = vsub.f32 0.0, %v852
        %v963 = vsub.f32 0.0, %v855
        %v964 = vsub.f32 0.0, %v860
        %v965 = vsub.f32 0.0, %v863
        %v966 = vsub.f32 0.0, %v868
        %v967 = vsub.f32 0.0, %v871
        %v968 = vsub.f32 0.0, %v876
        %v969 = vsub.f32 0.0, %v879
        %v970 = vsub.f32 0.0, %v884
        %v971 = vsub.f32 0.0, %v887
        %v972 = vsub.f32 0.0, %v892
        %v973 = vsub.f32 0.0, %v895
        %v974 = vsub.f32 0.0, %v900
        %v975 = vsub.f32 0.0, %v903
        %v976 = vsub.f32 0.0, %v908
        %v977 = vsub.f32 0.0, %v911
        %v978 = vsub.f32 0.0, %v916
        %v979 = vsub.f32 0.0, %v919
        %v980 = vsub.f32 0.0, %v924
        %v981 = vsub.f32 0.0, %v927
        %v982 = vmul.f32 %v942, 1.442695
        %v983 = vpow.pop %v982
        %v984 = vmul.f32 %v943, 1.442695
        %v985 = vpow.pop %v984
        %v986 = vmul.f32 %v944, 1.442695
        %v987 = vpow.pop %v986
        %v988 = vmul.f32 %v945, 1.442695
        %v989 = vpow.pop %v988
        %v990 = vmul.f32 %v946, 1.442695
        %v991 = vpow.pop %v990
        %v992 = vmul.f32 %v947, 1.442695
        %v993 = vpow.pop %v992
        %v994 = vmul.f32 %v948, 1.442695
        %v995 = vpow.pop %v994
        %v996 = vmul.f32 %v949, 1.442695
        %v997 = vpow.pop %v996
        %v998 = vmul.f32 %v950, 1.442695
        %v999 = vpow.pop %v998
        %v1000 = vmul.f32 %v951, 1.442695
        %v1001 = vpow.pop %v1000
        %v1002 = vmul.f32 %v952, 1.442695
        %v1003 = vpow.pop %v1002
        %v1004 = vmul.f32 %v953, 1.442695
        %v1005 = vpow.pop %v1004
        %v1006 = vmul.f32 %v954, 1.442695
        %v1007 = vpow.pop %v1006
        %v1008 = vmul.f32 %v955, 1.442695
        %v1009 = vpow.pop %v1008
        %v1010 = vmul.f32 %v956, 1.442695
        %v1011 = vpow.pop %v1010
        %v1012 = vmul.f32 %v957, 1.442695
        %v1013 = vpow.pop %v1012
        %v1014 = vmul.f32 %v958, 1.442695
        %v1015 = vpow.pop %v1014
        %v1016 = vmul.f32 %v959, 1.442695
        %v1017 = vpow.pop %v1016
        %v1018 = vmul.f32 %v960, 1.442695
        %v1019 = vpow.pop %v1018
        %v1020 = vmul.f32 %v961, 1.442695
        %v1021 = vpow.pop %v1020
        %v1022 = vmul.f32 %v962, 1.442695
        %v1023 = vpow.pop %v1022
        %v1024 = vmul.f32 %v963, 1.442695
        %v1025 = vpow.pop %v1024
        %v1026 = vmul.f32 %v964, 1.442695
        %v1027 = vpow.pop %v1026
        %v1028 = vmul.f32 %v965, 1.442695
        %v1029 = vpow.pop %v1028
        %v1030 = vmul.f32 %v966, 1.442695
        %v1031 = vpow.pop %v1030
        %v1032 = vmul.f32 %v967, 1.442695
        %v1033 = vpow.pop %v1032
        %v1034 = vmul.f32 %v968, 1.442695
        %v1035 = vpow.pop %v1034
        %v1036 = vmul.f32 %v969, 1.442695
        %v1037 = vpow.pop %v1036
        %v1038 = vmul.f32 %v970, 1.442695
        %v1039 = vpow.pop %v1038
        %v1040 = vmul.f32 %v971, 1.442695
        %v1041 = vpow.pop %v1040
        %v1042 = vmul.f32 %v972, 1.442695
        %v1043 = vpow.pop %v1042
        %v1044 = vmul.f32 %v973, 1.442695
        %v1045 = vpow.pop %v1044
        %v1046 = vmul.f32 %v974, 1.442695
        %v1047 = vpow.pop %v1046
        %v1048 = vmul.f32 %v975, 1.442695
        %v1049 = vpow.pop %v1048
        %v1050 = vmul.f32 %v976, 1.442695
        %v1051 = vpow.pop %v1050
        %v1052 = vmul.f32 %v977, 1.442695
        %v1053 = vpow.pop %v1052
        %v1054 = vmul.f32 %v978, 1.442695
        %v1055 = vpow.pop %v1054
        %v1056 = vmul.f32 %v979, 1.442695
        %v1057 = vpow.pop %v1056
        %v1058 = vmul.f32 %v980, 1.442695
        %v1059 = vpow.pop %v1058
        %v1060 = vmul.f32 %v981, 1.442695
        %v1061 = vpow.pop %v1060
        %v1062 = vadd.f32 %v983, 1.0
        %v1063 = vadd.f32 %v985, 1.0
        %v1064 = vadd.f32 %v987, 1.0
        %v1065 = vadd.f32 %v989, 1.0
        %v1066 = vadd.f32 %v991, 1.0
        %v1067 = vadd.f32 %v993, 1.0
        %v1068 = vadd.f32 %v995, 1.0
        %v1069 = vadd.f32 %v997, 1.0
        %v1070 = vadd.f32 %v999, 1.0
        %v1071 = vadd.f32 %v1001, 1.0
        %v1072 = vadd.f32 %v1003, 1.0
        %v1073 = vadd.f32 %v1005, 1.0
        %v1074 = vadd.f32 %v1007, 1.0
        %v1075 = vadd.f32 %v1009, 1.0
        %v1076 = vadd.f32 %v1011, 1.0
        %v1077 = vadd.f32 %v1013, 1.0
        %v1078 = vadd.f32 %v1015, 1.0
        %v1079 = vadd.f32 %v1017, 1.0
        %v1080 = vadd.f32 %v1019, 1.0
        %v1081 = vadd.f32 %v1021, 1.0
        %v1082 = vadd.f32 %v1023, 1.0
        %v1083 = vadd.f32 %v1025, 1.0
        %v1084 = vadd.f32 %v1027, 1.0
        %v1085 = vadd.f32 %v1029, 1.0
        %v1086 = vadd.f32 %v1031, 1.0
        %v1087 = vadd.f32 %v1033, 1.0
        %v1088 = vadd.f32 %v1035, 1.0
        %v1089 = vadd.f32 %v1037, 1.0
        %v1090 = vadd.f32 %v1039, 1.0
        %v1091 = vadd.f32 %v1041, 1.0
        %v1092 = vadd.f32 %v1043, 1.0
        %v1093 = vadd.f32 %v1045, 1.0
        %v1094 = vadd.f32 %v1047, 1.0
        %v1095 = vadd.f32 %v1049, 1.0
        %v1096 = vadd.f32 %v1051, 1.0
        %v1097 = vadd.f32 %v1053, 1.0
        %v1098 = vadd.f32 %v1055, 1.0
        %v1099 = vadd.f32 %v1057, 1.0
        %v1100 = vadd.f32 %v1059, 1.0
        %v1101 = vadd.f32 %v1061, 1.0
        %v1102 = vrcp.pop %v1062
        %v1103 = vrcp.pop %v1063
        %v1104 = vrcp.pop %v1064
        %v1105 = vrcp.pop %v1065
        %v1106 = vrcp.pop %v1066
        %v1107 = vrcp.pop %v1067
        %v1108 = vrcp.pop %v1068
        %v1109 = vrcp.pop %v1069
        %v1110 = vrcp.pop %v1070
        %v1111 = vrcp.pop %v1071
        %v1112 = vrcp.pop %v1072
        %v1113 = vrcp.pop %v1073
        %v1114 = vrcp.pop %v1074
        %v1115 = vrcp.pop %v1075
        %v1116 = vrcp.pop %v1076
        %v1117 = vrcp.pop %v1077
        %v1118 = vrcp.pop %v1078
        %v1119 = vrcp.pop %v1079
        %v1120 = vrcp.pop %v1080
        %v1121 = vrcp.pop %v1081
        %v1122 = vrcp.pop %v1082
        %v1123 = vrcp.pop %v1083
        %v1124 = vrcp.pop %v1084
        %v1125 = vrcp.pop %v1085
        %v1126 = vrcp.pop %v1086
        %v1127 = vrcp.pop %v1087
        %v1128 = vrcp.pop %v1088
        %v1129 = vrcp.pop %v1089
        %v1130 = vrcp.pop %v1090
        %v1131 = vrcp.pop %v1091
        %v1132 = vrcp.pop %v1092
        %v1133 = vrcp.pop %v1093
        %v1134 = vrcp.pop %v1094
        %v1135 = vrcp.pop %v1095
        %v1136 = vrcp.pop %v1096
        %v1137 = vrcp.pop %v1097
        %v1138 = vrcp.pop %v1098
        %v1139 = vrcp.pop %v1099
        %v1140 = vrcp.pop %v1100
        %v1141 = vrcp.pop %v1101
        %v1142 = vmul.f32 %v772, %v1102
        %v1143 = vmul.f32 %v775, %v1103
        %v1144 = vmul.f32 %v780, %v1104
        %v1145 = vmul.f32 %v783, %v1105
        %v1146 = vmul.f32 %v788, %v1106
        %v1147 = vmul.f32 %v791, %v1107
        %v1148 = vmul.f32 %v796, %v1108
        %v1149 = vmul.f32 %v799, %v1109
        %v1150 = vmul.f32 %v804, %v1110
        %v1151 = vmul.f32 %v807, %v1111
        %v1152 = vmul.f32 %v812, %v1112
        %v1153 = vmul.f32 %v815, %v1113
        %v1154 = vmul.f32 %v820, %v1114
        %v1155 = vmul.f32 %v823, %v1115
        %v1156 = vmul.f32 %v828, %v1116
        %v1157 = vmul.f32 %v831, %v1117
        %v1158 = vmul.f32 %v836, %v1118
        %v1159 = vmul.f32 %v839, %v1119
        %v1160 = vmul.f32 %v844, %v1120
        %v1161 = vmul.f32 %v847, %v1121
        %v1162 = vmul.f32 %v852, %v1122
        %v1163 = vmul.f32 %v855, %v1123
        %v1164 = vmul.f32 %v860, %v1124
        %v1165 = vmul.f32 %v863, %v1125
        %v1166 = vmul.f32 %v868, %v1126
        %v1167 = vmul.f32 %v871, %v1127
        %v1168 = vmul.f32 %v876, %v1128
        %v1169 = vmul.f32 %v879, %v1129
        %v1170 = vmul.f32 %v884, %v1130
        %v1171 = vmul.f32 %v887, %v1131
        %v1172 = vmul.f32 %v892, %v1132
        %v1173 = vmul.f32 %v895, %v1133
        %v1174 = vmul.f32 %v900, %v1134
        %v1175 = vmul.f32 %v903, %v1135
        %v1176 = vmul.f32 %v908, %v1136
        %v1177 = vmul.f32 %v911, %v1137
        %v1178 = vmul.f32 %v916, %v1138
        %v1179 = vmul.f32 %v919, %v1139
        %v1180 = vmul.f32 %v924, %v1140
        %v1181 = vmul.f32 %v927, %v1141
        %v1182 = vpack.c.bf16 %v1143, %v1142
        %v1183 = vpack.c.bf16 %v1145, %v1144
        %v1184 = vpack.c.bf16 %v1147, %v1146
        %v1185 = vpack.c.bf16 %v1149, %v1148
        %v1186 = vpack.c.bf16 %v1151, %v1150
        %v1187 = vpack.c.bf16 %v1153, %v1152
        %v1188 = vpack.c.bf16 %v1155, %v1154
        %v1189 = vpack.c.bf16 %v1157, %v1156
        %v1190 = vpack.c.bf16 %v1159, %v1158
        %v1191 = vpack.c.bf16 %v1161, %v1160
        %v1192 = vpack.c.bf16 %v1163, %v1162
        %v1193 = vpack.c.bf16 %v1165, %v1164
        %v1194 = vpack.c.bf16 %v1167, %v1166
        %v1195 = vpack.c.bf16 %v1169, %v1168
        %v1196 = vpack.c.bf16 %v1171, %v1170
        %v1197 = vpack.c.bf16 %v1173, %v1172
        %v1198 = vpack.c.bf16 %v1175, %v1174
        %v1199 = vpack.c.bf16 %v1177, %v1176
        %v1200 = vpack.c.bf16 %v1179, %v1178
        %v1201 = vpack.c.bf16 %v1181, %v1180
        %p1202 = scmp.eq.s32.totalorder %s33, 0
        %s1203 = scalar_select %p1202, -1e+30, 0.0
        %p1205 = scmp.ne.f32.partialorder %s1203, %s1203
        %s1206 = sshrl.u32 %s1203, 16
        %s1207 = sand.u32 %s1206, 1
        %s1208 = sadd.s32 32767, %s1207
        %s1209 = sadd.s32 %s1203, %s1208
        %s1210 = sand.u32 %s1209, 4294901760
        %s1211 = scalar_select %p1205, 2143289344, %s1210
        %s1213 = sshrl.u32 %s1211, 16
        %p1214 = scmp.eq.s32.totalorder %s33, 1
        %s1215 = scalar_select %p1214, -1e+30, 0.0
        %p1217 = scmp.ne.f32.partialorder %s1215, %s1215
        %s1218 = sshrl.u32 %s1215, 16
        %s1219 = sand.u32 %s1218, 1
        %s1220 = sadd.s32 32767, %s1219
        %s1221 = sadd.s32 %s1215, %s1220
        %s1222 = sand.u32 %s1221, 4294901760
        %s1223 = scalar_select %p1217, 2143289344, %s1222
        %s1225 = sshrl.u32 %s1223, 16
        %s1226 = sshll.u32 %s1213, 16
        %s1227 = sor.u32 %s1213, %s1226
        %v1228 = vstv %s1227
        %v1230 = vadd.bf16 %v1182, %v1228
        %v1231 = vadd.bf16 %v1183, %v1228
        %v1232 = vadd.bf16 %v1184, %v1228
        %v1233 = vadd.bf16 %v1185, %v1228
        %v1234 = vadd.bf16 %v1186, %v1228
        %v1235 = vadd.bf16 %v1187, %v1228
        %s1236 = sshll.u32 %s1225, 16
        %s1237 = sor.u32 %s1225, %s1236
        %v1238 = vstv %s1237
        %v1240 = vadd.bf16 %v1196, %v1238
        %v1241 = vadd.bf16 %v1197, %v1238
        %v1242 = vadd.bf16 %v1198, %v1238
        %v1243 = vadd.bf16 %v1199, %v1238
        %v1244 = vadd.bf16 %v1200, %v1238
        %v1245 = vadd.bf16 %v1201, %v1238
        %v1266 = vrot.slane %v1230, 5
        %v1267 = vrot.slane %v1231, 5
        %v1268 = vrot.slane %v1232, 5
        %v1269 = vrot.slane %v1233, 5
        %v1270 = vrot.slane %v1234, 5
        %v1271 = vrot.slane %v1235, 5
        %v1272 = vrot.slane %v1188, 5
        %v1273 = vrot.slane %v1189, 5
        %v1274 = vrot.slane %v1190, 5
        %v1275 = vrot.slane %v1191, 5
        %v1276 = vrot.slane %v1192, 5
        %v1277 = vrot.slane %v1193, 5
        %v1278 = vrot.slane %v1194, 5
        %v1279 = vrot.slane %v1195, 5
        %v1280 = vrot.slane %v1240, 5
        %v1281 = vrot.slane %v1241, 5
        %v1282 = vrot.slane %v1242, 5
        %v1283 = vrot.slane %v1243, 5
        %v1284 = vrot.slane %v1244, 5
        %v1285 = vrot.slane %v1245, 5
        %vm1286 = vcmask 1042432
        %v1289 = vsel %vm1286, 4048220490, %v1266
        %v1292 = vsel %vm1286, 4048220490, %v1267
        %v1295 = vsel %vm1286, 4048220490, %v1268
        %v1298 = vsel %vm1286, 4048220490, %v1269
        %v1301 = vsel %vm1286, 4048220490, %v1270
        %v1304 = vsel %vm1286, 4048220490, %v1271
        %v1307 = vsel %vm1286, 4048220490, %v1272
        %v1310 = vsel %vm1286, 4048220490, %v1273
        %v1313 = vsel %vm1286, 4048220490, %v1274
        %v1316 = vsel %vm1286, 4048220490, %v1275
        %v1319 = vsel %vm1286, 4048220490, %v1276
        %v1322 = vsel %vm1286, 4048220490, %v1277
        %v1325 = vsel %vm1286, 4048220490, %v1278
        %v1328 = vsel %vm1286, 4048220490, %v1279
        %v1331 = vsel %vm1286, 4048220490, %v1280
        %v1334 = vsel %vm1286, 4048220490, %v1281
        %v1337 = vsel %vm1286, 4048220490, %v1282
        %v1340 = vsel %vm1286, 4048220490, %v1283
        %v1343 = vsel %vm1286, 4048220490, %v1284
        %v1346 = vsel %vm1286, 4048220490, %v1285
        %v1348 = vsel %vm1286, %v1266, 4048220490
        %v1350 = vsel %vm1286, %v1267, 4048220490
        %v1352 = vsel %vm1286, %v1268, 4048220490
        %v1354 = vsel %vm1286, %v1269, 4048220490
        %v1356 = vsel %vm1286, %v1270, 4048220490
        %v1358 = vsel %vm1286, %v1271, 4048220490
        %v1360 = vsel %vm1286, %v1272, 4048220490
        %v1362 = vsel %vm1286, %v1273, 4048220490
        %v1364 = vsel %vm1286, %v1274, 4048220490
        %v1366 = vsel %vm1286, %v1275, 4048220490
        %v1368 = vsel %vm1286, %v1276, 4048220490
        %v1370 = vsel %vm1286, %v1277, 4048220490
        %v1372 = vsel %vm1286, %v1278, 4048220490
        %v1374 = vsel %vm1286, %v1279, 4048220490
        %v1376 = vsel %vm1286, %v1280, 4048220490
        %v1378 = vsel %vm1286, %v1281, 4048220490
        %v1380 = vsel %vm1286, %v1282, 4048220490
        %v1382 = vsel %vm1286, %v1283, 4048220490
        %v1384 = vsel %vm1286, %v1284, 4048220490
        %v1386 = vsel %vm1286, %v1285, 4048220490
        %v1388 = vld [vmem:[#allocation10] sm:$0xf]
        %v1389 = vld [vmem:[#allocation10 + $0x4] sm:$0xf]
        %v1390 = vld [vmem:[#allocation10 + $0x8] sm:$0xf]
        %v1391 = vld [vmem:[#allocation10 + $0xc] sm:$0xf]
        %v1392 = vld [vmem:[#allocation10 + $0x10] sm:$0xf]
        %v1393 = vld [vmem:[#allocation10 + $0x14] sm:$0xf]
        %v1394 = vld [vmem:[#allocation10 + $0x18] sm:$0xf]
        %v1395 = vld [vmem:[#allocation10 + $0x1c] sm:$0xf]
        %v1396 = vld [vmem:[#allocation10 + $0x20] sm:$0xf]
        %v1397 = vld [vmem:[#allocation10 + $0x24] sm:$0xf]
        %v1398 = vld [vmem:[#allocation10 + $0x28] sm:$0xf]
        %v1399 = vld [vmem:[#allocation10 + $0x2c] sm:$0xf]
        %v1400 = vld [vmem:[#allocation10 + $0x30] sm:$0xf]
        %v1401 = vld [vmem:[#allocation10 + $0x34] sm:$0xf]
        %v1402 = vld [vmem:[#allocation10 + $0x38] sm:$0xf]
        %v1403 = vld [vmem:[#allocation10 + $0x3c] sm:$0xf]
        %vm1404 = vsmask.f32 7424
        %v1405 = vshrl.u32 %v1289, 16
        %v1407 = vshll.u32 %v1289, 16
        %v1409 = vrot.slane %v1407, 1
        %v1410 = vor.u32 %v1405, %v1409
        %v1411 = vshll.u32 %v1348, 16
        %v1413 = vrot.slane %v1411, 1
        %v1414 = vsel %vm1404, %v1410, %v1413
        %v1415 = vshrl.u32 %v1348, 16
        %v1417 = vor.u32 %v1415, %v1413
        %v1418 = vshrl.u32 %v1292, 16
        %v1420 = vshll.u32 %v1292, 16
        %v1422 = vrot.slane %v1420, 1
        %v1423 = vor.u32 %v1418, %v1422
        %v1424 = vshll.u32 %v1350, 16
        %v1426 = vrot.slane %v1424, 1
        %v1427 = vsel %vm1404, %v1423, %v1426
        %v1428 = vshrl.u32 %v1350, 16
        %v1430 = vor.u32 %v1428, %v1426
        %v1431 = vshrl.u32 %v1295, 16
        %v1433 = vshll.u32 %v1295, 16
        %v1435 = vrot.slane %v1433, 1
        %v1436 = vor.u32 %v1431, %v1435
        %v1437 = vshll.u32 %v1352, 16
        %v1439 = vrot.slane %v1437, 1
        %v1440 = vsel %vm1404, %v1436, %v1439
        %v1441 = vshrl.u32 %v1352, 16
        %v1443 = vor.u32 %v1441, %v1439
        %v1444 = vshrl.u32 %v1298, 16
        %v1446 = vshll.u32 %v1298, 16
        %v1448 = vrot.slane %v1446, 1
        %v1449 = vor.u32 %v1444, %v1448
        %v1450 = vshll.u32 %v1354, 16
        %v1452 = vrot.slane %v1450, 1
        %v1453 = vsel %vm1404, %v1449, %v1452
        %v1454 = vshrl.u32 %v1354, 16
        %v1456 = vor.u32 %v1454, %v1452
        %v1457 = vshrl.u32 %v1301, 16
        %v1459 = vshll.u32 %v1301, 16
        %v1461 = vrot.slane %v1459, 1
        %v1462 = vor.u32 %v1457, %v1461
        %v1463 = vshll.u32 %v1356, 16
        %v1465 = vrot.slane %v1463, 1
        %v1466 = vsel %vm1404, %v1462, %v1465
        %v1467 = vshrl.u32 %v1356, 16
        %v1469 = vor.u32 %v1467, %v1465
        %v1470 = vshrl.u32 %v1304, 16
        %v1472 = vshll.u32 %v1304, 16
        %v1474 = vrot.slane %v1472, 1
        %v1475 = vor.u32 %v1470, %v1474
        %v1476 = vshll.u32 %v1358, 16
        %v1478 = vrot.slane %v1476, 1
        %v1479 = vsel %vm1404, %v1475, %v1478
        %v1480 = vshrl.u32 %v1358, 16
        %v1482 = vor.u32 %v1480, %v1478
        %v1483 = vshrl.u32 %v1307, 16
        %v1485 = vshll.u32 %v1307, 16
        %v1487 = vrot.slane %v1485, 1
        %v1488 = vor.u32 %v1483, %v1487
        %v1489 = vshll.u32 %v1360, 16
        %v1491 = vrot.slane %v1489, 1
        %v1492 = vsel %vm1404, %v1488, %v1491
        %v1493 = vshrl.u32 %v1360, 16
        %v1495 = vor.u32 %v1493, %v1491
        %v1496 = vshrl.u32 %v1310, 16
        %v1498 = vshll.u32 %v1310, 16
        %v1500 = vrot.slane %v1498, 1
        %v1501 = vor.u32 %v1496, %v1500
        %v1502 = vshll.u32 %v1362, 16
        %v1504 = vrot.slane %v1502, 1
        %v1505 = vsel %vm1404, %v1501, %v1504
        %v1506 = vshrl.u32 %v1362, 16
        %v1508 = vor.u32 %v1506, %v1504
        %v1509 = vshrl.u32 %v1313, 16
        %v1511 = vshll.u32 %v1313, 16
        %v1513 = vrot.slane %v1511, 1
        %v1514 = vor.u32 %v1509, %v1513
        %v1515 = vshll.u32 %v1364, 16
        %v1517 = vrot.slane %v1515, 1
        %v1518 = vsel %vm1404, %v1514, %v1517
        %v1519 = vshrl.u32 %v1364, 16
        %v1521 = vor.u32 %v1519, %v1517
        %v1522 = vshrl.u32 %v1316, 16
        %v1524 = vshll.u32 %v1316, 16
        %v1526 = vrot.slane %v1524, 1
        %v1527 = vor.u32 %v1522, %v1526
        %v1528 = vshll.u32 %v1366, 16
        %v1530 = vrot.slane %v1528, 1
        %v1531 = vsel %vm1404, %v1527, %v1530
        %v1532 = vshrl.u32 %v1366, 16
        %v1534 = vor.u32 %v1532, %v1530
        %v1535 = vshrl.u32 %v1319, 16
        %v1537 = vshll.u32 %v1319, 16
        %v1539 = vrot.slane %v1537, 1
        %v1540 = vor.u32 %v1535, %v1539
        %v1541 = vshll.u32 %v1368, 16
        %v1543 = vrot.slane %v1541, 1
        %v1544 = vsel %vm1404, %v1540, %v1543
        %v1545 = vshrl.u32 %v1368, 16
        %v1547 = vor.u32 %v1545, %v1543
        %v1548 = vshrl.u32 %v1322, 16
        %v1550 = vshll.u32 %v1322, 16
        %v1552 = vrot.slane %v1550, 1
        %v1553 = vor.u32 %v1548, %v1552
        %v1554 = vshll.u32 %v1370, 16
        %v1556 = vrot.slane %v1554, 1
        %v1557 = vsel %vm1404, %v1553, %v1556
        %v1558 = vshrl.u32 %v1370, 16
        %v1560 = vor.u32 %v1558, %v1556
        %v1561 = vshrl.u32 %v1325, 16
        %v1563 = vshll.u32 %v1325, 16
        %v1565 = vrot.slane %v1563, 1
        %v1566 = vor.u32 %v1561, %v1565
        %v1567 = vshll.u32 %v1372, 16
        %v1569 = vrot.slane %v1567, 1
        %v1570 = vsel %vm1404, %v1566, %v1569
        %v1571 = vshrl.u32 %v1372, 16
        %v1573 = vor.u32 %v1571, %v1569
        %v1574 = vshrl.u32 %v1328, 16
        %v1576 = vshll.u32 %v1328, 16
        %v1578 = vrot.slane %v1576, 1
        %v1579 = vor.u32 %v1574, %v1578
        %v1580 = vshll.u32 %v1374, 16
        %v1582 = vrot.slane %v1580, 1
        %v1583 = vsel %vm1404, %v1579, %v1582
        %v1584 = vshrl.u32 %v1374, 16
        %v1586 = vor.u32 %v1584, %v1582
        %v1587 = vshrl.u32 %v1331, 16
        %v1589 = vshll.u32 %v1331, 16
        %v1591 = vrot.slane %v1589, 1
        %v1592 = vor.u32 %v1587, %v1591
        %v1593 = vshll.u32 %v1376, 16
        %v1595 = vrot.slane %v1593, 1
        %v1596 = vsel %vm1404, %v1592, %v1595
        %v1597 = vshrl.u32 %v1376, 16
        %v1599 = vor.u32 %v1597, %v1595
        %v1600 = vshrl.u32 %v1334, 16
        %v1602 = vshll.u32 %v1334, 16
        %v1604 = vrot.slane %v1602, 1
        %v1605 = vor.u32 %v1600, %v1604
        %v1606 = vshll.u32 %v1378, 16
        %v1608 = vrot.slane %v1606, 1
        %v1609 = vsel %vm1404, %v1605, %v1608
        %v1610 = vshrl.u32 %v1378, 16
        %v1612 = vor.u32 %v1610, %v1608
        %v1613 = vshrl.u32 %v1337, 16
        %v1615 = vshll.u32 %v1337, 16
        %v1617 = vrot.slane %v1615, 1
        %v1618 = vor.u32 %v1613, %v1617
        %v1619 = vshll.u32 %v1380, 16
        %v1621 = vrot.slane %v1619, 1
        %v1622 = vsel %vm1404, %v1618, %v1621
        %v1623 = vshrl.u32 %v1380, 16
        %v1625 = vor.u32 %v1623, %v1621
        %v1626 = vshrl.u32 %v1340, 16
        %v1628 = vshll.u32 %v1340, 16
        %v1630 = vrot.slane %v1628, 1
        %v1631 = vor.u32 %v1626, %v1630
        %v1632 = vshll.u32 %v1382, 16
        %v1634 = vrot.slane %v1632, 1
        %v1635 = vsel %vm1404, %v1631, %v1634
        %v1636 = vshrl.u32 %v1382, 16
        %v1638 = vor.u32 %v1636, %v1634
        %v1639 = vshrl.u32 %v1343, 16
        %v1641 = vshll.u32 %v1343, 16
        %v1643 = vrot.slane %v1641, 1
        %v1644 = vor.u32 %v1639, %v1643
        %v1645 = vshll.u32 %v1384, 16
        %v1647 = vrot.slane %v1645, 1
        %v1648 = vsel %vm1404, %v1644, %v1647
        %v1649 = vshrl.u32 %v1384, 16
        %v1651 = vor.u32 %v1649, %v1647
        %v1652 = vshrl.u32 %v1346, 16
        %v1654 = vshll.u32 %v1346, 16
        %v1656 = vrot.slane %v1654, 1
        %v1657 = vor.u32 %v1652, %v1656
        %v1658 = vshll.u32 %v1386, 16
        %v1660 = vrot.slane %v1658, 1
        %v1661 = vsel %vm1404, %v1657, %v1660
        %v1662 = vshrl.u32 %v1386, 16
        %v1664 = vor.u32 %v1662, %v1660
        %v1705 = vmax.bf16 %v1289, %v1414
        %v1706 = vmax.bf16 %v1348, %v1417
        %v1707 = vmax.bf16 %v1292, %v1427
        %v1708 = vmax.bf16 %v1350, %v1430
        %v1709 = vmax.bf16 %v1295, %v1440
        %v1710 = vmax.bf16 %v1352, %v1443
        %v1711 = vmax.bf16 %v1298, %v1453
        %v1712 = vmax.bf16 %v1354, %v1456
        %v1713 = vmax.bf16 %v1301, %v1466
        %v1714 = vmax.bf16 %v1356, %v1469
        %v1715 = vmax.bf16 %v1304, %v1479
        %v1716 = vmax.bf16 %v1358, %v1482
        %v1717 = vmax.bf16 %v1307, %v1492
        %v1718 = vmax.bf16 %v1360, %v1495
        %v1719 = vmax.bf16 %v1310, %v1505
        %v1720 = vmax.bf16 %v1362, %v1508
        %v1721 = vmax.bf16 %v1313, %v1518
        %v1722 = vmax.bf16 %v1364, %v1521
        %v1723 = vmax.bf16 %v1316, %v1531
        %v1724 = vmax.bf16 %v1366, %v1534
        %v1725 = vmax.bf16 %v1319, %v1544
        %v1726 = vmax.bf16 %v1368, %v1547
        %v1727 = vmax.bf16 %v1322, %v1557
        %v1728 = vmax.bf16 %v1370, %v1560
        %v1729 = vmax.bf16 %v1325, %v1570
        %v1730 = vmax.bf16 %v1372, %v1573
        %v1731 = vmax.bf16 %v1328, %v1583
        %v1732 = vmax.bf16 %v1374, %v1586
        %v1733 = vmax.bf16 %v1331, %v1596
        %v1734 = vmax.bf16 %v1376, %v1599
        %v1735 = vmax.bf16 %v1334, %v1609
        %v1736 = vmax.bf16 %v1378, %v1612
        %v1737 = vmax.bf16 %v1337, %v1622
        %v1738 = vmax.bf16 %v1380, %v1625
        %v1739 = vmax.bf16 %v1340, %v1635
        %v1740 = vmax.bf16 %v1382, %v1638
        %v1741 = vmax.bf16 %v1343, %v1648
        %v1742 = vmax.bf16 %v1384, %v1651
        %v1743 = vmax.bf16 %v1346, %v1661
        %v1744 = vmax.bf16 %v1386, %v1664
        %vm1785 = vcmask 1046528
        %v1786 = vrot.slane %v1289, 1
        %v1787 = vrot.slane %v1348, 1
        %v1788 = vsel %vm1785, %v1786, %v1787
        %v1789 = vrot.slane %v1292, 1
        %v1790 = vrot.slane %v1350, 1
        %v1791 = vsel %vm1785, %v1789, %v1790
        %v1792 = vrot.slane %v1295, 1
        %v1793 = vrot.slane %v1352, 1
        %v1794 = vsel %vm1785, %v1792, %v1793
        %v1795 = vrot.slane %v1298, 1
        %v1796 = vrot.slane %v1354, 1
        %v1797 = vsel %vm1785, %v1795, %v1796
        %v1798 = vrot.slane %v1301, 1
        %v1799 = vrot.slane %v1356, 1
        %v1800 = vsel %vm1785, %v1798, %v1799
        %v1801 = vrot.slane %v1304, 1
        %v1802 = vrot.slane %v1358, 1
        %v1803 = vsel %vm1785, %v1801, %v1802
        %v1804 = vrot.slane %v1307, 1
        %v1805 = vrot.slane %v1360, 1
        %v1806 = vsel %vm1785, %v1804, %v1805
        %v1807 = vrot.slane %v1310, 1
        %v1808 = vrot.slane %v1362, 1
        %v1809 = vsel %vm1785, %v1807, %v1808
        %v1810 = vrot.slane %v1313, 1
        %v1811 = vrot.slane %v1364, 1
        %v1812 = vsel %vm1785, %v1810, %v1811
        %v1813 = vrot.slane %v1316, 1
        %v1814 = vrot.slane %v1366, 1
        %v1815 = vsel %vm1785, %v1813, %v1814
        %v1816 = vrot.slane %v1319, 1
        %v1817 = vrot.slane %v1368, 1
        %v1818 = vsel %vm1785, %v1816, %v1817
        %v1819 = vrot.slane %v1322, 1
        %v1820 = vrot.slane %v1370, 1
        %v1821 = vsel %vm1785, %v1819, %v1820
        %v1822 = vrot.slane %v1325, 1
        %v1823 = vrot.slane %v1372, 1
        %v1824 = vsel %vm1785, %v1822, %v1823
        %v1825 = vrot.slane %v1328, 1
        %v1826 = vrot.slane %v1374, 1
        %v1827 = vsel %vm1785, %v1825, %v1826
        %v1828 = vrot.slane %v1331, 1
        %v1829 = vrot.slane %v1376, 1
        %v1830 = vsel %vm1785, %v1828, %v1829
        %v1831 = vrot.slane %v1334, 1
        %v1832 = vrot.slane %v1378, 1
        %v1833 = vsel %vm1785, %v1831, %v1832
        %v1834 = vrot.slane %v1337, 1
        %v1835 = vrot.slane %v1380, 1
        %v1836 = vsel %vm1785, %v1834, %v1835
        %v1837 = vrot.slane %v1340, 1
        %v1838 = vrot.slane %v1382, 1
        %v1839 = vsel %vm1785, %v1837, %v1838
        %v1840 = vrot.slane %v1343, 1
        %v1841 = vrot.slane %v1384, 1
        %v1842 = vsel %vm1785, %v1840, %v1841
        %v1843 = vrot.slane %v1346, 1
        %v1844 = vrot.slane %v1386, 1
        %v1845 = vsel %vm1785, %v1843, %v1844
        %v1886 = vmax.bf16 %v1705, %v1788
        %v1887 = vmax.bf16 %v1706, %v1787
        %v1888 = vmax.bf16 %v1707, %v1791
        %v1889 = vmax.bf16 %v1708, %v1790
        %v1890 = vmax.bf16 %v1709, %v1794
        %v1891 = vmax.bf16 %v1710, %v1793
        %v1892 = vmax.bf16 %v1711, %v1797
        %v1893 = vmax.bf16 %v1712, %v1796
        %v1894 = vmax.bf16 %v1713, %v1800
        %v1895 = vmax.bf16 %v1714, %v1799
        %v1896 = vmax.bf16 %v1715, %v1803
        %v1897 = vmax.bf16 %v1716, %v1802
        %v1898 = vmax.bf16 %v1717, %v1806
        %v1899 = vmax.bf16 %v1718, %v1805
        %v1900 = vmax.bf16 %v1719, %v1809
        %v1901 = vmax.bf16 %v1720, %v1808
        %v1902 = vmax.bf16 %v1721, %v1812
        %v1903 = vmax.bf16 %v1722, %v1811
        %v1904 = vmax.bf16 %v1723, %v1815
        %v1905 = vmax.bf16 %v1724, %v1814
        %v1906 = vmax.bf16 %v1725, %v1818
        %v1907 = vmax.bf16 %v1726, %v1817
        %v1908 = vmax.bf16 %v1727, %v1821
        %v1909 = vmax.bf16 %v1728, %v1820
        %v1910 = vmax.bf16 %v1729, %v1824
        %v1911 = vmax.bf16 %v1730, %v1823
        %v1912 = vmax.bf16 %v1731, %v1827
        %v1913 = vmax.bf16 %v1732, %v1826
        %v1914 = vmax.bf16 %v1733, %v1830
        %v1915 = vmax.bf16 %v1734, %v1829
        %v1916 = vmax.bf16 %v1735, %v1833
        %v1917 = vmax.bf16 %v1736, %v1832
        %v1918 = vmax.bf16 %v1737, %v1836
        %v1919 = vmax.bf16 %v1738, %v1835
        %v1920 = vmax.bf16 %v1739, %v1839
        %v1921 = vmax.bf16 %v1740, %v1838
        %v1922 = vmax.bf16 %v1741, %v1842
        %v1923 = vmax.bf16 %v1742, %v1841
        %v1924 = vmax.bf16 %v1743, %v1845
        %v1925 = vmax.bf16 %v1744, %v1844
        %vm1926 = vsmask.f32 6400
        %v1927 = vrot.slane %v1405, 1
        %v1928 = vrot.slane %v1407, 2
        %v1929 = vor.u32 %v1927, %v1928
        %v1930 = vrot.slane %v1415, 1
        %v1931 = vrot.slane %v1411, 2
        %v1932 = vor.u32 %v1930, %v1931
        %v1933 = vsel %vm1926, %v1929, %v1932
        %v1934 = vrot.slane %v1418, 1
        %v1935 = vrot.slane %v1420, 2
        %v1936 = vor.u32 %v1934, %v1935
        %v1937 = vrot.slane %v1428, 1
        %v1938 = vrot.slane %v1424, 2
        %v1939 = vor.u32 %v1937, %v1938
        %v1940 = vsel %vm1926, %v1936, %v1939
        %v1941 = vrot.slane %v1431, 1
        %v1942 = vrot.slane %v1433, 2
        %v1943 = vor.u32 %v1941, %v1942
        %v1944 = vrot.slane %v1441, 1
        %v1945 = vrot.slane %v1437, 2
        %v1946 = vor.u32 %v1944, %v1945
        %v1947 = vsel %vm1926, %v1943, %v1946
        %v1948 = vrot.slane %v1444, 1
        %v1949 = vrot.slane %v1446, 2
        %v1950 = vor.u32 %v1948, %v1949
        %v1951 = vrot.slane %v1454, 1
        %v1952 = vrot.slane %v1450, 2
        %v1953 = vor.u32 %v1951, %v1952
        %v1954 = vsel %vm1926, %v1950, %v1953
        %v1955 = vrot.slane %v1457, 1
        %v1956 = vrot.slane %v1459, 2
        %v1957 = vor.u32 %v1955, %v1956
        %v1958 = vrot.slane %v1467, 1
        %v1959 = vrot.slane %v1463, 2
        %v1960 = vor.u32 %v1958, %v1959
        %v1961 = vsel %vm1926, %v1957, %v1960
        %v1962 = vrot.slane %v1470, 1
        %v1963 = vrot.slane %v1472, 2
        %v1964 = vor.u32 %v1962, %v1963
        %v1965 = vrot.slane %v1480, 1
        %v1966 = vrot.slane %v1476, 2
        %v1967 = vor.u32 %v1965, %v1966
        %v1968 = vsel %vm1926, %v1964, %v1967
        %v1969 = vrot.slane %v1483, 1
        %v1970 = vrot.slane %v1485, 2
        %v1971 = vor.u32 %v1969, %v1970
        %v1972 = vrot.slane %v1493, 1
        %v1973 = vrot.slane %v1489, 2
        %v1974 = vor.u32 %v1972, %v1973
        %v1975 = vsel %vm1926, %v1971, %v1974
        %v1976 = vrot.slane %v1496, 1
        %v1977 = vrot.slane %v1498, 2
        %v1978 = vor.u32 %v1976, %v1977
        %v1979 = vrot.slane %v1506, 1
        %v1980 = vrot.slane %v1502, 2
        %v1981 = vor.u32 %v1979, %v1980
        %v1982 = vsel %vm1926, %v1978, %v1981
        %v1983 = vrot.slane %v1509, 1
        %v1984 = vrot.slane %v1511, 2
        %v1985 = vor.u32 %v1983, %v1984
        %v1986 = vrot.slane %v1519, 1
        %v1987 = vrot.slane %v1515, 2
        %v1988 = vor.u32 %v1986, %v1987
        %v1989 = vsel %vm1926, %v1985, %v1988
        %v1990 = vrot.slane %v1522, 1
        %v1991 = vrot.slane %v1524, 2
        %v1992 = vor.u32 %v1990, %v1991
        %v1993 = vrot.slane %v1532, 1
        %v1994 = vrot.slane %v1528, 2
        %v1995 = vor.u32 %v1993, %v1994
        %v1996 = vsel %vm1926, %v1992, %v1995
        %v1997 = vrot.slane %v1535, 1
        %v1998 = vrot.slane %v1537, 2
        %v1999 = vor.u32 %v1997, %v1998
        %v2000 = vrot.slane %v1545, 1
        %v2001 = vrot.slane %v1541, 2
        %v2002 = vor.u32 %v2000, %v2001
        %v2003 = vsel %vm1926, %v1999, %v2002
        %v2004 = vrot.slane %v1548, 1
        %v2005 = vrot.slane %v1550, 2
        %v2006 = vor.u32 %v2004, %v2005
        %v2007 = vrot.slane %v1558, 1
        %v2008 = vrot.slane %v1554, 2
        %v2009 = vor.u32 %v2007, %v2008
        %v2010 = vsel %vm1926, %v2006, %v2009
        %v2011 = vrot.slane %v1561, 1
        %v2012 = vrot.slane %v1563, 2
        %v2013 = vor.u32 %v2011, %v2012
        %v2014 = vrot.slane %v1571, 1
        %v2015 = vrot.slane %v1567, 2
        %v2016 = vor.u32 %v2014, %v2015
        %v2017 = vsel %vm1926, %v2013, %v2016
        %v2018 = vrot.slane %v1574, 1
        %v2019 = vrot.slane %v1576, 2
        %v2020 = vor.u32 %v2018, %v2019
        %v2021 = vrot.slane %v1584, 1
        %v2022 = vrot.slane %v1580, 2
        %v2023 = vor.u32 %v2021, %v2022
        %v2024 = vsel %vm1926, %v2020, %v2023
        %v2025 = vrot.slane %v1587, 1
        %v2026 = vrot.slane %v1589, 2
        %v2027 = vor.u32 %v2025, %v2026
        %v2028 = vrot.slane %v1597, 1
        %v2029 = vrot.slane %v1593, 2
        %v2030 = vor.u32 %v2028, %v2029
        %v2031 = vsel %vm1926, %v2027, %v2030
        %v2032 = vrot.slane %v1600, 1
        %v2033 = vrot.slane %v1602, 2
        %v2034 = vor.u32 %v2032, %v2033
        %v2035 = vrot.slane %v1610, 1
        %v2036 = vrot.slane %v1606, 2
        %v2037 = vor.u32 %v2035, %v2036
        %v2038 = vsel %vm1926, %v2034, %v2037
        %v2039 = vrot.slane %v1613, 1
        %v2040 = vrot.slane %v1615, 2
        %v2041 = vor.u32 %v2039, %v2040
        %v2042 = vrot.slane %v1623, 1
        %v2043 = vrot.slane %v1619, 2
        %v2044 = vor.u32 %v2042, %v2043
        %v2045 = vsel %vm1926, %v2041, %v2044
        %v2046 = vrot.slane %v1626, 1
        %v2047 = vrot.slane %v1628, 2
        %v2048 = vor.u32 %v2046, %v2047
        %v2049 = vrot.slane %v1636, 1
        %v2050 = vrot.slane %v1632, 2
        %v2051 = vor.u32 %v2049, %v2050
        %v2052 = vsel %vm1926, %v2048, %v2051
        %v2053 = vrot.slane %v1639, 1
        %v2054 = vrot.slane %v1641, 2
        %v2055 = vor.u32 %v2053, %v2054
        %v2056 = vrot.slane %v1649, 1
        %v2057 = vrot.slane %v1645, 2
        %v2058 = vor.u32 %v2056, %v2057
        %v2059 = vsel %vm1926, %v2055, %v2058
        %v2060 = vrot.slane %v1652, 1
        %v2061 = vrot.slane %v1654, 2
        %v2062 = vor.u32 %v2060, %v2061
        %v2063 = vrot.slane %v1662, 1
        %v2064 = vrot.slane %v1658, 2
        %v2065 = vor.u32 %v2063, %v2064
        %v2066 = vsel %vm1926, %v2062, %v2065
        %v2107 = vmax.bf16 %v1886, %v1933
        %v2108 = vmax.bf16 %v1887, %v1932
        %v2109 = vmax.bf16 %v1888, %v1940
        %v2110 = vmax.bf16 %v1889, %v1939
        %v2111 = vmax.bf16 %v1890, %v1947
        %v2112 = vmax.bf16 %v1891, %v1946
        %v2113 = vmax.bf16 %v1892, %v1954
        %v2114 = vmax.bf16 %v1893, %v1953
        %v2115 = vmax.bf16 %v1894, %v1961
        %v2116 = vmax.bf16 %v1895, %v1960
        %v2117 = vmax.bf16 %v1896, %v1968
        %v2118 = vmax.bf16 %v1897, %v1967
        %v2119 = vmax.bf16 %v1898, %v1975
        %v2120 = vmax.bf16 %v1899, %v1974
        %v2121 = vmax.bf16 %v1900, %v1982
        %v2122 = vmax.bf16 %v1901, %v1981
        %v2123 = vmax.bf16 %v1902, %v1989
        %v2124 = vmax.bf16 %v1903, %v1988
        %v2125 = vmax.bf16 %v1904, %v1996
        %v2126 = vmax.bf16 %v1905, %v1995
        %v2127 = vmax.bf16 %v1906, %v2003
        %v2128 = vmax.bf16 %v1907, %v2002
        %v2129 = vmax.bf16 %v1908, %v2010
        %v2130 = vmax.bf16 %v1909, %v2009
        %v2131 = vmax.bf16 %v1910, %v2017
        %v2132 = vmax.bf16 %v1911, %v2016
        %v2133 = vmax.bf16 %v1912, %v2024
        %v2134 = vmax.bf16 %v1913, %v2023
        %v2135 = vmax.bf16 %v1914, %v2031
        %v2136 = vmax.bf16 %v1915, %v2030
        %v2137 = vmax.bf16 %v1916, %v2038
        %v2138 = vmax.bf16 %v1917, %v2037
        %v2139 = vmax.bf16 %v1918, %v2045
        %v2140 = vmax.bf16 %v1919, %v2044
        %v2141 = vmax.bf16 %v1920, %v2052
        %v2142 = vmax.bf16 %v1921, %v2051
        %v2143 = vmax.bf16 %v1922, %v2059
        %v2144 = vmax.bf16 %v1923, %v2058
        %v2145 = vmax.bf16 %v1924, %v2066
        %v2146 = vmax.bf16 %v1925, %v2065
        %vm2147 = vcmask 1045504
        %v2148 = vrot.slane %v1289, 2
        %v2149 = vrot.slane %v1348, 2
        %v2150 = vsel %vm2147, %v2148, %v2149
        %v2151 = vrot.slane %v1292, 2
        %v2152 = vrot.slane %v1350, 2
        %v2153 = vsel %vm2147, %v2151, %v2152
        %v2154 = vrot.slane %v1295, 2
        %v2155 = vrot.slane %v1352, 2
        %v2156 = vsel %vm2147, %v2154, %v2155
        %v2157 = vrot.slane %v1298, 2
        %v2158 = vrot.slane %v1354, 2
        %v2159 = vsel %vm2147, %v2157, %v2158
        %v2160 = vrot.slane %v1301, 2
        %v2161 = vrot.slane %v1356, 2
        %v2162 = vsel %vm2147, %v2160, %v2161
        %v2163 = vrot.slane %v1304, 2
        %v2164 = vrot.slane %v1358, 2
        %v2165 = vsel %vm2147, %v2163, %v2164
        %v2166 = vrot.slane %v1307, 2
        %v2167 = vrot.slane %v1360, 2
        %v2168 = vsel %vm2147, %v2166, %v2167
        %v2169 = vrot.slane %v1310, 2
        %v2170 = vrot.slane %v1362, 2
        %v2171 = vsel %vm2147, %v2169, %v2170
        %v2172 = vrot.slane %v1313, 2
        %v2173 = vrot.slane %v1364, 2
        %v2174 = vsel %vm2147, %v2172, %v2173
        %v2175 = vrot.slane %v1316, 2
        %v2176 = vrot.slane %v1366, 2
        %v2177 = vsel %vm2147, %v2175, %v2176
        %v2178 = vrot.slane %v1319, 2
        %v2179 = vrot.slane %v1368, 2
        %v2180 = vsel %vm2147, %v2178, %v2179
        %v2181 = vrot.slane %v1322, 2
        %v2182 = vrot.slane %v1370, 2
        %v2183 = vsel %vm2147, %v2181, %v2182
        %v2184 = vrot.slane %v1325, 2
        %v2185 = vrot.slane %v1372, 2
        %v2186 = vsel %vm2147, %v2184, %v2185
        %v2187 = vrot.slane %v1328, 2
        %v2188 = vrot.slane %v1374, 2
        %v2189 = vsel %vm2147, %v2187, %v2188
        %v2190 = vrot.slane %v1331, 2
        %v2191 = vrot.slane %v1376, 2
        %v2192 = vsel %vm2147, %v2190, %v2191
        %v2193 = vrot.slane %v1334, 2
        %v2194 = vrot.slane %v1378, 2
        %v2195 = vsel %vm2147, %v2193, %v2194
        %v2196 = vrot.slane %v1337, 2
        %v2197 = vrot.slane %v1380, 2
        %v2198 = vsel %vm2147, %v2196, %v2197
        %v2199 = vrot.slane %v1340, 2
        %v2200 = vrot.slane %v1382, 2
        %v2201 = vsel %vm2147, %v2199, %v2200
        %v2202 = vrot.slane %v1343, 2
        %v2203 = vrot.slane %v1384, 2
        %v2204 = vsel %vm2147, %v2202, %v2203
        %v2205 = vrot.slane %v1346, 2
        %v2206 = vrot.slane %v1386, 2
        %v2207 = vsel %vm2147, %v2205, %v2206
        %v2248 = vmax.bf16 %v2107, %v2150
        %v2249 = vmax.bf16 %v2108, %v2149
        %v2250 = vmax.bf16 %v2109, %v2153
        %v2251 = vmax.bf16 %v2110, %v2152
        %v2252 = vmax.bf16 %v2111, %v2156
        %v2253 = vmax.bf16 %v2112, %v2155
        %v2254 = vmax.bf16 %v2113, %v2159
        %v2255 = vmax.bf16 %v2114, %v2158
        %v2256 = vmax.bf16 %v2115, %v2162
        %v2257 = vmax.bf16 %v2116, %v2161
        %v2258 = vmax.bf16 %v2117, %v2165
        %v2259 = vmax.bf16 %v2118, %v2164
        %v2260 = vmax.bf16 %v2119, %v2168
        %v2261 = vmax.bf16 %v2120, %v2167
        %v2262 = vmax.bf16 %v2121, %v2171
        %v2263 = vmax.bf16 %v2122, %v2170
        %v2264 = vmax.bf16 %v2123, %v2174
        %v2265 = vmax.bf16 %v2124, %v2173
        %v2266 = vmax.bf16 %v2125, %v2177
        %v2267 = vmax.bf16 %v2126, %v2176
        %v2268 = vmax.bf16 %v2127, %v2180
        %v2269 = vmax.bf16 %v2128, %v2179
        %v2270 = vmax.bf16 %v2129, %v2183
        %v2271 = vmax.bf16 %v2130, %v2182
        %v2272 = vmax.bf16 %v2131, %v2186
        %v2273 = vmax.bf16 %v2132, %v2185
        %v2274 = vmax.bf16 %v2133, %v2189
        %v2275 = vmax.bf16 %v2134, %v2188
        %v2276 = vmax.bf16 %v2135, %v2192
        %v2277 = vmax.bf16 %v2136, %v2191
        %v2278 = vmax.bf16 %v2137, %v2195
        %v2279 = vmax.bf16 %v2138, %v2194
        %v2280 = vmax.bf16 %v2139, %v2198
        %v2281 = vmax.bf16 %v2140, %v2197
        %v2282 = vmax.bf16 %v2141, %v2201
        %v2283 = vmax.bf16 %v2142, %v2200
        %v2284 = vmax.bf16 %v2143, %v2204
        %v2285 = vmax.bf16 %v2144, %v2203
        %v2286 = vmax.bf16 %v2145, %v2207
        %v2287 = vmax.bf16 %v2146, %v2206
        %v2288 = vmax.bf16 %v2248, %v2250
        %v2289 = vmax.bf16 %v2249, %v2251
        %v2290 = vmax.bf16 %v2250, %v2252
        %v2291 = vmax.bf16 %v2251, %v2253
        %v2292 = vmax.bf16 %v2252, %v2254
        %v2293 = vmax.bf16 %v2253, %v2255
        %v2294 = vmax.bf16 %v2254, %v2256
        %v2295 = vmax.bf16 %v2255, %v2257
        %v2296 = vmax.bf16 %v2256, %v2258
        %v2297 = vmax.bf16 %v2257, %v2259
        %v2298 = vmax.bf16 %v2258, %v2260
        %v2299 = vmax.bf16 %v2259, %v2261
        %v2300 = vmax.bf16 %v2260, %v2262
        %v2301 = vmax.bf16 %v2261, %v2263
        %v2302 = vmax.bf16 %v2262, %v2264
        %v2303 = vmax.bf16 %v2263, %v2265
        %v2304 = vmax.bf16 %v2264, %v2266
        %v2305 = vmax.bf16 %v2265, %v2267
        %v2306 = vmax.bf16 %v2266, %v2268
        %v2307 = vmax.bf16 %v2267, %v2269
        %v2308 = vmax.bf16 %v2268, %v2270
        %v2309 = vmax.bf16 %v2269, %v2271
        %v2310 = vmax.bf16 %v2270, %v2272
        %v2311 = vmax.bf16 %v2271, %v2273
        %v2312 = vmax.bf16 %v2272, %v2274
        %v2313 = vmax.bf16 %v2273, %v2275
        %v2314 = vmax.bf16 %v2274, %v2276
        %v2315 = vmax.bf16 %v2275, %v2277
        %v2316 = vmax.bf16 %v2276, %v2278
        %v2317 = vmax.bf16 %v2277, %v2279
        %v2318 = vmax.bf16 %v2278, %v2280
        %v2319 = vmax.bf16 %v2279, %v2281
        %v2320 = vmax.bf16 %v2288, %v2252
        %v2321 = vmax.bf16 %v2289, %v2253
        %v2322 = vmax.bf16 %v2290, %v2254
        %v2323 = vmax.bf16 %v2291, %v2255
        %v2324 = vmax.bf16 %v2292, %v2256
        %v2325 = vmax.bf16 %v2293, %v2257
        %v2326 = vmax.bf16 %v2294, %v2258
        %v2327 = vmax.bf16 %v2295, %v2259
        %v2328 = vmax.bf16 %v2296, %v2260
        %v2329 = vmax.bf16 %v2297, %v2261
        %v2330 = vmax.bf16 %v2298, %v2262
        %v2331 = vmax.bf16 %v2299, %v2263
        %v2332 = vmax.bf16 %v2300, %v2264
        %v2333 = vmax.bf16 %v2301, %v2265
        %v2334 = vmax.bf16 %v2302, %v2266
        %v2335 = vmax.bf16 %v2303, %v2267
        %v2336 = vmax.bf16 %v2304, %v2268
        %v2337 = vmax.bf16 %v2305, %v2269
        %v2338 = vmax.bf16 %v2306, %v2270
        %v2339 = vmax.bf16 %v2307, %v2271
        %v2340 = vmax.bf16 %v2308, %v2272
        %v2341 = vmax.bf16 %v2309, %v2273
        %v2342 = vmax.bf16 %v2310, %v2274
        %v2343 = vmax.bf16 %v2311, %v2275
        %v2344 = vmax.bf16 %v2312, %v2276
        %v2345 = vmax.bf16 %v2313, %v2277
        %v2346 = vmax.bf16 %v2314, %v2278
        %v2347 = vmax.bf16 %v2315, %v2279
        %v2348 = vmax.bf16 %v2316, %v2280
        %v2349 = vmax.bf16 %v2317, %v2281
        %v2350 = vmax.bf16 %v2318, %v2282
        %v2351 = vmax.bf16 %v2319, %v2283
        %v2352 = vmax.bf16 %v2320, %v2254
        %v2353 = vmax.bf16 %v2321, %v2255
        %v2354 = vmax.bf16 %v2322, %v2256
        %v2355 = vmax.bf16 %v2323, %v2257
        %v2356 = vmax.bf16 %v2324, %v2258
        %v2357 = vmax.bf16 %v2325, %v2259
        %v2358 = vmax.bf16 %v2326, %v2260
        %v2359 = vmax.bf16 %v2327, %v2261
        %v2360 = vmax.bf16 %v2328, %v2262
        %v2361 = vmax.bf16 %v2329, %v2263
        %v2362 = vmax.bf16 %v2330, %v2264
        %v2363 = vmax.bf16 %v2331, %v2265
        %v2364 = vmax.bf16 %v2332, %v2266
        %v2365 = vmax.bf16 %v2333, %v2267
        %v2366 = vmax.bf16 %v2334, %v2268
        %v2367 = vmax.bf16 %v2335, %v2269
        %v2368 = vmax.bf16 %v2336, %v2270
        %v2369 = vmax.bf16 %v2337, %v2271
        %v2370 = vmax.bf16 %v2338, %v2272
        %v2371 = vmax.bf16 %v2339, %v2273
        %v2372 = vmax.bf16 %v2340, %v2274
        %v2373 = vmax.bf16 %v2341, %v2275
        %v2374 = vmax.bf16 %v2342, %v2276
        %v2375 = vmax.bf16 %v2343, %v2277
        %v2376 = vmax.bf16 %v2344, %v2278
        %v2377 = vmax.bf16 %v2345, %v2279
        %v2378 = vmax.bf16 %v2346, %v2280
        %v2379 = vmax.bf16 %v2347, %v2281
        %v2380 = vmax.bf16 %v2348, %v2282
        %v2381 = vmax.bf16 %v2349, %v2283
        %v2382 = vmax.bf16 %v2350, %v2284
        %v2383 = vmax.bf16 %v2351, %v2285
        %v2384 = vmax.bf16 %v2352, %v2256
        %v2385 = vmax.bf16 %v2353, %v2257
        %v2386 = vmax.bf16 %v2354, %v2258
        %v2387 = vmax.bf16 %v2355, %v2259
        %v2388 = vmax.bf16 %v2356, %v2260
        %v2389 = vmax.bf16 %v2357, %v2261
        %v2390 = vmax.bf16 %v2358, %v2262
        %v2391 = vmax.bf16 %v2359, %v2263
        %v2392 = vmax.bf16 %v2360, %v2264
        %v2393 = vmax.bf16 %v2361, %v2265
        %v2394 = vmax.bf16 %v2362, %v2266
        %v2395 = vmax.bf16 %v2363, %v2267
        %v2396 = vmax.bf16 %v2364, %v2268
        %v2397 = vmax.bf16 %v2365, %v2269
        %v2398 = vmax.bf16 %v2366, %v2270
        %v2399 = vmax.bf16 %v2367, %v2271
        %v2400 = vmax.bf16 %v2368, %v2272
        %v2401 = vmax.bf16 %v2369, %v2273
        %v2402 = vmax.bf16 %v2370, %v2274
        %v2403 = vmax.bf16 %v2371, %v2275
        %v2404 = vmax.bf16 %v2372, %v2276
        %v2405 = vmax.bf16 %v2373, %v2277
        %v2406 = vmax.bf16 %v2374, %v2278
        %v2407 = vmax.bf16 %v2375, %v2279
        %v2408 = vmax.bf16 %v2376, %v2280
        %v2409 = vmax.bf16 %v2377, %v2281
        %v2410 = vmax.bf16 %v2378, %v2282
        %v2411 = vmax.bf16 %v2379, %v2283
        %v2412 = vmax.bf16 %v2380, %v2284
        %v2413 = vmax.bf16 %v2381, %v2285
        %v2414 = vmax.bf16 %v2382, %v2286
        %v2415 = vmax.bf16 %v2383, %v2287
        %v2432 = vrot.slane %v2392, 2
        %v2433 = vrot.slane %v2393, 2
        %v2434 = vsel %vm2147, %v2432, %v2433
        %v2435 = vrot.slane %v2394, 2
        %v2436 = vrot.slane %v2395, 2
        %v2437 = vsel %vm2147, %v2435, %v2436
        %v2438 = vrot.slane %v2396, 2
        %v2439 = vrot.slane %v2397, 2
        %v2440 = vsel %vm2147, %v2438, %v2439
        %v2441 = vrot.slane %v2398, 2
        %v2442 = vrot.slane %v2399, 2
        %v2443 = vsel %vm2147, %v2441, %v2442
        %v2444 = vrot.slane %v2400, 2
        %v2445 = vrot.slane %v2401, 2
        %v2446 = vsel %vm2147, %v2444, %v2445
        %v2447 = vrot.slane %v2402, 2
        %v2448 = vrot.slane %v2403, 2
        %v2449 = vsel %vm2147, %v2447, %v2448
        %v2450 = vrot.slane %v2404, 2
        %v2451 = vrot.slane %v2405, 2
        %v2452 = vsel %vm2147, %v2450, %v2451
        %v2453 = vrot.slane %v2406, 2
        %v2454 = vrot.slane %v2407, 2
        %v2455 = vsel %vm2147, %v2453, %v2454
        %s2464 = scalar_lea.vmem [#allocation10], 64
        %v2465 = vld [vmem:[%s2464] sm:$0xf]
        %v2466 = vld [vmem:[%s2464 + $0x4] sm:$0xf]
        %v2467 = vld [vmem:[%s2464 + $0x8] sm:$0xf]
        %v2468 = vld [vmem:[%s2464 + $0xc] sm:$0xf]
        %v2469 = vld [vmem:[%s2464 + $0x10] sm:$0xf]
        %v2470 = vld [vmem:[%s2464 + $0x14] sm:$0xf]
        %v2471 = vld [vmem:[%s2464 + $0x18] sm:$0xf]
        %v2472 = vld [vmem:[%s2464 + $0x1c] sm:$0xf]
        %v2473 = vld [vmem:[%s2464 + $0x20] sm:$0xf]
        %v2474 = vld [vmem:[%s2464 + $0x24] sm:$0xf]
        %v2475 = vld [vmem:[%s2464 + $0x28] sm:$0xf]
        %v2476 = vld [vmem:[%s2464 + $0x2c] sm:$0xf]
        %v2477 = vld [vmem:[%s2464 + $0x30] sm:$0xf]
        %v2478 = vld [vmem:[%s2464 + $0x34] sm:$0xf]
        %v2479 = vld [vmem:[%s2464 + $0x38] sm:$0xf]
        %v2480 = vld [vmem:[%s2464 + $0x3c] sm:$0xf]
        %v2497 = vunpack.c.l.b16 %v2465
        %v2498 = vunpack.c.l.b16 %v2466
        %v2499 = vunpack.c.l.b16 %v2467
        %v2500 = vunpack.c.l.b16 %v2468
        %v2501 = vunpack.c.l.b16 %v2469
        %v2502 = vunpack.c.l.b16 %v2470
        %v2503 = vunpack.c.l.b16 %v2471
        %v2504 = vunpack.c.l.b16 %v2472
        %v2505 = vunpack.c.l.b16 %v2473
        %v2506 = vunpack.c.l.b16 %v2474
        %v2507 = vunpack.c.l.b16 %v2475
        %v2508 = vunpack.c.l.b16 %v2476
        %v2509 = vunpack.c.l.b16 %v2477
        %v2510 = vunpack.c.l.b16 %v2478
        %v2511 = vunpack.c.l.b16 %v2479
        %v2512 = vunpack.c.l.b16 %v2480
        %v2513 = vpack.c.b16 %v2498, %v2497
        %v2514 = vpack.c.b16 %v2500, %v2499
        %v2515 = vpack.c.b16 %v2502, %v2501
        %v2516 = vpack.c.b16 %v2504, %v2503
        %v2517 = vpack.c.b16 %v2506, %v2505
        %v2518 = vpack.c.b16 %v2508, %v2507
        %v2519 = vpack.c.b16 %v2510, %v2509
        %v2520 = vpack.c.b16 %v2512, %v2511
        %2529 = vmatprep.subr.bf16.mxu0 0
        %2530 = vmatpush1.bf16.msra.mxu0 %v2513
        %2531 = vmatprep.subr.bf16.mxu0 0
        %2532 = vmatpush1.bf16.msra.mxu0 %v2514
        %2533 = vmatprep.subr.bf16.mxu0 0
        %2534 = vmatpush1.bf16.msra.mxu0 %v2515
        %2535 = vmatprep.subr.bf16.mxu0 0
        %2536 = vmatpush1.bf16.msra.mxu0 %v2516
        %2537 = vmatprep.subr.bf16.mxu0 0
        %2538 = vmatpush1.bf16.msra.mxu0 %v2517
        %2539 = vmatprep.subr.bf16.mxu0 0
        %2540 = vmatpush1.bf16.msra.mxu0 %v2518
        %2541 = vmatprep.subr.bf16.mxu0 0
        %2542 = vmatpush1.bf16.msra.mxu0 %v2519
        %2543 = vmatprep.subr.bf16.mxu0 0
        %2544 = vmatpush1.bf16.msra.mxu0 %v2520
        %2545 = vmatprep.subr.bf16.mxu0 0
        %2546 = vmatpush1.bf16.msra.mxu0 0
        %2547 = vmatprep.subr.bf16.mxu0 0
        %2548 = vmatpush1.bf16.msra.mxu0 0
        %2549 = vmatprep.subr.bf16.mxu0 0
        %2550 = vmatpush1.bf16.msra.mxu0 0
        %2551 = vmatprep.subr.bf16.mxu0 0
        %2552 = vmatpush1.bf16.msra.mxu0 0
        %2553 = vmatprep.subr.bf16.mxu0 0
        %2554 = vmatpush1.bf16.msra.mxu0 0
        %2555 = vmatprep.subr.bf16.mxu0 0
        %2556 = vmatpush1.bf16.msra.mxu0 0
        %2557 = vmatprep.subr.bf16.mxu0 0
        %2558 = vmatpush1.bf16.msra.mxu0 0
        %2559 = vmatprep.subr.bf16.mxu0 0
        %2560 = vmatpush1.bf16.msra.mxu0 0
        %2561 = vmatprep.mubr.bf16.mxu0 0
        %2562 = vmatmul.mubr.bf16.gmra.mrb[0].mxu0 %v2434
        %v2563 = vpop.f32.mrb[0].mxu0
        %v2564 = vadd.f32 0.0, %v2563
        %v2565 = vpop.f32.mrb[0].mxu0
        %v2566 = vpop.f32.mrb[0].mxu0
        %v2567 = vadd.f32 0.0, %v2566
        %v2568 = vpop.f32.mrb[0].mxu0
        %2569 = vmatprep.mubr.bf16.mxu0 0
        %2570 = vmatmul.mubr.bf16.gmra.mrb[0].mxu0 %v2437
        %v2571 = vpop.f32.mrb[0].mxu0
        %v2572 = vadd.f32 0.0, %v2571
        %v2573 = vpop.f32.mrb[0].mxu0
        %v2574 = vpop.f32.mrb[0].mxu0
        %v2575 = vadd.f32 0.0, %v2574
        %v2576 = vpop.f32.mrb[0].mxu0
        %2577 = vmatprep.mubr.bf16.mxu0 0
        %2578 = vmatmul.mubr.bf16.gmra.mrb[0].mxu0 %v2440
        %v2579 = vpop.f32.mrb[0].mxu0
        %v2580 = vadd.f32 0.0, %v2579
        %v2581 = vpop.f32.mrb[0].mxu0
        %v2582 = vpop.f32.mrb[0].mxu0
        %v2583 = vadd.f32 0.0, %v2582
        %v2584 = vpop.f32.mrb[0].mxu0
        %2585 = vmatprep.mubr.bf16.mxu0 0
        %2586 = vmatmul.mubr.bf16.gmra.mrb[0].mxu0 %v2443
        %v2587 = vpop.f32.mrb[0].mxu0
        %v2588 = vadd.f32 0.0, %v2587
        %v2589 = vpop.f32.mrb[0].mxu0
        %v2590 = vpop.f32.mrb[0].mxu0
        %v2591 = vadd.f32 0.0, %v2590
        %v2592 = vpop.f32.mrb[0].mxu0
        %2593 = vmatprep.mubr.bf16.mxu0 0
        %2594 = vmatmul.mubr.bf16.gmra.mrb[0].mxu0 %v2446
        %v2595 = vpop.f32.mrb[0].mxu0
        %v2596 = vadd.f32 0.0, %v2595
        %v2597 = vpop.f32.mrb[0].mxu0
        %v2598 = vpop.f32.mrb[0].mxu0
        %v2599 = vadd.f32 0.0, %v2598
        %v2600 = vpop.f32.mrb[0].mxu0
        %2601 = vmatprep.mubr.bf16.mxu0 0
        %2602 = vmatmul.mubr.bf16.gmra.mrb[0].mxu0 %v2449
        %v2603 = vpop.f32.mrb[0].mxu0
        %v2604 = vadd.f32 0.0, %v2603
        %v2605 = vpop.f32.mrb[0].mxu0
        %v2606 = vpop.f32.mrb[0].mxu0
        %v2607 = vadd.f32 0.0, %v2606
        %v2608 = vpop.f32.mrb[0].mxu0
        %2609 = vmatprep.mubr.bf16.mxu0 0
        %2610 = vmatmul.mubr.bf16.gmra.mrb[0].mxu0 %v2452
        %v2611 = vpop.f32.mrb[0].mxu0
        %v2612 = vadd.f32 0.0, %v2611
        %v2613 = vpop.f32.mrb[0].mxu0
        %v2614 = vpop.f32.mrb[0].mxu0
        %v2615 = vadd.f32 0.0, %v2614
        %v2616 = vpop.f32.mrb[0].mxu0
        %2617 = vmatprep.mubr.bf16.mxu0 0
        %2618 = vmatmul.mubr.bf16.gmra.mrb[0].mxu0 %v2455
        %v2619 = vpop.f32.mrb[0].mxu0
        %v2620 = vadd.f32 0.0, %v2619
        %v2621 = vpop.f32.mrb[0].mxu0
        %v2622 = vpop.f32.mrb[0].mxu0
        %v2623 = vadd.f32 0.0, %v2622
        %v2624 = vpop.f32.mrb[0].mxu0
        %2625 = vdwg.mxu0
        %v2642 = vunpack.c.l.b16 %v1388
        %v2643 = vunpack.c.l.b16 %v1389
        %v2644 = vunpack.c.l.b16 %v1390
        %v2645 = vunpack.c.l.b16 %v1391
        %v2646 = vunpack.c.l.b16 %v1392
        %v2647 = vunpack.c.l.b16 %v1393
        %v2648 = vunpack.c.l.b16 %v1394
        %v2649 = vunpack.c.l.b16 %v1395
        %v2650 = vunpack.c.l.b16 %v1396
        %v2651 = vunpack.c.l.b16 %v1397
        %v2652 = vunpack.c.l.b16 %v1398
        %v2653 = vunpack.c.l.b16 %v1399
        %v2654 = vunpack.c.l.b16 %v1400
        %v2655 = vunpack.c.l.b16 %v1401
        %v2656 = vunpack.c.l.b16 %v1402
        %v2657 = vunpack.c.l.b16 %v1403
        %v2658 = vpack.c.b16 %v2643, %v2642
        %v2659 = vpack.c.b16 %v2645, %v2644
        %v2660 = vpack.c.b16 %v2647, %v2646
        %v2661 = vpack.c.b16 %v2649, %v2648
        %v2662 = vpack.c.b16 %v2651, %v2650
        %v2663 = vpack.c.b16 %v2653, %v2652
        %v2664 = vpack.c.b16 %v2655, %v2654
        %v2665 = vpack.c.b16 %v2657, %v2656
        %2674 = vmatprep.subr.bf16.mxu0 0
        %2675 = vmatpush1.bf16.msra.mxu0 %v2658
        %2676 = vmatprep.subr.bf16.mxu0 0
        %2677 = vmatpush1.bf16.msra.mxu0 %v2659
        %2678 = vmatprep.subr.bf16.mxu0 0
        %2679 = vmatpush1.bf16.msra.mxu0 %v2660
        %2680 = vmatprep.subr.bf16.mxu0 0
        %2681 = vmatpush1.bf16.msra.mxu0 %v2661
        %2682 = vmatprep.subr.bf16.mxu0 0
        %2683 = vmatpush1.bf16.msra.mxu0 %v2662
        %2684 = vmatprep.subr.bf16.mxu0 0
        %2685 = vmatpush1.bf16.msra.mxu0 %v2663
        %2686 = vmatprep.subr.bf16.mxu0 0
        %2687 = vmatpush1.bf16.msra.mxu0 %v2664
        %2688 = vmatprep.subr.bf16.mxu0 0
        %2689 = vmatpush1.bf16.msra.mxu0 %v2665
        %2690 = vmatprep.subr.bf16.mxu0 0
        %2691 = vmatpush1.bf16.msra.mxu0 0
        %2692 = vmatprep.subr.bf16.mxu0 0
        %2693 = vmatpush1.bf16.msra.mxu0 0
        %2694 = vmatprep.subr.bf16.mxu0 0
        %2695 = vmatpush1.bf16.msra.mxu0 0
        %2696 = vmatprep.subr.bf16.mxu0 0
        %2697 = vmatpush1.bf16.msra.mxu0 0
        %2698 = vmatprep.subr.bf16.mxu0 0
        %2699 = vmatpush1.bf16.msra.mxu0 0
        %2700 = vmatprep.subr.bf16.mxu0 0
        %2701 = vmatpush1.bf16.msra.mxu0 0
        %2702 = vmatprep.subr.bf16.mxu0 0
        %2703 = vmatpush1.bf16.msra.mxu0 0
        %2704 = vmatprep.subr.bf16.mxu0 0
        %2705 = vmatpush1.bf16.msra.mxu0 0
        %2706 = vmatprep.mubr.bf16.mxu0 0
        %2707 = vmatmul.mubr.bf16.gmra.mrb[0].mxu0 %v1188
        %v2708 = vpop.f32.mrb[0].mxu0
        %v2709 = vadd.f32 %v2564, %v2708
        %v2710 = vpop.f32.mrb[0].mxu0
        %v2711 = vpop.f32.mrb[0].mxu0
        %v2712 = vadd.f32 %v2567, %v2711
        %v2713 = vpop.f32.mrb[0].mxu0
        %2714 = vmatprep.mubr.bf16.mxu0 0
        %2715 = vmatmul.mubr.bf16.gmra.mrb[0].mxu0 %v1189
        %v2716 = vpop.f32.mrb[0].mxu0
        %v2717 = vadd.f32 %v2572, %v2716
        %v2718 = vpop.f32.mrb[0].mxu0
        %v2719 = vpop.f32.mrb[0].mxu0
        %v2720 = vadd.f32 %v2575, %v2719
        %v2721 = vpop.f32.mrb[0].mxu0
        %2722 = vmatprep.mubr.bf16.mxu0 0
        %2723 = vmatmul.mubr.bf16.gmra.mrb[0].mxu0 %v1190
        %v2724 = vpop.f32.mrb[0].mxu0
        %v2725 = vadd.f32 %v2580, %v2724
        %v2726 = vpop.f32.mrb[0].mxu0
        %v2727 = vpop.f32.mrb[0].mxu0
        %v2728 = vadd.f32 %v2583, %v2727
        %v2729 = vpop.f32.mrb[0].mxu0
        %2730 = vmatprep.mubr.bf16.mxu0 0
        %2731 = vmatmul.mubr.bf16.gmra.mrb[0].mxu0 %v1191
        %v2732 = vpop.f32.mrb[0].mxu0
        %v2733 = vadd.f32 %v2588, %v2732
        %v2734 = vpop.f32.mrb[0].mxu0
        %v2735 = vpop.f32.mrb[0].mxu0
        %v2736 = vadd.f32 %v2591, %v2735
        %v2737 = vpop.f32.mrb[0].mxu0
        %2738 = vmatprep.mubr.bf16.mxu0 0
        %2739 = vmatmul.mubr.bf16.gmra.mrb[0].mxu0 %v1192
        %v2740 = vpop.f32.mrb[0].mxu0
        %v2741 = vadd.f32 %v2596, %v2740
        %v2742 = vpop.f32.mrb[0].mxu0
        %v2743 = vpop.f32.mrb[0].mxu0
        %v2744 = vadd.f32 %v2599, %v2743
        %v2745 = vpop.f32.mrb[0].mxu0
        %2746 = vmatprep.mubr.bf16.mxu0 0
        %2747 = vmatmul.mubr.bf16.gmra.mrb[0].mxu0 %v1193
        %v2748 = vpop.f32.mrb[0].mxu0
        %v2749 = vadd.f32 %v2604, %v2748
        %v2750 = vpop.f32.mrb[0].mxu0
        %v2751 = vpop.f32.mrb[0].mxu0
        %v2752 = vadd.f32 %v2607, %v2751
        %v2753 = vpop.f32.mrb[0].mxu0
        %2754 = vmatprep.mubr.bf16.mxu0 0
        %2755 = vmatmul.mubr.bf16.gmra.mrb[0].mxu0 %v1194
        %v2756 = vpop.f32.mrb[0].mxu0
        %v2757 = vadd.f32 %v2612, %v2756
        %v2758 = vpop.f32.mrb[0].mxu0
        %v2759 = vpop.f32.mrb[0].mxu0
        %v2760 = vadd.f32 %v2615, %v2759
        %v2761 = vpop.f32.mrb[0].mxu0
        %2762 = vmatprep.mubr.bf16.mxu0 0
        %2763 = vmatmul.mubr.bf16.gmra.mrb[0].mxu0 %v1195
        %v2764 = vpop.f32.mrb[0].mxu0
        %v2765 = vadd.f32 %v2620, %v2764
        %v2766 = vpop.f32.mrb[0].mxu0
        %v2767 = vpop.f32.mrb[0].mxu0
        %v2768 = vadd.f32 %v2623, %v2767
        %v2769 = vpop.f32.mrb[0].mxu0
        %2770 = vdwg.mxu0
        %v2772 = vshrl.u32 %v2384, 16
        %v2774 = vshll.u32 %v2384, 16
        %v2776 = vrot.slane %v2774, 1
        %v2777 = vor.u32 %v2772, %v2776
        %v2779 = vshll.u32 %v2385, 16
        %v2781 = vrot.slane %v2779, 1
        %v2782 = vsel %vm1404, %v2777, %v2781
        %v2783 = vshrl.u32 %v2385, 16
        %v2785 = vor.u32 %v2783, %v2781
        %v2787 = vshrl.u32 %v2386, 16
        %v2789 = vshll.u32 %v2386, 16
        %v2791 = vrot.slane %v2789, 1
        %v2792 = vor.u32 %v2787, %v2791
        %v2794 = vshll.u32 %v2387, 16
        %v2796 = vrot.slane %v2794, 1
        %v2797 = vsel %vm1404, %v2792, %v2796
        %v2798 = vshrl.u32 %v2387, 16
        %v2800 = vor.u32 %v2798, %v2796
        %v2802 = vshrl.u32 %v2388, 16
        %v2804 = vshll.u32 %v2388, 16
        %v2806 = vrot.slane %v2804, 1
        %v2807 = vor.u32 %v2802, %v2806
        %v2809 = vshll.u32 %v2389, 16
        %v2811 = vrot.slane %v2809, 1
        %v2812 = vsel %vm1404, %v2807, %v2811
        %v2813 = vshrl.u32 %v2389, 16
        %v2815 = vor.u32 %v2813, %v2811
        %v2817 = vshrl.u32 %v2390, 16
        %v2819 = vshll.u32 %v2390, 16
        %v2821 = vrot.slane %v2819, 1
        %v2822 = vor.u32 %v2817, %v2821
        %v2824 = vshll.u32 %v2391, 16
        %v2826 = vrot.slane %v2824, 1
        %v2827 = vsel %vm1404, %v2822, %v2826
        %v2828 = vshrl.u32 %v2391, 16
        %v2830 = vor.u32 %v2828, %v2826
        %v2832 = vshrl.u32 %v2392, 16
        %v2834 = vshll.u32 %v2392, 16
        %v2836 = vrot.slane %v2834, 1
        %v2837 = vor.u32 %v2832, %v2836
        %v2839 = vshll.u32 %v2393, 16
        %v2841 = vrot.slane %v2839, 1
        %v2842 = vsel %vm1404, %v2837, %v2841
        %v2843 = vshrl.u32 %v2393, 16
        %v2845 = vor.u32 %v2843, %v2841
        %v2847 = vshrl.u32 %v2394, 16
        %v2849 = vshll.u32 %v2394, 16
        %v2851 = vrot.slane %v2849, 1
        %v2852 = vor.u32 %v2847, %v2851
        %v2854 = vshll.u32 %v2395, 16
        %v2856 = vrot.slane %v2854, 1
        %v2857 = vsel %vm1404, %v2852, %v2856
        %v2858 = vshrl.u32 %v2395, 16
        %v2860 = vor.u32 %v2858, %v2856
        %v2862 = vshrl.u32 %v2396, 16
        %v2864 = vshll.u32 %v2396, 16
        %v2866 = vrot.slane %v2864, 1
        %v2867 = vor.u32 %v2862, %v2866
        %v2869 = vshll.u32 %v2397, 16
        %v2871 = vrot.slane %v2869, 1
        %v2872 = vsel %vm1404, %v2867, %v2871
        %v2873 = vshrl.u32 %v2397, 16
        %v2875 = vor.u32 %v2873, %v2871
        %v2877 = vshrl.u32 %v2398, 16
        %v2879 = vshll.u32 %v2398, 16
        %v2881 = vrot.slane %v2879, 1
        %v2882 = vor.u32 %v2877, %v2881
        %v2884 = vshll.u32 %v2399, 16
        %v2886 = vrot.slane %v2884, 1
        %v2887 = vsel %vm1404, %v2882, %v2886
        %v2888 = vshrl.u32 %v2399, 16
        %v2890 = vor.u32 %v2888, %v2886
        %v2892 = vshrl.u32 %v2400, 16
        %v2894 = vshll.u32 %v2400, 16
        %v2896 = vrot.slane %v2894, 1
        %v2897 = vor.u32 %v2892, %v2896
        %v2899 = vshll.u32 %v2401, 16
        %v2901 = vrot.slane %v2899, 1
        %v2902 = vsel %vm1404, %v2897, %v2901
        %v2903 = vshrl.u32 %v2401, 16
        %v2905 = vor.u32 %v2903, %v2901
        %v2907 = vshrl.u32 %v2402, 16
        %v2909 = vshll.u32 %v2402, 16
        %v2911 = vrot.slane %v2909, 1
        %v2912 = vor.u32 %v2907, %v2911
        %v2914 = vshll.u32 %v2403, 16
        %v2916 = vrot.slane %v2914, 1
        %v2917 = vsel %vm1404, %v2912, %v2916
        %v2918 = vshrl.u32 %v2403, 16
        %v2920 = vor.u32 %v2918, %v2916
        %v2922 = vshrl.u32 %v2404, 16
        %v2924 = vshll.u32 %v2404, 16
        %v2926 = vrot.slane %v2924, 1
        %v2927 = vor.u32 %v2922, %v2926
        %v2929 = vshll.u32 %v2405, 16
        %v2931 = vrot.slane %v2929, 1
        %v2932 = vsel %vm1404, %v2927, %v2931
        %v2933 = vshrl.u32 %v2405, 16
        %v2935 = vor.u32 %v2933, %v2931
        %v2937 = vshrl.u32 %v2406, 16
        %v2939 = vshll.u32 %v2406, 16
        %v2941 = vrot.slane %v2939, 1
        %v2942 = vor.u32 %v2937, %v2941
        %v2944 = vshll.u32 %v2407, 16
        %v2946 = vrot.slane %v2944, 1
        %v2947 = vsel %vm1404, %v2942, %v2946
        %v2948 = vshrl.u32 %v2407, 16
        %v2950 = vor.u32 %v2948, %v2946
        %v2952 = vshrl.u32 %v2408, 16
        %v2954 = vshll.u32 %v2408, 16
        %v2956 = vrot.slane %v2954, 1
        %v2957 = vor.u32 %v2952, %v2956
        %v2959 = vshll.u32 %v2409, 16
        %v2961 = vrot.slane %v2959, 1
        %v2962 = vsel %vm1404, %v2957, %v2961
        %v2963 = vshrl.u32 %v2409, 16
        %v2965 = vor.u32 %v2963, %v2961
        %v2967 = vshrl.u32 %v2410, 16
        %v2969 = vshll.u32 %v2410, 16
        %v2971 = vrot.slane %v2969, 1
        %v2972 = vor.u32 %v2967, %v2971
        %v2974 = vshll.u32 %v2411, 16
        %v2976 = vrot.slane %v2974, 1
        %v2977 = vsel %vm1404, %v2972, %v2976
        %v2978 = vshrl.u32 %v2411, 16
        %v2980 = vor.u32 %v2978, %v2976
        %v2982 = vshrl.u32 %v2412, 16
        %v2984 = vshll.u32 %v2412, 16
        %v2986 = vrot.slane %v2984, 1
        %v2987 = vor.u32 %v2982, %v2986
        %v2989 = vshll.u32 %v2413, 16
        %v2991 = vrot.slane %v2989, 1
        %v2992 = vsel %vm1404, %v2987, %v2991
        %v2993 = vshrl.u32 %v2413, 16
        %v2995 = vor.u32 %v2993, %v2991
        %v2997 = vshrl.u32 %v2414, 16
        %v2999 = vshll.u32 %v2414, 16
        %v3001 = vrot.slane %v2999, 1
        %v3002 = vor.u32 %v2997, %v3001
        %v3004 = vshll.u32 %v2415, 16
        %v3006 = vrot.slane %v3004, 1
        %v3007 = vsel %vm1404, %v3002, %v3006
        %v3008 = vshrl.u32 %v2415, 16
        %v3010 = vor.u32 %v3008, %v3006
        %v3043 = vmax.bf16 %v2384, %v2782
        %v3044 = vmax.bf16 %v2385, %v2785
        %v3045 = vmax.bf16 %v2386, %v2797
        %v3046 = vmax.bf16 %v2387, %v2800
        %v3047 = vmax.bf16 %v2388, %v2812
        %v3048 = vmax.bf16 %v2389, %v2815
        %v3049 = vmax.bf16 %v2390, %v2827
        %v3050 = vmax.bf16 %v2391, %v2830
        %v3051 = vmax.bf16 %v2392, %v2842
        %v3052 = vmax.bf16 %v2393, %v2845
        %v3053 = vmax.bf16 %v2394, %v2857
        %v3054 = vmax.bf16 %v2395, %v2860
        %v3055 = vmax.bf16 %v2396, %v2872
        %v3056 = vmax.bf16 %v2397, %v2875
        %v3057 = vmax.bf16 %v2398, %v2887
        %v3058 = vmax.bf16 %v2399, %v2890
        %v3059 = vmax.bf16 %v2400, %v2902
        %v3060 = vmax.bf16 %v2401, %v2905
        %v3061 = vmax.bf16 %v2402, %v2917
        %v3062 = vmax.bf16 %v2403, %v2920
        %v3063 = vmax.bf16 %v2404, %v2932
        %v3064 = vmax.bf16 %v2405, %v2935
        %v3065 = vmax.bf16 %v2406, %v2947
        %v3066 = vmax.bf16 %v2407, %v2950
        %v3067 = vmax.bf16 %v2408, %v2962
        %v3068 = vmax.bf16 %v2409, %v2965
        %v3069 = vmax.bf16 %v2410, %v2977
        %v3070 = vmax.bf16 %v2411, %v2980
        %v3071 = vmax.bf16 %v2412, %v2992
        %v3072 = vmax.bf16 %v2413, %v2995
        %v3073 = vmax.bf16 %v2414, %v3007
        %v3074 = vmax.bf16 %v2415, %v3010
        %v3091 = vrot.slane %v2384, 1
        %v3092 = vrot.slane %v2385, 1
        %v3093 = vsel %vm1785, %v3091, %v3092
        %v3094 = vrot.slane %v2386, 1
        %v3095 = vrot.slane %v2387, 1
        %v3096 = vsel %vm1785, %v3094, %v3095
        %v3097 = vrot.slane %v2388, 1
        %v3098 = vrot.slane %v2389, 1
        %v3099 = vsel %vm1785, %v3097, %v3098
        %v3100 = vrot.slane %v2390, 1
        %v3101 = vrot.slane %v2391, 1
        %v3102 = vsel %vm1785, %v3100, %v3101
        %v3103 = vrot.slane %v2392, 1
        %v3104 = vrot.slane %v2393, 1
        %v3105 = vsel %vm1785, %v3103, %v3104
        %v3106 = vrot.slane %v2394, 1
        %v3107 = vrot.slane %v2395, 1
        %v3108 = vsel %vm1785, %v3106, %v3107
        %v3109 = vrot.slane %v2396, 1
        %v3110 = vrot.slane %v2397, 1
        %v3111 = vsel %vm1785, %v3109, %v3110
        %v3112 = vrot.slane %v2398, 1
        %v3113 = vrot.slane %v2399, 1
        %v3114 = vsel %vm1785, %v3112, %v3113
        %v3115 = vrot.slane %v2400, 1
        %v3116 = vrot.slane %v2401, 1
        %v3117 = vsel %vm1785, %v3115, %v3116
        %v3118 = vrot.slane %v2402, 1
        %v3119 = vrot.slane %v2403, 1
        %v3120 = vsel %vm1785, %v3118, %v3119
        %v3121 = vrot.slane %v2404, 1
        %v3122 = vrot.slane %v2405, 1
        %v3123 = vsel %vm1785, %v3121, %v3122
        %v3124 = vrot.slane %v2406, 1
        %v3125 = vrot.slane %v2407, 1
        %v3126 = vsel %vm1785, %v3124, %v3125
        %v3127 = vrot.slane %v2408, 1
        %v3128 = vrot.slane %v2409, 1
        %v3129 = vsel %vm1785, %v3127, %v3128
        %v3130 = vrot.slane %v2410, 1
        %v3131 = vrot.slane %v2411, 1
        %v3132 = vsel %vm1785, %v3130, %v3131
        %v3133 = vrot.slane %v2412, 1
        %v3134 = vrot.slane %v2413, 1
        %v3135 = vsel %vm1785, %v3133, %v3134
        %v3136 = vrot.slane %v2414, 1
        %v3137 = vrot.slane %v2415, 1
        %v3138 = vsel %vm1785, %v3136, %v3137
        %v3171 = vmax.bf16 %v3043, %v3093
        %v3172 = vmax.bf16 %v3044, %v3092
        %v3173 = vmax.bf16 %v3045, %v3096
        %v3174 = vmax.bf16 %v3046, %v3095
        %v3175 = vmax.bf16 %v3047, %v3099
        %v3176 = vmax.bf16 %v3048, %v3098
        %v3177 = vmax.bf16 %v3049, %v3102
        %v3178 = vmax.bf16 %v3050, %v3101
        %v3179 = vmax.bf16 %v3051, %v3105
        %v3180 = vmax.bf16 %v3052, %v3104
        %v3181 = vmax.bf16 %v3053, %v3108
        %v3182 = vmax.bf16 %v3054, %v3107
        %v3183 = vmax.bf16 %v3055, %v3111
        %v3184 = vmax.bf16 %v3056, %v3110
        %v3185 = vmax.bf16 %v3057, %v3114
        %v3186 = vmax.bf16 %v3058, %v3113
        %v3187 = vmax.bf16 %v3059, %v3117
        %v3188 = vmax.bf16 %v3060, %v3116
        %v3189 = vmax.bf16 %v3061, %v3120
        %v3190 = vmax.bf16 %v3062, %v3119
        %v3191 = vmax.bf16 %v3063, %v3123
        %v3192 = vmax.bf16 %v3064, %v3122
        %v3193 = vmax.bf16 %v3065, %v3126
        %v3194 = vmax.bf16 %v3066, %v3125
        %v3195 = vmax.bf16 %v3067, %v3129
        %v3196 = vmax.bf16 %v3068, %v3128
        %v3197 = vmax.bf16 %v3069, %v3132
        %v3198 = vmax.bf16 %v3070, %v3131
        %v3199 = vmax.bf16 %v3071, %v3135
        %v3200 = vmax.bf16 %v3072, %v3134
        %v3201 = vmax.bf16 %v3073, %v3138
        %v3202 = vmax.bf16 %v3074, %v3137
        %v3203 = vrot.slane %v2772, 1
        %v3204 = vrot.slane %v2774, 2
        %v3205 = vor.u32 %v3203, %v3204
        %v3206 = vrot.slane %v2783, 1
        %v3207 = vrot.slane %v2779, 2
        %v3208 = vor.u32 %v3206, %v3207
        %v3209 = vsel %vm1926, %v3205, %v3208
        %v3210 = vrot.slane %v2787, 1
        %v3211 = vrot.slane %v2789, 2
        %v3212 = vor.u32 %v3210, %v3211
        %v3213 = vrot.slane %v2798, 1
        %v3214 = vrot.slane %v2794, 2
        %v3215 = vor.u32 %v3213, %v3214
        %v3216 = vsel %vm1926, %v3212, %v3215
        %v3217 = vrot.slane %v2802, 1
        %v3218 = vrot.slane %v2804, 2
        %v3219 = vor.u32 %v3217, %v3218
        %v3220 = vrot.slane %v2813, 1
        %v3221 = vrot.slane %v2809, 2
        %v3222 = vor.u32 %v3220, %v3221
        %v3223 = vsel %vm1926, %v3219, %v3222
        %v3224 = vrot.slane %v2817, 1
        %v3225 = vrot.slane %v2819, 2
        %v3226 = vor.u32 %v3224, %v3225
        %v3227 = vrot.slane %v2828, 1
        %v3228 = vrot.slane %v2824, 2
        %v3229 = vor.u32 %v3227, %v3228
        %v3230 = vsel %vm1926, %v3226, %v3229
        %v3231 = vrot.slane %v2832, 1
        %v3232 = vrot.slane %v2834, 2
        %v3233 = vor.u32 %v3231, %v3232
        %v3234 = vrot.slane %v2843, 1
        %v3235 = vrot.slane %v2839, 2
        %v3236 = vor.u32 %v3234, %v3235
        %v3237 = vsel %vm1926, %v3233, %v3236
        %v3238 = vrot.slane %v2847, 1
        %v3239 = vrot.slane %v2849, 2
        %v3240 = vor.u32 %v3238, %v3239
        %v3241 = vrot.slane %v2858, 1
        %v3242 = vrot.slane %v2854, 2
        %v3243 = vor.u32 %v3241, %v3242
        %v3244 = vsel %vm1926, %v3240, %v3243
        %v3245 = vrot.slane %v2862, 1
        %v3246 = vrot.slane %v2864, 2
        %v3247 = vor.u32 %v3245, %v3246
        %v3248 = vrot.slane %v2873, 1
        %v3249 = vrot.slane %v2869, 2
        %v3250 = vor.u32 %v3248, %v3249
        %v3251 = vsel %vm1926, %v3247, %v3250
        %v3252 = vrot.slane %v2877, 1
        %v3253 = vrot.slane %v2879, 2
        %v3254 = vor.u32 %v3252, %v3253
        %v3255 = vrot.slane %v2888, 1
        %v3256 = vrot.slane %v2884, 2
        %v3257 = vor.u32 %v3255, %v3256
        %v3258 = vsel %vm1926, %v3254, %v3257
        %v3259 = vrot.slane %v2892, 1
        %v3260 = vrot.slane %v2894, 2
        %v3261 = vor.u32 %v3259, %v3260
        %v3262 = vrot.slane %v2903, 1
        %v3263 = vrot.slane %v2899, 2
        %v3264 = vor.u32 %v3262, %v3263
        %v3265 = vsel %vm1926, %v3261, %v3264
        %v3266 = vrot.slane %v2907, 1
        %v3267 = vrot.slane %v2909, 2
        %v3268 = vor.u32 %v3266, %v3267
        %v3269 = vrot.slane %v2918, 1
        %v3270 = vrot.slane %v2914, 2
        %v3271 = vor.u32 %v3269, %v3270
        %v3272 = vsel %vm1926, %v3268, %v3271
        %v3273 = vrot.slane %v2922, 1
        %v3274 = vrot.slane %v2924, 2
        %v3275 = vor.u32 %v3273, %v3274
        %v3276 = vrot.slane %v2933, 1
        %v3277 = vrot.slane %v2929, 2
        %v3278 = vor.u32 %v3276, %v3277
        %v3279 = vsel %vm1926, %v3275, %v3278
        %v3280 = vrot.slane %v2937, 1
        %v3281 = vrot.slane %v2939, 2
        %v3282 = vor.u32 %v3280, %v3281
        %v3283 = vrot.slane %v2948, 1
        %v3284 = vrot.slane %v2944, 2
        %v3285 = vor.u32 %v3283, %v3284
        %v3286 = vsel %vm1926, %v3282, %v3285
        %v3287 = vrot.slane %v2952, 1
        %v3288 = vrot.slane %v2954, 2
        %v3289 = vor.u32 %v3287, %v3288
        %v3290 = vrot.slane %v2963, 1
        %v3291 = vrot.slane %v2959, 2
        %v3292 = vor.u32 %v3290, %v3291
        %v3293 = vsel %vm1926, %v3289, %v3292
        %v3294 = vrot.slane %v2967, 1
        %v3295 = vrot.slane %v2969, 2
        %v3296 = vor.u32 %v3294, %v3295
        %v3297 = vrot.slane %v2978, 1
        %v3298 = vrot.slane %v2974, 2
        %v3299 = vor.u32 %v3297, %v3298
        %v3300 = vsel %vm1926, %v3296, %v3299
        %v3301 = vrot.slane %v2982, 1
        %v3302 = vrot.slane %v2984, 2
        %v3303 = vor.u32 %v3301, %v3302
        %v3304 = vrot.slane %v2993, 1
        %v3305 = vrot.slane %v2989, 2
        %v3306 = vor.u32 %v3304, %v3305
        %v3307 = vsel %vm1926, %v3303, %v3306
        %v3308 = vrot.slane %v2997, 1
        %v3309 = vrot.slane %v2999, 2
        %v3310 = vor.u32 %v3308, %v3309
        %v3311 = vrot.slane %v3008, 1
        %v3312 = vrot.slane %v3004, 2
        %v3313 = vor.u32 %v3311, %v3312
        %v3314 = vsel %vm1926, %v3310, %v3313
        %v3347 = vmax.bf16 %v3171, %v3209
        %v3348 = vmax.bf16 %v3172, %v3208
        %v3349 = vmax.bf16 %v3173, %v3216
        %v3350 = vmax.bf16 %v3174, %v3215
        %v3351 = vmax.bf16 %v3175, %v3223
        %v3352 = vmax.bf16 %v3176, %v3222
        %v3353 = vmax.bf16 %v3177, %v3230
        %v3354 = vmax.bf16 %v3178, %v3229
        %v3355 = vmax.bf16 %v3179, %v3237
        %v3356 = vmax.bf16 %v3180, %v3236
        %v3357 = vmax.bf16 %v3181, %v3244
        %v3358 = vmax.bf16 %v3182, %v3243
        %v3359 = vmax.bf16 %v3183, %v3251
        %v3360 = vmax.bf16 %v3184, %v3250
        %v3361 = vmax.bf16 %v3185, %v3258
        %v3362 = vmax.bf16 %v3186, %v3257
        %v3363 = vmax.bf16 %v3187, %v3265
        %v3364 = vmax.bf16 %v3188, %v3264
        %v3365 = vmax.bf16 %v3189, %v3272
        %v3366 = vmax.bf16 %v3190, %v3271
        %v3367 = vmax.bf16 %v3191, %v3279
        %v3368 = vmax.bf16 %v3192, %v3278
        %v3369 = vmax.bf16 %v3193, %v3286
        %v3370 = vmax.bf16 %v3194, %v3285
        %v3371 = vmax.bf16 %v3195, %v3293
        %v3372 = vmax.bf16 %v3196, %v3292
        %v3373 = vmax.bf16 %v3197, %v3300
        %v3374 = vmax.bf16 %v3198, %v3299
        %v3375 = vmax.bf16 %v3199, %v3307
        %v3376 = vmax.bf16 %v3200, %v3306
        %v3377 = vmax.bf16 %v3201, %v3314
        %v3378 = vmax.bf16 %v3202, %v3313
        %v3379 = vrot.slane %v2384, 2
        %v3380 = vrot.slane %v2385, 2
        %v3381 = vsel %vm2147, %v3379, %v3380
        %v3382 = vrot.slane %v2386, 2
        %v3383 = vrot.slane %v2387, 2
        %v3384 = vsel %vm2147, %v3382, %v3383
        %v3385 = vrot.slane %v2388, 2
        %v3386 = vrot.slane %v2389, 2
        %v3387 = vsel %vm2147, %v3385, %v3386
        %v3388 = vrot.slane %v2390, 2
        %v3389 = vrot.slane %v2391, 2
        %v3390 = vsel %vm2147, %v3388, %v3389
        %v3391 = vrot.slane %v2408, 2
        %v3392 = vrot.slane %v2409, 2
        %v3393 = vsel %vm2147, %v3391, %v3392
        %v3394 = vrot.slane %v2410, 2
        %v3395 = vrot.slane %v2411, 2
        %v3396 = vsel %vm2147, %v3394, %v3395
        %v3397 = vrot.slane %v2412, 2
        %v3398 = vrot.slane %v2413, 2
        %v3399 = vsel %vm2147, %v3397, %v3398
        %v3400 = vrot.slane %v2414, 2
        %v3401 = vrot.slane %v2415, 2
        %v3402 = vsel %vm2147, %v3400, %v3401
        %v3427 = vmax.bf16 %v3347, %v3381
        %v3428 = vmax.bf16 %v3348, %v3380
        %v3429 = vmax.bf16 %v3349, %v3384
        %v3430 = vmax.bf16 %v3350, %v3383
        %v3431 = vmax.bf16 %v3351, %v3387
        %v3432 = vmax.bf16 %v3352, %v3386
        %v3433 = vmax.bf16 %v3353, %v3390
        %v3434 = vmax.bf16 %v3354, %v3389
        %v3435 = vmax.bf16 %v3355, %v2434
        %v3436 = vmax.bf16 %v3356, %v2433
        %v3437 = vmax.bf16 %v3357, %v2437
        %v3438 = vmax.bf16 %v3358, %v2436
        %v3439 = vmax.bf16 %v3359, %v2440
        %v3440 = vmax.bf16 %v3360, %v2439
        %v3441 = vmax.bf16 %v3361, %v2443
        %v3442 = vmax.bf16 %v3362, %v2442
        %v3443 = vmax.bf16 %v3363, %v2446
        %v3444 = vmax.bf16 %v3364, %v2445
        %v3445 = vmax.bf16 %v3365, %v2449
        %v3446 = vmax.bf16 %v3366, %v2448
        %v3447 = vmax.bf16 %v3367, %v2452
        %v3448 = vmax.bf16 %v3368, %v2451
        %v3449 = vmax.bf16 %v3369, %v2455
        %v3450 = vmax.bf16 %v3370, %v2454
        %v3451 = vmax.bf16 %v3371, %v3393
        %v3452 = vmax.bf16 %v3372, %v3392
        %v3453 = vmax.bf16 %v3373, %v3396
        %v3454 = vmax.bf16 %v3374, %v3395
        %v3455 = vmax.bf16 %v3375, %v3399
        %v3456 = vmax.bf16 %v3376, %v3398
        %v3457 = vmax.bf16 %v3377, %v3402
        %v3458 = vmax.bf16 %v3378, %v3401
        %v3459 = vmax.bf16 %v3427, %v3429
        %v3460 = vmax.bf16 %v3428, %v3430
        %v3461 = vmax.bf16 %v3429, %v3431
        %v3462 = vmax.bf16 %v3430, %v3432
        %v3463 = vmax.bf16 %v3431, %v3433
        %v3464 = vmax.bf16 %v3432, %v3434
        %v3465 = vmax.bf16 %v3433, %v3435
        %v3466 = vmax.bf16 %v3434, %v3436
        %v3467 = vmax.bf16 %v3435, %v3437
        %v3468 = vmax.bf16 %v3436, %v3438
        %v3469 = vmax.bf16 %v3437, %v3439
        %v3470 = vmax.bf16 %v3438, %v3440
        %v3471 = vmax.bf16 %v3439, %v3441
        %v3472 = vmax.bf16 %v3440, %v3442
        %v3473 = vmax.bf16 %v3441, %v3443
        %v3474 = vmax.bf16 %v3442, %v3444
        %v3475 = vmax.bf16 %v3443, %v3445
        %v3476 = vmax.bf16 %v3444, %v3446
        %v3477 = vmax.bf16 %v3445, %v3447
        %v3478 = vmax.bf16 %v3446, %v3448
        %v3479 = vmax.bf16 %v3447, %v3449
        %v3480 = vmax.bf16 %v3448, %v3450
        %v3481 = vmax.bf16 %v3449, %v3451
        %v3482 = vmax.bf16 %v3450, %v3452
        %v3483 = vmax.bf16 %v3459, %v3431
        %v3484 = vmax.bf16 %v3460, %v3432
        %v3485 = vmax.bf16 %v3461, %v3433
        %v3486 = vmax.bf16 %v3462, %v3434
        %v3487 = vmax.bf16 %v3463, %v3435
        %v3488 = vmax.bf16 %v3464, %v3436
        %v3489 = vmax.bf16 %v3465, %v3437
        %v3490 = vmax.bf16 %v3466, %v3438
        %v3491 = vmax.bf16 %v3467, %v3439
        %v3492 = vmax.bf16 %v3468, %v3440
        %v3493 = vmax.bf16 %v3469, %v3441
        %v3494 = vmax.bf16 %v3470, %v3442
        %v3495 = vmax.bf16 %v3471, %v3443
        %v3496 = vmax.bf16 %v3472, %v3444
        %v3497 = vmax.bf16 %v3473, %v3445
        %v3498 = vmax.bf16 %v3474, %v3446
        %v3499 = vmax.bf16 %v3475, %v3447
        %v3500 = vmax.bf16 %v3476, %v3448
        %v3501 = vmax.bf16 %v3477, %v3449
        %v3502 = vmax.bf16 %v3478, %v3450
        %v3503 = vmax.bf16 %v3479, %v3451
        %v3504 = vmax.bf16 %v3480, %v3452
        %v3505 = vmax.bf16 %v3481, %v3453
        %v3506 = vmax.bf16 %v3482, %v3454
        %v3507 = vmax.bf16 %v3483, %v3433
        %v3508 = vmax.bf16 %v3484, %v3434
        %v3509 = vmax.bf16 %v3485, %v3435
        %v3510 = vmax.bf16 %v3486, %v3436
        %v3511 = vmax.bf16 %v3487, %v3437
        %v3512 = vmax.bf16 %v3488, %v3438
        %v3513 = vmax.bf16 %v3489, %v3439
        %v3514 = vmax.bf16 %v3490, %v3440
        %v3515 = vmax.bf16 %v3491, %v3441
        %v3516 = vmax.bf16 %v3492, %v3442
        %v3517 = vmax.bf16 %v3493, %v3443
        %v3518 = vmax.bf16 %v3494, %v3444
        %v3519 = vmax.bf16 %v3495, %v3445
        %v3520 = vmax.bf16 %v3496, %v3446
        %v3521 = vmax.bf16 %v3497, %v3447
        %v3522 = vmax.bf16 %v3498, %v3448
        %v3523 = vmax.bf16 %v3499, %v3449
        %v3524 = vmax.bf16 %v3500, %v3450
        %v3525 = vmax.bf16 %v3501, %v3451
        %v3526 = vmax.bf16 %v3502, %v3452
        %v3527 = vmax.bf16 %v3503, %v3453
        %v3528 = vmax.bf16 %v3504, %v3454
        %v3529 = vmax.bf16 %v3505, %v3455
        %v3530 = vmax.bf16 %v3506, %v3456
        %v3531 = vmax.bf16 %v3507, %v3435
        %v3532 = vmax.bf16 %v3508, %v3436
        %v3533 = vmax.bf16 %v3509, %v3437
        %v3534 = vmax.bf16 %v3510, %v3438
        %v3535 = vmax.bf16 %v3511, %v3439
        %v3536 = vmax.bf16 %v3512, %v3440
        %v3537 = vmax.bf16 %v3513, %v3441
        %v3538 = vmax.bf16 %v3514, %v3442
        %v3539 = vmax.bf16 %v3515, %v3443
        %v3540 = vmax.bf16 %v3516, %v3444
        %v3541 = vmax.bf16 %v3517, %v3445
        %v3542 = vmax.bf16 %v3518, %v3446
        %v3543 = vmax.bf16 %v3519, %v3447
        %v3544 = vmax.bf16 %v3520, %v3448
        %v3545 = vmax.bf16 %v3521, %v3449
        %v3546 = vmax.bf16 %v3522, %v3450
        %v3547 = vmax.bf16 %v3523, %v3451
        %v3548 = vmax.bf16 %v3524, %v3452
        %v3549 = vmax.bf16 %v3525, %v3453
        %v3550 = vmax.bf16 %v3526, %v3454
        %v3551 = vmax.bf16 %v3527, %v3455
        %v3552 = vmax.bf16 %v3528, %v3456
        %v3553 = vmax.bf16 %v3529, %v3457
        %v3554 = vmax.bf16 %v3530, %v3458
        %v3571 = vrot.slane %v3535, 1
        %v3572 = vrot.slane %v3536, 1
        %v3573 = vsel %vm1785, %v3571, %v3572
        %v3574 = vrot.slane %v3537, 1
        %v3575 = vrot.slane %v3538, 1
        %v3576 = vsel %vm1785, %v3574, %v3575
        %v3577 = vrot.slane %v3539, 1
        %v3578 = vrot.slane %v3540, 1
        %v3579 = vsel %vm1785, %v3577, %v3578
        %v3580 = vrot.slane %v3541, 1
        %v3581 = vrot.slane %v3542, 1
        %v3582 = vsel %vm1785, %v3580, %v3581
        %v3583 = vrot.slane %v3543, 1
        %v3584 = vrot.slane %v3544, 1
        %v3585 = vsel %vm1785, %v3583, %v3584
        %v3586 = vrot.slane %v3545, 1
        %v3587 = vrot.slane %v3546, 1
        %v3588 = vsel %vm1785, %v3586, %v3587
        %v3589 = vrot.slane %v3547, 1
        %v3590 = vrot.slane %v3548, 1
        %v3591 = vsel %vm1785, %v3589, %v3590
        %v3592 = vrot.slane %v3549, 1
        %v3593 = vrot.slane %v3550, 1
        %v3594 = vsel %vm1785, %v3592, %v3593
        %s3603 = scalar_lea.vmem [#allocation10], 128
        %v3604 = vld [vmem:[%s3603] sm:$0xf]
        %v3605 = vld [vmem:[%s3603 + $0x4] sm:$0xf]
        %v3606 = vld [vmem:[%s3603 + $0x8] sm:$0xf]
        %v3607 = vld [vmem:[%s3603 + $0xc] sm:$0xf]
        %v3608 = vld [vmem:[%s3603 + $0x10] sm:$0xf]
        %v3609 = vld [vmem:[%s3603 + $0x14] sm:$0xf]
        %v3610 = vld [vmem:[%s3603 + $0x18] sm:$0xf]
        %v3611 = vld [vmem:[%s3603 + $0x1c] sm:$0xf]
        %v3612 = vld [vmem:[%s3603 + $0x20] sm:$0xf]
        %v3613 = vld [vmem:[%s3603 + $0x24] sm:$0xf]
        %v3614 = vld [vmem:[%s3603 + $0x28] sm:$0xf]
        %v3615 = vld [vmem:[%s3603 + $0x2c] sm:$0xf]
        %v3616 = vld [vmem:[%s3603 + $0x30] sm:$0xf]
        %v3617 = vld [vmem:[%s3603 + $0x34] sm:$0xf]
        %v3618 = vld [vmem:[%s3603 + $0x38] sm:$0xf]
        %v3619 = vld [vmem:[%s3603 + $0x3c] sm:$0xf]
        %v3636 = vunpack.c.l.b16 %v3604
        %v3637 = vunpack.c.l.b16 %v3605
        %v3638 = vunpack.c.l.b16 %v3606
        %v3639 = vunpack.c.l.b16 %v3607
        %v3640 = vunpack.c.l.b16 %v3608
        %v3641 = vunpack.c.l.b16 %v3609
        %v3642 = vunpack.c.l.b16 %v3610
        %v3643 = vunpack.c.l.b16 %v3611
        %v3644 = vunpack.c.l.b16 %v3612
        %v3645 = vunpack.c.l.b16 %v3613
        %v3646 = vunpack.c.l.b16 %v3614
        %v3647 = vunpack.c.l.b16 %v3615
        %v3648 = vunpack.c.l.b16 %v3616
        %v3649 = vunpack.c.l.b16 %v3617
        %v3650 = vunpack.c.l.b16 %v3618
        %v3651 = vunpack.c.l.b16 %v3619
        %v3652 = vpack.c.b16 %v3637, %v3636
        %v3653 = vpack.c.b16 %v3639, %v3638
        %v3654 = vpack.c.b16 %v3641, %v3640
        %v3655 = vpack.c.b16 %v3643, %v3642
        %v3656 = vpack.c.b16 %v3645, %v3644
        %v3657 = vpack.c.b16 %v3647, %v3646
        %v3658 = vpack.c.b16 %v3649, %v3648
        %v3659 = vpack.c.b16 %v3651, %v3650
        %3668 = vmatprep.subr.bf16.mxu0 0
        %3669 = vmatpush1.bf16.msra.mxu0 %v3652
        %3670 = vmatprep.subr.bf16.mxu0 0
        %3671 = vmatpush1.bf16.msra.mxu0 %v3653
        %3672 = vmatprep.subr.bf16.mxu0 0
        %3673 = vmatpush1.bf16.msra.mxu0 %v3654
        %3674 = vmatprep.subr.bf16.mxu0 0
        %3675 = vmatpush1.bf16.msra.mxu0 %v3655
        %3676 = vmatprep.subr.bf16.mxu0 0
        %3677 = vmatpush1.bf16.msra.mxu0 %v3656
        %3678 = vmatprep.subr.bf16.mxu0 0
        %3679 = vmatpush1.bf16.msra.mxu0 %v3657
        %3680 = vmatprep.subr.bf16.mxu0 0
        %3681 = vmatpush1.bf16.msra.mxu0 %v3658
        %3682 = vmatprep.subr.bf16.mxu0 0
        %3683 = vmatpush1.bf16.msra.mxu0 %v3659
        %3684 = vmatprep.subr.bf16.mxu0 0
        %3685 = vmatpush1.bf16.msra.mxu0 0
        %3686 = vmatprep.subr.bf16.mxu0 0
        %3687 = vmatpush1.bf16.msra.mxu0 0
        %3688 = vmatprep.subr.bf16.mxu0 0
        %3689 = vmatpush1.bf16.msra.mxu0 0
        %3690 = vmatprep.subr.bf16.mxu0 0
        %3691 = vmatpush1.bf16.msra.mxu0 0
        %3692 = vmatprep.subr.bf16.mxu0 0
        %3693 = vmatpush1.bf16.msra.mxu0 0
        %3694 = vmatprep.subr.bf16.mxu0 0
        %3695 = vmatpush1.bf16.msra.mxu0 0
        %3696 = vmatprep.subr.bf16.mxu0 0
        %3697 = vmatpush1.bf16.msra.mxu0 0
        %3698 = vmatprep.subr.bf16.mxu0 0
        %3699 = vmatpush1.bf16.msra.mxu0 0
        %3700 = vmatprep.mubr.bf16.mxu0 0
        %3701 = vmatmul.mubr.bf16.gmra.mrb[0].mxu0 %v3573
        %v3702 = vpop.f32.mrb[0].mxu0
        %v3703 = vadd.f32 0.0, %v3702
        %v3704 = vpop.f32.mrb[0].mxu0
        %v3705 = vpop.f32.mrb[0].mxu0
        %v3706 = vadd.f32 0.0, %v3705
        %v3707 = vpop.f32.mrb[0].mxu0
        %3708 = vmatprep.mubr.bf16.mxu0 0
        %3709 = vmatmul.mubr.bf16.gmra.mrb[0].mxu0 %v3576
        %v3710 = vpop.f32.mrb[0].mxu0
        %v3711 = vadd.f32 0.0, %v3710
        %v3712 = vpop.f32.mrb[0].mxu0
        %v3713 = vpop.f32.mrb[0].mxu0
        %v3714 = vadd.f32 0.0, %v3713
        %v3715 = vpop.f32.mrb[0].mxu0
        %3716 = vmatprep.mubr.bf16.mxu0 0
        %3717 = vmatmul.mubr.bf16.gmra.mrb[0].mxu0 %v3579
        %v3718 = vpop.f32.mrb[0].mxu0
        %v3719 = vadd.f32 0.0, %v3718
        %v3720 = vpop.f32.mrb[0].mxu0
        %v3721 = vpop.f32.mrb[0].mxu0
        %v3722 = vadd.f32 0.0, %v3721
        %v3723 = vpop.f32.mrb[0].mxu0
        %3724 = vmatprep.mubr.bf16.mxu0 0
        %3725 = vmatmul.mubr.bf16.gmra.mrb[0].mxu0 %v3582
        %v3726 = vpop.f32.mrb[0].mxu0
        %v3727 = vadd.f32 0.0, %v3726
        %v3728 = vpop.f32.mrb[0].mxu0
        %v3729 = vpop.f32.mrb[0].mxu0
        %v3730 = vadd.f32 0.0, %v3729
        %v3731 = vpop.f32.mrb[0].mxu0
        %3732 = vmatprep.mubr.bf16.mxu0 0
        %3733 = vmatmul.mubr.bf16.gmra.mrb[0].mxu0 %v3585
        %v3734 = vpop.f32.mrb[0].mxu0
        %v3735 = vadd.f32 0.0, %v3734
        %v3736 = vpop.f32.mrb[0].mxu0
        %v3737 = vpop.f32.mrb[0].mxu0
        %v3738 = vadd.f32 0.0, %v3737
        %v3739 = vpop.f32.mrb[0].mxu0
        %3740 = vmatprep.mubr.bf16.mxu0 0
        %3741 = vmatmul.mubr.bf16.gmra.mrb[0].mxu0 %v3588
        %v3742 = vpop.f32.mrb[0].mxu0
        %v3743 = vadd.f32 0.0, %v3742
        %v3744 = vpop.f32.mrb[0].mxu0
        %v3745 = vpop.f32.mrb[0].mxu0
        %v3746 = vadd.f32 0.0, %v3745
        %v3747 = vpop.f32.mrb[0].mxu0
        %3748 = vmatprep.mubr.bf16.mxu0 0
        %3749 = vmatmul.mubr.bf16.gmra.mrb[0].mxu0 %v3591
        %v3750 = vpop.f32.mrb[0].mxu0
        %v3751 = vadd.f32 0.0, %v3750
        %v3752 = vpop.f32.mrb[0].mxu0
        %v3753 = vpop.f32.mrb[0].mxu0
        %v3754 = vadd.f32 0.0, %v3753
        %v3755 = vpop.f32.mrb[0].mxu0
        %3756 = vmatprep.mubr.bf16.mxu0 0
        %3757 = vmatmul.mubr.bf16.gmra.mrb[0].mxu0 %v3594
        %v3758 = vpop.f32.mrb[0].mxu0
        %v3759 = vadd.f32 0.0, %v3758
        %v3760 = vpop.f32.mrb[0].mxu0
        %v3761 = vpop.f32.mrb[0].mxu0
        %v3762 = vadd.f32 0.0, %v3761
        %v3763 = vpop.f32.mrb[0].mxu0
        %3764 = vdwg.mxu0
        %v3765 = vadd.f32 %v2709, %v3703
        %v3766 = vadd.f32 %v2712, %v3706
        %v3767 = vadd.f32 %v2717, %v3711
        %v3768 = vadd.f32 %v2720, %v3714
        %v3769 = vadd.f32 %v2725, %v3719
        %v3770 = vadd.f32 %v2728, %v3722
        %v3771 = vadd.f32 %v2733, %v3727
        %v3772 = vadd.f32 %v2736, %v3730
        %v3773 = vadd.f32 %v2741, %v3735
        %v3774 = vadd.f32 %v2744, %v3738
        %v3775 = vadd.f32 %v2749, %v3743
        %v3776 = vadd.f32 %v2752, %v3746
        %v3777 = vadd.f32 %v2757, %v3751
        %v3778 = vadd.f32 %v2760, %v3754
        %v3779 = vadd.f32 %v2765, %v3759
        %v3780 = vadd.f32 %v2768, %v3762
        %v3782 = vshrl.u32 %v3531, 16
        %v3784 = vshll.u32 %v3531, 16
        %v3786 = vrot.slane %v3784, 1
        %v3787 = vor.u32 %v3782, %v3786
        %v3789 = vshll.u32 %v3532, 16
        %v3791 = vrot.slane %v3789, 1
        %v3792 = vsel %vm1404, %v3787, %v3791
        %v3794 = vshrl.u32 %v3533, 16
        %v3796 = vshll.u32 %v3533, 16
        %v3798 = vrot.slane %v3796, 1
        %v3799 = vor.u32 %v3794, %v3798
        %v3801 = vshll.u32 %v3534, 16
        %v3803 = vrot.slane %v3801, 1
        %v3804 = vsel %vm1404, %v3799, %v3803
        %v3806 = vshrl.u32 %v3535, 16
        %v3808 = vshll.u32 %v3535, 16
        %v3810 = vrot.slane %v3808, 1
        %v3811 = vor.u32 %v3806, %v3810
        %v3813 = vshll.u32 %v3536, 16
        %v3815 = vrot.slane %v3813, 1
        %v3816 = vsel %vm1404, %v3811, %v3815
        %v3818 = vshrl.u32 %v3537, 16
        %v3820 = vshll.u32 %v3537, 16
        %v3822 = vrot.slane %v3820, 1
        %v3823 = vor.u32 %v3818, %v3822
        %v3825 = vshll.u32 %v3538, 16
        %v3827 = vrot.slane %v3825, 1
        %v3828 = vsel %vm1404, %v3823, %v3827
        %v3830 = vshrl.u32 %v3539, 16
        %v3832 = vshll.u32 %v3539, 16
        %v3834 = vrot.slane %v3832, 1
        %v3835 = vor.u32 %v3830, %v3834
        %v3837 = vshll.u32 %v3540, 16
        %v3839 = vrot.slane %v3837, 1
        %v3840 = vsel %vm1404, %v3835, %v3839
        %v3842 = vshrl.u32 %v3541, 16
        %v3844 = vshll.u32 %v3541, 16
        %v3846 = vrot.slane %v3844, 1
        %v3847 = vor.u32 %v3842, %v3846
        %v3849 = vshll.u32 %v3542, 16
        %v3851 = vrot.slane %v3849, 1
        %v3852 = vsel %vm1404, %v3847, %v3851
        %v3854 = vshrl.u32 %v3543, 16
        %v3856 = vshll.u32 %v3543, 16
        %v3858 = vrot.slane %v3856, 1
        %v3859 = vor.u32 %v3854, %v3858
        %v3861 = vshll.u32 %v3544, 16
        %v3863 = vrot.slane %v3861, 1
        %v3864 = vsel %vm1404, %v3859, %v3863
        %v3866 = vshrl.u32 %v3545, 16
        %v3868 = vshll.u32 %v3545, 16
        %v3870 = vrot.slane %v3868, 1
        %v3871 = vor.u32 %v3866, %v3870
        %v3873 = vshll.u32 %v3546, 16
        %v3875 = vrot.slane %v3873, 1
        %v3876 = vsel %vm1404, %v3871, %v3875
        %v3878 = vshrl.u32 %v3547, 16
        %v3880 = vshll.u32 %v3547, 16
        %v3882 = vrot.slane %v3880, 1
        %v3883 = vor.u32 %v3878, %v3882
        %v3885 = vshll.u32 %v3548, 16
        %v3887 = vrot.slane %v3885, 1
        %v3888 = vsel %vm1404, %v3883, %v3887
        %v3890 = vshrl.u32 %v3549, 16
        %v3892 = vshll.u32 %v3549, 16
        %v3894 = vrot.slane %v3892, 1
        %v3895 = vor.u32 %v3890, %v3894
        %v3897 = vshll.u32 %v3550, 16
        %v3899 = vrot.slane %v3897, 1
        %v3900 = vsel %vm1404, %v3895, %v3899
        %v3902 = vshrl.u32 %v3551, 16
        %v3904 = vshll.u32 %v3551, 16
        %v3906 = vrot.slane %v3904, 1
        %v3907 = vor.u32 %v3902, %v3906
        %v3909 = vshll.u32 %v3552, 16
        %v3911 = vrot.slane %v3909, 1
        %v3912 = vsel %vm1404, %v3907, %v3911
        %v3914 = vshrl.u32 %v3553, 16
        %v3916 = vshll.u32 %v3553, 16
        %v3918 = vrot.slane %v3916, 1
        %v3919 = vor.u32 %v3914, %v3918
        %v3921 = vshll.u32 %v3554, 16
        %v3923 = vrot.slane %v3921, 1
        %v3924 = vsel %vm1404, %v3919, %v3923
        %v3937 = vmax.bf16 %v3531, %v3792
        %v3938 = vmax.bf16 %v3533, %v3804
        %v3939 = vmax.bf16 %v3535, %v3816
        %v3940 = vmax.bf16 %v3537, %v3828
        %v3941 = vmax.bf16 %v3539, %v3840
        %v3942 = vmax.bf16 %v3541, %v3852
        %v3943 = vmax.bf16 %v3543, %v3864
        %v3944 = vmax.bf16 %v3545, %v3876
        %v3945 = vmax.bf16 %v3547, %v3888
        %v3946 = vmax.bf16 %v3549, %v3900
        %v3947 = vmax.bf16 %v3551, %v3912
        %v3948 = vmax.bf16 %v3553, %v3924
        %v3957 = vrot.slane %v3531, 1
        %v3958 = vrot.slane %v3532, 1
        %v3959 = vsel %vm1785, %v3957, %v3958
        %v3960 = vrot.slane %v3533, 1
        %v3961 = vrot.slane %v3534, 1
        %v3962 = vsel %vm1785, %v3960, %v3961
        %v3963 = vrot.slane %v3551, 1
        %v3964 = vrot.slane %v3552, 1
        %v3965 = vsel %vm1785, %v3963, %v3964
        %v3966 = vrot.slane %v3553, 1
        %v3967 = vrot.slane %v3554, 1
        %v3968 = vsel %vm1785, %v3966, %v3967
        %v3973 = vmax.bf16 %v3937, %v3959
        %v3974 = vmax.bf16 %v3938, %v3962
        %v3975 = vmax.bf16 %v3939, %v3573
        %v3976 = vmax.bf16 %v3940, %v3576
        %v3977 = vmax.bf16 %v3941, %v3579
        %v3978 = vmax.bf16 %v3942, %v3582
        %v3979 = vmax.bf16 %v3943, %v3585
        %v3980 = vmax.bf16 %v3944, %v3588
        %v3981 = vmax.bf16 %v3945, %v3591
        %v3982 = vmax.bf16 %v3946, %v3594
        %v3983 = vmax.bf16 %v3947, %v3965
        %v3984 = vmax.bf16 %v3948, %v3968
        %v3985 = vrot.slane %v3782, 1
        %v3986 = vrot.slane %v3784, 2
        %v3987 = vor.u32 %v3985, %v3986
        %v3988 = vshrl.u32 %v3532, 16
        %v3990 = vrot.slane %v3988, 1
        %v3991 = vrot.slane %v3789, 2
        %v3992 = vor.u32 %v3990, %v3991
        %v3993 = vsel %vm1926, %v3987, %v3992
        %v3994 = vrot.slane %v3794, 1
        %v3995 = vrot.slane %v3796, 2
        %v3996 = vor.u32 %v3994, %v3995
        %v3997 = vshrl.u32 %v3534, 16
        %v3999 = vrot.slane %v3997, 1
        %v4000 = vrot.slane %v3801, 2
        %v4001 = vor.u32 %v3999, %v4000
        %v4002 = vsel %vm1926, %v3996, %v4001
        %v4003 = vrot.slane %v3806, 1
        %v4004 = vrot.slane %v3808, 2
        %v4005 = vor.u32 %v4003, %v4004
        %v4006 = vshrl.u32 %v3536, 16
        %v4008 = vrot.slane %v4006, 1
        %v4009 = vrot.slane %v3813, 2
        %v4010 = vor.u32 %v4008, %v4009
        %v4011 = vsel %vm1926, %v4005, %v4010
        %v4012 = vrot.slane %v3818, 1
        %v4013 = vrot.slane %v3820, 2
        %v4014 = vor.u32 %v4012, %v4013
        %v4015 = vshrl.u32 %v3538, 16
        %v4017 = vrot.slane %v4015, 1
        %v4018 = vrot.slane %v3825, 2
        %v4019 = vor.u32 %v4017, %v4018
        %v4020 = vsel %vm1926, %v4014, %v4019
        %v4021 = vrot.slane %v3830, 1
        %v4022 = vrot.slane %v3832, 2
        %v4023 = vor.u32 %v4021, %v4022
        %v4024 = vshrl.u32 %v3540, 16
        %v4026 = vrot.slane %v4024, 1
        %v4027 = vrot.slane %v3837, 2
        %v4028 = vor.u32 %v4026, %v4027
        %v4029 = vsel %vm1926, %v4023, %v4028
        %v4030 = vrot.slane %v3842, 1
        %v4031 = vrot.slane %v3844, 2
        %v4032 = vor.u32 %v4030, %v4031
        %v4033 = vshrl.u32 %v3542, 16
        %v4035 = vrot.slane %v4033, 1
        %v4036 = vrot.slane %v3849, 2
        %v4037 = vor.u32 %v4035, %v4036
        %v4038 = vsel %vm1926, %v4032, %v4037
        %v4039 = vrot.slane %v3854, 1
        %v4040 = vrot.slane %v3856, 2
        %v4041 = vor.u32 %v4039, %v4040
        %v4042 = vshrl.u32 %v3544, 16
        %v4044 = vrot.slane %v4042, 1
        %v4045 = vrot.slane %v3861, 2
        %v4046 = vor.u32 %v4044, %v4045
        %v4047 = vsel %vm1926, %v4041, %v4046
        %v4048 = vrot.slane %v3866, 1
        %v4049 = vrot.slane %v3868, 2
        %v4050 = vor.u32 %v4048, %v4049
        %v4051 = vshrl.u32 %v3546, 16
        %v4053 = vrot.slane %v4051, 1
        %v4054 = vrot.slane %v3873, 2
        %v4055 = vor.u32 %v4053, %v4054
        %v4056 = vsel %vm1926, %v4050, %v4055
        %v4057 = vrot.slane %v3878, 1
        %v4058 = vrot.slane %v3880, 2
        %v4059 = vor.u32 %v4057, %v4058
        %v4060 = vshrl.u32 %v3548, 16
        %v4062 = vrot.slane %v4060, 1
        %v4063 = vrot.slane %v3885, 2
        %v4064 = vor.u32 %v4062, %v4063
        %v4065 = vsel %vm1926, %v4059, %v4064
        %v4066 = vrot.slane %v3890, 1
        %v4067 = vrot.slane %v3892, 2
        %v4068 = vor.u32 %v4066, %v4067
        %v4069 = vshrl.u32 %v3550, 16
        %v4071 = vrot.slane %v4069, 1
        %v4072 = vrot.slane %v3897, 2
        %v4073 = vor.u32 %v4071, %v4072
        %v4074 = vsel %vm1926, %v4068, %v4073
        %v4075 = vrot.slane %v3902, 1
        %v4076 = vrot.slane %v3904, 2
        %v4077 = vor.u32 %v4075, %v4076
        %v4078 = vshrl.u32 %v3552, 16
        %v4080 = vrot.slane %v4078, 1
        %v4081 = vrot.slane %v3909, 2
        %v4082 = vor.u32 %v4080, %v4081
        %v4083 = vsel %vm1926, %v4077, %v4082
        %v4084 = vrot.slane %v3914, 1
        %v4085 = vrot.slane %v3916, 2
        %v4086 = vor.u32 %v4084, %v4085
        %v4087 = vshrl.u32 %v3554, 16
        %v4089 = vrot.slane %v4087, 1
        %v4090 = vrot.slane %v3921, 2
        %v4091 = vor.u32 %v4089, %v4090
        %v4092 = vsel %vm1926, %v4086, %v4091
        %v4105 = vmax.bf16 %v3973, %v3993
        %v4106 = vmax.bf16 %v3974, %v4002
        %v4107 = vmax.bf16 %v3975, %v4011
        %v4108 = vmax.bf16 %v3976, %v4020
        %v4109 = vmax.bf16 %v3977, %v4029
        %v4110 = vmax.bf16 %v3978, %v4038
        %v4111 = vmax.bf16 %v3979, %v4047
        %v4112 = vmax.bf16 %v3980, %v4056
        %v4113 = vmax.bf16 %v3981, %v4065
        %v4114 = vmax.bf16 %v3982, %v4074
        %v4115 = vmax.bf16 %v3983, %v4083
        %v4116 = vmax.bf16 %v3984, %v4092
        %v4117 = vrot.slane %v3531, 2
        %v4118 = vrot.slane %v3532, 2
        %v4119 = vsel %vm2147, %v4117, %v4118
        %v4120 = vrot.slane %v3533, 2
        %v4121 = vrot.slane %v3534, 2
        %v4122 = vsel %vm2147, %v4120, %v4121
        %v4123 = vrot.slane %v3535, 2
        %v4124 = vrot.slane %v3536, 2
        %v4125 = vsel %vm2147, %v4123, %v4124
        %v4126 = vrot.slane %v3537, 2
        %v4127 = vrot.slane %v3538, 2
        %v4128 = vsel %vm2147, %v4126, %v4127
        %v4129 = vrot.slane %v3539, 2
        %v4130 = vrot.slane %v3540, 2
        %v4131 = vsel %vm2147, %v4129, %v4130
        %v4132 = vrot.slane %v3541, 2
        %v4133 = vrot.slane %v3542, 2
        %v4134 = vsel %vm2147, %v4132, %v4133
        %v4135 = vrot.slane %v3543, 2
        %v4136 = vrot.slane %v3544, 2
        %v4137 = vsel %vm2147, %v4135, %v4136
        %v4138 = vrot.slane %v3545, 2
        %v4139 = vrot.slane %v3546, 2
        %v4140 = vsel %vm2147, %v4138, %v4139
        %v4141 = vrot.slane %v3547, 2
        %v4142 = vrot.slane %v3548, 2
        %v4143 = vsel %vm2147, %v4141, %v4142
        %v4144 = vrot.slane %v3549, 2
        %v4145 = vrot.slane %v3550, 2
        %v4146 = vsel %vm2147, %v4144, %v4145
        %v4147 = vrot.slane %v3551, 2
        %v4148 = vrot.slane %v3552, 2
        %v4149 = vsel %vm2147, %v4147, %v4148
        %v4150 = vrot.slane %v3553, 2
        %v4151 = vrot.slane %v3554, 2
        %v4152 = vsel %vm2147, %v4150, %v4151
        %v4165 = vmax.bf16 %v4105, %v4119
        %v4166 = vmax.bf16 %v4106, %v4122
        %v4167 = vmax.bf16 %v4107, %v4125
        %v4168 = vmax.bf16 %v4108, %v4128
        %v4169 = vmax.bf16 %v4109, %v4131
        %v4170 = vmax.bf16 %v4110, %v4134
        %v4171 = vmax.bf16 %v4111, %v4137
        %v4172 = vmax.bf16 %v4112, %v4140
        %v4173 = vmax.bf16 %v4113, %v4143
        %v4174 = vmax.bf16 %v4114, %v4146
        %v4175 = vmax.bf16 %v4115, %v4149
        %v4176 = vmax.bf16 %v4116, %v4152
        %v4177 = vmax.bf16 %v4165, %v4166
        %v4178 = vmax.bf16 %v4166, %v4167
        %v4179 = vmax.bf16 %v4167, %v4168
        %v4180 = vmax.bf16 %v4168, %v4169
        %v4181 = vmax.bf16 %v4169, %v4170
        %v4182 = vmax.bf16 %v4170, %v4171
        %v4183 = vmax.bf16 %v4171, %v4172
        %v4184 = vmax.bf16 %v4172, %v4173
        %v4185 = vmax.bf16 %v4177, %v4167
        %v4186 = vmax.bf16 %v4178, %v4168
        %v4187 = vmax.bf16 %v4179, %v4169
        %v4188 = vmax.bf16 %v4180, %v4170
        %v4189 = vmax.bf16 %v4181, %v4171
        %v4190 = vmax.bf16 %v4182, %v4172
        %v4191 = vmax.bf16 %v4183, %v4173
        %v4192 = vmax.bf16 %v4184, %v4174
        %v4193 = vmax.bf16 %v4185, %v4168
        %v4194 = vmax.bf16 %v4186, %v4169
        %v4195 = vmax.bf16 %v4187, %v4170
        %v4196 = vmax.bf16 %v4188, %v4171
        %v4197 = vmax.bf16 %v4189, %v4172
        %v4198 = vmax.bf16 %v4190, %v4173
        %v4199 = vmax.bf16 %v4191, %v4174
        %v4200 = vmax.bf16 %v4192, %v4175
        %v4201 = vmax.bf16 %v4193, %v4169
        %v4202 = vmax.bf16 %v4194, %v4170
        %v4203 = vmax.bf16 %v4195, %v4171
        %v4204 = vmax.bf16 %v4196, %v4172
        %v4205 = vmax.bf16 %v4197, %v4173
        %v4206 = vmax.bf16 %v4198, %v4174
        %v4207 = vmax.bf16 %v4199, %v4175
        %v4208 = vmax.bf16 %v4200, %v4176
        %s4209 = scalar_lea.vmem [#allocation10], 192
        %v4210 = vld [vmem:[%s4209] sm:$0xf]
        %v4211 = vld [vmem:[%s4209 + $0x4] sm:$0xf]
        %v4212 = vld [vmem:[%s4209 + $0x8] sm:$0xf]
        %v4213 = vld [vmem:[%s4209 + $0xc] sm:$0xf]
        %v4214 = vld [vmem:[%s4209 + $0x10] sm:$0xf]
        %v4215 = vld [vmem:[%s4209 + $0x14] sm:$0xf]
        %v4216 = vld [vmem:[%s4209 + $0x18] sm:$0xf]
        %v4217 = vld [vmem:[%s4209 + $0x1c] sm:$0xf]
        %v4218 = vld [vmem:[%s4209 + $0x20] sm:$0xf]
        %v4219 = vld [vmem:[%s4209 + $0x24] sm:$0xf]
        %v4220 = vld [vmem:[%s4209 + $0x28] sm:$0xf]
        %v4221 = vld [vmem:[%s4209 + $0x2c] sm:$0xf]
        %v4222 = vld [vmem:[%s4209 + $0x30] sm:$0xf]
        %v4223 = vld [vmem:[%s4209 + $0x34] sm:$0xf]
        %v4224 = vld [vmem:[%s4209 + $0x38] sm:$0xf]
        %v4225 = vld [vmem:[%s4209 + $0x3c] sm:$0xf]
        %v4242 = vunpack.c.l.b16 %v4210
        %v4243 = vunpack.c.l.b16 %v4211
        %v4244 = vunpack.c.l.b16 %v4212
        %v4245 = vunpack.c.l.b16 %v4213
        %v4246 = vunpack.c.l.b16 %v4214
        %v4247 = vunpack.c.l.b16 %v4215
        %v4248 = vunpack.c.l.b16 %v4216
        %v4249 = vunpack.c.l.b16 %v4217
        %v4250 = vunpack.c.l.b16 %v4218
        %v4251 = vunpack.c.l.b16 %v4219
        %v4252 = vunpack.c.l.b16 %v4220
        %v4253 = vunpack.c.l.b16 %v4221
        %v4254 = vunpack.c.l.b16 %v4222
        %v4255 = vunpack.c.l.b16 %v4223
        %v4256 = vunpack.c.l.b16 %v4224
        %v4257 = vunpack.c.l.b16 %v4225
        %v4258 = vpack.c.b16 %v4243, %v4242
        %v4259 = vpack.c.b16 %v4245, %v4244
        %v4260 = vpack.c.b16 %v4247, %v4246
        %v4261 = vpack.c.b16 %v4249, %v4248
        %v4262 = vpack.c.b16 %v4251, %v4250
        %v4263 = vpack.c.b16 %v4253, %v4252
        %v4264 = vpack.c.b16 %v4255, %v4254
        %v4265 = vpack.c.b16 %v4257, %v4256
        %4274 = vmatprep.subr.bf16.mxu0 0
        %4275 = vmatpush1.bf16.msra.mxu0 %v4258
        %4276 = vmatprep.subr.bf16.mxu0 0
        %4277 = vmatpush1.bf16.msra.mxu0 %v4259
        %4278 = vmatprep.subr.bf16.mxu0 0
        %4279 = vmatpush1.bf16.msra.mxu0 %v4260
        %4280 = vmatprep.subr.bf16.mxu0 0
        %4281 = vmatpush1.bf16.msra.mxu0 %v4261
        %4282 = vmatprep.subr.bf16.mxu0 0
        %4283 = vmatpush1.bf16.msra.mxu0 %v4262
        %4284 = vmatprep.subr.bf16.mxu0 0
        %4285 = vmatpush1.bf16.msra.mxu0 %v4263
        %4286 = vmatprep.subr.bf16.mxu0 0
        %4287 = vmatpush1.bf16.msra.mxu0 %v4264
        %4288 = vmatprep.subr.bf16.mxu0 0
        %4289 = vmatpush1.bf16.msra.mxu0 %v4265
        %4290 = vmatprep.subr.bf16.mxu0 0
        %4291 = vmatpush1.bf16.msra.mxu0 0
        %4292 = vmatprep.subr.bf16.mxu0 0
        %4293 = vmatpush1.bf16.msra.mxu0 0
        %4294 = vmatprep.subr.bf16.mxu0 0
        %4295 = vmatpush1.bf16.msra.mxu0 0
        %4296 = vmatprep.subr.bf16.mxu0 0
        %4297 = vmatpush1.bf16.msra.mxu0 0
        %4298 = vmatprep.subr.bf16.mxu0 0
        %4299 = vmatpush1.bf16.msra.mxu0 0
        %4300 = vmatprep.subr.bf16.mxu0 0
        %4301 = vmatpush1.bf16.msra.mxu0 0
        %4302 = vmatprep.subr.bf16.mxu0 0
        %4303 = vmatpush1.bf16.msra.mxu0 0
        %4304 = vmatprep.subr.bf16.mxu0 0
        %4305 = vmatpush1.bf16.msra.mxu0 0
        %4306 = vmatprep.mubr.bf16.mxu0 0
        %4307 = vmatmul.mubr.bf16.gmra.mrb[0].mxu0 %v4201
        %v4308 = vpop.f32.mrb[0].mxu0
        %v4309 = vadd.f32 0.0, %v4308
        %v4310 = vpop.f32.mrb[0].mxu0
        %v4311 = vpop.f32.mrb[0].mxu0
        %v4312 = vadd.f32 0.0, %v4311
        %v4313 = vpop.f32.mrb[0].mxu0
        %4314 = vmatprep.mubr.bf16.mxu0 0
        %4315 = vmatmul.mubr.bf16.gmra.mrb[0].mxu0 %v4202
        %v4316 = vpop.f32.mrb[0].mxu0
        %v4317 = vadd.f32 0.0, %v4316
        %v4318 = vpop.f32.mrb[0].mxu0
        %v4319 = vpop.f32.mrb[0].mxu0
        %v4320 = vadd.f32 0.0, %v4319
        %v4321 = vpop.f32.mrb[0].mxu0
        %4322 = vmatprep.mubr.bf16.mxu0 0
        %4323 = vmatmul.mubr.bf16.gmra.mrb[0].mxu0 %v4203
        %v4324 = vpop.f32.mrb[0].mxu0
        %v4325 = vadd.f32 0.0, %v4324
        %v4326 = vpop.f32.mrb[0].mxu0
        %v4327 = vpop.f32.mrb[0].mxu0
        %v4328 = vadd.f32 0.0, %v4327
        %v4329 = vpop.f32.mrb[0].mxu0
        %4330 = vmatprep.mubr.bf16.mxu0 0
        %4331 = vmatmul.mubr.bf16.gmra.mrb[0].mxu0 %v4204
        %v4332 = vpop.f32.mrb[0].mxu0
        %v4333 = vadd.f32 0.0, %v4332
        %v4334 = vpop.f32.mrb[0].mxu0
        %v4335 = vpop.f32.mrb[0].mxu0
        %v4336 = vadd.f32 0.0, %v4335
        %v4337 = vpop.f32.mrb[0].mxu0
        %4338 = vmatprep.mubr.bf16.mxu0 0
        %4339 = vmatmul.mubr.bf16.gmra.mrb[0].mxu0 %v4205
        %v4340 = vpop.f32.mrb[0].mxu0
        %v4341 = vadd.f32 0.0, %v4340
        %v4342 = vpop.f32.mrb[0].mxu0
        %v4343 = vpop.f32.mrb[0].mxu0
        %v4344 = vadd.f32 0.0, %v4343
        %v4345 = vpop.f32.mrb[0].mxu0
        %4346 = vmatprep.mubr.bf16.mxu0 0
        %4347 = vmatmul.mubr.bf16.gmra.mrb[0].mxu0 %v4206
        %v4348 = vpop.f32.mrb[0].mxu0
        %v4349 = vadd.f32 0.0, %v4348
        %v4350 = vpop.f32.mrb[0].mxu0
        %v4351 = vpop.f32.mrb[0].mxu0
        %v4352 = vadd.f32 0.0, %v4351
        %v4353 = vpop.f32.mrb[0].mxu0
        %4354 = vmatprep.mubr.bf16.mxu0 0
        %4355 = vmatmul.mubr.bf16.gmra.mrb[0].mxu0 %v4207
        %v4356 = vpop.f32.mrb[0].mxu0
        %v4357 = vadd.f32 0.0, %v4356
        %v4358 = vpop.f32.mrb[0].mxu0
        %v4359 = vpop.f32.mrb[0].mxu0
        %v4360 = vadd.f32 0.0, %v4359
        %v4361 = vpop.f32.mrb[0].mxu0
        %4362 = vmatprep.mubr.bf16.mxu0 0
        %4363 = vmatmul.mubr.bf16.gmra.mrb[0].mxu0 %v4208
        %v4364 = vpop.f32.mrb[0].mxu0
        %v4365 = vadd.f32 0.0, %v4364
        %v4366 = vpop.f32.mrb[0].mxu0
        %v4367 = vpop.f32.mrb[0].mxu0
        %v4368 = vadd.f32 0.0, %v4367
        %v4369 = vpop.f32.mrb[0].mxu0
        %4370 = vdwg.mxu0
        %v4371 = vadd.f32 %v3765, %v4309
        %v4372 = vadd.f32 %v3766, %v4312
        %v4373 = vadd.f32 %v3767, %v4317
        %v4374 = vadd.f32 %v3768, %v4320
        %v4375 = vadd.f32 %v3769, %v4325
        %v4376 = vadd.f32 %v3770, %v4328
        %v4377 = vadd.f32 %v3771, %v4333
        %v4378 = vadd.f32 %v3772, %v4336
        %v4379 = vadd.f32 %v3773, %v4341
        %v4380 = vadd.f32 %v3774, %v4344
        %v4381 = vadd.f32 %v3775, %v4349
        %v4382 = vadd.f32 %v3776, %v4352
        %v4383 = vadd.f32 %v3777, %v4357
        %v4384 = vadd.f32 %v3778, %v4360
        %v4385 = vadd.f32 %v3779, %v4365
        %v4386 = vadd.f32 %v3780, %v4368
        %v4387 = vld [vmem:[%s6] sm:$0x1]
        %v4389 = vlaneseq
        %v4390 = vshrl.u32 %v4389, 7
        %v4391 = vsub.s32 0, %v4390
        %v4392 = vrot.slane %v4387, %v4391
        %v4394 = vadd.f32 %v4371, %v4392
        %v4395 = vadd.f32 %v4372, %v4392
        %v4396 = vadd.f32 %v4373, %v4392
        %v4397 = vadd.f32 %v4374, %v4392
        %v4398 = vadd.f32 %v4375, %v4392
        %v4399 = vadd.f32 %v4376, %v4392
        %v4400 = vadd.f32 %v4377, %v4392
        %v4401 = vadd.f32 %v4378, %v4392
        %v4402 = vadd.f32 %v4379, %v4392
        %v4403 = vadd.f32 %v4380, %v4392
        %v4404 = vadd.f32 %v4381, %v4392
        %v4405 = vadd.f32 %v4382, %v4392
        %v4406 = vadd.f32 %v4383, %v4392
        %v4407 = vadd.f32 %v4384, %v4392
        %v4408 = vadd.f32 %v4385, %v4392
        %v4409 = vadd.f32 %v4386, %v4392
        %v4410 = vsub.f32 0.0, %v4394
        %v4411 = vsub.f32 0.0, %v4395
        %v4412 = vsub.f32 0.0, %v4396
        %v4413 = vsub.f32 0.0, %v4397
        %v4414 = vsub.f32 0.0, %v4398
        %v4415 = vsub.f32 0.0, %v4399
        %v4416 = vsub.f32 0.0, %v4400
        %v4417 = vsub.f32 0.0, %v4401
        %v4418 = vsub.f32 0.0, %v4402
        %v4419 = vsub.f32 0.0, %v4403
        %v4420 = vsub.f32 0.0, %v4404
        %v4421 = vsub.f32 0.0, %v4405
        %v4422 = vsub.f32 0.0, %v4406
        %v4423 = vsub.f32 0.0, %v4407
        %v4424 = vsub.f32 0.0, %v4408
        %v4425 = vsub.f32 0.0, %v4409
        %v4426 = vmul.f32 %v4410, 1.442695
        %v4427 = vpow.pop %v4426
        %v4428 = vmul.f32 %v4411, 1.442695
        %v4429 = vpow.pop %v4428
        %v4430 = vmul.f32 %v4412, 1.442695
        %v4431 = vpow.pop %v4430
        %v4432 = vmul.f32 %v4413, 1.442695
        %v4433 = vpow.pop %v4432
        %v4434 = vmul.f32 %v4414, 1.442695
        %v4435 = vpow.pop %v4434
        %v4436 = vmul.f32 %v4415, 1.442695
        %v4437 = vpow.pop %v4436
        %v4438 = vmul.f32 %v4416, 1.442695
        %v4439 = vpow.pop %v4438
        %v4440 = vmul.f32 %v4417, 1.442695
        %v4441 = vpow.pop %v4440
        %v4442 = vmul.f32 %v4418, 1.442695
        %v4443 = vpow.pop %v4442
        %v4444 = vmul.f32 %v4419, 1.442695
        %v4445 = vpow.pop %v4444
        %v4446 = vmul.f32 %v4420, 1.442695
        %v4447 = vpow.pop %v4446
        %v4448 = vmul.f32 %v4421, 1.442695
        %v4449 = vpow.pop %v4448
        %v4450 = vmul.f32 %v4422, 1.442695
        %v4451 = vpow.pop %v4450
        %v4452 = vmul.f32 %v4423, 1.442695
        %v4453 = vpow.pop %v4452
        %v4454 = vmul.f32 %v4424, 1.442695
        %v4455 = vpow.pop %v4454
        %v4456 = vmul.f32 %v4425, 1.442695
        %v4457 = vpow.pop %v4456
        %v4458 = vadd.f32 %v4427, 1.0
        %v4459 = vadd.f32 %v4429, 1.0
        %v4460 = vadd.f32 %v4431, 1.0
        %v4461 = vadd.f32 %v4433, 1.0
        %v4462 = vadd.f32 %v4435, 1.0
        %v4463 = vadd.f32 %v4437, 1.0
        %v4464 = vadd.f32 %v4439, 1.0
        %v4465 = vadd.f32 %v4441, 1.0
        %v4466 = vadd.f32 %v4443, 1.0
        %v4467 = vadd.f32 %v4445, 1.0
        %v4468 = vadd.f32 %v4447, 1.0
        %v4469 = vadd.f32 %v4449, 1.0
        %v4470 = vadd.f32 %v4451, 1.0
        %v4471 = vadd.f32 %v4453, 1.0
        %v4472 = vadd.f32 %v4455, 1.0
        %v4473 = vadd.f32 %v4457, 1.0
        %v4474 = vrcp.pop %v4458
        %v4475 = vrcp.pop %v4459
        %v4476 = vrcp.pop %v4460
        %v4477 = vrcp.pop %v4461
        %v4478 = vrcp.pop %v4462
        %v4479 = vrcp.pop %v4463
        %v4480 = vrcp.pop %v4464
        %v4481 = vrcp.pop %v4465
        %v4482 = vrcp.pop %v4466
        %v4483 = vrcp.pop %v4467
        %v4484 = vrcp.pop %v4468
        %v4485 = vrcp.pop %v4469
        %v4486 = vrcp.pop %v4470
        %v4487 = vrcp.pop %v4471
        %v4488 = vrcp.pop %v4472
        %v4489 = vrcp.pop %v4473
        %v4490 = vmul.f32 %v4394, %v4474
        %v4491 = vmul.f32 %v4395, %v4475
        %v4492 = vmul.f32 %v4396, %v4476
        %v4493 = vmul.f32 %v4397, %v4477
        %v4494 = vmul.f32 %v4398, %v4478
        %v4495 = vmul.f32 %v4399, %v4479
        %v4496 = vmul.f32 %v4400, %v4480
        %v4497 = vmul.f32 %v4401, %v4481
        %v4498 = vmul.f32 %v4402, %v4482
        %v4499 = vmul.f32 %v4403, %v4483
        %v4500 = vmul.f32 %v4404, %v4484
        %v4501 = vmul.f32 %v4405, %v4485
        %v4502 = vmul.f32 %v4406, %v4486
        %v4503 = vmul.f32 %v4407, %v4487
        %v4504 = vmul.f32 %v4408, %v4488
        %v4505 = vmul.f32 %v4409, %v4489
        %v4506 = vpack.c.bf16 %v4491, %v4490
        %v4507 = vpack.c.bf16 %v4493, %v4492
        %v4508 = vpack.c.bf16 %v4495, %v4494
        %v4509 = vpack.c.bf16 %v4497, %v4496
        %v4510 = vpack.c.bf16 %v4499, %v4498
        %v4511 = vpack.c.bf16 %v4501, %v4500
        %v4512 = vpack.c.bf16 %v4503, %v4502
        %v4513 = vpack.c.bf16 %v4505, %v4504
        %v4522 = vunpack.c.l.b16 %v4506
        %v4523 = vunpack.c.h.b16 %v4506
        %v4524 = vunpack.c.l.b16 %v4507
        %v4525 = vunpack.c.h.b16 %v4507
        %v4526 = vunpack.c.l.b16 %v4508
        %v4527 = vunpack.c.h.b16 %v4508
        %v4528 = vunpack.c.l.b16 %v4509
        %v4529 = vunpack.c.h.b16 %v4509
        %v4530 = vunpack.c.l.b16 %v4510
        %v4531 = vunpack.c.h.b16 %v4510
        %v4532 = vunpack.c.l.b16 %v4511
        %v4533 = vunpack.c.h.b16 %v4511
        %v4534 = vunpack.c.l.b16 %v4512
        %v4535 = vunpack.c.h.b16 %v4512
        %v4536 = vunpack.c.l.b16 %v4513
        %v4537 = vunpack.c.h.b16 %v4513
        %v4538 = vpack.c.b16 %v4522, %v4522
        %v4539 = vpack.c.b16 %v4523, %v4523
        %v4540 = vpack.c.b16 %v4524, %v4524
        %v4541 = vpack.c.b16 %v4525, %v4525
        %v4542 = vpack.c.b16 %v4526, %v4526
        %v4543 = vpack.c.b16 %v4527, %v4527
        %v4544 = vpack.c.b16 %v4528, %v4528
        %v4545 = vpack.c.b16 %v4529, %v4529
        %v4546 = vpack.c.b16 %v4530, %v4530
        %v4547 = vpack.c.b16 %v4531, %v4531
        %v4548 = vpack.c.b16 %v4532, %v4532
        %v4549 = vpack.c.b16 %v4533, %v4533
        %v4550 = vpack.c.b16 %v4534, %v4534
        %v4551 = vpack.c.b16 %v4535, %v4535
        %v4552 = vpack.c.b16 %v4536, %v4536
        %v4553 = vpack.c.b16 %v4537, %v4537
        %4570 = vst [vmem:[%s449] sm:$0xf] %v4538
        %4571 = vst [vmem:[%s449 + $0x4] sm:$0xf] %v4539
        %4572 = vst [vmem:[%s449 + $0x8] sm:$0xf] %v4540
        %4573 = vst [vmem:[%s449 + $0xc] sm:$0xf] %v4541
        %4574 = vst [vmem:[%s449 + $0x10] sm:$0xf] %v4542
        %4575 = vst [vmem:[%s449 + $0x14] sm:$0xf] %v4543
        %4576 = vst [vmem:[%s449 + $0x18] sm:$0xf] %v4544
        %4577 = vst [vmem:[%s449 + $0x1c] sm:$0xf] %v4545
        %4578 = vst [vmem:[%s449 + $0x20] sm:$0xf] %v4546
        %4579 = vst [vmem:[%s449 + $0x24] sm:$0xf] %v4547
        %4580 = vst [vmem:[%s449 + $0x28] sm:$0xf] %v4548
        %4581 = vst [vmem:[%s449 + $0x2c] sm:$0xf] %v4549
        %4582 = vst [vmem:[%s449 + $0x30] sm:$0xf] %v4550
        %4583 = vst [vmem:[%s449 + $0x34] sm:$0xf] %v4551
        %4584 = vst [vmem:[%s449 + $0x38] sm:$0xf] %v4552
        %4585 = vst [vmem:[%s449 + $0x3c] sm:$0xf] %v4553
        %s4586 = sand.u32 %s230, 1
        %s4587 = scalar_lea.sflag [#allocation4], %s4586
        %s4588 = sand.u32 %s230, 1
        %s4589 = smul.addr %s4588, 64
        %s4590 = scalar_lea.vmem [#allocation11], %s4589
        // Predicated region
        $region69: #{tpu_custom_call.1} parent=47 // pred_check
          %p4591 = pneg %p240
        $region70: #{tpu_custom_call.1} parent=47 // pred_check_branch
          %4593 = sbr.rel (%p4591) target = $region72
        $region71: #{tpu_custom_call.1} parent=47 // pred_region
          %s4594 = smul.u32 8, %s33
          %s4596 = ssub.s32 1024, 1024
          %4597 = vsyncadd %s4587, %s4596
          %s4598 = smul.addr %s4594, 2
          %s4599 = smul.addr %s32, 32
          %s4600 = sadd.s32 %s4598, %s4599
          %s4601 = smul.addr %s4600, 64
          %s4602 = scalar_lea.hbm %s7, %s4601
          %s4603 = sshll.u32 %s4590, 4
          %s4604 = int_to_ptr.vmem [resolvable:$true] %s4603
          %4609 = dma.vmem_to_hbm [thread:$0]  %s4604, 1024, %s4602, %s4587, 64, 64, 4
        $region72: #{tpu_custom_call.1} parent=47 // pred_fallthru
          _
      $region48: #{tpu_custom_call.1} parent=5 // pred_fallthru
        _
      %p4610 = scmp.le.s32.totalorder 2, %s23
      // Predicated region
      $region73: #{tpu_custom_call.1} parent=5 // pred_check
        %p4611 = pneg %p4610
      $region74: #{tpu_custom_call.1} parent=5 // pred_check_branch
        %4613 = sbr.rel (%p4611) target = $region76
      $region75: #{tpu_custom_call.1} parent=5 // pred_region
        %s4614 = ssub.s32 %s23, 2
        // Predicated region
        $region77: #{tpu_custom_call.1} parent=75 // pred_check
          %p4615 = pneg %p246
        $region78: #{tpu_custom_call.1} parent=75 // pred_check_branch
          %4617 = sbr.rel (%p4615) target = $region80
        $region79: #{tpu_custom_call.1} parent=75 // pred_region
          %s4618 = sand.u32 %s231, 1
          %s4619 = scalar_lea.sflag [#allocation4], %s4618
          %s4620 = sand.u32 %s231, 1
          %s4621 = smul.addr %s4620, 64
          %s4622 = scalar_lea.vmem [#allocation11], %s4621
          %4623 = dma.done %s4619, 1024
        $region80: #{tpu_custom_call.1} parent=75 // pred_fallthru
          _
      $region76: #{tpu_custom_call.1} parent=5 // pred_fallthru
        _
    $region6: #{tpu_custom_call.1} parent=1 // loop_footer
      %s27 = sadd.s32 1, %s23
    $region7: #{tpu_custom_call.1} parent=1 // loop_footer_branch
      %22 = sbr.rel target = $region3
    $region8: #{tpu_custom_call.1} parent=1 // loop_exit
      _
    %4624 = vsyncpa [#allocation3], 1
    %s4625 = scalar_lea.sflag [#allocation3], 1
    %4626 = vsyncpa %s4625, 1
    %4627 = vsyncpa [#allocation6], 1
    %s4628 = scalar_lea.sflag [#allocation6], 1
    %4629 = vsyncpa %s4628, 1
    %4630 = vsyncpa [#allocation9], 1
    %4631 = vsyncpa [#allocation4], 1
    %s4632 = scalar_lea.sflag [#allocation4], 1
    %4633 = vsyncpa %s4632, 1

</llo_original>
